<compile_context>
chip_gen: v5e
topology: v5e:2x2
jax: 0.10.0
libtpu: 0.0.40
codegen_flags: <defaults>
</compile_context>

<pallas_src>
import math
import functools

import jax
import jax.numpy as jnp
from jax import lax
from jax.experimental import pallas as pl
from jax.experimental.pallas import tpu as pltpu

# ------------- small deterministic synthetic configuration -------------------
B = 2         # batch
T = 16        # sequence length
C = 64        # encoder_embed_dim
FFN = 128     # encoder_ffn_embed_dim (2048 in the module; small here)
HEADS = 4     # encoder_attention_heads
DK = C // HEADS
LAYERS = 2    # encoder_layers (24 in the module; small here)
KSIZE = 7     # depthwise_conv_kernel_size (31 in the module; small & odd here)
PAD = (KSIZE - 1) // 2
EPS_LN = 1e-5
EPS_BN = 1e-5
EMBED_SCALE = math.sqrt(C)          # self.embed_scale = sqrt(encoder_embed_dim)

# MXU operand dtype (accumulation is always f32). bf16 halves weight traffic
# and roughly doubles MXU throughput on v5e/v6e/v7x; use jnp.float32 for exact.
MXU_DTYPE = jnp.bfloat16


# ------------------------------ tiny helpers ---------------------------------

def _mm(a, b):
    """MXU matmul with bf16 operands and f32 accumulation."""
    return jnp.dot(a.astype(MXU_DTYPE), b.astype(MXU_DTYPE),
                   preferred_element_type=jnp.float32)


def _ln(x, g, b):
    mu = jnp.mean(x, axis=-1, keepdims=True)
    var = jnp.mean(jnp.square(x - mu), axis=-1, keepdims=True)
    return (x - mu) * lax.rsqrt(var + EPS_LN) * g + b


def _swish(x):
    return x * jax.nn.sigmoid(x)


def _const_spec(shape):
    """Whole-array block, same block for every layer step (fetched once)."""
    zeros = (0,) * len(shape)
    return pl.BlockSpec(shape, lambda i, z=zeros: z)


def _layer_spec(tail):
    """Per-layer block of a (LAYERS, *tail) stacked parameter."""
    zeros = (0,) * len(tail)
    return pl.BlockSpec((None,) + tuple(tail), lambda i, z=zeros: (i,) + z)


# fixed positional order of the stacked per-layer parameters
_LAYER_KEYS = (
    "ffn1_ln_g", "ffn1_ln_b", "ffn1_w1", "ffn1_b1", "ffn1_w2", "ffn1_b2",
    "attn_ln_g", "attn_ln_b", "qkv_w", "qkv_b", "pos_w",
    "pos_bias_u", "pos_bias_v", "out_w", "out_b",
    "conv_ln_g", "conv_ln_b", "pw1_wa", "pw1_wb", "dw_w",
    "bn_scale", "bn_shift", "pw2_w",
    "ffn2_ln_g", "ffn2_ln_b", "ffn2_w1", "ffn2_b1", "ffn2_w2", "ffn2_b2",
    "final_ln_g", "final_ln_b",
)


# ===================== fused per-layer building blocks =======================
# (pure functions on VMEM values, traced inside the single kernel body)

def _ffn_half(x, g, b, w1, b1, w2, b2):
    """x + 0.5 * FFN(LN(x)); FFN = Linear -> Swish -> Linear."""
    h = _ln(x, g, b)
    h = _mm(h, w1) + b1
    h = _swish(h)
    return x + 0.5 * (_mm(h, w2) + b2)


def _rel_attention(x, mask, pe, g, b, qkv_w, qkv_b, pos_w,
                   bias_u, bias_v, out_w, out_b):
    """Relative-position MHSA on the batch-folded (B*T, C) activation."""
    h = _ln(x, g, b)
    qkv = _mm(h, qkv_w) + qkv_b                       # (BT, 3C) fused projection
    p = _mm(pe, pos_w)                                # (2T-1, C); once per layer
    q = qkv[:, :C]
    k = qkv[:, C:2 * C]
    v = qkv[:, 2 * C:]
    q_u = q + bias_u                                  # pos_bias_u (head-major)
    q_v = q + bias_v                                  # pos_bias_v
    scale = 1.0 / math.sqrt(DK)
    masked = mask > 0.5                               # (B, 1, T); True = padded key

    out = jnp.zeros((B * T, C), jnp.float32)
    dims = (((1,), (1,)), ((), ()))                   # contract last dims (q p^T)
    for hh in range(HEADS):
        sl = slice(hh * DK, (hh + 1) * DK)
        qu_h = q_u[:, sl].reshape(B, T, DK)
        k_h = k[:, sl].reshape(B, T, DK)
        v_h = v[:, sl].reshape(B, T, DK)
        # content scores (B, T, T) for the whole batch in one einsum
        ac = jnp.einsum('bqd,bkd->bqk',
                        qu_h.astype(MXU_DTYPE), k_h.astype(MXU_DTYPE),
                        preferred_element_type=jnp.float32)
        # positional scores (BT, 2T-1) then O(T^2) rel_shift in VMEM
        bdf = lax.dot_general(q_v[:, sl].astype(MXU_DTYPE),
                              p[:, sl].astype(MXU_DTYPE), dims,
                              preferred_element_type=jnp.float32)
        bdf = bdf.reshape(B, T, 2 * T - 1)
        # bd[b, q, j] = bdf[b, q, (T-1) - q + j]   (per-row static window slice)
        bd = jnp.concatenate(
            [bdf[:, qq:qq + 1, T - 1 - qq: 2 * T - 1 - qq] for qq in range(T)],
            axis=1)                                   # (B, T, T)

        s = (ac + bd) * scale
        s = jnp.where(masked, -1e30, s)               # key-padding mask
        m = jnp.max(s, axis=-1, keepdims=True)
        e = jnp.exp(s - m)
        attn = e * pl.reciprocal(jnp.sum(e, axis=-1, keepdims=True), approx=True)
        attn = jnp.where(masked, 0.0, attn)           # ESPNet: zero padded keys
        ctx = jnp.einsum('bqk,bkd->bqd',
                         attn.astype(MXU_DTYPE), v_h.astype(MXU_DTYPE),
                         preferred_element_type=jnp.float32)      # (B, T, DK)
        # fold the head directly into the output projection (no lane concat)
        out = out + _mm(ctx.reshape(B * T, DK), out_w[sl, :])
    return x + out + out_b                            # residual


def _conv_module(x, g, b, wa, wb, dw, bns, bnb, w2):
    """LN -> pointwise1+GLU -> depthwise conv -> BN(eval) -> Swish -> pointwise2."""
    h = _ln(x, g, b)
    a = _mm(h, wa)
    gate = _mm(h, wb)
    u = a * jax.nn.sigmoid(gate)                      # GLU (lane-aligned halves)

    # depthwise conv over time on the batch-folded rows; shifted taps built
    # with pltpu.roll (XLU), batch boundaries enforced by an in-batch position
    # mask (also kills the rotation wrap-around).
    tpos = lax.broadcasted_iota(jnp.int32, (B, T, 1), 1).reshape(B * T, 1)
    acc = jnp.zeros((B * T, C), jnp.float32)
    for kk in range(KSIZE):
        d = kk - PAD                                  # tap offset in time
        src = u if d == 0 else pltpu.roll(u, shift=(-d) % (B * T), axis=0)
        if d != 0:
            valid = jnp.logical_and(tpos + d >= 0, tpos + d <= T - 1)
            src = jnp.where(valid, src, 0.0)
        acc = acc + src * dw[kk:kk + 1, :]
    # depthwise/pointwise convs are bias-free (fairseq ConvolutionModule default)
    y = acc * bns + bnb                               # BatchNorm1d (eval) affine
    y = _swish(y)
    return x + _mm(y, w2)                             # residual


# ============================ the fused kernel ===============================

def _encoder_kernel(emit_states,
                    x_ref, extra_ref, mask_ref, pe_ref, lin_w_ref, lin_b_ref,
                    f1_g, f1_b, f1_w1, f1_b1, f1_w2, f1_b2,
                    a_g, a_b, qkv_w, qkv_b, pos_w, bias_u, bias_v, out_w, out_b,
                    c_g, c_b, c_wa, c_wb, c_dw, c_bns, c_bnb, c_w2,
                    f2_g, f2_b, f2_w1, f2_b1, f2_w2, f2_b2,
                    fin_g, fin_b,
                    *outs):
    if emit_states:
        o_ref, states_ref, x_scr = outs
    else:
        o_ref, x_scr = outs
        states_ref = None

    layer = pl.program_id(0)

    # frontend (before layer 0): x = Linear(embed_scale*x) + condition + step
    @pl.when(layer == 0)
    def _():
        x0 = x_ref[...].reshape(B * T, C)
        extra = extra_ref[...].reshape(B * T, C)
        x_scr[...] = (_mm(x0 * EMBED_SCALE, lin_w_ref[...])
                      + lin_b_ref[...] + extra)

    x = x_scr[...]                                    # (B*T, C) resident in VMEM
    mask = mask_ref[...]                              # (B, 1, T)
    pe = pe_ref[...]                                  # (2T-1, C)

    # ---- one Conformer layer (weights of layer `layer` streamed by BlockSpec)
    x = _ffn_half(x, f1_g[...], f1_b[...], f1_w1[...], f1_b1[...],
                  f1_w2[...], f1_b2[...])
    x = _rel_attention(x, mask, pe, a_g[...], a_b[...], qkv_w[...], qkv_b[...],
                       pos_w[...], bias_u[...], bias_v[...],
                       out_w[...], out_b[...])
    x = _conv_module(x, c_g[...], c_b[...], c_wa[...], c_wb[...], c_dw[...],
                     c_bns[...], c_bnb[...], c_w2[...])
    x = _ffn_half(x, f2_g[...], f2_b[...], f2_w1[...], f2_b1[...],
                  f2_w2[...], f2_b2[...])
    x = _ln(x, fin_g[...], fin_b[...])

    x_scr[...] = x

    if emit_states:
        states_ref[...] = x.reshape(B, T, C)

    # final output written once, lane-dense (T, B*C) = (16, 128)
    @pl.when(layer == LAYERS - 1)
    def _():
        for bb in range(B):
            o_ref[:, bb * C:(bb + 1) * C] = x[bb * T:(bb + 1) * T, :]


# =============================== plain-JAX glue ==============================

def lengths_to_padding_mask(lens, max_len):
    ar = jnp.arange(max_len, dtype=lens.dtype)[None, :]
    return ar >= lens[:, None]                        # (B, T) bool, True = pad


def rel_positional_encoding(t, d_model):
    """fairseq RelPositionalEncoding.extend_pe / forward -> (2T-1, C)."""
    position = jnp.arange(t, dtype=jnp.float32)[:, None]
    div_term = jnp.exp(jnp.arange(0, d_model, 2, dtype=jnp.float32)
                       * -(math.log(10000.0) / d_model))
    pe_pos = jnp.zeros((t, d_model), jnp.float32)
    pe_pos = pe_pos.at[:, 0::2].set(jnp.sin(position * div_term))
    pe_pos = pe_pos.at[:, 1::2].set(jnp.cos(position * div_term))
    pe_neg = jnp.zeros((t, d_model), jnp.float32)
    pe_neg = pe_neg.at[:, 0::2].set(jnp.sin(-1.0 * position * div_term))
    pe_neg = pe_neg.at[:, 1::2].set(jnp.cos(-1.0 * position * div_term))
    pe_pos = jnp.flip(pe_pos, axis=0)
    pe_neg = pe_neg[1:]
    return jnp.concatenate([pe_pos, pe_neg], axis=0)  # (2T-1, C)


def s2t_conformer_encoder(params, speech_latent, condition, diffusion_step,
                          input_lengths, return_all_hiddens=False,
                          has_padding=None):
    pad_mask = lengths_to_padding_mask(input_lengths, T)          # (B, T) bool
    mask_b1t = pad_mask.astype(jnp.float32).reshape(B, 1, T)
    pos_emb = rel_positional_encoding(T, C)                       # (2T-1, C)
    extra = condition + diffusion_step                            # broadcast add

    # TODO(synk): diffusion_step usage inside ConformerEncoderLayer is not given
    # in the reference; layers follow the standard fairseq rel_pos
    # ConformerEncoderLayer and diffusion_step is unused inside them.
    layer_params = [params["layers"][k] for k in _LAYER_KEYS]
    inputs = [speech_latent, extra, mask_b1t, pos_emb,
              params["lin_w"], params["lin_b"]] + layer_params
    in_specs = ([_const_spec((B, T, C)), _const_spec((B, T, C)),
                 _const_spec((B, 1, T)), _const_spec((2 * T - 1, C)),
                 _const_spec((C, C)), _const_spec((1, C))]
                + [_layer_spec(p.shape[1:]) for p in layer_params])

    if return_all_hiddens:
        out_shape = (jax.ShapeDtypeStruct((T, B * C), jnp.float32),
                     jax.ShapeDtypeStruct((LAYERS, B, T, C), jnp.float32))
        out_specs = (_const_spec((T, B * C)),
                     pl.BlockSpec((None, B, T, C), lambda i: (i, 0, 0, 0)))
    else:
        out_shape = jax.ShapeDtypeStruct((T, B * C), jnp.float32)
        out_specs = _const_spec((T, B * C))

    outs = pl.pallas_call(
        functools.partial(_encoder_kernel, return_all_hiddens),
        grid=(LAYERS,),
        in_specs=in_specs,
        out_specs=out_specs,
        out_shape=out_shape,
        scratch_shapes=[pltpu.VMEM((B * T, C), jnp.float32)],     # resident x
        compiler_params=pltpu.CompilerParams(
            dimension_semantics=("arbitrary",)),                  # layers are sequential
    )(*inputs)

    if return_all_hiddens:
        enc_flat, states = outs
        encoder_states = [states[l] for l in range(LAYERS)]
    else:
        enc_flat = outs
        encoder_states = []

    enc_tbc = enc_flat.reshape(T, B, C)               # free metadata reshape

    if has_padding is None:
        # tiny host read of the (B, T) input mask only (never blocks on kernel
        # results); pass `has_padding` as a static bool when calling under jit.
        has_padding = bool(jax.device_get(jnp.any(pad_mask)))

    mask_tb = pad_mask.T                              # (T, B)
    return {
        "encoder_out": [enc_tbc],                     # x.transpose(0, 1)
        "encoder_padding_mask": [mask_tb] if has_padding else [],
        "encoder_embedding": [],
        "encoder_states": encoder_states,
        "src_tokens": [],
        "src_lengths": [],
    }


# ======================= deterministic parameter init ========================

def init_params(key):
    keys = iter(jax.random.split(key, 256))

    def w(shape, scale=0.02):
        return (scale * jax.random.normal(next(keys), shape)).astype(jnp.float32)

    ones = lambda s: jnp.ones(s, jnp.float32)
    zeros = lambda s: jnp.zeros(s, jnp.float32)
    L = LAYERS

    # BatchNorm1d eval affine: running_mean=0, running_var=1, gamma=1, beta=0
    bn_scale = jnp.full((L, 1, C), 1.0 / math.sqrt(1.0 + EPS_BN), jnp.float32)

    layers = {
        "ffn1_ln_g": ones((L, 1, C)),   "ffn1_ln_b": zeros((L, 1, C)),
        "ffn1_w1": w((L, C, FFN)),      "ffn1_b1": zeros((L, 1, FFN)),
        "ffn1_w2": w((L, FFN, C)),      "ffn1_b2": zeros((L, 1, C)),
        "attn_ln_g": ones((L, 1, C)),   "attn_ln_b": zeros((L, 1, C)),
        "qkv_w": w((L, C, 3 * C)),      "qkv_b": zeros((L, 1, 3 * C)),
        "pos_w": w((L, C, C)),                        # linear_pos (bias=False)
        "pos_bias_u": w((L, 1, C)),     "pos_bias_v": w((L, 1, C)),
        "out_w": w((L, C, C)),          "out_b": zeros((L, 1, C)),
        "conv_ln_g": ones((L, 1, C)),   "conv_ln_b": zeros((L, 1, C)),
        "pw1_wa": w((L, C, C)),         "pw1_wb": w((L, C, C)),
        "dw_w": w((L, KSIZE, C)),                     # depthwise conv (K, C)
        "bn_scale": bn_scale,           "bn_shift": zeros((L, 1, C)),
        "pw2_w": w((L, C, C)),
        "ffn2_ln_g": ones((L, 1, C)),   "ffn2_ln_b": zeros((L, 1, C)),
        "ffn2_w1": w((L, C, FFN)),      "ffn2_b1": zeros((L, 1, FFN)),
        "ffn2_w2": w((L, FFN, C)),      "ffn2_b2": zeros((L, 1, C)),
        "final_ln_g": ones((L, 1, C)),  "final_ln_b": zeros((L, 1, C)),
    }
    return {"lin_w": w((C, C)), "lin_b": zeros((1, C)), "layers": layers}


# =================================== main ====================================

if __name__ == "__main__":
    key = jax.random.PRNGKey(0)
    k1, k2, k3, kp = jax.random.split(key, 4)
    speech_latent = jax.random.normal(k1, (B, T, C), jnp.float32)
    condition = jax.random.normal(k2, (B, T, C), jnp.float32)
    diffusion_step = jax.random.normal(k3, (B, 1, C), jnp.float32)
    input_lengths = jnp.array([T, T - 4], dtype=jnp.int32)

    params = init_params(kp)
    out = s2t_conformer_encoder(params, speech_latent, condition,
                                diffusion_step, input_lengths)
    enc = jax.block_until_ready(out["encoder_out"][0])
    assert enc.shape == (T, B, C), enc.shape
    assert bool(jnp.all(jnp.isfinite(enc)))
    assert len(out["encoder_padding_mask"]) == 1
    print("KERNEL_OK")
</pallas_src>

<mosaic_0001>
module attributes {stable_mosaic.version = 11 : i64} {
  func.func @_encoder_kernel(%arg0: i32, %arg1: memref<2x16x64xf32, #tpu.memory_space<vmem>>, %arg2: memref<2x16x64xf32, #tpu.memory_space<vmem>>, %arg3: memref<2x1x16xf32, #tpu.memory_space<vmem>>, %arg4: memref<31x64xf32, #tpu.memory_space<vmem>>, %arg5: memref<64x64xf32, #tpu.memory_space<vmem>>, %arg6: memref<1x64xf32, #tpu.memory_space<vmem>>, %arg7: memref<1x1x64xf32, #tpu.memory_space<vmem>>, %arg8: memref<1x1x64xf32, #tpu.memory_space<vmem>>, %arg9: memref<1x64x128xf32, #tpu.memory_space<vmem>>, %arg10: memref<1x1x128xf32, #tpu.memory_space<vmem>>, %arg11: memref<1x128x64xf32, #tpu.memory_space<vmem>>, %arg12: memref<1x1x64xf32, #tpu.memory_space<vmem>>, %arg13: memref<1x1x64xf32, #tpu.memory_space<vmem>>, %arg14: memref<1x1x64xf32, #tpu.memory_space<vmem>>, %arg15: memref<1x64x192xf32, #tpu.memory_space<vmem>>, %arg16: memref<1x1x192xf32, #tpu.memory_space<vmem>>, %arg17: memref<1x64x64xf32, #tpu.memory_space<vmem>>, %arg18: memref<1x1x64xf32, #tpu.memory_space<vmem>>, %arg19: memref<1x1x64xf32, #tpu.memory_space<vmem>>, %arg20: memref<1x64x64xf32, #tpu.memory_space<vmem>>, %arg21: memref<1x1x64xf32, #tpu.memory_space<vmem>>, %arg22: memref<1x1x64xf32, #tpu.memory_space<vmem>>, %arg23: memref<1x1x64xf32, #tpu.memory_space<vmem>>, %arg24: memref<1x64x64xf32, #tpu.memory_space<vmem>>, %arg25: memref<1x64x64xf32, #tpu.memory_space<vmem>>, %arg26: memref<1x7x64xf32, #tpu.memory_space<vmem>>, %arg27: memref<1x1x64xf32, #tpu.memory_space<vmem>>, %arg28: memref<1x1x64xf32, #tpu.memory_space<vmem>>, %arg29: memref<1x64x64xf32, #tpu.memory_space<vmem>>, %arg30: memref<1x1x64xf32, #tpu.memory_space<vmem>>, %arg31: memref<1x1x64xf32, #tpu.memory_space<vmem>>, %arg32: memref<1x64x128xf32, #tpu.memory_space<vmem>>, %arg33: memref<1x1x128xf32, #tpu.memory_space<vmem>>, %arg34: memref<1x128x64xf32, #tpu.memory_space<vmem>>, %arg35: memref<1x1x64xf32, #tpu.memory_space<vmem>>, %arg36: memref<1x1x64xf32, #tpu.memory_space<vmem>>, %arg37: memref<1x1x64xf32, #tpu.memory_space<vmem>>, %arg38: memref<16x128xf32, #tpu.memory_space<vmem>>, %arg39: memref<32x64xf32, #tpu.memory_space<vmem>>) attributes {dimension_semantics = [#tpu.dimension_semantics<arbitrary>], iteration_bounds = array<i64: 2>, scalar_prefetch = 0 : i64, scratch_operands = 1 : i64, tpu.core_type = #tpu.core_type<tc>, window_params = [{pipeline_mode = #tpu.pipeline_mode<synchronous>, transform_indices = @transform_0, window_bounds = array<i64: 2, 16, 64>}, {pipeline_mode = #tpu.pipeline_mode<synchronous>, transform_indices = @transform_1, window_bounds = array<i64: 2, 16, 64>}, {pipeline_mode = #tpu.pipeline_mode<synchronous>, transform_indices = @transform_2, window_bounds = array<i64: 2, 1, 16>}, {pipeline_mode = #tpu.pipeline_mode<synchronous>, transform_indices = @transform_3, window_bounds = array<i64: 31, 64>}, {pipeline_mode = #tpu.pipeline_mode<synchronous>, transform_indices = @transform_4, window_bounds = array<i64: 64, 64>}, {pipeline_mode = #tpu.pipeline_mode<synchronous>, transform_indices = @transform_5, window_bounds = array<i64: 1, 64>}, {transform_indices = @transform_6, window_bounds = array<i64: 1, 1, 64>}, {transform_indices = @transform_7, window_bounds = array<i64: 1, 1, 64>}, {transform_indices = @transform_8, window_bounds = array<i64: 1, 64, 128>}, {transform_indices = @transform_9, window_bounds = array<i64: 1, 1, 128>}, {transform_indices = @transform_10, window_bounds = array<i64: 1, 128, 64>}, {transform_indices = @transform_11, window_bounds = array<i64: 1, 1, 64>}, {transform_indices = @transform_12, window_bounds = array<i64: 1, 1, 64>}, {transform_indices = @transform_13, window_bounds = array<i64: 1, 1, 64>}, {transform_indices = @transform_14, window_bounds = array<i64: 1, 64, 192>}, {transform_indices = @transform_15, window_bounds = array<i64: 1, 1, 192>}, {transform_indices = @transform_16, window_bounds = array<i64: 1, 64, 64>}, {transform_indices = @transform_17, window_bounds = array<i64: 1, 1, 64>}, {transform_indices = @transform_18, window_bounds = array<i64: 1, 1, 64>}, {transform_indices = @transform_19, window_bounds = array<i64: 1, 64, 64>}, {transform_indices = @transform_20, window_bounds = array<i64: 1, 1, 64>}, {transform_indices = @transform_21, window_bounds = array<i64: 1, 1, 64>}, {transform_indices = @transform_22, window_bounds = array<i64: 1, 1, 64>}, {transform_indices = @transform_23, window_bounds = array<i64: 1, 64, 64>}, {transform_indices = @transform_24, window_bounds = array<i64: 1, 64, 64>}, {transform_indices = @transform_25, window_bounds = array<i64: 1, 7, 64>}, {transform_indices = @transform_26, window_bounds = array<i64: 1, 1, 64>}, {transform_indices = @transform_27, window_bounds = array<i64: 1, 1, 64>}, {transform_indices = @transform_28, window_bounds = array<i64: 1, 64, 64>}, {transform_indices = @transform_29, window_bounds = array<i64: 1, 1, 64>}, {transform_indices = @transform_30, window_bounds = array<i64: 1, 1, 64>}, {transform_indices = @transform_31, window_bounds = array<i64: 1, 64, 128>}, {transform_indices = @transform_32, window_bounds = array<i64: 1, 1, 128>}, {transform_indices = @transform_33, window_bounds = array<i64: 1, 128, 64>}, {transform_indices = @transform_34, window_bounds = array<i64: 1, 1, 64>}, {transform_indices = @transform_35, window_bounds = array<i64: 1, 1, 64>}, {transform_indices = @transform_36, window_bounds = array<i64: 1, 1, 64>}, {pipeline_mode = #tpu.pipeline_mode<synchronous>, transform_indices = @transform_37, window_bounds = array<i64: 16, 128>}]} {
    %c0_i32 = arith.constant 0 : i32
    %0 = arith.cmpi eq, %arg0, %c0_i32 : i32
    %1 = arith.extui %0 : i1 to i32
    %c0_i32_0 = arith.constant 0 : i32
    %2 = arith.cmpi ne, %1, %c0_i32_0 : i32
    scf.if %2 {
      %c0_208 = arith.constant 0 : index
      %c0_209 = arith.constant 0 : index
      %c0_210 = arith.constant 0 : index
      %630 = vector.load %arg1[%c0_208, %c0_209, %c0_210] : memref<2x16x64xf32, #tpu.memory_space<vmem>>, vector<2x16x64xf32>
      %631 = vector.shape_cast %630 : vector<2x16x64xf32> to vector<32x64xf32>
      %c0_211 = arith.constant 0 : index
      %c0_212 = arith.constant 0 : index
      %c0_213 = arith.constant 0 : index
      %632 = vector.load %arg2[%c0_211, %c0_212, %c0_213] : memref<2x16x64xf32, #tpu.memory_space<vmem>>, vector<2x16x64xf32>
      %633 = vector.shape_cast %632 : vector<2x16x64xf32> to vector<32x64xf32>
      %cst_214 = arith.constant 8.000000e+00 : f32
      %634 = vector.broadcast %cst_214 : f32 to vector<32x64xf32>
      %635 = arith.mulf %631, %634 : vector<32x64xf32>
      %c0_215 = arith.constant 0 : index
      %c0_216 = arith.constant 0 : index
      %636 = vector.load %arg5[%c0_215, %c0_216] : memref<64x64xf32, #tpu.memory_space<vmem>>, vector<64x64xf32>
      %637 = arith.truncf %635 : vector<32x64xf32> to vector<32x64xbf16>
      %638 = arith.truncf %636 : vector<64x64xf32> to vector<64x64xbf16>
      %cst_217 = arith.constant dense<0.000000e+00> : vector<32x64xf32>
      %639 = tpu.matmul %637, %638, %cst_217 {dimension_numbers = #tpu.dot_dimension_numbers<[1], [0], [0], [1], [0, 0, 1, 1], [], []>} : vector<32x64xbf16>, vector<64x64xbf16>, vector<32x64xf32> -> vector<32x64xf32>
      %c0_218 = arith.constant 0 : index
      %c0_219 = arith.constant 0 : index
      %640 = vector.load %arg6[%c0_218, %c0_219] : memref<1x64xf32, #tpu.memory_space<vmem>>, vector<1x64xf32>
      %641 = vector.broadcast %640 : vector<1x64xf32> to vector<32x64xf32>
      %642 = arith.addf %639, %641 : vector<32x64xf32>
      %643 = arith.addf %642, %633 : vector<32x64xf32>
      %c0_220 = arith.constant 0 : index
      %c0_221 = arith.constant 0 : index
      %644 = vector.load %arg39[%c0_220, %c0_221] : memref<32x64xf32, #tpu.memory_space<vmem>>, vector<32x64xf32>
      tpu.vector_store %arg39[%c0_220, %c0_221], %643 {strides = array<i32>} : memref<32x64xf32, #tpu.memory_space<vmem>>, vector<32x64xf32>,
    } else {
    }
    %c0 = arith.constant 0 : index
    %c0_1 = arith.constant 0 : index
    %3 = vector.load %arg39[%c0, %c0_1] : memref<32x64xf32, #tpu.memory_space<vmem>>, vector<32x64xf32>
    %c0_2 = arith.constant 0 : index
    %c0_3 = arith.constant 0 : index
    %c0_4 = arith.constant 0 : index
    %4 = vector.load %arg3[%c0_2, %c0_3, %c0_4] : memref<2x1x16xf32, #tpu.memory_space<vmem>>, vector<2x1x16xf32>
    %c0_5 = arith.constant 0 : index
    %c0_6 = arith.constant 0 : index
    %5 = vector.load %arg4[%c0_5, %c0_6] : memref<31x64xf32, #tpu.memory_space<vmem>>, vector<31x64xf32>
    %c0_7 = arith.constant 0 : index
    %c0_8 = arith.constant 0 : index
    %c0_9 = arith.constant 0 : index
    %6 = vector.load %arg7[%c0_7, %c0_8, %c0_9] : memref<1x1x64xf32, #tpu.memory_space<vmem>>, vector<1x1x64xf32>
    %7 = vector.shape_cast %6 : vector<1x1x64xf32> to vector<1x64xf32>
    %c0_10 = arith.constant 0 : index
    %c0_11 = arith.constant 0 : index
    %c0_12 = arith.constant 0 : index
    %8 = vector.load %arg8[%c0_10, %c0_11, %c0_12] : memref<1x1x64xf32, #tpu.memory_space<vmem>>, vector<1x1x64xf32>
    %9 = vector.shape_cast %8 : vector<1x1x64xf32> to vector<1x64xf32>
    %c0_13 = arith.constant 0 : index
    %c0_14 = arith.constant 0 : index
    %c0_15 = arith.constant 0 : index
    %10 = vector.load %arg9[%c0_13, %c0_14, %c0_15] : memref<1x64x128xf32, #tpu.memory_space<vmem>>, vector<1x64x128xf32>
    %11 = vector.shape_cast %10 : vector<1x64x128xf32> to vector<64x128xf32>
    %c0_16 = arith.constant 0 : index
    %c0_17 = arith.constant 0 : index
    %c0_18 = arith.constant 0 : index
    %12 = vector.load %arg10[%c0_16, %c0_17, %c0_18] : memref<1x1x128xf32, #tpu.memory_space<vmem>>, vector<1x1x128xf32>
    %13 = vector.shape_cast %12 : vector<1x1x128xf32> to vector<1x128xf32>
    %c0_19 = arith.constant 0 : index
    %c0_20 = arith.constant 0 : index
    %c0_21 = arith.constant 0 : index
    %14 = vector.load %arg11[%c0_19, %c0_20, %c0_21] : memref<1x128x64xf32, #tpu.memory_space<vmem>>, vector<1x128x64xf32>
    %15 = vector.shape_cast %14 : vector<1x128x64xf32> to vector<128x64xf32>
    %c0_22 = arith.constant 0 : index
    %c0_23 = arith.constant 0 : index
    %c0_24 = arith.constant 0 : index
    %16 = vector.load %arg12[%c0_22, %c0_23, %c0_24] : memref<1x1x64xf32, #tpu.memory_space<vmem>>, vector<1x1x64xf32>
    %17 = vector.shape_cast %16 : vector<1x1x64xf32> to vector<1x64xf32>
    %cst = arith.constant dense<0.000000e+00> : vector<32xf32>
    %18 = vector.multi_reduction <add>, %3, %cst [1] : vector<32x64xf32> to vector<32xf32>
    %19 = vector.shape_cast %18 : vector<32xf32> to vector<32x1xf32>
    %cst_25 = arith.constant 6.400000e+01 : f32
    %20 = vector.broadcast %cst_25 : f32 to vector<32x1xf32>
    %21 = arith.divf %19, %20 : vector<32x1xf32>
    %22 = vector.broadcast %21 : vector<32x1xf32> to vector<32x64xf32>
    %23 = arith.subf %3, %22 : vector<32x64xf32>
    %24 = arith.mulf %23, %23 : vector<32x64xf32>
    %cst_26 = arith.constant dense<0.000000e+00> : vector<32xf32>
    %25 = vector.multi_reduction <add>, %24, %cst_26 [1] : vector<32x64xf32> to vector<32xf32>
    %26 = vector.shape_cast %25 : vector<32xf32> to vector<32x1xf32>
    %cst_27 = arith.constant 6.400000e+01 : f32
    %27 = vector.broadcast %cst_27 : f32 to vector<32x1xf32>
    %28 = arith.divf %26, %27 : vector<32x1xf32>
    %29 = vector.broadcast %21 : vector<32x1xf32> to vector<32x64xf32>
    %30 = arith.subf %3, %29 : vector<32x64xf32>
    %cst_28 = arith.constant 9.99999974E-6 : f32
    %31 = vector.broadcast %cst_28 : f32 to vector<32x1xf32>
    %32 = arith.addf %28, %31 : vector<32x1xf32>
    %33 = math.rsqrt %32 : vector<32x1xf32>
    %34 = vector.broadcast %33 : vector<32x1xf32> to vector<32x64xf32>
    %35 = arith.mulf %30, %34 : vector<32x64xf32>
    %36 = vector.broadcast %7 : vector<1x64xf32> to vector<32x64xf32>
    %37 = arith.mulf %35, %36 : vector<32x64xf32>
    %38 = vector.broadcast %9 : vector<1x64xf32> to vector<32x64xf32>
    %39 = arith.addf %37, %38 : vector<32x64xf32>
    %40 = arith.truncf %39 : vector<32x64xf32> to vector<32x64xbf16>
    %41 = arith.truncf %11 : vector<64x128xf32> to vector<64x128xbf16>
    %cst_29 = arith.constant dense<0.000000e+00> : vector<32x128xf32>
    %42 = tpu.matmul %40, %41, %cst_29 {dimension_numbers = #tpu.dot_dimension_numbers<[1], [0], [0], [1], [0, 0, 1, 1], [], []>} : vector<32x64xbf16>, vector<64x128xbf16>, vector<32x128xf32> -> vector<32x128xf32>
    %43 = vector.broadcast %13 : vector<1x128xf32> to vector<32x128xf32>
    %44 = arith.addf %42, %43 : vector<32x128xf32>
    %45 = arith.negf %44 : vector<32x128xf32>
    %46 = math.exp %45 : vector<32x128xf32>
    %cst_30 = arith.constant 1.000000e+00 : f32
    %47 = vector.broadcast %cst_30 : f32 to vector<32x128xf32>
    %48 = arith.addf %47, %46 : vector<32x128xf32>
    %49 = arith.divf %47, %48 : vector<32x128xf32>
    %50 = arith.mulf %44, %49 : vector<32x128xf32>
    %51 = arith.truncf %50 : vector<32x128xf32> to vector<32x128xbf16>
    %52 = arith.truncf %15 : vector<128x64xf32> to vector<128x64xbf16>
    %cst_31 = arith.constant dense<0.000000e+00> : vector<32x64xf32>
    %53 = tpu.matmul %51, %52, %cst_31 {dimension_numbers = #tpu.dot_dimension_numbers<[1], [0], [0], [1], [0, 0, 1, 1], [], []>} : vector<32x128xbf16>, vector<128x64xbf16>, vector<32x64xf32> -> vector<32x64xf32>
    %54 = vector.broadcast %17 : vector<1x64xf32> to vector<32x64xf32>
    %55 = arith.addf %53, %54 : vector<32x64xf32>
    %cst_32 = arith.constant 5.000000e-01 : f32
    %56 = vector.broadcast %cst_32 : f32 to vector<32x64xf32>
    %57 = arith.mulf %56, %55 : vector<32x64xf32>
    %58 = arith.addf %3, %57 : vector<32x64xf32>
    %c0_33 = arith.constant 0 : index
    %c0_34 = arith.constant 0 : index
    %c0_35 = arith.constant 0 : index
    %59 = vector.load %arg13[%c0_33, %c0_34, %c0_35] : memref<1x1x64xf32, #tpu.memory_space<vmem>>, vector<1x1x64xf32>
    %60 = vector.shape_cast %59 : vector<1x1x64xf32> to vector<1x64xf32>
    %c0_36 = arith.constant 0 : index
    %c0_37 = arith.constant 0 : index
    %c0_38 = arith.constant 0 : index
    %61 = vector.load %arg14[%c0_36, %c0_37, %c0_38] : memref<1x1x64xf32, #tpu.memory_space<vmem>>, vector<1x1x64xf32>
    %62 = vector.shape_cast %61 : vector<1x1x64xf32> to vector<1x64xf32>
    %c0_39 = arith.constant 0 : index
    %c0_40 = arith.constant 0 : index
    %c0_41 = arith.constant 0 : index
    %63 = vector.load %arg15[%c0_39, %c0_40, %c0_41] : memref<1x64x192xf32, #tpu.memory_space<vmem>>, vector<1x64x192xf32>
    %64 = vector.shape_cast %63 : vector<1x64x192xf32> to vector<64x192xf32>
    %c0_42 = arith.constant 0 : index
    %c0_43 = arith.constant 0 : index
    %c0_44 = arith.constant 0 : index
    %65 = vector.load %arg16[%c0_42, %c0_43, %c0_44] : memref<1x1x192xf32, #tpu.memory_space<vmem>>, vector<1x1x192xf32>
    %66 = vector.shape_cast %65 : vector<1x1x192xf32> to vector<1x192xf32>
    %c0_45 = arith.constant 0 : index
    %c0_46 = arith.constant 0 : index
    %c0_47 = arith.constant 0 : index
    %67 = vector.load %arg17[%c0_45, %c0_46, %c0_47] : memref<1x64x64xf32, #tpu.memory_space<vmem>>, vector<1x64x64xf32>
    %68 = vector.shape_cast %67 : vector<1x64x64xf32> to vector<64x64xf32>
    %c0_48 = arith.constant 0 : index
    %c0_49 = arith.constant 0 : index
    %c0_50 = arith.constant 0 : index
    %69 = vector.load %arg18[%c0_48, %c0_49, %c0_50] : memref<1x1x64xf32, #tpu.memory_space<vmem>>, vector<1x1x64xf32>
    %70 = vector.shape_cast %69 : vector<1x1x64xf32> to vector<1x64xf32>
    %c0_51 = arith.constant 0 : index
    %c0_52 = arith.constant 0 : index
    %c0_53 = arith.constant 0 : index
    %71 = vector.load %arg19[%c0_51, %c0_52, %c0_53] : memref<1x1x64xf32, #tpu.memory_space<vmem>>, vector<1x1x64xf32>
    %72 = vector.shape_cast %71 : vector<1x1x64xf32> to vector<1x64xf32>
    %c0_54 = arith.constant 0 : index
    %c0_55 = arith.constant 0 : index
    %c0_56 = arith.constant 0 : index
    %73 = vector.load %arg20[%c0_54, %c0_55, %c0_56] : memref<1x64x64xf32, #tpu.memory_space<vmem>>, vector<1x64x64xf32>
    %74 = vector.shape_cast %73 : vector<1x64x64xf32> to vector<64x64xf32>
    %c0_57 = arith.constant 0 : index
    %c0_58 = arith.constant 0 : index
    %c0_59 = arith.constant 0 : index
    %75 = vector.load %arg21[%c0_57, %c0_58, %c0_59] : memref<1x1x64xf32, #tpu.memory_space<vmem>>, vector<1x1x64xf32>
    %76 = vector.shape_cast %75 : vector<1x1x64xf32> to vector<1x64xf32>
    %cst_60 = arith.constant dense<0.000000e+00> : vector<32xf32>
    %77 = vector.multi_reduction <add>, %58, %cst_60 [1] : vector<32x64xf32> to vector<32xf32>
    %78 = vector.shape_cast %77 : vector<32xf32> to vector<32x1xf32>
    %cst_61 = arith.constant 6.400000e+01 : f32
    %79 = vector.broadcast %cst_61 : f32 to vector<32x1xf32>
    %80 = arith.divf %78, %79 : vector<32x1xf32>
    %81 = vector.broadcast %80 : vector<32x1xf32> to vector<32x64xf32>
    %82 = arith.subf %58, %81 : vector<32x64xf32>
    %83 = arith.mulf %82, %82 : vector<32x64xf32>
    %cst_62 = arith.constant dense<0.000000e+00> : vector<32xf32>
    %84 = vector.multi_reduction <add>, %83, %cst_62 [1] : vector<32x64xf32> to vector<32xf32>
    %85 = vector.shape_cast %84 : vector<32xf32> to vector<32x1xf32>
    %cst_63 = arith.constant 6.400000e+01 : f32
    %86 = vector.broadcast %cst_63 : f32 to vector<32x1xf32>
    %87 = arith.divf %85, %86 : vector<32x1xf32>
    %88 = vector.broadcast %80 : vector<32x1xf32> to vector<32x64xf32>
    %89 = arith.subf %58, %88 : vector<32x64xf32>
    %cst_64 = arith.constant 9.99999974E-6 : f32
    %90 = vector.broadcast %cst_64 : f32 to vector<32x1xf32>
    %91 = arith.addf %87, %90 : vector<32x1xf32>
    %92 = math.rsqrt %91 : vector<32x1xf32>
    %93 = vector.broadcast %92 : vector<32x1xf32> to vector<32x64xf32>
    %94 = arith.mulf %89, %93 : vector<32x64xf32>
    %95 = vector.broadcast %60 : vector<1x64xf32> to vector<32x64xf32>
    %96 = arith.mulf %94, %95 : vector<32x64xf32>
    %97 = vector.broadcast %62 : vector<1x64xf32> to vector<32x64xf32>
    %98 = arith.addf %96, %97 : vector<32x64xf32>
    %99 = arith.truncf %98 : vector<32x64xf32> to vector<32x64xbf16>
    %100 = arith.truncf %64 : vector<64x192xf32> to vector<64x192xbf16>
    %cst_65 = arith.constant dense<0.000000e+00> : vector<32x192xf32>
    %101 = tpu.matmul %99, %100, %cst_65 {dimension_numbers = #tpu.dot_dimension_numbers<[1], [0], [0], [1], [0, 0, 1, 1], [], []>} : vector<32x64xbf16>, vector<64x192xbf16>, vector<32x192xf32> -> vector<32x192xf32>
    %102 = vector.broadcast %66 : vector<1x192xf32> to vector<32x192xf32>
    %103 = arith.addf %101, %102 : vector<32x192xf32>
    %104 = arith.truncf %5 : vector<31x64xf32> to vector<31x64xbf16>
    %105 = arith.truncf %68 : vector<64x64xf32> to vector<64x64xbf16>
    %cst_66 = arith.constant dense<0.000000e+00> : vector<31x64xf32>
    %106 = tpu.matmul %104, %105, %cst_66 {dimension_numbers = #tpu.dot_dimension_numbers<[1], [0], [0], [1], [0, 0, 1, 1], [], []>} : vector<31x64xbf16>, vector<64x64xbf16>, vector<31x64xf32> -> vector<31x64xf32>
    %107 = vector.extract_strided_slice %103 {offsets = [0, 0], sizes = [32, 64], strides = [1, 1]} : vector<32x192xf32> to vector<32x64xf32>
    %108 = vector.extract_strided_slice %103 {offsets = [0, 64], sizes = [32, 64], strides = [1, 1]} : vector<32x192xf32> to vector<32x64xf32>
    %109 = vector.extract_strided_slice %103 {offsets = [0, 128], sizes = [32, 64], strides = [1, 1]} : vector<32x192xf32> to vector<32x64xf32>
    %110 = vector.broadcast %70 : vector<1x64xf32> to vector<32x64xf32>
    %111 = arith.addf %107, %110 : vector<32x64xf32>
    %112 = vector.broadcast %72 : vector<1x64xf32> to vector<32x64xf32>
    %113 = arith.addf %107, %112 : vector<32x64xf32>
    %cst_67 = arith.constant 5.000000e-01 : f32
    %114 = vector.broadcast %cst_67 : f32 to vector<2x1x16xf32>
    %115 = arith.cmpf ogt, %4, %114 : vector<2x1x16xf32>
    %cst_68 = arith.constant 0.000000e+00 : f32
    %116 = vector.broadcast %cst_68 : f32 to vector<32x64xf32>
    %117 = vector.extract_strided_slice %111 {offsets = [0, 0], sizes = [32, 16], strides = [1, 1]} : vector<32x64xf32> to vector<32x16xf32>
    %118 = vector.shape_cast %117 : vector<32x16xf32> to vector<2x16x16xf32>
    %119 = vector.extract_strided_slice %108 {offsets = [0, 0], sizes = [32, 16], strides = [1, 1]} : vector<32x64xf32> to vector<32x16xf32>
    %120 = vector.shape_cast %119 : vector<32x16xf32> to vector<2x16x16xf32>
    %121 = vector.extract_strided_slice %109 {offsets = [0, 0], sizes = [32, 16], strides = [1, 1]} : vector<32x64xf32> to vector<32x16xf32>
    %122 = vector.shape_cast %121 : vector<32x16xf32> to vector<2x16x16xf32>
    %123 = arith.truncf %118 : vector<2x16x16xf32> to vector<2x16x16xbf16>
    %124 = arith.truncf %120 : vector<2x16x16xf32> to vector<2x16x16xbf16>
    "tpu.trace_start"() <{level = 10 : i32, message = "bqd,bkd->bqk"}> : () -> ()
    %cst_69 = arith.constant dense<0.000000e+00> : vector<2x16x16xf32>
    %125 = tpu.matmul %123, %124, %cst_69 {dimension_numbers = #tpu.dot_dimension_numbers<[2], [2], [1], [1], [0, 0, 0, 1, 1, 1], [0], [0]>} : vector<2x16x16xbf16>, vector<2x16x16xbf16>, vector<2x16x16xf32> -> vector<2x16x16xf32>
    "tpu.trace_stop"() : () -> ()
    %126 = vector.extract_strided_slice %113 {offsets = [0, 0], sizes = [32, 16], strides = [1, 1]} : vector<32x64xf32> to vector<32x16xf32>
    %127 = arith.truncf %126 : vector<32x16xf32> to vector<32x16xbf16>
    %128 = vector.extract_strided_slice %106 {offsets = [0, 0], sizes = [31, 16], strides = [1, 1]} : vector<31x64xf32> to vector<31x16xf32>
    %129 = arith.truncf %128 : vector<31x16xf32> to vector<31x16xbf16>
    %cst_70 = arith.constant dense<0.000000e+00> : vector<32x31xf32>
    %130 = tpu.matmul %127, %129, %cst_70 {dimension_numbers = #tpu.dot_dimension_numbers<[1], [1], [0], [0], [0, 0, 1, 0], [], []>} : vector<32x16xbf16>, vector<31x16xbf16>, vector<32x31xf32> -> vector<32x31xf32>
    %131 = vector.shape_cast %130 : vector<32x31xf32> to vector<2x16x31xf32>
    %132 = vector.extract_strided_slice %131 {offsets = [0, 0, 15], sizes = [2, 1, 16], strides = [1, 1, 1]} : vector<2x16x31xf32> to vector<2x1x16xf32>
    %133 = vector.extract_strided_slice %131 {offsets = [0, 1, 14], sizes = [2, 1, 16], strides = [1, 1, 1]} : vector<2x16x31xf32> to vector<2x1x16xf32>
    %134 = vector.extract_strided_slice %131 {offsets = [0, 2, 13], sizes = [2, 1, 16], strides = [1, 1, 1]} : vector<2x16x31xf32> to vector<2x1x16xf32>
    %135 = vector.extract_strided_slice %131 {offsets = [0, 3, 12], sizes = [2, 1, 16], strides = [1, 1, 1]} : vector<2x16x31xf32> to vector<2x1x16xf32>
    %136 = vector.extract_strided_slice %131 {offsets = [0, 4, 11], sizes = [2, 1, 16], strides = [1, 1, 1]} : vector<2x16x31xf32> to vector<2x1x16xf32>
    %137 = vector.extract_strided_slice %131 {offsets = [0, 5, 10], sizes = [2, 1, 16], strides = [1, 1, 1]} : vector<2x16x31xf32> to vector<2x1x16xf32>
    %138 = vector.extract_strided_slice %131 {offsets = [0, 6, 9], sizes = [2, 1, 16], strides = [1, 1, 1]} : vector<2x16x31xf32> to vector<2x1x16xf32>
    %139 = vector.extract_strided_slice %131 {offsets = [0, 7, 8], sizes = [2, 1, 16], strides = [1, 1, 1]} : vector<2x16x31xf32> to vector<2x1x16xf32>
    %140 = vector.extract_strided_slice %131 {offsets = [0, 8, 7], sizes = [2, 1, 16], strides = [1, 1, 1]} : vector<2x16x31xf32> to vector<2x1x16xf32>
    %141 = vector.extract_strided_slice %131 {offsets = [0, 9, 6], sizes = [2, 1, 16], strides = [1, 1, 1]} : vector<2x16x31xf32> to vector<2x1x16xf32>
    %142 = vector.extract_strided_slice %131 {offsets = [0, 10, 5], sizes = [2, 1, 16], strides = [1, 1, 1]} : vector<2x16x31xf32> to vector<2x1x16xf32>
    %143 = vector.extract_strided_slice %131 {offsets = [0, 11, 4], sizes = [2, 1, 16], strides = [1, 1, 1]} : vector<2x16x31xf32> to vector<2x1x16xf32>
    %144 = vector.extract_strided_slice %131 {offsets = [0, 12, 3], sizes = [2, 1, 16], strides = [1, 1, 1]} : vector<2x16x31xf32> to vector<2x1x16xf32>
    %145 = vector.extract_strided_slice %131 {offsets = [0, 13, 2], sizes = [2, 1, 16], strides = [1, 1, 1]} : vector<2x16x31xf32> to vector<2x1x16xf32>
    %146 = vector.extract_strided_slice %131 {offsets = [0, 14, 1], sizes = [2, 1, 16], strides = [1, 1, 1]} : vector<2x16x31xf32> to vector<2x1x16xf32>
    %147 = vector.extract_strided_slice %131 {offsets = [0, 15, 0], sizes = [2, 1, 16], strides = [1, 1, 1]} : vector<2x16x31xf32> to vector<2x1x16xf32>
    %148 = tpu.concatenate %132, %133, %134, %135, %136, %137, %138, %139, %140, %141, %142, %143, %144, %145, %146, %147 in 1 : vector<2x1x16xf32>, vector<2x1x16xf32>, vector<2x1x16xf32>, vector<2x1x16xf32>, vector<2x1x16xf32>, vector<2x1x16xf32>, vector<2x1x16xf32>, vector<2x1x16xf32>, vector<2x1x16xf32>, vector<2x1x16xf32>, vector<2x1x16xf32>, vector<2x1x16xf32>, vector<2x1x16xf32>, vector<2x1x16xf32>, vector<2x1x16xf32>, vector<2x1x16xf32> -> vector<2x16x16xf32>
    %149 = arith.addf %125, %148 : vector<2x16x16xf32>
    %cst_71 = arith.constant 2.500000e-01 : f32
    %150 = vector.broadcast %cst_71 : f32 to vector<2x16x16xf32>
    %151 = arith.mulf %149, %150 : vector<2x16x16xf32>
    %cst_72 = arith.constant -1.000000e+30 : f32
    %152 = vector.shape_cast %115 : vector<2x1x16xi1> to vector<2x1x16xi1>
    %153 = vector.broadcast %152 : vector<2x1x16xi1> to vector<2x16x16xi1>
    %154 = vector.broadcast %cst_72 : f32 to vector<2x16x16xf32>
    %155 = arith.select %153, %154, %151 : vector<2x16x16xi1>, vector<2x16x16xf32>
    %cst_73 = arith.constant dense<0xFF800000> : vector<2x16xf32>
    %156 = vector.multi_reduction <maximumf>, %155, %cst_73 [2] : vector<2x16x16xf32> to vector<2x16xf32>
    %157 = vector.shape_cast %156 : vector<2x16xf32> to vector<2x16x1xf32>
    %158 = vector.broadcast %157 : vector<2x16x1xf32> to vector<2x16x16xf32>
    %159 = arith.subf %155, %158 : vector<2x16x16xf32>
    %160 = math.exp %159 : vector<2x16x16xf32>
    %cst_74 = arith.constant dense<0.000000e+00> : vector<2x16xf32>
    %161 = vector.multi_reduction <add>, %160, %cst_74 [2] : vector<2x16x16xf32> to vector<2x16xf32>
    %162 = vector.shape_cast %161 : vector<2x16xf32> to vector<2x16x1xf32>
    %163 = tpu.reciprocal %162 {approx = true} : vector<2x16x1xf32> -> vector<2x16x1xf32>
    %164 = vector.broadcast %163 : vector<2x16x1xf32> to vector<2x16x16xf32>
    %165 = arith.mulf %160, %164 : vector<2x16x16xf32>
    %cst_75 = arith.constant 0.000000e+00 : f32
    %166 = vector.shape_cast %115 : vector<2x1x16xi1> to vector<2x1x16xi1>
    %167 = vector.broadcast %166 : vector<2x1x16xi1> to vector<2x16x16xi1>
    %168 = vector.broadcast %cst_75 : f32 to vector<2x16x16xf32>
    %169 = arith.select %167, %168, %165 : vector<2x16x16xi1>, vector<2x16x16xf32>
    %170 = arith.truncf %169 : vector<2x16x16xf32> to vector<2x16x16xbf16>
    %171 = arith.truncf %122 : vector<2x16x16xf32> to vector<2x16x16xbf16>
    "tpu.trace_start"() <{level = 10 : i32, message = "bqk,bkd->bqd"}> : () -> ()
    %cst_76 = arith.constant dense<0.000000e+00> : vector<2x16x16xf32>
    %172 = tpu.matmul %170, %171, %cst_76 {dimension_numbers = #tpu.dot_dimension_numbers<[2], [1], [1], [2], [0, 0, 0, 1, 1, 2], [0], [0]>} : vector<2x16x16xbf16>, vector<2x16x16xbf16>, vector<2x16x16xf32> -> vector<2x16x16xf32>
    "tpu.trace_stop"() : () -> ()
    %173 = vector.shape_cast %172 : vector<2x16x16xf32> to vector<32x16xf32>
    %174 = vector.extract_strided_slice %74 {offsets = [0, 0], sizes = [16, 64], strides = [1, 1]} : vector<64x64xf32> to vector<16x64xf32>
    %175 = arith.truncf %173 : vector<32x16xf32> to vector<32x16xbf16>
    %176 = arith.truncf %174 : vector<16x64xf32> to vector<16x64xbf16>
    %cst_77 = arith.constant dense<0.000000e+00> : vector<32x64xf32>
    %177 = tpu.matmul %175, %176, %cst_77 {dimension_numbers = #tpu.dot_dimension_numbers<[1], [0], [0], [1], [0, 0, 1, 1], [], []>} : vector<32x16xbf16>, vector<16x64xbf16>, vector<32x64xf32> -> vector<32x64xf32>
    %178 = arith.addf %116, %177 : vector<32x64xf32>
    %179 = vector.extract_strided_slice %111 {offsets = [0, 16], sizes = [32, 16], strides = [1, 1]} : vector<32x64xf32> to vector<32x16xf32>
    %180 = vector.shape_cast %179 : vector<32x16xf32> to vector<2x16x16xf32>
    %181 = vector.extract_strided_slice %108 {offsets = [0, 16], sizes = [32, 16], strides = [1, 1]} : vector<32x64xf32> to vector<32x16xf32>
    %182 = vector.shape_cast %181 : vector<32x16xf32> to vector<2x16x16xf32>
    %183 = vector.extract_strided_slice %109 {offsets = [0, 16], sizes = [32, 16], strides = [1, 1]} : vector<32x64xf32> to vector<32x16xf32>
    %184 = vector.shape_cast %183 : vector<32x16xf32> to vector<2x16x16xf32>
    %185 = arith.truncf %180 : vector<2x16x16xf32> to vector<2x16x16xbf16>
    %186 = arith.truncf %182 : vector<2x16x16xf32> to vector<2x16x16xbf16>
    "tpu.trace_start"() <{level = 10 : i32, message = "bqd,bkd->bqk"}> : () -> ()
    %cst_78 = arith.constant dense<0.000000e+00> : vector<2x16x16xf32>
    %187 = tpu.matmul %185, %186, %cst_78 {dimension_numbers = #tpu.dot_dimension_numbers<[2], [2], [1], [1], [0, 0, 0, 1, 1, 1], [0], [0]>} : vector<2x16x16xbf16>, vector<2x16x16xbf16>, vector<2x16x16xf32> -> vector<2x16x16xf32>
    "tpu.trace_stop"() : () -> ()
    %188 = vector.extract_strided_slice %113 {offsets = [0, 16], sizes = [32, 16], strides = [1, 1]} : vector<32x64xf32> to vector<32x16xf32>
    %189 = arith.truncf %188 : vector<32x16xf32> to vector<32x16xbf16>
    %190 = vector.extract_strided_slice %106 {offsets = [0, 16], sizes = [31, 16], strides = [1, 1]} : vector<31x64xf32> to vector<31x16xf32>
    %191 = arith.truncf %190 : vector<31x16xf32> to vector<31x16xbf16>
    %cst_79 = arith.constant dense<0.000000e+00> : vector<32x31xf32>
    %192 = tpu.matmul %189, %191, %cst_79 {dimension_numbers = #tpu.dot_dimension_numbers<[1], [1], [0], [0], [0, 0, 1, 0], [], []>} : vector<32x16xbf16>, vector<31x16xbf16>, vector<32x31xf32> -> vector<32x31xf32>
    %193 = vector.shape_cast %192 : vector<32x31xf32> to vector<2x16x31xf32>
    %194 = vector.extract_strided_slice %193 {offsets = [0, 0, 15], sizes = [2, 1, 16], strides = [1, 1, 1]} : vector<2x16x31xf32> to vector<2x1x16xf32>
    %195 = vector.extract_strided_slice %193 {offsets = [0, 1, 14], sizes = [2, 1, 16], strides = [1, 1, 1]} : vector<2x16x31xf32> to vector<2x1x16xf32>
    %196 = vector.extract_strided_slice %193 {offsets = [0, 2, 13], sizes = [2, 1, 16], strides = [1, 1, 1]} : vector<2x16x31xf32> to vector<2x1x16xf32>
    %197 = vector.extract_strided_slice %193 {offsets = [0, 3, 12], sizes = [2, 1, 16], strides = [1, 1, 1]} : vector<2x16x31xf32> to vector<2x1x16xf32>
    %198 = vector.extract_strided_slice %193 {offsets = [0, 4, 11], sizes = [2, 1, 16], strides = [1, 1, 1]} : vector<2x16x31xf32> to vector<2x1x16xf32>
    %199 = vector.extract_strided_slice %193 {offsets = [0, 5, 10], sizes = [2, 1, 16], strides = [1, 1, 1]} : vector<2x16x31xf32> to vector<2x1x16xf32>
    %200 = vector.extract_strided_slice %193 {offsets = [0, 6, 9], sizes = [2, 1, 16], strides = [1, 1, 1]} : vector<2x16x31xf32> to vector<2x1x16xf32>
    %201 = vector.extract_strided_slice %193 {offsets = [0, 7, 8], sizes = [2, 1, 16], strides = [1, 1, 1]} : vector<2x16x31xf32> to vector<2x1x16xf32>
    %202 = vector.extract_strided_slice %193 {offsets = [0, 8, 7], sizes = [2, 1, 16], strides = [1, 1, 1]} : vector<2x16x31xf32> to vector<2x1x16xf32>
    %203 = vector.extract_strided_slice %193 {offsets = [0, 9, 6], sizes = [2, 1, 16], strides = [1, 1, 1]} : vector<2x16x31xf32> to vector<2x1x16xf32>
    %204 = vector.extract_strided_slice %193 {offsets = [0, 10, 5], sizes = [2, 1, 16], strides = [1, 1, 1]} : vector<2x16x31xf32> to vector<2x1x16xf32>
    %205 = vector.extract_strided_slice %193 {offsets = [0, 11, 4], sizes = [2, 1, 16], strides = [1, 1, 1]} : vector<2x16x31xf32> to vector<2x1x16xf32>
    %206 = vector.extract_strided_slice %193 {offsets = [0, 12, 3], sizes = [2, 1, 16], strides = [1, 1, 1]} : vector<2x16x31xf32> to vector<2x1x16xf32>
    %207 = vector.extract_strided_slice %193 {offsets = [0, 13, 2], sizes = [2, 1, 16], strides = [1, 1, 1]} : vector<2x16x31xf32> to vector<2x1x16xf32>
    %208 = vector.extract_strided_slice %193 {offsets = [0, 14, 1], sizes = [2, 1, 16], strides = [1, 1, 1]} : vector<2x16x31xf32> to vector<2x1x16xf32>
    %209 = vector.extract_strided_slice %193 {offsets = [0, 15, 0], sizes = [2, 1, 16], strides = [1, 1, 1]} : vector<2x16x31xf32> to vector<2x1x16xf32>
    %210 = tpu.concatenate %194, %195, %196, %197, %198, %199, %200, %201, %202, %203, %204, %205, %206, %207, %208, %209 in 1 : vector<2x1x16xf32>, vector<2x1x16xf32>, vector<2x1x16xf32>, vector<2x1x16xf32>, vector<2x1x16xf32>, vector<2x1x16xf32>, vector<2x1x16xf32>, vector<2x1x16xf32>, vector<2x1x16xf32>, vector<2x1x16xf32>, vector<2x1x16xf32>, vector<2x1x16xf32>, vector<2x1x16xf32>, vector<2x1x16xf32>, vector<2x1x16xf32>, vector<2x1x16xf32> -> vector<2x16x16xf32>
    %211 = arith.addf %187, %210 : vector<2x16x16xf32>
    %cst_80 = arith.constant 2.500000e-01 : f32
    %212 = vector.broadcast %cst_80 : f32 to vector<2x16x16xf32>
    %213 = arith.mulf %211, %212 : vector<2x16x16xf32>
    %cst_81 = arith.constant -1.000000e+30 : f32
    %214 = vector.shape_cast %115 : vector<2x1x16xi1> to vector<2x1x16xi1>
    %215 = vector.broadcast %214 : vector<2x1x16xi1> to vector<2x16x16xi1>
    %216 = vector.broadcast %cst_81 : f32 to vector<2x16x16xf32>
    %217 = arith.select %215, %216, %213 : vector<2x16x16xi1>, vector<2x16x16xf32>
    %cst_82 = arith.constant dense<0xFF800000> : vector<2x16xf32>
    %218 = vector.multi_reduction <maximumf>, %217, %cst_82 [2] : vector<2x16x16xf32> to vector<2x16xf32>
    %219 = vector.shape_cast %218 : vector<2x16xf32> to vector<2x16x1xf32>
    %220 = vector.broadcast %219 : vector<2x16x1xf32> to vector<2x16x16xf32>
    %221 = arith.subf %217, %220 : vector<2x16x16xf32>
    %222 = math.exp %221 : vector<2x16x16xf32>
    %cst_83 = arith.constant dense<0.000000e+00> : vector<2x16xf32>
    %223 = vector.multi_reduction <add>, %222, %cst_83 [2] : vector<2x16x16xf32> to vector<2x16xf32>
    %224 = vector.shape_cast %223 : vector<2x16xf32> to vector<2x16x1xf32>
    %225 = tpu.reciprocal %224 {approx = true} : vector<2x16x1xf32> -> vector<2x16x1xf32>
    %226 = vector.broadcast %225 : vector<2x16x1xf32> to vector<2x16x16xf32>
    %227 = arith.mulf %222, %226 : vector<2x16x16xf32>
    %cst_84 = arith.constant 0.000000e+00 : f32
    %228 = vector.shape_cast %115 : vector<2x1x16xi1> to vector<2x1x16xi1>
    %229 = vector.broadcast %228 : vector<2x1x16xi1> to vector<2x16x16xi1>
    %230 = vector.broadcast %cst_84 : f32 to vector<2x16x16xf32>
    %231 = arith.select %229, %230, %227 : vector<2x16x16xi1>, vector<2x16x16xf32>
    %232 = arith.truncf %231 : vector<2x16x16xf32> to vector<2x16x16xbf16>
    %233 = arith.truncf %184 : vector<2x16x16xf32> to vector<2x16x16xbf16>
    "tpu.trace_start"() <{level = 10 : i32, message = "bqk,bkd->bqd"}> : () -> ()
    %cst_85 = arith.constant dense<0.000000e+00> : vector<2x16x16xf32>
    %234 = tpu.matmul %232, %233, %cst_85 {dimension_numbers = #tpu.dot_dimension_numbers<[2], [1], [1], [2], [0, 0, 0, 1, 1, 2], [0], [0]>} : vector<2x16x16xbf16>, vector<2x16x16xbf16>, vector<2x16x16xf32> -> vector<2x16x16xf32>
    "tpu.trace_stop"() : () -> ()
    %235 = vector.shape_cast %234 : vector<2x16x16xf32> to vector<32x16xf32>
    %236 = vector.extract_strided_slice %74 {offsets = [16, 0], sizes = [16, 64], strides = [1, 1]} : vector<64x64xf32> to vector<16x64xf32>
    %237 = arith.truncf %235 : vector<32x16xf32> to vector<32x16xbf16>
    %238 = arith.truncf %236 : vector<16x64xf32> to vector<16x64xbf16>
    %cst_86 = arith.constant dense<0.000000e+00> : vector<32x64xf32>
    %239 = tpu.matmul %237, %238, %cst_86 {dimension_numbers = #tpu.dot_dimension_numbers<[1], [0], [0], [1], [0, 0, 1, 1], [], []>} : vector<32x16xbf16>, vector<16x64xbf16>, vector<32x64xf32> -> vector<32x64xf32>
    %240 = arith.addf %178, %239 : vector<32x64xf32>
    %241 = vector.extract_strided_slice %111 {offsets = [0, 32], sizes = [32, 16], strides = [1, 1]} : vector<32x64xf32> to vector<32x16xf32>
    %242 = vector.shape_cast %241 : vector<32x16xf32> to vector<2x16x16xf32>
    %243 = vector.extract_strided_slice %108 {offsets = [0, 32], sizes = [32, 16], strides = [1, 1]} : vector<32x64xf32> to vector<32x16xf32>
    %244 = vector.shape_cast %243 : vector<32x16xf32> to vector<2x16x16xf32>
    %245 = vector.extract_strided_slice %109 {offsets = [0, 32], sizes = [32, 16], strides = [1, 1]} : vector<32x64xf32> to vector<32x16xf32>
    %246 = vector.shape_cast %245 : vector<32x16xf32> to vector<2x16x16xf32>
    %247 = arith.truncf %242 : vector<2x16x16xf32> to vector<2x16x16xbf16>
    %248 = arith.truncf %244 : vector<2x16x16xf32> to vector<2x16x16xbf16>
    "tpu.trace_start"() <{level = 10 : i32, message = "bqd,bkd->bqk"}> : () -> ()
    %cst_87 = arith.constant dense<0.000000e+00> : vector<2x16x16xf32>
    %249 = tpu.matmul %247, %248, %cst_87 {dimension_numbers = #tpu.dot_dimension_numbers<[2], [2], [1], [1], [0, 0, 0, 1, 1, 1], [0], [0]>} : vector<2x16x16xbf16>, vector<2x16x16xbf16>, vector<2x16x16xf32> -> vector<2x16x16xf32>
    "tpu.trace_stop"() : () -> ()
    %250 = vector.extract_strided_slice %113 {offsets = [0, 32], sizes = [32, 16], strides = [1, 1]} : vector<32x64xf32> to vector<32x16xf32>
    %251 = arith.truncf %250 : vector<32x16xf32> to vector<32x16xbf16>
    %252 = vector.extract_strided_slice %106 {offsets = [0, 32], sizes = [31, 16], strides = [1, 1]} : vector<31x64xf32> to vector<31x16xf32>
    %253 = arith.truncf %252 : vector<31x16xf32> to vector<31x16xbf16>
    %cst_88 = arith.constant dense<0.000000e+00> : vector<32x31xf32>
    %254 = tpu.matmul %251, %253, %cst_88 {dimension_numbers = #tpu.dot_dimension_numbers<[1], [1], [0], [0], [0, 0, 1, 0], [], []>} : vector<32x16xbf16>, vector<31x16xbf16>, vector<32x31xf32> -> vector<32x31xf32>
    %255 = vector.shape_cast %254 : vector<32x31xf32> to vector<2x16x31xf32>
    %256 = vector.extract_strided_slice %255 {offsets = [0, 0, 15], sizes = [2, 1, 16], strides = [1, 1, 1]} : vector<2x16x31xf32> to vector<2x1x16xf32>
    %257 = vector.extract_strided_slice %255 {offsets = [0, 1, 14], sizes = [2, 1, 16], strides = [1, 1, 1]} : vector<2x16x31xf32> to vector<2x1x16xf32>
    %258 = vector.extract_strided_slice %255 {offsets = [0, 2, 13], sizes = [2, 1, 16], strides = [1, 1, 1]} : vector<2x16x31xf32> to vector<2x1x16xf32>
    %259 = vector.extract_strided_slice %255 {offsets = [0, 3, 12], sizes = [2, 1, 16], strides = [1, 1, 1]} : vector<2x16x31xf32> to vector<2x1x16xf32>
    %260 = vector.extract_strided_slice %255 {offsets = [0, 4, 11], sizes = [2, 1, 16], strides = [1, 1, 1]} : vector<2x16x31xf32> to vector<2x1x16xf32>
    %261 = vector.extract_strided_slice %255 {offsets = [0, 5, 10], sizes = [2, 1, 16], strides = [1, 1, 1]} : vector<2x16x31xf32> to vector<2x1x16xf32>
    %262 = vector.extract_strided_slice %255 {offsets = [0, 6, 9], sizes = [2, 1, 16], strides = [1, 1, 1]} : vector<2x16x31xf32> to vector<2x1x16xf32>
    %263 = vector.extract_strided_slice %255 {offsets = [0, 7, 8], sizes = [2, 1, 16], strides = [1, 1, 1]} : vector<2x16x31xf32> to vector<2x1x16xf32>
    %264 = vector.extract_strided_slice %255 {offsets = [0, 8, 7], sizes = [2, 1, 16], strides = [1, 1, 1]} : vector<2x16x31xf32> to vector<2x1x16xf32>
    %265 = vector.extract_strided_slice %255 {offsets = [0, 9, 6], sizes = [2, 1, 16], strides = [1, 1, 1]} : vector<2x16x31xf32> to vector<2x1x16xf32>
    %266 = vector.extract_strided_slice %255 {offsets = [0, 10, 5], sizes = [2, 1, 16], strides = [1, 1, 1]} : vector<2x16x31xf32> to vector<2x1x16xf32>
    %267 = vector.extract_strided_slice %255 {offsets = [0, 11, 4], sizes = [2, 1, 16], strides = [1, 1, 1]} : vector<2x16x31xf32> to vector<2x1x16xf32>
    %268 = vector.extract_strided_slice %255 {offsets = [0, 12, 3], sizes = [2, 1, 16], strides = [1, 1, 1]} : vector<2x16x31xf32> to vector<2x1x16xf32>
    %269 = vector.extract_strided_slice %255 {offsets = [0, 13, 2], sizes = [2, 1, 16], strides = [1, 1, 1]} : vector<2x16x31xf32> to vector<2x1x16xf32>
    %270 = vector.extract_strided_slice %255 {offsets = [0, 14, 1], sizes = [2, 1, 16], strides = [1, 1, 1]} : vector<2x16x31xf32> to vector<2x1x16xf32>
    %271 = vector.extract_strided_slice %255 {offsets = [0, 15, 0], sizes = [2, 1, 16], strides = [1, 1, 1]} : vector<2x16x31xf32> to vector<2x1x16xf32>
    %272 = tpu.concatenate %256, %257, %258, %259, %260, %261, %262, %263, %264, %265, %266, %267, %268, %269, %270, %271 in 1 : vector<2x1x16xf32>, vector<2x1x16xf32>, vector<2x1x16xf32>, vector<2x1x16xf32>, vector<2x1x16xf32>, vector<2x1x16xf32>, vector<2x1x16xf32>, vector<2x1x16xf32>, vector<2x1x16xf32>, vector<2x1x16xf32>, vector<2x1x16xf32>, vector<2x1x16xf32>, vector<2x1x16xf32>, vector<2x1x16xf32>, vector<2x1x16xf32>, vector<2x1x16xf32> -> vector<2x16x16xf32>
    %273 = arith.addf %249, %272 : vector<2x16x16xf32>
    %cst_89 = arith.constant 2.500000e-01 : f32
    %274 = vector.broadcast %cst_89 : f32 to vector<2x16x16xf32>
    %275 = arith.mulf %273, %274 : vector<2x16x16xf32>
    %cst_90 = arith.constant -1.000000e+30 : f32
    %276 = vector.shape_cast %115 : vector<2x1x16xi1> to vector<2x1x16xi1>
    %277 = vector.broadcast %276 : vector<2x1x16xi1> to vector<2x16x16xi1>
    %278 = vector.broadcast %cst_90 : f32 to vector<2x16x16xf32>
    %279 = arith.select %277, %278, %275 : vector<2x16x16xi1>, vector<2x16x16xf32>
    %cst_91 = arith.constant dense<0xFF800000> : vector<2x16xf32>
    %280 = vector.multi_reduction <maximumf>, %279, %cst_91 [2] : vector<2x16x16xf32> to vector<2x16xf32>
    %281 = vector.shape_cast %280 : vector<2x16xf32> to vector<2x16x1xf32>
    %282 = vector.broadcast %281 : vector<2x16x1xf32> to vector<2x16x16xf32>
    %283 = arith.subf %279, %282 : vector<2x16x16xf32>
    %284 = math.exp %283 : vector<2x16x16xf32>
    %cst_92 = arith.constant dense<0.000000e+00> : vector<2x16xf32>
    %285 = vector.multi_reduction <add>, %284, %cst_92 [2] : vector<2x16x16xf32> to vector<2x16xf32>
    %286 = vector.shape_cast %285 : vector<2x16xf32> to vector<2x16x1xf32>
    %287 = tpu.reciprocal %286 {approx = true} : vector<2x16x1xf32> -> vector<2x16x1xf32>
    %288 = vector.broadcast %287 : vector<2x16x1xf32> to vector<2x16x16xf32>
    %289 = arith.mulf %284, %288 : vector<2x16x16xf32>
    %cst_93 = arith.constant 0.000000e+00 : f32
    %290 = vector.shape_cast %115 : vector<2x1x16xi1> to vector<2x1x16xi1>
    %291 = vector.broadcast %290 : vector<2x1x16xi1> to vector<2x16x16xi1>
    %292 = vector.broadcast %cst_93 : f32 to vector<2x16x16xf32>
    %293 = arith.select %291, %292, %289 : vector<2x16x16xi1>, vector<2x16x16xf32>
    %294 = arith.truncf %293 : vector<2x16x16xf32> to vector<2x16x16xbf16>
    %295 = arith.truncf %246 : vector<2x16x16xf32> to vector<2x16x16xbf16>
    "tpu.trace_start"() <{level = 10 : i32, message = "bqk,bkd->bqd"}> : () -> ()
    %cst_94 = arith.constant dense<0.000000e+00> : vector<2x16x16xf32>
    %296 = tpu.matmul %294, %295, %cst_94 {dimension_numbers = #tpu.dot_dimension_numbers<[2], [1], [1], [2], [0, 0, 0, 1, 1, 2], [0], [0]>} : vector<2x16x16xbf16>, vector<2x16x16xbf16>, vector<2x16x16xf32> -> vector<2x16x16xf32>
    "tpu.trace_stop"() : () -> ()
    %297 = vector.shape_cast %296 : vector<2x16x16xf32> to vector<32x16xf32>
    %298 = vector.extract_strided_slice %74 {offsets = [32, 0], sizes = [16, 64], strides = [1, 1]} : vector<64x64xf32> to vector<16x64xf32>
    %299 = arith.truncf %297 : vector<32x16xf32> to vector<32x16xbf16>
    %300 = arith.truncf %298 : vector<16x64xf32> to vector<16x64xbf16>
    %cst_95 = arith.constant dense<0.000000e+00> : vector<32x64xf32>
    %301 = tpu.matmul %299, %300, %cst_95 {dimension_numbers = #tpu.dot_dimension_numbers<[1], [0], [0], [1], [0, 0, 1, 1], [], []>} : vector<32x16xbf16>, vector<16x64xbf16>, vector<32x64xf32> -> vector<32x64xf32>
    %302 = arith.addf %240, %301 : vector<32x64xf32>
    %303 = vector.extract_strided_slice %111 {offsets = [0, 48], sizes = [32, 16], strides = [1, 1]} : vector<32x64xf32> to vector<32x16xf32>
    %304 = vector.shape_cast %303 : vector<32x16xf32> to vector<2x16x16xf32>
    %305 = vector.extract_strided_slice %108 {offsets = [0, 48], sizes = [32, 16], strides = [1, 1]} : vector<32x64xf32> to vector<32x16xf32>
    %306 = vector.shape_cast %305 : vector<32x16xf32> to vector<2x16x16xf32>
    %307 = vector.extract_strided_slice %109 {offsets = [0, 48], sizes = [32, 16], strides = [1, 1]} : vector<32x64xf32> to vector<32x16xf32>
    %308 = vector.shape_cast %307 : vector<32x16xf32> to vector<2x16x16xf32>
    %309 = arith.truncf %304 : vector<2x16x16xf32> to vector<2x16x16xbf16>
    %310 = arith.truncf %306 : vector<2x16x16xf32> to vector<2x16x16xbf16>
    "tpu.trace_start"() <{level = 10 : i32, message = "bqd,bkd->bqk"}> : () -> ()
    %cst_96 = arith.constant dense<0.000000e+00> : vector<2x16x16xf32>
    %311 = tpu.matmul %309, %310, %cst_96 {dimension_numbers = #tpu.dot_dimension_numbers<[2], [2], [1], [1], [0, 0, 0, 1, 1, 1], [0], [0]>} : vector<2x16x16xbf16>, vector<2x16x16xbf16>, vector<2x16x16xf32> -> vector<2x16x16xf32>
    "tpu.trace_stop"() : () -> ()
    %312 = vector.extract_strided_slice %113 {offsets = [0, 48], sizes = [32, 16], strides = [1, 1]} : vector<32x64xf32> to vector<32x16xf32>
    %313 = arith.truncf %312 : vector<32x16xf32> to vector<32x16xbf16>
    %314 = vector.extract_strided_slice %106 {offsets = [0, 48], sizes = [31, 16], strides = [1, 1]} : vector<31x64xf32> to vector<31x16xf32>
    %315 = arith.truncf %314 : vector<31x16xf32> to vector<31x16xbf16>
    %cst_97 = arith.constant dense<0.000000e+00> : vector<32x31xf32>
    %316 = tpu.matmul %313, %315, %cst_97 {dimension_numbers = #tpu.dot_dimension_numbers<[1], [1], [0], [0], [0, 0, 1, 0], [], []>} : vector<32x16xbf16>, vector<31x16xbf16>, vector<32x31xf32> -> vector<32x31xf32>
    %317 = vector.shape_cast %316 : vector<32x31xf32> to vector<2x16x31xf32>
    %318 = vector.extract_strided_slice %317 {offsets = [0, 0, 15], sizes = [2, 1, 16], strides = [1, 1, 1]} : vector<2x16x31xf32> to vector<2x1x16xf32>
    %319 = vector.extract_strided_slice %317 {offsets = [0, 1, 14], sizes = [2, 1, 16], strides = [1, 1, 1]} : vector<2x16x31xf32> to vector<2x1x16xf32>
    %320 = vector.extract_strided_slice %317 {offsets = [0, 2, 13], sizes = [2, 1, 16], strides = [1, 1, 1]} : vector<2x16x31xf32> to vector<2x1x16xf32>
    %321 = vector.extract_strided_slice %317 {offsets = [0, 3, 12], sizes = [2, 1, 16], strides = [1, 1, 1]} : vector<2x16x31xf32> to vector<2x1x16xf32>
    %322 = vector.extract_strided_slice %317 {offsets = [0, 4, 11], sizes = [2, 1, 16], strides = [1, 1, 1]} : vector<2x16x31xf32> to vector<2x1x16xf32>
    %323 = vector.extract_strided_slice %317 {offsets = [0, 5, 10], sizes = [2, 1, 16], strides = [1, 1, 1]} : vector<2x16x31xf32> to vector<2x1x16xf32>
    %324 = vector.extract_strided_slice %317 {offsets = [0, 6, 9], sizes = [2, 1, 16], strides = [1, 1, 1]} : vector<2x16x31xf32> to vector<2x1x16xf32>
    %325 = vector.extract_strided_slice %317 {offsets = [0, 7, 8], sizes = [2, 1, 16], strides = [1, 1, 1]} : vector<2x16x31xf32> to vector<2x1x16xf32>
    %326 = vector.extract_strided_slice %317 {offsets = [0, 8, 7], sizes = [2, 1, 16], strides = [1, 1, 1]} : vector<2x16x31xf32> to vector<2x1x16xf32>
    %327 = vector.extract_strided_slice %317 {offsets = [0, 9, 6], sizes = [2, 1, 16], strides = [1, 1, 1]} : vector<2x16x31xf32> to vector<2x1x16xf32>
    %328 = vector.extract_strided_slice %317 {offsets = [0, 10, 5], sizes = [2, 1, 16], strides = [1, 1, 1]} : vector<2x16x31xf32> to vector<2x1x16xf32>
    %329 = vector.extract_strided_slice %317 {offsets = [0, 11, 4], sizes = [2, 1, 16], strides = [1, 1, 1]} : vector<2x16x31xf32> to vector<2x1x16xf32>
    %330 = vector.extract_strided_slice %317 {offsets = [0, 12, 3], sizes = [2, 1, 16], strides = [1, 1, 1]} : vector<2x16x31xf32> to vector<2x1x16xf32>
    %331 = vector.extract_strided_slice %317 {offsets = [0, 13, 2], sizes = [2, 1, 16], strides = [1, 1, 1]} : vector<2x16x31xf32> to vector<2x1x16xf32>
    %332 = vector.extract_strided_slice %317 {offsets = [0, 14, 1], sizes = [2, 1, 16], strides = [1, 1, 1]} : vector<2x16x31xf32> to vector<2x1x16xf32>
    %333 = vector.extract_strided_slice %317 {offsets = [0, 15, 0], sizes = [2, 1, 16], strides = [1, 1, 1]} : vector<2x16x31xf32> to vector<2x1x16xf32>
    %334 = tpu.concatenate %318, %319, %320, %321, %322, %323, %324, %325, %326, %327, %328, %329, %330, %331, %332, %333 in 1 : vector<2x1x16xf32>, vector<2x1x16xf32>, vector<2x1x16xf32>, vector<2x1x16xf32>, vector<2x1x16xf32>, vector<2x1x16xf32>, vector<2x1x16xf32>, vector<2x1x16xf32>, vector<2x1x16xf32>, vector<2x1x16xf32>, vector<2x1x16xf32>, vector<2x1x16xf32>, vector<2x1x16xf32>, vector<2x1x16xf32>, vector<2x1x16xf32>, vector<2x1x16xf32> -> vector<2x16x16xf32>
    %335 = arith.addf %311, %334 : vector<2x16x16xf32>
    %cst_98 = arith.constant 2.500000e-01 : f32
    %336 = vector.broadcast %cst_98 : f32 to vector<2x16x16xf32>
    %337 = arith.mulf %335, %336 : vector<2x16x16xf32>
    %cst_99 = arith.constant -1.000000e+30 : f32
    %338 = vector.shape_cast %115 : vector<2x1x16xi1> to vector<2x1x16xi1>
    %339 = vector.broadcast %338 : vector<2x1x16xi1> to vector<2x16x16xi1>
    %340 = vector.broadcast %cst_99 : f32 to vector<2x16x16xf32>
    %341 = arith.select %339, %340, %337 : vector<2x16x16xi1>, vector<2x16x16xf32>
    %cst_100 = arith.constant dense<0xFF800000> : vector<2x16xf32>
    %342 = vector.multi_reduction <maximumf>, %341, %cst_100 [2] : vector<2x16x16xf32> to vector<2x16xf32>
    %343 = vector.shape_cast %342 : vector<2x16xf32> to vector<2x16x1xf32>
    %344 = vector.broadcast %343 : vector<2x16x1xf32> to vector<2x16x16xf32>
    %345 = arith.subf %341, %344 : vector<2x16x16xf32>
    %346 = math.exp %345 : vector<2x16x16xf32>
    %cst_101 = arith.constant dense<0.000000e+00> : vector<2x16xf32>
    %347 = vector.multi_reduction <add>, %346, %cst_101 [2] : vector<2x16x16xf32> to vector<2x16xf32>
    %348 = vector.shape_cast %347 : vector<2x16xf32> to vector<2x16x1xf32>
    %349 = tpu.reciprocal %348 {approx = true} : vector<2x16x1xf32> -> vector<2x16x1xf32>
    %350 = vector.broadcast %349 : vector<2x16x1xf32> to vector<2x16x16xf32>
    %351 = arith.mulf %346, %350 : vector<2x16x16xf32>
    %cst_102 = arith.constant 0.000000e+00 : f32
    %352 = vector.shape_cast %115 : vector<2x1x16xi1> to vector<2x1x16xi1>
    %353 = vector.broadcast %352 : vector<2x1x16xi1> to vector<2x16x16xi1>
    %354 = vector.broadcast %cst_102 : f32 to vector<2x16x16xf32>
    %355 = arith.select %353, %354, %351 : vector<2x16x16xi1>, vector<2x16x16xf32>
    %356 = arith.truncf %355 : vector<2x16x16xf32> to vector<2x16x16xbf16>
    %357 = arith.truncf %308 : vector<2x16x16xf32> to vector<2x16x16xbf16>
    "tpu.trace_start"() <{level = 10 : i32, message = "bqk,bkd->bqd"}> : () -> ()
    %cst_103 = arith.constant dense<0.000000e+00> : vector<2x16x16xf32>
    %358 = tpu.matmul %356, %357, %cst_103 {dimension_numbers = #tpu.dot_dimension_numbers<[2], [1], [1], [2], [0, 0, 0, 1, 1, 2], [0], [0]>} : vector<2x16x16xbf16>, vector<2x16x16xbf16>, vector<2x16x16xf32> -> vector<2x16x16xf32>
    "tpu.trace_stop"() : () -> ()
    %359 = vector.shape_cast %358 : vector<2x16x16xf32> to vector<32x16xf32>
    %360 = vector.extract_strided_slice %74 {offsets = [48, 0], sizes = [16, 64], strides = [1, 1]} : vector<64x64xf32> to vector<16x64xf32>
    %361 = arith.truncf %359 : vector<32x16xf32> to vector<32x16xbf16>
    %362 = arith.truncf %360 : vector<16x64xf32> to vector<16x64xbf16>
    %cst_104 = arith.constant dense<0.000000e+00> : vector<32x64xf32>
    %363 = tpu.matmul %361, %362, %cst_104 {dimension_numbers = #tpu.dot_dimension_numbers<[1], [0], [0], [1], [0, 0, 1, 1], [], []>} : vector<32x16xbf16>, vector<16x64xbf16>, vector<32x64xf32> -> vector<32x64xf32>
    %364 = arith.addf %302, %363 : vector<32x64xf32>
    %365 = arith.addf %58, %364 : vector<32x64xf32>
    %366 = vector.broadcast %76 : vector<1x64xf32> to vector<32x64xf32>
    %367 = arith.addf %365, %366 : vector<32x64xf32>
    %c0_105 = arith.constant 0 : index
    %c0_106 = arith.constant 0 : index
    %c0_107 = arith.constant 0 : index
    %368 = vector.load %arg22[%c0_105, %c0_106, %c0_107] : memref<1x1x64xf32, #tpu.memory_space<vmem>>, vector<1x1x64xf32>
    %369 = vector.shape_cast %368 : vector<1x1x64xf32> to vector<1x64xf32>
    %c0_108 = arith.constant 0 : index
    %c0_109 = arith.constant 0 : index
    %c0_110 = arith.constant 0 : index
    %370 = vector.load %arg23[%c0_108, %c0_109, %c0_110] : memref<1x1x64xf32, #tpu.memory_space<vmem>>, vector<1x1x64xf32>
    %371 = vector.shape_cast %370 : vector<1x1x64xf32> to vector<1x64xf32>
    %c0_111 = arith.constant 0 : index
    %c0_112 = arith.constant 0 : index
    %c0_113 = arith.constant 0 : index
    %372 = vector.load %arg24[%c0_111, %c0_112, %c0_113] : memref<1x64x64xf32, #tpu.memory_space<vmem>>, vector<1x64x64xf32>
    %373 = vector.shape_cast %372 : vector<1x64x64xf32> to vector<64x64xf32>
    %c0_114 = arith.constant 0 : index
    %c0_115 = arith.constant 0 : index
    %c0_116 = arith.constant 0 : index
    %374 = vector.load %arg25[%c0_114, %c0_115, %c0_116] : memref<1x64x64xf32, #tpu.memory_space<vmem>>, vector<1x64x64xf32>
    %375 = vector.shape_cast %374 : vector<1x64x64xf32> to vector<64x64xf32>
    %c0_117 = arith.constant 0 : index
    %c0_118 = arith.constant 0 : index
    %c0_119 = arith.constant 0 : index
    %376 = vector.load %arg26[%c0_117, %c0_118, %c0_119] : memref<1x7x64xf32, #tpu.memory_space<vmem>>, vector<1x7x64xf32>
    %377 = vector.shape_cast %376 : vector<1x7x64xf32> to vector<7x64xf32>
    %c0_120 = arith.constant 0 : index
    %c0_121 = arith.constant 0 : index
    %c0_122 = arith.constant 0 : index
    %378 = vector.load %arg27[%c0_120, %c0_121, %c0_122] : memref<1x1x64xf32, #tpu.memory_space<vmem>>, vector<1x1x64xf32>
    %379 = vector.shape_cast %378 : vector<1x1x64xf32> to vector<1x64xf32>
    %c0_123 = arith.constant 0 : index
    %c0_124 = arith.constant 0 : index
    %c0_125 = arith.constant 0 : index
    %380 = vector.load %arg28[%c0_123, %c0_124, %c0_125] : memref<1x1x64xf32, #tpu.memory_space<vmem>>, vector<1x1x64xf32>
    %381 = vector.shape_cast %380 : vector<1x1x64xf32> to vector<1x64xf32>
    %c0_126 = arith.constant 0 : index
    %c0_127 = arith.constant 0 : index
    %c0_128 = arith.constant 0 : index
    %382 = vector.load %arg29[%c0_126, %c0_127, %c0_128] : memref<1x64x64xf32, #tpu.memory_space<vmem>>, vector<1x64x64xf32>
    %383 = vector.shape_cast %382 : vector<1x64x64xf32> to vector<64x64xf32>
    %cst_129 = arith.constant dense<0.000000e+00> : vector<32xf32>
    %384 = vector.multi_reduction <add>, %367, %cst_129 [1] : vector<32x64xf32> to vector<32xf32>
    %385 = vector.shape_cast %384 : vector<32xf32> to vector<32x1xf32>
    %cst_130 = arith.constant 6.400000e+01 : f32
    %386 = vector.broadcast %cst_130 : f32 to vector<32x1xf32>
    %387 = arith.divf %385, %386 : vector<32x1xf32>
    %388 = vector.broadcast %387 : vector<32x1xf32> to vector<32x64xf32>
    %389 = arith.subf %367, %388 : vector<32x64xf32>
    %390 = arith.mulf %389, %389 : vector<32x64xf32>
    %cst_131 = arith.constant dense<0.000000e+00> : vector<32xf32>
    %391 = vector.multi_reduction <add>, %390, %cst_131 [1] : vector<32x64xf32> to vector<32xf32>
    %392 = vector.shape_cast %391 : vector<32xf32> to vector<32x1xf32>
    %cst_132 = arith.constant 6.400000e+01 : f32
    %393 = vector.broadcast %cst_132 : f32 to vector<32x1xf32>
    %394 = arith.divf %392, %393 : vector<32x1xf32>
    %395 = vector.broadcast %387 : vector<32x1xf32> to vector<32x64xf32>
    %396 = arith.subf %367, %395 : vector<32x64xf32>
    %cst_133 = arith.constant 9.99999974E-6 : f32
    %397 = vector.broadcast %cst_133 : f32 to vector<32x1xf32>
    %398 = arith.addf %394, %397 : vector<32x1xf32>
    %399 = math.rsqrt %398 : vector<32x1xf32>
    %400 = vector.broadcast %399 : vector<32x1xf32> to vector<32x64xf32>
    %401 = arith.mulf %396, %400 : vector<32x64xf32>
    %402 = vector.broadcast %369 : vector<1x64xf32> to vector<32x64xf32>
    %403 = arith.mulf %401, %402 : vector<32x64xf32>
    %404 = vector.broadcast %371 : vector<1x64xf32> to vector<32x64xf32>
    %405 = arith.addf %403, %404 : vector<32x64xf32>
    %406 = arith.truncf %405 : vector<32x64xf32> to vector<32x64xbf16>
    %407 = arith.truncf %373 : vector<64x64xf32> to vector<64x64xbf16>
    %cst_134 = arith.constant dense<0.000000e+00> : vector<32x64xf32>
    %408 = tpu.matmul %406, %407, %cst_134 {dimension_numbers = #tpu.dot_dimension_numbers<[1], [0], [0], [1], [0, 0, 1, 1], [], []>} : vector<32x64xbf16>, vector<64x64xbf16>, vector<32x64xf32> -> vector<32x64xf32>
    %409 = arith.truncf %405 : vector<32x64xf32> to vector<32x64xbf16>
    %410 = arith.truncf %375 : vector<64x64xf32> to vector<64x64xbf16>
    %cst_135 = arith.constant dense<0.000000e+00> : vector<32x64xf32>
    %411 = tpu.matmul %409, %410, %cst_135 {dimension_numbers = #tpu.dot_dimension_numbers<[1], [0], [0], [1], [0, 0, 1, 1], [], []>} : vector<32x64xbf16>, vector<64x64xbf16>, vector<32x64xf32> -> vector<32x64xf32>
    %412 = arith.negf %411 : vector<32x64xf32>
    %413 = math.exp %412 : vector<32x64xf32>
    %cst_136 = arith.constant 1.000000e+00 : f32
    %414 = vector.broadcast %cst_136 : f32 to vector<32x64xf32>
    %415 = arith.addf %414, %413 : vector<32x64xf32>
    %416 = arith.divf %414, %415 : vector<32x64xf32>
    %417 = arith.mulf %408, %416 : vector<32x64xf32>
    %418 = tpu.iota {dimensions = array<i32: 1>} : vector<2x16x1xi32>
    %419 = vector.shape_cast %418 : vector<2x16x1xi32> to vector<32x1xi32>
    %cst_137 = arith.constant 0.000000e+00 : f32
    %420 = vector.broadcast %cst_137 : f32 to vector<32x64xf32>
    %c3_i32 = arith.constant 3 : i32
    %421 = tpu.dynamic_rotate %417 by %c3_i32 dim 0 : vector<32x64xf32>, i32 -> vector<32x64xf32>
    %c-3_i32 = arith.constant -3 : i32
    %422 = vector.broadcast %c-3_i32 : i32 to vector<32x1xi32>
    %423 = arith.addi %419, %422 : vector<32x1xi32>
    %c0_i32_138 = arith.constant 0 : i32
    %424 = vector.broadcast %c0_i32_138 : i32 to vector<32x1xi32>
    %425 = arith.cmpi sge, %423, %424 : vector<32x1xi32>
    %c-3_i32_139 = arith.constant -3 : i32
    %426 = vector.broadcast %c-3_i32_139 : i32 to vector<32x1xi32>
    %427 = arith.addi %419, %426 : vector<32x1xi32>
    %c15_i32 = arith.constant 15 : i32
    %428 = vector.broadcast %c15_i32 : i32 to vector<32x1xi32>
    %429 = arith.cmpi sle, %427, %428 : vector<32x1xi32>
    %430 = arith.andi %425, %429 : vector<32x1xi1>
    %cst_140 = arith.constant 0.000000e+00 : f32
    %431 = vector.shape_cast %430 : vector<32x1xi1> to vector<32x1xi1>
    %432 = vector.broadcast %431 : vector<32x1xi1> to vector<32x64xi1>
    %433 = vector.broadcast %cst_140 : f32 to vector<32x64xf32>
    %434 = arith.select %432, %421, %433 : vector<32x64xi1>, vector<32x64xf32>
    %435 = vector.extract_strided_slice %377 {offsets = [0, 0], sizes = [1, 64], strides = [1, 1]} : vector<7x64xf32> to vector<1x64xf32>
    %436 = vector.broadcast %435 : vector<1x64xf32> to vector<32x64xf32>
    %437 = arith.mulf %434, %436 : vector<32x64xf32>
    %438 = arith.addf %420, %437 : vector<32x64xf32>
    %c2_i32 = arith.constant 2 : i32
    %439 = tpu.dynamic_rotate %417 by %c2_i32 dim 0 : vector<32x64xf32>, i32 -> vector<32x64xf32>
    %c-2_i32 = arith.constant -2 : i32
    %440 = vector.broadcast %c-2_i32 : i32 to vector<32x1xi32>
    %441 = arith.addi %419, %440 : vector<32x1xi32>
    %c0_i32_141 = arith.constant 0 : i32
    %442 = vector.broadcast %c0_i32_141 : i32 to vector<32x1xi32>
    %443 = arith.cmpi sge, %441, %442 : vector<32x1xi32>
    %c-2_i32_142 = arith.constant -2 : i32
    %444 = vector.broadcast %c-2_i32_142 : i32 to vector<32x1xi32>
    %445 = arith.addi %419, %444 : vector<32x1xi32>
    %c15_i32_143 = arith.constant 15 : i32
    %446 = vector.broadcast %c15_i32_143 : i32 to vector<32x1xi32>
    %447 = arith.cmpi sle, %445, %446 : vector<32x1xi32>
    %448 = arith.andi %443, %447 : vector<32x1xi1>
    %cst_144 = arith.constant 0.000000e+00 : f32
    %449 = vector.shape_cast %448 : vector<32x1xi1> to vector<32x1xi1>
    %450 = vector.broadcast %449 : vector<32x1xi1> to vector<32x64xi1>
    %451 = vector.broadcast %cst_144 : f32 to vector<32x64xf32>
    %452 = arith.select %450, %439, %451 : vector<32x64xi1>, vector<32x64xf32>
    %453 = vector.extract_strided_slice %377 {offsets = [1, 0], sizes = [1, 64], strides = [1, 1]} : vector<7x64xf32> to vector<1x64xf32>
    %454 = vector.broadcast %453 : vector<1x64xf32> to vector<32x64xf32>
    %455 = arith.mulf %452, %454 : vector<32x64xf32>
    %456 = arith.addf %438, %455 : vector<32x64xf32>
    %c1_i32 = arith.constant 1 : i32
    %457 = tpu.dynamic_rotate %417 by %c1_i32 dim 0 : vector<32x64xf32>, i32 -> vector<32x64xf32>
    %c-1_i32 = arith.constant -1 : i32
    %458 = vector.broadcast %c-1_i32 : i32 to vector<32x1xi32>
    %459 = arith.addi %419, %458 : vector<32x1xi32>
    %c0_i32_145 = arith.constant 0 : i32
    %460 = vector.broadcast %c0_i32_145 : i32 to vector<32x1xi32>
    %461 = arith.cmpi sge, %459, %460 : vector<32x1xi32>
    %c-1_i32_146 = arith.constant -1 : i32
    %462 = vector.broadcast %c-1_i32_146 : i32 to vector<32x1xi32>
    %463 = arith.addi %419, %462 : vector<32x1xi32>
    %c15_i32_147 = arith.constant 15 : i32
    %464 = vector.broadcast %c15_i32_147 : i32 to vector<32x1xi32>
    %465 = arith.cmpi sle, %463, %464 : vector<32x1xi32>
    %466 = arith.andi %461, %465 : vector<32x1xi1>
    %cst_148 = arith.constant 0.000000e+00 : f32
    %467 = vector.shape_cast %466 : vector<32x1xi1> to vector<32x1xi1>
    %468 = vector.broadcast %467 : vector<32x1xi1> to vector<32x64xi1>
    %469 = vector.broadcast %cst_148 : f32 to vector<32x64xf32>
    %470 = arith.select %468, %457, %469 : vector<32x64xi1>, vector<32x64xf32>
    %471 = vector.extract_strided_slice %377 {offsets = [2, 0], sizes = [1, 64], strides = [1, 1]} : vector<7x64xf32> to vector<1x64xf32>
    %472 = vector.broadcast %471 : vector<1x64xf32> to vector<32x64xf32>
    %473 = arith.mulf %470, %472 : vector<32x64xf32>
    %474 = arith.addf %456, %473 : vector<32x64xf32>
    %475 = vector.extract_strided_slice %377 {offsets = [3, 0], sizes = [1, 64], strides = [1, 1]} : vector<7x64xf32> to vector<1x64xf32>
    %476 = vector.broadcast %475 : vector<1x64xf32> to vector<32x64xf32>
    %477 = arith.mulf %417, %476 : vector<32x64xf32>
    %478 = arith.addf %474, %477 : vector<32x64xf32>
    %c31_i32 = arith.constant 31 : i32
    %479 = tpu.dynamic_rotate %417 by %c31_i32 dim 0 : vector<32x64xf32>, i32 -> vector<32x64xf32>
    %c1_i32_149 = arith.constant 1 : i32
    %480 = vector.broadcast %c1_i32_149 : i32 to vector<32x1xi32>
    %481 = arith.addi %419, %480 : vector<32x1xi32>
    %c0_i32_150 = arith.constant 0 : i32
    %482 = vector.broadcast %c0_i32_150 : i32 to vector<32x1xi32>
    %483 = arith.cmpi sge, %481, %482 : vector<32x1xi32>
    %c1_i32_151 = arith.constant 1 : i32
    %484 = vector.broadcast %c1_i32_151 : i32 to vector<32x1xi32>
    %485 = arith.addi %419, %484 : vector<32x1xi32>
    %c15_i32_152 = arith.constant 15 : i32
    %486 = vector.broadcast %c15_i32_152 : i32 to vector<32x1xi32>
    %487 = arith.cmpi sle, %485, %486 : vector<32x1xi32>
    %488 = arith.andi %483, %487 : vector<32x1xi1>
    %cst_153 = arith.constant 0.000000e+00 : f32
    %489 = vector.shape_cast %488 : vector<32x1xi1> to vector<32x1xi1>
    %490 = vector.broadcast %489 : vector<32x1xi1> to vector<32x64xi1>
    %491 = vector.broadcast %cst_153 : f32 to vector<32x64xf32>
    %492 = arith.select %490, %479, %491 : vector<32x64xi1>, vector<32x64xf32>
    %493 = vector.extract_strided_slice %377 {offsets = [4, 0], sizes = [1, 64], strides = [1, 1]} : vector<7x64xf32> to vector<1x64xf32>
    %494 = vector.broadcast %493 : vector<1x64xf32> to vector<32x64xf32>
    %495 = arith.mulf %492, %494 : vector<32x64xf32>
    %496 = arith.addf %478, %495 : vector<32x64xf32>
    %c30_i32 = arith.constant 30 : i32
    %497 = tpu.dynamic_rotate %417 by %c30_i32 dim 0 : vector<32x64xf32>, i32 -> vector<32x64xf32>
    %c2_i32_154 = arith.constant 2 : i32
    %498 = vector.broadcast %c2_i32_154 : i32 to vector<32x1xi32>
    %499 = arith.addi %419, %498 : vector<32x1xi32>
    %c0_i32_155 = arith.constant 0 : i32
    %500 = vector.broadcast %c0_i32_155 : i32 to vector<32x1xi32>
    %501 = arith.cmpi sge, %499, %500 : vector<32x1xi32>
    %c2_i32_156 = arith.constant 2 : i32
    %502 = vector.broadcast %c2_i32_156 : i32 to vector<32x1xi32>
    %503 = arith.addi %419, %502 : vector<32x1xi32>
    %c15_i32_157 = arith.constant 15 : i32
    %504 = vector.broadcast %c15_i32_157 : i32 to vector<32x1xi32>
    %505 = arith.cmpi sle, %503, %504 : vector<32x1xi32>
    %506 = arith.andi %501, %505 : vector<32x1xi1>
    %cst_158 = arith.constant 0.000000e+00 : f32
    %507 = vector.shape_cast %506 : vector<32x1xi1> to vector<32x1xi1>
    %508 = vector.broadcast %507 : vector<32x1xi1> to vector<32x64xi1>
    %509 = vector.broadcast %cst_158 : f32 to vector<32x64xf32>
    %510 = arith.select %508, %497, %509 : vector<32x64xi1>, vector<32x64xf32>
    %511 = vector.extract_strided_slice %377 {offsets = [5, 0], sizes = [1, 64], strides = [1, 1]} : vector<7x64xf32> to vector<1x64xf32>
    %512 = vector.broadcast %511 : vector<1x64xf32> to vector<32x64xf32>
    %513 = arith.mulf %510, %512 : vector<32x64xf32>
    %514 = arith.addf %496, %513 : vector<32x64xf32>
    %c29_i32 = arith.constant 29 : i32
    %515 = tpu.dynamic_rotate %417 by %c29_i32 dim 0 : vector<32x64xf32>, i32 -> vector<32x64xf32>
    %c3_i32_159 = arith.constant 3 : i32
    %516 = vector.broadcast %c3_i32_159 : i32 to vector<32x1xi32>
    %517 = arith.addi %419, %516 : vector<32x1xi32>
    %c0_i32_160 = arith.constant 0 : i32
    %518 = vector.broadcast %c0_i32_160 : i32 to vector<32x1xi32>
    %519 = arith.cmpi sge, %517, %518 : vector<32x1xi32>
    %c3_i32_161 = arith.constant 3 : i32
    %520 = vector.broadcast %c3_i32_161 : i32 to vector<32x1xi32>
    %521 = arith.addi %419, %520 : vector<32x1xi32>
    %c15_i32_162 = arith.constant 15 : i32
    %522 = vector.broadcast %c15_i32_162 : i32 to vector<32x1xi32>
    %523 = arith.cmpi sle, %521, %522 : vector<32x1xi32>
    %524 = arith.andi %519, %523 : vector<32x1xi1>
    %cst_163 = arith.constant 0.000000e+00 : f32
    %525 = vector.shape_cast %524 : vector<32x1xi1> to vector<32x1xi1>
    %526 = vector.broadcast %525 : vector<32x1xi1> to vector<32x64xi1>
    %527 = vector.broadcast %cst_163 : f32 to vector<32x64xf32>
    %528 = arith.select %526, %515, %527 : vector<32x64xi1>, vector<32x64xf32>
    %529 = vector.extract_strided_slice %377 {offsets = [6, 0], sizes = [1, 64], strides = [1, 1]} : vector<7x64xf32> to vector<1x64xf32>
    %530 = vector.broadcast %529 : vector<1x64xf32> to vector<32x64xf32>
    %531 = arith.mulf %528, %530 : vector<32x64xf32>
    %532 = arith.addf %514, %531 : vector<32x64xf32>
    %533 = vector.broadcast %379 : vector<1x64xf32> to vector<32x64xf32>
    %534 = arith.mulf %532, %533 : vector<32x64xf32>
    %535 = vector.broadcast %381 : vector<1x64xf32> to vector<32x64xf32>
    %536 = arith.addf %534, %535 : vector<32x64xf32>
    %537 = arith.negf %536 : vector<32x64xf32>
    %538 = math.exp %537 : vector<32x64xf32>
    %cst_164 = arith.constant 1.000000e+00 : f32
    %539 = vector.broadcast %cst_164 : f32 to vector<32x64xf32>
    %540 = arith.addf %539, %538 : vector<32x64xf32>
    %541 = arith.divf %539, %540 : vector<32x64xf32>
    %542 = arith.mulf %536, %541 : vector<32x64xf32>
    %543 = arith.truncf %542 : vector<32x64xf32> to vector<32x64xbf16>
    %544 = arith.truncf %383 : vector<64x64xf32> to vector<64x64xbf16>
    %cst_165 = arith.constant dense<0.000000e+00> : vector<32x64xf32>
    %545 = tpu.matmul %543, %544, %cst_165 {dimension_numbers = #tpu.dot_dimension_numbers<[1], [0], [0], [1], [0, 0, 1, 1], [], []>} : vector<32x64xbf16>, vector<64x64xbf16>, vector<32x64xf32> -> vector<32x64xf32>
    %546 = arith.addf %367, %545 : vector<32x64xf32>
    %c0_166 = arith.constant 0 : index
    %c0_167 = arith.constant 0 : index
    %c0_168 = arith.constant 0 : index
    %547 = vector.load %arg30[%c0_166, %c0_167, %c0_168] : memref<1x1x64xf32, #tpu.memory_space<vmem>>, vector<1x1x64xf32>
    %548 = vector.shape_cast %547 : vector<1x1x64xf32> to vector<1x64xf32>
    %c0_169 = arith.constant 0 : index
    %c0_170 = arith.constant 0 : index
    %c0_171 = arith.constant 0 : index
    %549 = vector.load %arg31[%c0_169, %c0_170, %c0_171] : memref<1x1x64xf32, #tpu.memory_space<vmem>>, vector<1x1x64xf32>
    %550 = vector.shape_cast %549 : vector<1x1x64xf32> to vector<1x64xf32>
    %c0_172 = arith.constant 0 : index
    %c0_173 = arith.constant 0 : index
    %c0_174 = arith.constant 0 : index
    %551 = vector.load %arg32[%c0_172, %c0_173, %c0_174] : memref<1x64x128xf32, #tpu.memory_space<vmem>>, vector<1x64x128xf32>
    %552 = vector.shape_cast %551 : vector<1x64x128xf32> to vector<64x128xf32>
    %c0_175 = arith.constant 0 : index
    %c0_176 = arith.constant 0 : index
    %c0_177 = arith.constant 0 : index
    %553 = vector.load %arg33[%c0_175, %c0_176, %c0_177] : memref<1x1x128xf32, #tpu.memory_space<vmem>>, vector<1x1x128xf32>
    %554 = vector.shape_cast %553 : vector<1x1x128xf32> to vector<1x128xf32>
    %c0_178 = arith.constant 0 : index
    %c0_179 = arith.constant 0 : index
    %c0_180 = arith.constant 0 : index
    %555 = vector.load %arg34[%c0_178, %c0_179, %c0_180] : memref<1x128x64xf32, #tpu.memory_space<vmem>>, vector<1x128x64xf32>
    %556 = vector.shape_cast %555 : vector<1x128x64xf32> to vector<128x64xf32>
    %c0_181 = arith.constant 0 : index
    %c0_182 = arith.constant 0 : index
    %c0_183 = arith.constant 0 : index
    %557 = vector.load %arg35[%c0_181, %c0_182, %c0_183] : memref<1x1x64xf32, #tpu.memory_space<vmem>>, vector<1x1x64xf32>
    %558 = vector.shape_cast %557 : vector<1x1x64xf32> to vector<1x64xf32>
    %cst_184 = arith.constant dense<0.000000e+00> : vector<32xf32>
    %559 = vector.multi_reduction <add>, %546, %cst_184 [1] : vector<32x64xf32> to vector<32xf32>
    %560 = vector.shape_cast %559 : vector<32xf32> to vector<32x1xf32>
    %cst_185 = arith.constant 6.400000e+01 : f32
    %561 = vector.broadcast %cst_185 : f32 to vector<32x1xf32>
    %562 = arith.divf %560, %561 : vector<32x1xf32>
    %563 = vector.broadcast %562 : vector<32x1xf32> to vector<32x64xf32>
    %564 = arith.subf %546, %563 : vector<32x64xf32>
    %565 = arith.mulf %564, %564 : vector<32x64xf32>
    %cst_186 = arith.constant dense<0.000000e+00> : vector<32xf32>
    %566 = vector.multi_reduction <add>, %565, %cst_186 [1] : vector<32x64xf32> to vector<32xf32>
    %567 = vector.shape_cast %566 : vector<32xf32> to vector<32x1xf32>
    %cst_187 = arith.constant 6.400000e+01 : f32
    %568 = vector.broadcast %cst_187 : f32 to vector<32x1xf32>
    %569 = arith.divf %567, %568 : vector<32x1xf32>
    %570 = vector.broadcast %562 : vector<32x1xf32> to vector<32x64xf32>
    %571 = arith.subf %546, %570 : vector<32x64xf32>
    %cst_188 = arith.constant 9.99999974E-6 : f32
    %572 = vector.broadcast %cst_188 : f32 to vector<32x1xf32>
    %573 = arith.addf %569, %572 : vector<32x1xf32>
    %574 = math.rsqrt %573 : vector<32x1xf32>
    %575 = vector.broadcast %574 : vector<32x1xf32> to vector<32x64xf32>
    %576 = arith.mulf %571, %575 : vector<32x64xf32>
    %577 = vector.broadcast %548 : vector<1x64xf32> to vector<32x64xf32>
    %578 = arith.mulf %576, %577 : vector<32x64xf32>
    %579 = vector.broadcast %550 : vector<1x64xf32> to vector<32x64xf32>
    %580 = arith.addf %578, %579 : vector<32x64xf32>
    %581 = arith.truncf %580 : vector<32x64xf32> to vector<32x64xbf16>
    %582 = arith.truncf %552 : vector<64x128xf32> to vector<64x128xbf16>
    %cst_189 = arith.constant dense<0.000000e+00> : vector<32x128xf32>
    %583 = tpu.matmul %581, %582, %cst_189 {dimension_numbers = #tpu.dot_dimension_numbers<[1], [0], [0], [1], [0, 0, 1, 1], [], []>} : vector<32x64xbf16>, vector<64x128xbf16>, vector<32x128xf32> -> vector<32x128xf32>
    %584 = vector.broadcast %554 : vector<1x128xf32> to vector<32x128xf32>
    %585 = arith.addf %583, %584 : vector<32x128xf32>
    %586 = arith.negf %585 : vector<32x128xf32>
    %587 = math.exp %586 : vector<32x128xf32>
    %cst_190 = arith.constant 1.000000e+00 : f32
    %588 = vector.broadcast %cst_190 : f32 to vector<32x128xf32>
    %589 = arith.addf %588, %587 : vector<32x128xf32>
    %590 = arith.divf %588, %589 : vector<32x128xf32>
    %591 = arith.mulf %585, %590 : vector<32x128xf32>
    %592 = arith.truncf %591 : vector<32x128xf32> to vector<32x128xbf16>
    %593 = arith.truncf %556 : vector<128x64xf32> to vector<128x64xbf16>
    %cst_191 = arith.constant dense<0.000000e+00> : vector<32x64xf32>
    %594 = tpu.matmul %592, %593, %cst_191 {dimension_numbers = #tpu.dot_dimension_numbers<[1], [0], [0], [1], [0, 0, 1, 1], [], []>} : vector<32x128xbf16>, vector<128x64xbf16>, vector<32x64xf32> -> vector<32x64xf32>
    %595 = vector.broadcast %558 : vector<1x64xf32> to vector<32x64xf32>
    %596 = arith.addf %594, %595 : vector<32x64xf32>
    %cst_192 = arith.constant 5.000000e-01 : f32
    %597 = vector.broadcast %cst_192 : f32 to vector<32x64xf32>
    %598 = arith.mulf %597, %596 : vector<32x64xf32>
    %599 = arith.addf %546, %598 : vector<32x64xf32>
    %c0_193 = arith.constant 0 : index
    %c0_194 = arith.constant 0 : index
    %c0_195 = arith.constant 0 : index
    %600 = vector.load %arg36[%c0_193, %c0_194, %c0_195] : memref<1x1x64xf32, #tpu.memory_space<vmem>>, vector<1x1x64xf32>
    %601 = vector.shape_cast %600 : vector<1x1x64xf32> to vector<1x64xf32>
    %c0_196 = arith.constant 0 : index
    %c0_197 = arith.constant 0 : index
    %c0_198 = arith.constant 0 : index
    %602 = vector.load %arg37[%c0_196, %c0_197, %c0_198] : memref<1x1x64xf32, #tpu.memory_space<vmem>>, vector<1x1x64xf32>
    %603 = vector.shape_cast %602 : vector<1x1x64xf32> to vector<1x64xf32>
    %cst_199 = arith.constant dense<0.000000e+00> : vector<32xf32>
    %604 = vector.multi_reduction <add>, %599, %cst_199 [1] : vector<32x64xf32> to vector<32xf32>
    %605 = vector.shape_cast %604 : vector<32xf32> to vector<32x1xf32>
    %cst_200 = arith.constant 6.400000e+01 : f32
    %606 = vector.broadcast %cst_200 : f32 to vector<32x1xf32>
    %607 = arith.divf %605, %606 : vector<32x1xf32>
    %608 = vector.broadcast %607 : vector<32x1xf32> to vector<32x64xf32>
    %609 = arith.subf %599, %608 : vector<32x64xf32>
    %610 = arith.mulf %609, %609 : vector<32x64xf32>
    %cst_201 = arith.constant dense<0.000000e+00> : vector<32xf32>
    %611 = vector.multi_reduction <add>, %610, %cst_201 [1] : vector<32x64xf32> to vector<32xf32>
    %612 = vector.shape_cast %611 : vector<32xf32> to vector<32x1xf32>
    %cst_202 = arith.constant 6.400000e+01 : f32
    %613 = vector.broadcast %cst_202 : f32 to vector<32x1xf32>
    %614 = arith.divf %612, %613 : vector<32x1xf32>
    %615 = vector.broadcast %607 : vector<32x1xf32> to vector<32x64xf32>
    %616 = arith.subf %599, %615 : vector<32x64xf32>
    %cst_203 = arith.constant 9.99999974E-6 : f32
    %617 = vector.broadcast %cst_203 : f32 to vector<32x1xf32>
    %618 = arith.addf %614, %617 : vector<32x1xf32>
    %619 = math.rsqrt %618 : vector<32x1xf32>
    %620 = vector.broadcast %619 : vector<32x1xf32> to vector<32x64xf32>
    %621 = arith.mulf %616, %620 : vector<32x64xf32>
    %622 = vector.broadcast %601 : vector<1x64xf32> to vector<32x64xf32>
    %623 = arith.mulf %621, %622 : vector<32x64xf32>
    %624 = vector.broadcast %603 : vector<1x64xf32> to vector<32x64xf32>
    %625 = arith.addf %623, %624 : vector<32x64xf32>
    %c0_204 = arith.constant 0 : index
    %c0_205 = arith.constant 0 : index
    %626 = vector.load %arg39[%c0_204, %c0_205] : memref<32x64xf32, #tpu.memory_space<vmem>>, vector<32x64xf32>
    tpu.vector_store %arg39[%c0_204, %c0_205], %625 {strides = array<i32>} : memref<32x64xf32, #tpu.memory_space<vmem>>, vector<32x64xf32>,
    %c1_i32_206 = arith.constant 1 : i32
    %627 = arith.cmpi eq, %arg0, %c1_i32_206 : i32
    %628 = arith.extui %627 : i1 to i32
    %c0_i32_207 = arith.constant 0 : i32
    %629 = arith.cmpi ne, %628, %c0_i32_207 : i32
    scf.if %629 {
      %630 = vector.extract_strided_slice %625 {offsets = [0, 0], sizes = [16, 64], strides = [1, 1]} : vector<32x64xf32> to vector<16x64xf32>
      %c0_208 = arith.constant 0 : index
      %c0_209 = arith.constant 0 : index
      %631 = vector.load %arg38[%c0_208, %c0_209] : memref<16x128xf32, #tpu.memory_space<vmem>>, vector<16x64xf32>
      tpu.vector_store %arg38[%c0_208, %c0_209], %630 {strides = array<i32>} : memref<16x128xf32, #tpu.memory_space<vmem>>, vector<16x64xf32>,
      %632 = vector.extract_strided_slice %625 {offsets = [16, 0], sizes = [16, 64], strides = [1, 1]} : vector<32x64xf32> to vector<16x64xf32>
      %c0_210 = arith.constant 0 : index
      %c64 = arith.constant 64 : index
      %633 = vector.load %arg38[%c0_210, %c64] : memref<16x128xf32, #tpu.memory_space<vmem>>, vector<16x64xf32>
      tpu.vector_store %arg38[%c0_210, %c64], %632 {strides = array<i32>} : memref<16x128xf32, #tpu.memory_space<vmem>>, vector<16x64xf32>,
    } else {
    }
    return
  }
  func.func @transform_0(%arg0: i32) -> (i32, i32, i32) {
    %c0_i32 = arith.constant 0 : i32
    %c0_i32_0 = arith.constant 0 : i32
    %c0_i32_1 = arith.constant 0 : i32
    %c0_i32_2 = arith.constant 0 : i32
    return %c0_i32, %c0_i32_0, %c0_i32_1 : i32, i32, i32
  }
  func.func @transform_1(%arg0: i32) -> (i32, i32, i32) {
    %c0_i32 = arith.constant 0 : i32
    %c0_i32_0 = arith.constant 0 : i32
    %c0_i32_1 = arith.constant 0 : i32
    %c0_i32_2 = arith.constant 0 : i32
    return %c0_i32, %c0_i32_0, %c0_i32_1 : i32, i32, i32
  }
  func.func @transform_2(%arg0: i32) -> (i32, i32, i32) {
    %c0_i32 = arith.constant 0 : i32
    %c0_i32_0 = arith.constant 0 : i32
    %c0_i32_1 = arith.constant 0 : i32
    %c0_i32_2 = arith.constant 0 : i32
    return %c0_i32, %c0_i32_0, %c0_i32_1 : i32, i32, i32
  }
  func.func @transform_3(%arg0: i32) -> (i32, i32) {
    %c0_i32 = arith.constant 0 : i32
    %c0_i32_0 = arith.constant 0 : i32
    %c0_i32_1 = arith.constant 0 : i32
    return %c0_i32, %c0_i32_0 : i32, i32
  }
  func.func @transform_4(%arg0: i32) -> (i32, i32) {
    %c0_i32 = arith.constant 0 : i32
    %c0_i32_0 = arith.constant 0 : i32
    %c0_i32_1 = arith.constant 0 : i32
    return %c0_i32, %c0_i32_0 : i32, i32
  }
  func.func @transform_5(%arg0: i32) -> (i32, i32) {
    %c0_i32 = arith.constant 0 : i32
    %c0_i32_0 = arith.constant 0 : i32
    %c0_i32_1 = arith.constant 0 : i32
    return %c0_i32, %c0_i32_0 : i32, i32
  }
  func.func @transform_6(%arg0: i32) -> (i32, i32, i32) {
    %c0_i32 = arith.constant 0 : i32
    %c0_i32_0 = arith.constant 0 : i32
    %c0_i32_1 = arith.constant 0 : i32
    return %arg0, %c0_i32, %c0_i32_0 : i32, i32, i32
  }
  func.func @transform_7(%arg0: i32) -> (i32, i32, i32) {
    %c0_i32 = arith.constant 0 : i32
    %c0_i32_0 = arith.constant 0 : i32
    %c0_i32_1 = arith.constant 0 : i32
    return %arg0, %c0_i32, %c0_i32_0 : i32, i32, i32
  }
  func.func @transform_8(%arg0: i32) -> (i32, i32, i32) {
    %c0_i32 = arith.constant 0 : i32
    %c0_i32_0 = arith.constant 0 : i32
    %c0_i32_1 = arith.constant 0 : i32
    return %arg0, %c0_i32, %c0_i32_0 : i32, i32, i32
  }
  func.func @transform_9(%arg0: i32) -> (i32, i32, i32) {
    %c0_i32 = arith.constant 0 : i32
    %c0_i32_0 = arith.constant 0 : i32
    %c0_i32_1 = arith.constant 0 : i32
    return %arg0, %c0_i32, %c0_i32_0 : i32, i32, i32
  }
  func.func @transform_10(%arg0: i32) -> (i32, i32, i32) {
    %c0_i32 = arith.constant 0 : i32
    %c0_i32_0 = arith.constant 0 : i32
    %c0_i32_1 = arith.constant 0 : i32
    return %arg0, %c0_i32, %c0_i32_0 : i32, i32, i32
  }
  func.func @transform_11(%arg0: i32) -> (i32, i32, i32) {
    %c0_i32 = arith.constant 0 : i32
    %c0_i32_0 = arith.constant 0 : i32
    %c0_i32_1 = arith.constant 0 : i32
    return %arg0, %c0_i32, %c0_i32_0 : i32, i32, i32
  }
  func.func @transform_12(%arg0: i32) -> (i32, i32, i32) {
    %c0_i32 = arith.constant 0 : i32
    %c0_i32_0 = arith.constant 0 : i32
    %c0_i32_1 = arith.constant 0 : i32
    return %arg0, %c0_i32, %c0_i32_0 : i32, i32, i32
  }
  func.func @transform_13(%arg0: i32) -> (i32, i32, i32) {
    %c0_i32 = arith.constant 0 : i32
    %c0_i32_0 = arith.constant 0 : i32
    %c0_i32_1 = arith.constant 0 : i32
    return %arg0, %c0_i32, %c0_i32_0 : i32, i32, i32
  }
  func.func @transform_14(%arg0: i32) -> (i32, i32, i32) {
    %c0_i32 = arith.constant 0 : i32
    %c0_i32_0 = arith.constant 0 : i32
    %c0_i32_1 = arith.constant 0 : i32
    return %arg0, %c0_i32, %c0_i32_0 : i32, i32, i32
  }
  func.func @transform_15(%arg0: i32) -> (i32, i32, i32) {
    %c0_i32 = arith.constant 0 : i32
    %c0_i32_0 = arith.constant 0 : i32
    %c0_i32_1 = arith.constant 0 : i32
    return %arg0, %c0_i32, %c0_i32_0 : i32, i32, i32
  }
  func.func @transform_16(%arg0: i32) -> (i32, i32, i32) {
    %c0_i32 = arith.constant 0 : i32
    %c0_i32_0 = arith.constant 0 : i32
    %c0_i32_1 = arith.constant 0 : i32
    return %arg0, %c0_i32, %c0_i32_0 : i32, i32, i32
  }
  func.func @transform_17(%arg0: i32) -> (i32, i32, i32) {
    %c0_i32 = arith.constant 0 : i32
    %c0_i32_0 = arith.constant 0 : i32
    %c0_i32_1 = arith.constant 0 : i32
    return %arg0, %c0_i32, %c0_i32_0 : i32, i32, i32
  }
  func.func @transform_18(%arg0: i32) -> (i32, i32, i32) {
    %c0_i32 = arith.constant 0 : i32
    %c0_i32_0 = arith.constant 0 : i32
    %c0_i32_1 = arith.constant 0 : i32
    return %arg0, %c0_i32, %c0_i32_0 : i32, i32, i32
  }
  func.func @transform_19(%arg0: i32) -> (i32, i32, i32) {
    %c0_i32 = arith.constant 0 : i32
    %c0_i32_0 = arith.constant 0 : i32
    %c0_i32_1 = arith.constant 0 : i32
    return %arg0, %c0_i32, %c0_i32_0 : i32, i32, i32
  }
  func.func @transform_20(%arg0: i32) -> (i32, i32, i32) {
    %c0_i32 = arith.constant 0 : i32
    %c0_i32_0 = arith.constant 0 : i32
    %c0_i32_1 = arith.constant 0 : i32
    return %arg0, %c0_i32, %c0_i32_0 : i32, i32, i32
  }
  func.func @transform_21(%arg0: i32) -> (i32, i32, i32) {
    %c0_i32 = arith.constant 0 : i32
    %c0_i32_0 = arith.constant 0 : i32
    %c0_i32_1 = arith.constant 0 : i32
    return %arg0, %c0_i32, %c0_i32_0 : i32, i32, i32
  }
  func.func @transform_22(%arg0: i32) -> (i32, i32, i32) {
    %c0_i32 = arith.constant 0 : i32
    %c0_i32_0 = arith.constant 0 : i32
    %c0_i32_1 = arith.constant 0 : i32
    return %arg0, %c0_i32, %c0_i32_0 : i32, i32, i32
  }
  func.func @transform_23(%arg0: i32) -> (i32, i32, i32) {
    %c0_i32 = arith.constant 0 : i32
    %c0_i32_0 = arith.constant 0 : i32
    %c0_i32_1 = arith.constant 0 : i32
    return %arg0, %c0_i32, %c0_i32_0 : i32, i32, i32
  }
  func.func @transform_24(%arg0: i32) -> (i32, i32, i32) {
    %c0_i32 = arith.constant 0 : i32
    %c0_i32_0 = arith.constant 0 : i32
    %c0_i32_1 = arith.constant 0 : i32
    return %arg0, %c0_i32, %c0_i32_0 : i32, i32, i32
  }
  func.func @transform_25(%arg0: i32) -> (i32, i32, i32) {
    %c0_i32 = arith.constant 0 : i32
    %c0_i32_0 = arith.constant 0 : i32
    %c0_i32_1 = arith.constant 0 : i32
    return %arg0, %c0_i32, %c0_i32_0 : i32, i32, i32
  }
  func.func @transform_26(%arg0: i32) -> (i32, i32, i32) {
    %c0_i32 = arith.constant 0 : i32
    %c0_i32_0 = arith.constant 0 : i32
    %c0_i32_1 = arith.constant 0 : i32
    return %arg0, %c0_i32, %c0_i32_0 : i32, i32, i32
  }
  func.func @transform_27(%arg0: i32) -> (i32, i32, i32) {
    %c0_i32 = arith.constant 0 : i32
    %c0_i32_0 = arith.constant 0 : i32
    %c0_i32_1 = arith.constant 0 : i32
    return %arg0, %c0_i32, %c0_i32_0 : i32, i32, i32
  }
  func.func @transform_28(%arg0: i32) -> (i32, i32, i32) {
    %c0_i32 = arith.constant 0 : i32
    %c0_i32_0 = arith.constant 0 : i32
    %c0_i32_1 = arith.constant 0 : i32
    return %arg0, %c0_i32, %c0_i32_0 : i32, i32, i32
  }
  func.func @transform_29(%arg0: i32) -> (i32, i32, i32) {
    %c0_i32 = arith.constant 0 : i32
    %c0_i32_0 = arith.constant 0 : i32
    %c0_i32_1 = arith.constant 0 : i32
    return %arg0, %c0_i32, %c0_i32_0 : i32, i32, i32
  }
  func.func @transform_30(%arg0: i32) -> (i32, i32, i32) {
    %c0_i32 = arith.constant 0 : i32
    %c0_i32_0 = arith.constant 0 : i32
    %c0_i32_1 = arith.constant 0 : i32
    return %arg0, %c0_i32, %c0_i32_0 : i32, i32, i32
  }
  func.func @transform_31(%arg0: i32) -> (i32, i32, i32) {
    %c0_i32 = arith.constant 0 : i32
    %c0_i32_0 = arith.constant 0 : i32
    %c0_i32_1 = arith.constant 0 : i32
    return %arg0, %c0_i32, %c0_i32_0 : i32, i32, i32
  }
  func.func @transform_32(%arg0: i32) -> (i32, i32, i32) {
    %c0_i32 = arith.constant 0 : i32
    %c0_i32_0 = arith.constant 0 : i32
    %c0_i32_1 = arith.constant 0 : i32
    return %arg0, %c0_i32, %c0_i32_0 : i32, i32, i32
  }
  func.func @transform_33(%arg0: i32) -> (i32, i32, i32) {
    %c0_i32 = arith.constant 0 : i32
    %c0_i32_0 = arith.constant 0 : i32
    %c0_i32_1 = arith.constant 0 : i32
    return %arg0, %c0_i32, %c0_i32_0 : i32, i32, i32
  }
  func.func @transform_34(%arg0: i32) -> (i32, i32, i32) {
    %c0_i32 = arith.constant 0 : i32
    %c0_i32_0 = arith.constant 0 : i32
    %c0_i32_1 = arith.constant 0 : i32
    return %arg0, %c0_i32, %c0_i32_0 : i32, i32, i32
  }
  func.func @transform_35(%arg0: i32) -> (i32, i32, i32) {
    %c0_i32 = arith.constant 0 : i32
    %c0_i32_0 = arith.constant 0 : i32
    %c0_i32_1 = arith.constant 0 : i32
    return %arg0, %c0_i32, %c0_i32_0 : i32, i32, i32
  }
  func.func @transform_36(%arg0: i32) -> (i32, i32, i32) {
    %c0_i32 = arith.constant 0 : i32
    %c0_i32_0 = arith.constant 0 : i32
    %c0_i32_1 = arith.constant 0 : i32
    return %arg0, %c0_i32, %c0_i32_0 : i32, i32, i32
  }
  func.func @transform_37(%arg0: i32) -> (i32, i32) {
    %c0_i32 = arith.constant 0 : i32
    %c0_i32_0 = arith.constant 0 : i32
    %c0_i32_1 = arith.constant 0 : i32
    return %c0_i32, %c0_i32_0 : i32, i32
  }
}

</mosaic_0001>

<llo_original>
// kernel: tpu_custom_call.1
$region0: #{tpu_custom_call.1}
  #allocation0 [shape = 'u32[]', space=smem, size = 0x4, offset = 0x4, fixed_abs, tag = 'smem constant byte address 0x4 - core index']
  #allocation1 [shape = 'u32[72,128]{1,0:T(1,128)}', space=vmem, size = 0x9000, scoped, tag = 'internal scratch']
  #allocation2 [shape = 'f32[32,64]{1,0:T(8,128)}', space=vmem, size = 0x4000, scoped, tag = 'scratch operand']
  %s0 = inlined_call_operand.smem [shape: u32[38], index: -1, kind: input, shape index: {}]
  %s1 = sld [smem:[%s0]]
  %s2 = scalar_lea.smem %s0, 1
  %s3 = sld [smem:[%s2]]
  %s4 = scalar_lea.smem %s0, 2
  %s5 = sld [smem:[%s4]]
  %s6 = scalar_lea.smem %s0, 3
  %s7 = sld [smem:[%s6]]
  %s8 = scalar_lea.smem %s0, 4
  %s9 = sld [smem:[%s8]]
  %s10 = scalar_lea.smem %s0, 5
  %s11 = sld [smem:[%s10]]
  %s12 = scalar_lea.smem %s0, 6
  %s13 = sld [smem:[%s12]]
  %s14 = scalar_lea.smem %s0, 7
  %s15 = sld [smem:[%s14]]
  %s16 = scalar_lea.smem %s0, 8
  %s17 = sld [smem:[%s16]]
  %s18 = scalar_lea.smem %s0, 9
  %s19 = sld [smem:[%s18]]
  %s20 = scalar_lea.smem %s0, 10
  %s21 = sld [smem:[%s20]]
  %s22 = scalar_lea.smem %s0, 11
  %s23 = sld [smem:[%s22]]
  %s24 = scalar_lea.smem %s0, 12
  %s25 = sld [smem:[%s24]]
  %s26 = scalar_lea.smem %s0, 13
  %s27 = sld [smem:[%s26]]
  %s28 = scalar_lea.smem %s0, 14
  %s29 = sld [smem:[%s28]]
  %s30 = scalar_lea.smem %s0, 15
  %s31 = sld [smem:[%s30]]
  %s32 = scalar_lea.smem %s0, 16
  %s33 = sld [smem:[%s32]]
  %s34 = scalar_lea.smem %s0, 17
  %s35 = sld [smem:[%s34]]
  %s36 = scalar_lea.smem %s0, 18
  %s37 = sld [smem:[%s36]]
  %s38 = scalar_lea.smem %s0, 19
  %s39 = sld [smem:[%s38]]
  %s40 = scalar_lea.smem %s0, 20
  %s41 = sld [smem:[%s40]]
  %s42 = scalar_lea.smem %s0, 21
  %s43 = sld [smem:[%s42]]
  %s44 = scalar_lea.smem %s0, 22
  %s45 = sld [smem:[%s44]]
  %s46 = scalar_lea.smem %s0, 23
  %s47 = sld [smem:[%s46]]
  %s48 = scalar_lea.smem %s0, 24
  %s49 = sld [smem:[%s48]]
  %s50 = scalar_lea.smem %s0, 25
  %s51 = sld [smem:[%s50]]
  %s52 = scalar_lea.smem %s0, 26
  %s53 = sld [smem:[%s52]]
  %s54 = scalar_lea.smem %s0, 27
  %s55 = sld [smem:[%s54]]
  %s56 = scalar_lea.smem %s0, 28
  %s57 = sld [smem:[%s56]]
  %s58 = scalar_lea.smem %s0, 29
  %s59 = sld [smem:[%s58]]
  %s60 = scalar_lea.smem %s0, 30
  %s61 = sld [smem:[%s60]]
  %s62 = scalar_lea.smem %s0, 31
  %s63 = sld [smem:[%s62]]
  %s64 = scalar_lea.smem %s0, 32
  %s65 = sld [smem:[%s64]]
  %s66 = scalar_lea.smem %s0, 33
  %s67 = sld [smem:[%s66]]
  %s68 = scalar_lea.smem %s0, 34
  %s69 = sld [smem:[%s68]]
  %s70 = scalar_lea.smem %s0, 35
  %s71 = sld [smem:[%s70]]
  %s72 = scalar_lea.smem %s0, 36
  %s73 = sld [smem:[%s72]]
  %s74 = scalar_lea.smem %s0, 37
  %s75 = sld [smem:[%s74]]
  %s76 = sld [smem:[#allocation0]]
  $region229: #{tpu_custom_call.1} parent=0
    _
  %s78 = ssub.s32 1, %s76
  %s79 = scalar_select 0, %s78, %s76
  $region1: #{tpu_custom_call.1} parent=0
    #allocation3 [shape = 'u8[16384]{0}', space=vmem, size = 0x4000, scoped, tag = 'input window, operand 0, single buffered']
    #allocation4 [shape = 's32[2]{0}', space=sflag, size = 0x8, scoped, tag = 'scoped memory for tpu_custom_call.1']
    #allocation5 [shape = 's32[2]{0}', space=sflag, size = 0x8, scoped, tag = 'scoped memory for tpu_custom_call.1']
    #allocation6 [shape = 'u8[16384]{0}', space=vmem, size = 0x4000, scoped, tag = 'input window, operand 1, single buffered']
    #allocation7 [shape = 's32[1]{0}', space=sflag, size = 0x4, scoped, tag = 'scoped memory for tpu_custom_call.1']
    #allocation8 [shape = 'u8[16384]{0}', space=vmem, size = 0x4000, scoped, tag = 'input window, operand 3, single buffered']
    #allocation9 [shape = 'u8[32768]{0}', space=vmem, size = 0x8000, scoped, tag = 'input window, operand 4, single buffered']
    #allocation10 [shape = 's32[1]{0}', space=sflag, size = 0x4, scoped, tag = 'scoped memory for tpu_custom_call.1']
    #allocation11 [shape = 'u8[512]{0}', space=vmem, size = 0x400, scoped, tag = 'input window, operand 5, single buffered']
    #allocation12 [shape = 'u8[65536]{0}', space=vmem, size = 0x10000, scoped, tag = 'input window, operand 23']
    #allocation13 [shape = 's32[2]{0}', space=sflag, size = 0x8, scoped, tag = 'scoped memory for tpu_custom_call.1']
    #allocation14 [shape = 'u8[65536]{0}', space=vmem, size = 0x10000, scoped, tag = 'input window, operand 24']
    #allocation15 [shape = 'u8[65536]{0}', space=vmem, size = 0x10000, scoped, tag = 'input window, operand 28']
    #allocation16 [shape = 's32[2]{0}', space=sflag, size = 0x8, scoped, tag = 'scoped memory for tpu_custom_call.1']
    #allocation17 [shape = 'u8[65536]{0}', space=vmem, size = 0x10000, scoped, tag = 'input window, operand 31']
    #allocation18 [shape = 'u8[1024]{0}', space=vmem, size = 0x400, scoped, tag = 'input window, operand 35']
    #allocation19 [shape = 's32[2]{0}', space=sflag, size = 0x8, scoped, tag = 'scoped memory for tpu_custom_call.1']
    #allocation20 [shape = 'u8[8192]{0}', space=vmem, size = 0x2000, scoped, tag = 'output window, operand 0, single buffered']
    %80 = vsyncpa [#allocation4], 0
    %81 = vsyncpa [#allocation7], 0
    %82 = vsyncpa [#allocation10], 0
    %83 = vsyncpa [#allocation13], 0
    %s84 = scalar_lea.sflag [#allocation13], 1
    %85 = vsyncpa %s84, 0
    %86 = vsyncpa [#allocation16], 0
    %s87 = scalar_lea.sflag [#allocation16], 1
    %88 = vsyncpa %s87, 0
    %89 = vsyncpa [#allocation19], 0
    %s90 = scalar_lea.sflag [#allocation19], 1
    %91 = vsyncpa %s90, 0
    %92 = vsyncpa [#allocation5], 0
    loop: start=0, step=1, limit=4
    $region2: #{tpu_custom_call.1} parent=1 // loop_pre_header
      _
    $region3: #{tpu_custom_call.1} parent=1 // loop_header
      %s94 = sphi 0, %s98
      %p95 = scmp.ge.s32.totalorder %s94, 4
      %s102 = sphi 0, %s102
      %s104 = sphi 0, %s102
      %s105 = sphi 0, %s104
      %s119 = sphi 0, %s105
      %s123 = sphi 0, %s123
      %s125 = sphi 0, %s123
      %s126 = sphi 0, %s125
      %s140 = sphi 0, %s126
      %s144 = sphi 0, %s144
      %s146 = sphi 0, %s144
      %s147 = sphi 0, %s146
      %s161 = sphi 0, %s147
      %s165 = sphi 0, %s165
      %s167 = sphi 0, %s165
      %s168 = sphi 0, %s167
      %s182 = sphi 0, %s168
      %s186 = sphi 0, %s186
      %s188 = sphi 0, %s186
      %s189 = sphi 0, %s188
      %s203 = sphi 0, %s189
      %s207 = sphi 0, %s207
      %s209 = sphi 0, %s207
      %s210 = sphi 0, %s209
      %s224 = sphi 0, %s210
      %s230 = sphi 0, %s232
      %s233 = sphi 0, %s230
      %s234 = sphi 0, %s233
      %s250 = sphi 0, %s234
      %s256 = sphi 0, %s258
      %s259 = sphi 0, %s256
      %s260 = sphi 0, %s259
      %s276 = sphi 0, %s260
      %s282 = sphi 0, %s284
      %s285 = sphi 0, %s282
      %s286 = sphi 0, %s285
      %s302 = sphi 0, %s286
      %s308 = sphi 0, %s310
      %s311 = sphi 0, %s308
      %s312 = sphi 0, %s311
      %s328 = sphi 0, %s312
      %s334 = sphi 0, %s336
      %s337 = sphi 0, %s334
      %s338 = sphi 0, %s337
      %s354 = sphi 0, %s338
      %s360 = sphi 0, %s362
      %s363 = sphi 0, %s360
      %s364 = sphi 0, %s363
      %s380 = sphi 0, %s364
      %s386 = sphi 0, %s388
      %s389 = sphi 0, %s386
      %s390 = sphi 0, %s389
      %s406 = sphi 0, %s390
      %s412 = sphi 0, %s414
      %s415 = sphi 0, %s412
      %s416 = sphi 0, %s415
      %s432 = sphi 0, %s416
      %s438 = sphi 0, %s440
      %s441 = sphi 0, %s438
      %s442 = sphi 0, %s441
      %s458 = sphi 0, %s442
      %s464 = sphi 0, %s466
      %s467 = sphi 0, %s464
      %s468 = sphi 0, %s467
      %s484 = sphi 0, %s468
      %s490 = sphi 0, %s492
      %s493 = sphi 0, %s490
      %s494 = sphi 0, %s493
      %s510 = sphi 0, %s494
      %s516 = sphi 0, %s518
      %s519 = sphi 0, %s516
      %s520 = sphi 0, %s519
      %s536 = sphi 0, %s520
      %s542 = sphi 0, %s544
      %s545 = sphi 0, %s542
      %s546 = sphi 0, %s545
      %s562 = sphi 0, %s546
      %s568 = sphi 0, %s570
      %s571 = sphi 0, %s568
      %s572 = sphi 0, %s571
      %s588 = sphi 0, %s572
      %s594 = sphi 0, %s596
      %s597 = sphi 0, %s594
      %s598 = sphi 0, %s597
      %s614 = sphi 0, %s598
      %s620 = sphi 0, %s622
      %s623 = sphi 0, %s620
      %s624 = sphi 0, %s623
      %s640 = sphi 0, %s624
      %s646 = sphi 0, %s648
      %s649 = sphi 0, %s646
      %s650 = sphi 0, %s649
      %s666 = sphi 0, %s650
      %s672 = sphi 0, %s674
      %s675 = sphi 0, %s672
      %s676 = sphi 0, %s675
      %s692 = sphi 0, %s676
      %s698 = sphi 0, %s700
      %s701 = sphi 0, %s698
      %s702 = sphi 0, %s701
      %s718 = sphi 0, %s702
      %s724 = sphi 0, %s726
      %s727 = sphi 0, %s724
      %s728 = sphi 0, %s727
      %s744 = sphi 0, %s728
      %s750 = sphi 0, %s752
      %s753 = sphi 0, %s750
      %s754 = sphi 0, %s753
      %s770 = sphi 0, %s754
      %s776 = sphi 0, %s778
      %s779 = sphi 0, %s776
      %s780 = sphi 0, %s779
      %s796 = sphi 0, %s780
      %s802 = sphi 0, %s804
      %s805 = sphi 0, %s802
      %s806 = sphi 0, %s805
      %s822 = sphi 0, %s806
      %s828 = sphi 0, %s830
      %s831 = sphi 0, %s828
      %s832 = sphi 0, %s831
      %s848 = sphi 0, %s832
      %s854 = sphi 0, %s856
      %s857 = sphi 0, %s854
      %s858 = sphi 0, %s857
      %s874 = sphi 0, %s858
      %s880 = sphi 0, %s882
      %s883 = sphi 0, %s880
      %s884 = sphi 0, %s883
      %s900 = sphi 0, %s884
      %s906 = sphi 0, %s908
      %s909 = sphi 0, %s906
      %s910 = sphi 0, %s909
      %s926 = sphi 0, %s910
      %s932 = sphi 0, %s934
      %s935 = sphi 0, %s932
      %s936 = sphi 0, %s935
      %s952 = sphi 0, %s936
      %s958 = sphi 0, %s960
      %s961 = sphi 0, %s958
      %s962 = sphi 0, %s961
      %s978 = sphi 0, %s962
      %s984 = sphi 0, %s986
      %s987 = sphi 0, %s984
      %s988 = sphi 0, %s987
      %s1004 = sphi 0, %s988
      %s1010 = sphi 0, %s1012
      %s1013 = sphi 0, %s1010
      %s1014 = sphi 0, %s1013
      %s1030 = sphi 0, %s1014
      %s1034 = sphi 0, %s1034
      %s1036 = sphi 0, %s1034
      %s1037 = sphi 0, %s1036
      %s1051 = sphi 0, %s1037
    $region4: #{tpu_custom_call.1} parent=1 // loop_header_branch
      %97 = sbr.rel (%p95) target = $region8
    $region5: #{tpu_custom_call.1} parent=1 // loop_body
      %s99 = ssub.s32 %s94, 1
      %s100 = ssub.s32 %s94, 2
      %s101 = sadd.s32 %s94, 1
      %s103 = sadd.s32 %s102, 1
      %p106 = scmp.eq.s32.totalorder %s94, 1
      %p107 = scmp.ne.s32.totalorder %s102, %s104
      %p108 = scmp.eq.s32.totalorder %s94, 0
      %p109 = por %p107, %p108
      %p110 = scmp.ne.s32.totalorder %s102, %s104
      %p111 = scmp.eq.s32.totalorder %s99, 1
      %p112 = por %p110, %p111
      %p113 = scmp.ne.s32.totalorder %s104, %s105
      %p114 = scmp.eq.s32.totalorder %s99, 0
      %p115 = por %p113, %p114
      %p116 = scmp.ne.s32.totalorder %s104, %s105
      %p117 = scmp.eq.s32.totalorder %s100, 1
      %p118 = por %p116, %p117
      %p120 = scmp.ne.s32.totalorder %s105, %s119
      %p121 = scmp.eq.s32.totalorder %s100, 0
      %p122 = por %p120, %p121
      %s124 = sadd.s32 %s123, 1
      %p127 = scmp.eq.s32.totalorder %s94, 1
      %p128 = scmp.ne.s32.totalorder %s123, %s125
      %p129 = scmp.eq.s32.totalorder %s94, 0
      %p130 = por %p128, %p129
      %p131 = scmp.ne.s32.totalorder %s123, %s125
      %p132 = scmp.eq.s32.totalorder %s99, 1
      %p133 = por %p131, %p132
      %p134 = scmp.ne.s32.totalorder %s125, %s126
      %p135 = scmp.eq.s32.totalorder %s99, 0
      %p136 = por %p134, %p135
      %p137 = scmp.ne.s32.totalorder %s125, %s126
      %p138 = scmp.eq.s32.totalorder %s100, 1
      %p139 = por %p137, %p138
      %p141 = scmp.ne.s32.totalorder %s126, %s140
      %p142 = scmp.eq.s32.totalorder %s100, 0
      %p143 = por %p141, %p142
      %s145 = sadd.s32 %s144, 1
      %p148 = scmp.eq.s32.totalorder %s94, 1
      %p149 = scmp.ne.s32.totalorder %s144, %s146
      %p150 = scmp.eq.s32.totalorder %s94, 0
      %p151 = por %p149, %p150
      %p152 = scmp.ne.s32.totalorder %s144, %s146
      %p153 = scmp.eq.s32.totalorder %s99, 1
      %p154 = por %p152, %p153
      %p155 = scmp.ne.s32.totalorder %s146, %s147
      %p156 = scmp.eq.s32.totalorder %s99, 0
      %p157 = por %p155, %p156
      %p158 = scmp.ne.s32.totalorder %s146, %s147
      %p159 = scmp.eq.s32.totalorder %s100, 1
      %p160 = por %p158, %p159
      %p162 = scmp.ne.s32.totalorder %s147, %s161
      %p163 = scmp.eq.s32.totalorder %s100, 0
      %p164 = por %p162, %p163
      %s166 = sadd.s32 %s165, 1
      %p169 = scmp.eq.s32.totalorder %s94, 1
      %p170 = scmp.ne.s32.totalorder %s165, %s167
      %p171 = scmp.eq.s32.totalorder %s94, 0
      %p172 = por %p170, %p171
      %p173 = scmp.ne.s32.totalorder %s165, %s167
      %p174 = scmp.eq.s32.totalorder %s99, 1
      %p175 = por %p173, %p174
      %p176 = scmp.ne.s32.totalorder %s167, %s168
      %p177 = scmp.eq.s32.totalorder %s99, 0
      %p178 = por %p176, %p177
      %p179 = scmp.ne.s32.totalorder %s167, %s168
      %p180 = scmp.eq.s32.totalorder %s100, 1
      %p181 = por %p179, %p180
      %p183 = scmp.ne.s32.totalorder %s168, %s182
      %p184 = scmp.eq.s32.totalorder %s100, 0
      %p185 = por %p183, %p184
      %s187 = sadd.s32 %s186, 1
      %p190 = scmp.eq.s32.totalorder %s94, 1
      %p191 = scmp.ne.s32.totalorder %s186, %s188
      %p192 = scmp.eq.s32.totalorder %s94, 0
      %p193 = por %p191, %p192
      %p194 = scmp.ne.s32.totalorder %s186, %s188
      %p195 = scmp.eq.s32.totalorder %s99, 1
      %p196 = por %p194, %p195
      %p197 = scmp.ne.s32.totalorder %s188, %s189
      %p198 = scmp.eq.s32.totalorder %s99, 0
      %p199 = por %p197, %p198
      %p200 = scmp.ne.s32.totalorder %s188, %s189
      %p201 = scmp.eq.s32.totalorder %s100, 1
      %p202 = por %p200, %p201
      %p204 = scmp.ne.s32.totalorder %s189, %s203
      %p205 = scmp.eq.s32.totalorder %s100, 0
      %p206 = por %p204, %p205
      %s208 = sadd.s32 %s207, 1
      %p211 = scmp.eq.s32.totalorder %s94, 1
      %p212 = scmp.ne.s32.totalorder %s207, %s209
      %p213 = scmp.eq.s32.totalorder %s94, 0
      %p214 = por %p212, %p213
      %p215 = scmp.ne.s32.totalorder %s207, %s209
      %p216 = scmp.eq.s32.totalorder %s99, 1
      %p217 = por %p215, %p216
      %p218 = scmp.ne.s32.totalorder %s209, %s210
      %p219 = scmp.eq.s32.totalorder %s99, 0
      %p220 = por %p218, %p219
      %p221 = scmp.ne.s32.totalorder %s209, %s210
      %p222 = scmp.eq.s32.totalorder %s100, 1
      %p223 = por %p221, %p222
      %p225 = scmp.ne.s32.totalorder %s210, %s224
      %p226 = scmp.eq.s32.totalorder %s100, 0
      %p227 = por %p225, %p226
      %s228 = ssub.s32 %s94, %s101
      %p229 = scmp.eq.s32.totalorder %s228, 0
      %s231 = sadd.s32 %s230, 1
      %s232 = scalar_select %p229, %s230, %s231
      %p235 = pneg %p229
      %p236 = scmp.eq.s32.totalorder %s94, 1
      %p237 = por %p235, %p236
      %p238 = scmp.ne.s32.totalorder %s230, %s233
      %p239 = scmp.eq.s32.totalorder %s94, 0
      %p240 = por %p238, %p239
      %p241 = scmp.ne.s32.totalorder %s230, %s233
      %p242 = scmp.eq.s32.totalorder %s99, 1
      %p243 = por %p241, %p242
      %p244 = scmp.ne.s32.totalorder %s233, %s234
      %p245 = scmp.eq.s32.totalorder %s99, 0
      %p246 = por %p244, %p245
      %p247 = scmp.ne.s32.totalorder %s233, %s234
      %p248 = scmp.eq.s32.totalorder %s100, 1
      %p249 = por %p247, %p248
      %p251 = scmp.ne.s32.totalorder %s234, %s250
      %p252 = scmp.eq.s32.totalorder %s100, 0
      %p253 = por %p251, %p252
      %s254 = ssub.s32 %s94, %s101
      %p255 = scmp.eq.s32.totalorder %s254, 0
      %s257 = sadd.s32 %s256, 1
      %s258 = scalar_select %p255, %s256, %s257
      %p261 = pneg %p255
      %p262 = scmp.eq.s32.totalorder %s94, 1
      %p263 = por %p261, %p262
      %p264 = scmp.ne.s32.totalorder %s256, %s259
      %p265 = scmp.eq.s32.totalorder %s94, 0
      %p266 = por %p264, %p265
      %p267 = scmp.ne.s32.totalorder %s256, %s259
      %p268 = scmp.eq.s32.totalorder %s99, 1
      %p269 = por %p267, %p268
      %p270 = scmp.ne.s32.totalorder %s259, %s260
      %p271 = scmp.eq.s32.totalorder %s99, 0
      %p272 = por %p270, %p271
      %p273 = scmp.ne.s32.totalorder %s259, %s260
      %p274 = scmp.eq.s32.totalorder %s100, 1
      %p275 = por %p273, %p274
      %p277 = scmp.ne.s32.totalorder %s260, %s276
      %p278 = scmp.eq.s32.totalorder %s100, 0
      %p279 = por %p277, %p278
      %s280 = ssub.s32 %s94, %s101
      %p281 = scmp.eq.s32.totalorder %s280, 0
      %s283 = sadd.s32 %s282, 1
      %s284 = scalar_select %p281, %s282, %s283
      %p287 = pneg %p281
      %p288 = scmp.eq.s32.totalorder %s94, 1
      %p289 = por %p287, %p288
      %p290 = scmp.ne.s32.totalorder %s282, %s285
      %p291 = scmp.eq.s32.totalorder %s94, 0
      %p292 = por %p290, %p291
      %p293 = scmp.ne.s32.totalorder %s282, %s285
      %p294 = scmp.eq.s32.totalorder %s99, 1
      %p295 = por %p293, %p294
      %p296 = scmp.ne.s32.totalorder %s285, %s286
      %p297 = scmp.eq.s32.totalorder %s99, 0
      %p298 = por %p296, %p297
      %p299 = scmp.ne.s32.totalorder %s285, %s286
      %p300 = scmp.eq.s32.totalorder %s100, 1
      %p301 = por %p299, %p300
      %p303 = scmp.ne.s32.totalorder %s286, %s302
      %p304 = scmp.eq.s32.totalorder %s100, 0
      %p305 = por %p303, %p304
      %s306 = ssub.s32 %s94, %s101
      %p307 = scmp.eq.s32.totalorder %s306, 0
      %s309 = sadd.s32 %s308, 1
      %s310 = scalar_select %p307, %s308, %s309
      %p313 = pneg %p307
      %p314 = scmp.eq.s32.totalorder %s94, 1
      %p315 = por %p313, %p314
      %p316 = scmp.ne.s32.totalorder %s308, %s311
      %p317 = scmp.eq.s32.totalorder %s94, 0
      %p318 = por %p316, %p317
      %p319 = scmp.ne.s32.totalorder %s308, %s311
      %p320 = scmp.eq.s32.totalorder %s99, 1
      %p321 = por %p319, %p320
      %p322 = scmp.ne.s32.totalorder %s311, %s312
      %p323 = scmp.eq.s32.totalorder %s99, 0
      %p324 = por %p322, %p323
      %p325 = scmp.ne.s32.totalorder %s311, %s312
      %p326 = scmp.eq.s32.totalorder %s100, 1
      %p327 = por %p325, %p326
      %p329 = scmp.ne.s32.totalorder %s312, %s328
      %p330 = scmp.eq.s32.totalorder %s100, 0
      %p331 = por %p329, %p330
      %s332 = ssub.s32 %s94, %s101
      %p333 = scmp.eq.s32.totalorder %s332, 0
      %s335 = sadd.s32 %s334, 1
      %s336 = scalar_select %p333, %s334, %s335
      %p339 = pneg %p333
      %p340 = scmp.eq.s32.totalorder %s94, 1
      %p341 = por %p339, %p340
      %p342 = scmp.ne.s32.totalorder %s334, %s337
      %p343 = scmp.eq.s32.totalorder %s94, 0
      %p344 = por %p342, %p343
      %p345 = scmp.ne.s32.totalorder %s334, %s337
      %p346 = scmp.eq.s32.totalorder %s99, 1
      %p347 = por %p345, %p346
      %p348 = scmp.ne.s32.totalorder %s337, %s338
      %p349 = scmp.eq.s32.totalorder %s99, 0
      %p350 = por %p348, %p349
      %p351 = scmp.ne.s32.totalorder %s337, %s338
      %p352 = scmp.eq.s32.totalorder %s100, 1
      %p353 = por %p351, %p352
      %p355 = scmp.ne.s32.totalorder %s338, %s354
      %p356 = scmp.eq.s32.totalorder %s100, 0
      %p357 = por %p355, %p356
      %s358 = ssub.s32 %s94, %s101
      %p359 = scmp.eq.s32.totalorder %s358, 0
      %s361 = sadd.s32 %s360, 1
      %s362 = scalar_select %p359, %s360, %s361
      %p365 = pneg %p359
      %p366 = scmp.eq.s32.totalorder %s94, 1
      %p367 = por %p365, %p366
      %p368 = scmp.ne.s32.totalorder %s360, %s363
      %p369 = scmp.eq.s32.totalorder %s94, 0
      %p370 = por %p368, %p369
      %p371 = scmp.ne.s32.totalorder %s360, %s363
      %p372 = scmp.eq.s32.totalorder %s99, 1
      %p373 = por %p371, %p372
      %p374 = scmp.ne.s32.totalorder %s363, %s364
      %p375 = scmp.eq.s32.totalorder %s99, 0
      %p376 = por %p374, %p375
      %p377 = scmp.ne.s32.totalorder %s363, %s364
      %p378 = scmp.eq.s32.totalorder %s100, 1
      %p379 = por %p377, %p378
      %p381 = scmp.ne.s32.totalorder %s364, %s380
      %p382 = scmp.eq.s32.totalorder %s100, 0
      %p383 = por %p381, %p382
      %s384 = ssub.s32 %s94, %s101
      %p385 = scmp.eq.s32.totalorder %s384, 0
      %s387 = sadd.s32 %s386, 1
      %s388 = scalar_select %p385, %s386, %s387
      %p391 = pneg %p385
      %p392 = scmp.eq.s32.totalorder %s94, 1
      %p393 = por %p391, %p392
      %p394 = scmp.ne.s32.totalorder %s386, %s389
      %p395 = scmp.eq.s32.totalorder %s94, 0
      %p396 = por %p394, %p395
      %p397 = scmp.ne.s32.totalorder %s386, %s389
      %p398 = scmp.eq.s32.totalorder %s99, 1
      %p399 = por %p397, %p398
      %p400 = scmp.ne.s32.totalorder %s389, %s390
      %p401 = scmp.eq.s32.totalorder %s99, 0
      %p402 = por %p400, %p401
      %p403 = scmp.ne.s32.totalorder %s389, %s390
      %p404 = scmp.eq.s32.totalorder %s100, 1
      %p405 = por %p403, %p404
      %p407 = scmp.ne.s32.totalorder %s390, %s406
      %p408 = scmp.eq.s32.totalorder %s100, 0
      %p409 = por %p407, %p408
      %s410 = ssub.s32 %s94, %s101
      %p411 = scmp.eq.s32.totalorder %s410, 0
      %s413 = sadd.s32 %s412, 1
      %s414 = scalar_select %p411, %s412, %s413
      %p417 = pneg %p411
      %p418 = scmp.eq.s32.totalorder %s94, 1
      %p419 = por %p417, %p418
      %p420 = scmp.ne.s32.totalorder %s412, %s415
      %p421 = scmp.eq.s32.totalorder %s94, 0
      %p422 = por %p420, %p421
      %p423 = scmp.ne.s32.totalorder %s412, %s415
      %p424 = scmp.eq.s32.totalorder %s99, 1
      %p425 = por %p423, %p424
      %p426 = scmp.ne.s32.totalorder %s415, %s416
      %p427 = scmp.eq.s32.totalorder %s99, 0
      %p428 = por %p426, %p427
      %p429 = scmp.ne.s32.totalorder %s415, %s416
      %p430 = scmp.eq.s32.totalorder %s100, 1
      %p431 = por %p429, %p430
      %p433 = scmp.ne.s32.totalorder %s416, %s432
      %p434 = scmp.eq.s32.totalorder %s100, 0
      %p435 = por %p433, %p434
      %s436 = ssub.s32 %s94, %s101
      %p437 = scmp.eq.s32.totalorder %s436, 0
      %s439 = sadd.s32 %s438, 1
      %s440 = scalar_select %p437, %s438, %s439
      %p443 = pneg %p437
      %p444 = scmp.eq.s32.totalorder %s94, 1
      %p445 = por %p443, %p444
      %p446 = scmp.ne.s32.totalorder %s438, %s441
      %p447 = scmp.eq.s32.totalorder %s94, 0
      %p448 = por %p446, %p447
      %p449 = scmp.ne.s32.totalorder %s438, %s441
      %p450 = scmp.eq.s32.totalorder %s99, 1
      %p451 = por %p449, %p450
      %p452 = scmp.ne.s32.totalorder %s441, %s442
      %p453 = scmp.eq.s32.totalorder %s99, 0
      %p454 = por %p452, %p453
      %p455 = scmp.ne.s32.totalorder %s441, %s442
      %p456 = scmp.eq.s32.totalorder %s100, 1
      %p457 = por %p455, %p456
      %p459 = scmp.ne.s32.totalorder %s442, %s458
      %p460 = scmp.eq.s32.totalorder %s100, 0
      %p461 = por %p459, %p460
      %s462 = ssub.s32 %s94, %s101
      %p463 = scmp.eq.s32.totalorder %s462, 0
      %s465 = sadd.s32 %s464, 1
      %s466 = scalar_select %p463, %s464, %s465
      %p469 = pneg %p463
      %p470 = scmp.eq.s32.totalorder %s94, 1
      %p471 = por %p469, %p470
      %p472 = scmp.ne.s32.totalorder %s464, %s467
      %p473 = scmp.eq.s32.totalorder %s94, 0
      %p474 = por %p472, %p473
      %p475 = scmp.ne.s32.totalorder %s464, %s467
      %p476 = scmp.eq.s32.totalorder %s99, 1
      %p477 = por %p475, %p476
      %p478 = scmp.ne.s32.totalorder %s467, %s468
      %p479 = scmp.eq.s32.totalorder %s99, 0
      %p480 = por %p478, %p479
      %p481 = scmp.ne.s32.totalorder %s467, %s468
      %p482 = scmp.eq.s32.totalorder %s100, 1
      %p483 = por %p481, %p482
      %p485 = scmp.ne.s32.totalorder %s468, %s484
      %p486 = scmp.eq.s32.totalorder %s100, 0
      %p487 = por %p485, %p486
      %s488 = ssub.s32 %s94, %s101
      %p489 = scmp.eq.s32.totalorder %s488, 0
      %s491 = sadd.s32 %s490, 1
      %s492 = scalar_select %p489, %s490, %s491
      %p495 = pneg %p489
      %p496 = scmp.eq.s32.totalorder %s94, 1
      %p497 = por %p495, %p496
      %p498 = scmp.ne.s32.totalorder %s490, %s493
      %p499 = scmp.eq.s32.totalorder %s94, 0
      %p500 = por %p498, %p499
      %p501 = scmp.ne.s32.totalorder %s490, %s493
      %p502 = scmp.eq.s32.totalorder %s99, 1
      %p503 = por %p501, %p502
      %p504 = scmp.ne.s32.totalorder %s493, %s494
      %p505 = scmp.eq.s32.totalorder %s99, 0
      %p506 = por %p504, %p505
      %p507 = scmp.ne.s32.totalorder %s493, %s494
      %p508 = scmp.eq.s32.totalorder %s100, 1
      %p509 = por %p507, %p508
      %p511 = scmp.ne.s32.totalorder %s494, %s510
      %p512 = scmp.eq.s32.totalorder %s100, 0
      %p513 = por %p511, %p512
      %s514 = ssub.s32 %s94, %s101
      %p515 = scmp.eq.s32.totalorder %s514, 0
      %s517 = sadd.s32 %s516, 1
      %s518 = scalar_select %p515, %s516, %s517
      %p521 = pneg %p515
      %p522 = scmp.eq.s32.totalorder %s94, 1
      %p523 = por %p521, %p522
      %p524 = scmp.ne.s32.totalorder %s516, %s519
      %p525 = scmp.eq.s32.totalorder %s94, 0
      %p526 = por %p524, %p525
      %p527 = scmp.ne.s32.totalorder %s516, %s519
      %p528 = scmp.eq.s32.totalorder %s99, 1
      %p529 = por %p527, %p528
      %p530 = scmp.ne.s32.totalorder %s519, %s520
      %p531 = scmp.eq.s32.totalorder %s99, 0
      %p532 = por %p530, %p531
      %p533 = scmp.ne.s32.totalorder %s519, %s520
      %p534 = scmp.eq.s32.totalorder %s100, 1
      %p535 = por %p533, %p534
      %p537 = scmp.ne.s32.totalorder %s520, %s536
      %p538 = scmp.eq.s32.totalorder %s100, 0
      %p539 = por %p537, %p538
      %s540 = ssub.s32 %s94, %s101
      %p541 = scmp.eq.s32.totalorder %s540, 0
      %s543 = sadd.s32 %s542, 1
      %s544 = scalar_select %p541, %s542, %s543
      %p547 = pneg %p541
      %p548 = scmp.eq.s32.totalorder %s94, 1
      %p549 = por %p547, %p548
      %p550 = scmp.ne.s32.totalorder %s542, %s545
      %p551 = scmp.eq.s32.totalorder %s94, 0
      %p552 = por %p550, %p551
      %p553 = scmp.ne.s32.totalorder %s542, %s545
      %p554 = scmp.eq.s32.totalorder %s99, 1
      %p555 = por %p553, %p554
      %p556 = scmp.ne.s32.totalorder %s545, %s546
      %p557 = scmp.eq.s32.totalorder %s99, 0
      %p558 = por %p556, %p557
      %p559 = scmp.ne.s32.totalorder %s545, %s546
      %p560 = scmp.eq.s32.totalorder %s100, 1
      %p561 = por %p559, %p560
      %p563 = scmp.ne.s32.totalorder %s546, %s562
      %p564 = scmp.eq.s32.totalorder %s100, 0
      %p565 = por %p563, %p564
      %s566 = ssub.s32 %s94, %s101
      %p567 = scmp.eq.s32.totalorder %s566, 0
      %s569 = sadd.s32 %s568, 1
      %s570 = scalar_select %p567, %s568, %s569
      %p573 = pneg %p567
      %p574 = scmp.eq.s32.totalorder %s94, 1
      %p575 = por %p573, %p574
      %p576 = scmp.ne.s32.totalorder %s568, %s571
      %p577 = scmp.eq.s32.totalorder %s94, 0
      %p578 = por %p576, %p577
      %p579 = scmp.ne.s32.totalorder %s568, %s571
      %p580 = scmp.eq.s32.totalorder %s99, 1
      %p581 = por %p579, %p580
      %p582 = scmp.ne.s32.totalorder %s571, %s572
      %p583 = scmp.eq.s32.totalorder %s99, 0
      %p584 = por %p582, %p583
      %p585 = scmp.ne.s32.totalorder %s571, %s572
      %p586 = scmp.eq.s32.totalorder %s100, 1
      %p587 = por %p585, %p586
      %p589 = scmp.ne.s32.totalorder %s572, %s588
      %p590 = scmp.eq.s32.totalorder %s100, 0
      %p591 = por %p589, %p590
      %s592 = ssub.s32 %s94, %s101
      %p593 = scmp.eq.s32.totalorder %s592, 0
      %s595 = sadd.s32 %s594, 1
      %s596 = scalar_select %p593, %s594, %s595
      %p599 = pneg %p593
      %p600 = scmp.eq.s32.totalorder %s94, 1
      %p601 = por %p599, %p600
      %p602 = scmp.ne.s32.totalorder %s594, %s597
      %p603 = scmp.eq.s32.totalorder %s94, 0
      %p604 = por %p602, %p603
      %p605 = scmp.ne.s32.totalorder %s594, %s597
      %p606 = scmp.eq.s32.totalorder %s99, 1
      %p607 = por %p605, %p606
      %p608 = scmp.ne.s32.totalorder %s597, %s598
      %p609 = scmp.eq.s32.totalorder %s99, 0
      %p610 = por %p608, %p609
      %p611 = scmp.ne.s32.totalorder %s597, %s598
      %p612 = scmp.eq.s32.totalorder %s100, 1
      %p613 = por %p611, %p612
      %p615 = scmp.ne.s32.totalorder %s598, %s614
      %p616 = scmp.eq.s32.totalorder %s100, 0
      %p617 = por %p615, %p616
      %s618 = ssub.s32 %s94, %s101
      %p619 = scmp.eq.s32.totalorder %s618, 0
      %s621 = sadd.s32 %s620, 1
      %s622 = scalar_select %p619, %s620, %s621
      %p625 = pneg %p619
      %p626 = scmp.eq.s32.totalorder %s94, 1
      %p627 = por %p625, %p626
      %p628 = scmp.ne.s32.totalorder %s620, %s623
      %p629 = scmp.eq.s32.totalorder %s94, 0
      %p630 = por %p628, %p629
      %p631 = scmp.ne.s32.totalorder %s620, %s623
      %p632 = scmp.eq.s32.totalorder %s99, 1
      %p633 = por %p631, %p632
      %p634 = scmp.ne.s32.totalorder %s623, %s624
      %p635 = scmp.eq.s32.totalorder %s99, 0
      %p636 = por %p634, %p635
      %p637 = scmp.ne.s32.totalorder %s623, %s624
      %p638 = scmp.eq.s32.totalorder %s100, 1
      %p639 = por %p637, %p638
      %p641 = scmp.ne.s32.totalorder %s624, %s640
      %p642 = scmp.eq.s32.totalorder %s100, 0
      %p643 = por %p641, %p642
      %s644 = ssub.s32 %s94, %s101
      %p645 = scmp.eq.s32.totalorder %s644, 0
      %s647 = sadd.s32 %s646, 1
      %s648 = scalar_select %p645, %s646, %s647
      %p651 = pneg %p645
      %p652 = scmp.eq.s32.totalorder %s94, 1
      %p653 = por %p651, %p652
      %p654 = scmp.ne.s32.totalorder %s646, %s649
      %p655 = scmp.eq.s32.totalorder %s94, 0
      %p656 = por %p654, %p655
      %p657 = scmp.ne.s32.totalorder %s646, %s649
      %p658 = scmp.eq.s32.totalorder %s99, 1
      %p659 = por %p657, %p658
      %p660 = scmp.ne.s32.totalorder %s649, %s650
      %p661 = scmp.eq.s32.totalorder %s99, 0
      %p662 = por %p660, %p661
      %p663 = scmp.ne.s32.totalorder %s649, %s650
      %p664 = scmp.eq.s32.totalorder %s100, 1
      %p665 = por %p663, %p664
      %p667 = scmp.ne.s32.totalorder %s650, %s666
      %p668 = scmp.eq.s32.totalorder %s100, 0
      %p669 = por %p667, %p668
      %s670 = ssub.s32 %s94, %s101
      %p671 = scmp.eq.s32.totalorder %s670, 0
      %s673 = sadd.s32 %s672, 1
      %s674 = scalar_select %p671, %s672, %s673
      %p677 = pneg %p671
      %p678 = scmp.eq.s32.totalorder %s94, 1
      %p679 = por %p677, %p678
      %p680 = scmp.ne.s32.totalorder %s672, %s675
      %p681 = scmp.eq.s32.totalorder %s94, 0
      %p682 = por %p680, %p681
      %p683 = scmp.ne.s32.totalorder %s672, %s675
      %p684 = scmp.eq.s32.totalorder %s99, 1
      %p685 = por %p683, %p684
      %p686 = scmp.ne.s32.totalorder %s675, %s676
      %p687 = scmp.eq.s32.totalorder %s99, 0
      %p688 = por %p686, %p687
      %p689 = scmp.ne.s32.totalorder %s675, %s676
      %p690 = scmp.eq.s32.totalorder %s100, 1
      %p691 = por %p689, %p690
      %p693 = scmp.ne.s32.totalorder %s676, %s692
      %p694 = scmp.eq.s32.totalorder %s100, 0
      %p695 = por %p693, %p694
      %s696 = ssub.s32 %s94, %s101
      %p697 = scmp.eq.s32.totalorder %s696, 0
      %s699 = sadd.s32 %s698, 1
      %s700 = scalar_select %p697, %s698, %s699
      %p703 = pneg %p697
      %p704 = scmp.eq.s32.totalorder %s94, 1
      %p705 = por %p703, %p704
      %p706 = scmp.ne.s32.totalorder %s698, %s701
      %p707 = scmp.eq.s32.totalorder %s94, 0
      %p708 = por %p706, %p707
      %p709 = scmp.ne.s32.totalorder %s698, %s701
      %p710 = scmp.eq.s32.totalorder %s99, 1
      %p711 = por %p709, %p710
      %p712 = scmp.ne.s32.totalorder %s701, %s702
      %p713 = scmp.eq.s32.totalorder %s99, 0
      %p714 = por %p712, %p713
      %p715 = scmp.ne.s32.totalorder %s701, %s702
      %p716 = scmp.eq.s32.totalorder %s100, 1
      %p717 = por %p715, %p716
      %p719 = scmp.ne.s32.totalorder %s702, %s718
      %p720 = scmp.eq.s32.totalorder %s100, 0
      %p721 = por %p719, %p720
      %s722 = ssub.s32 %s94, %s101
      %p723 = scmp.eq.s32.totalorder %s722, 0
      %s725 = sadd.s32 %s724, 1
      %s726 = scalar_select %p723, %s724, %s725
      %p729 = pneg %p723
      %p730 = scmp.eq.s32.totalorder %s94, 1
      %p731 = por %p729, %p730
      %p732 = scmp.ne.s32.totalorder %s724, %s727
      %p733 = scmp.eq.s32.totalorder %s94, 0
      %p734 = por %p732, %p733
      %p735 = scmp.ne.s32.totalorder %s724, %s727
      %p736 = scmp.eq.s32.totalorder %s99, 1
      %p737 = por %p735, %p736
      %p738 = scmp.ne.s32.totalorder %s727, %s728
      %p739 = scmp.eq.s32.totalorder %s99, 0
      %p740 = por %p738, %p739
      %p741 = scmp.ne.s32.totalorder %s727, %s728
      %p742 = scmp.eq.s32.totalorder %s100, 1
      %p743 = por %p741, %p742
      %p745 = scmp.ne.s32.totalorder %s728, %s744
      %p746 = scmp.eq.s32.totalorder %s100, 0
      %p747 = por %p745, %p746
      %s748 = ssub.s32 %s94, %s101
      %p749 = scmp.eq.s32.totalorder %s748, 0
      %s751 = sadd.s32 %s750, 1
      %s752 = scalar_select %p749, %s750, %s751
      %p755 = pneg %p749
      %p756 = scmp.eq.s32.totalorder %s94, 1
      %p757 = por %p755, %p756
      %p758 = scmp.ne.s32.totalorder %s750, %s753
      %p759 = scmp.eq.s32.totalorder %s94, 0
      %p760 = por %p758, %p759
      %p761 = scmp.ne.s32.totalorder %s750, %s753
      %p762 = scmp.eq.s32.totalorder %s99, 1
      %p763 = por %p761, %p762
      %p764 = scmp.ne.s32.totalorder %s753, %s754
      %p765 = scmp.eq.s32.totalorder %s99, 0
      %p766 = por %p764, %p765
      %p767 = scmp.ne.s32.totalorder %s753, %s754
      %p768 = scmp.eq.s32.totalorder %s100, 1
      %p769 = por %p767, %p768
      %p771 = scmp.ne.s32.totalorder %s754, %s770
      %p772 = scmp.eq.s32.totalorder %s100, 0
      %p773 = por %p771, %p772
      %s774 = ssub.s32 %s94, %s101
      %p775 = scmp.eq.s32.totalorder %s774, 0
      %s777 = sadd.s32 %s776, 1
      %s778 = scalar_select %p775, %s776, %s777
      %p781 = pneg %p775
      %p782 = scmp.eq.s32.totalorder %s94, 1
      %p783 = por %p781, %p782
      %p784 = scmp.ne.s32.totalorder %s776, %s779
      %p785 = scmp.eq.s32.totalorder %s94, 0
      %p786 = por %p784, %p785
      %p787 = scmp.ne.s32.totalorder %s776, %s779
      %p788 = scmp.eq.s32.totalorder %s99, 1
      %p789 = por %p787, %p788
      %p790 = scmp.ne.s32.totalorder %s779, %s780
      %p791 = scmp.eq.s32.totalorder %s99, 0
      %p792 = por %p790, %p791
      %p793 = scmp.ne.s32.totalorder %s779, %s780
      %p794 = scmp.eq.s32.totalorder %s100, 1
      %p795 = por %p793, %p794
      %p797 = scmp.ne.s32.totalorder %s780, %s796
      %p798 = scmp.eq.s32.totalorder %s100, 0
      %p799 = por %p797, %p798
      %s800 = ssub.s32 %s94, %s101
      %p801 = scmp.eq.s32.totalorder %s800, 0
      %s803 = sadd.s32 %s802, 1
      %s804 = scalar_select %p801, %s802, %s803
      %p807 = pneg %p801
      %p808 = scmp.eq.s32.totalorder %s94, 1
      %p809 = por %p807, %p808
      %p810 = scmp.ne.s32.totalorder %s802, %s805
      %p811 = scmp.eq.s32.totalorder %s94, 0
      %p812 = por %p810, %p811
      %p813 = scmp.ne.s32.totalorder %s802, %s805
      %p814 = scmp.eq.s32.totalorder %s99, 1
      %p815 = por %p813, %p814
      %p816 = scmp.ne.s32.totalorder %s805, %s806
      %p817 = scmp.eq.s32.totalorder %s99, 0
      %p818 = por %p816, %p817
      %p819 = scmp.ne.s32.totalorder %s805, %s806
      %p820 = scmp.eq.s32.totalorder %s100, 1
      %p821 = por %p819, %p820
      %p823 = scmp.ne.s32.totalorder %s806, %s822
      %p824 = scmp.eq.s32.totalorder %s100, 0
      %p825 = por %p823, %p824
      %s826 = ssub.s32 %s94, %s101
      %p827 = scmp.eq.s32.totalorder %s826, 0
      %s829 = sadd.s32 %s828, 1
      %s830 = scalar_select %p827, %s828, %s829
      %p833 = pneg %p827
      %p834 = scmp.eq.s32.totalorder %s94, 1
      %p835 = por %p833, %p834
      %p836 = scmp.ne.s32.totalorder %s828, %s831
      %p837 = scmp.eq.s32.totalorder %s94, 0
      %p838 = por %p836, %p837
      %p839 = scmp.ne.s32.totalorder %s828, %s831
      %p840 = scmp.eq.s32.totalorder %s99, 1
      %p841 = por %p839, %p840
      %p842 = scmp.ne.s32.totalorder %s831, %s832
      %p843 = scmp.eq.s32.totalorder %s99, 0
      %p844 = por %p842, %p843
      %p845 = scmp.ne.s32.totalorder %s831, %s832
      %p846 = scmp.eq.s32.totalorder %s100, 1
      %p847 = por %p845, %p846
      %p849 = scmp.ne.s32.totalorder %s832, %s848
      %p850 = scmp.eq.s32.totalorder %s100, 0
      %p851 = por %p849, %p850
      %s852 = ssub.s32 %s94, %s101
      %p853 = scmp.eq.s32.totalorder %s852, 0
      %s855 = sadd.s32 %s854, 1
      %s856 = scalar_select %p853, %s854, %s855
      %p859 = pneg %p853
      %p860 = scmp.eq.s32.totalorder %s94, 1
      %p861 = por %p859, %p860
      %p862 = scmp.ne.s32.totalorder %s854, %s857
      %p863 = scmp.eq.s32.totalorder %s94, 0
      %p864 = por %p862, %p863
      %p865 = scmp.ne.s32.totalorder %s854, %s857
      %p866 = scmp.eq.s32.totalorder %s99, 1
      %p867 = por %p865, %p866
      %p868 = scmp.ne.s32.totalorder %s857, %s858
      %p869 = scmp.eq.s32.totalorder %s99, 0
      %p870 = por %p868, %p869
      %p871 = scmp.ne.s32.totalorder %s857, %s858
      %p872 = scmp.eq.s32.totalorder %s100, 1
      %p873 = por %p871, %p872
      %p875 = scmp.ne.s32.totalorder %s858, %s874
      %p876 = scmp.eq.s32.totalorder %s100, 0
      %p877 = por %p875, %p876
      %s878 = ssub.s32 %s94, %s101
      %p879 = scmp.eq.s32.totalorder %s878, 0
      %s881 = sadd.s32 %s880, 1
      %s882 = scalar_select %p879, %s880, %s881
      %p885 = pneg %p879
      %p886 = scmp.eq.s32.totalorder %s94, 1
      %p887 = por %p885, %p886
      %p888 = scmp.ne.s32.totalorder %s880, %s883
      %p889 = scmp.eq.s32.totalorder %s94, 0
      %p890 = por %p888, %p889
      %p891 = scmp.ne.s32.totalorder %s880, %s883
      %p892 = scmp.eq.s32.totalorder %s99, 1
      %p893 = por %p891, %p892
      %p894 = scmp.ne.s32.totalorder %s883, %s884
      %p895 = scmp.eq.s32.totalorder %s99, 0
      %p896 = por %p894, %p895
      %p897 = scmp.ne.s32.totalorder %s883, %s884
      %p898 = scmp.eq.s32.totalorder %s100, 1
      %p899 = por %p897, %p898
      %p901 = scmp.ne.s32.totalorder %s884, %s900
      %p902 = scmp.eq.s32.totalorder %s100, 0
      %p903 = por %p901, %p902
      %s904 = ssub.s32 %s94, %s101
      %p905 = scmp.eq.s32.totalorder %s904, 0
      %s907 = sadd.s32 %s906, 1
      %s908 = scalar_select %p905, %s906, %s907
      %p911 = pneg %p905
      %p912 = scmp.eq.s32.totalorder %s94, 1
      %p913 = por %p911, %p912
      %p914 = scmp.ne.s32.totalorder %s906, %s909
      %p915 = scmp.eq.s32.totalorder %s94, 0
      %p916 = por %p914, %p915
      %p917 = scmp.ne.s32.totalorder %s906, %s909
      %p918 = scmp.eq.s32.totalorder %s99, 1
      %p919 = por %p917, %p918
      %p920 = scmp.ne.s32.totalorder %s909, %s910
      %p921 = scmp.eq.s32.totalorder %s99, 0
      %p922 = por %p920, %p921
      %p923 = scmp.ne.s32.totalorder %s909, %s910
      %p924 = scmp.eq.s32.totalorder %s100, 1
      %p925 = por %p923, %p924
      %p927 = scmp.ne.s32.totalorder %s910, %s926
      %p928 = scmp.eq.s32.totalorder %s100, 0
      %p929 = por %p927, %p928
      %s930 = ssub.s32 %s94, %s101
      %p931 = scmp.eq.s32.totalorder %s930, 0
      %s933 = sadd.s32 %s932, 1
      %s934 = scalar_select %p931, %s932, %s933
      %p937 = pneg %p931
      %p938 = scmp.eq.s32.totalorder %s94, 1
      %p939 = por %p937, %p938
      %p940 = scmp.ne.s32.totalorder %s932, %s935
      %p941 = scmp.eq.s32.totalorder %s94, 0
      %p942 = por %p940, %p941
      %p943 = scmp.ne.s32.totalorder %s932, %s935
      %p944 = scmp.eq.s32.totalorder %s99, 1
      %p945 = por %p943, %p944
      %p946 = scmp.ne.s32.totalorder %s935, %s936
      %p947 = scmp.eq.s32.totalorder %s99, 0
      %p948 = por %p946, %p947
      %p949 = scmp.ne.s32.totalorder %s935, %s936
      %p950 = scmp.eq.s32.totalorder %s100, 1
      %p951 = por %p949, %p950
      %p953 = scmp.ne.s32.totalorder %s936, %s952
      %p954 = scmp.eq.s32.totalorder %s100, 0
      %p955 = por %p953, %p954
      %s956 = ssub.s32 %s94, %s101
      %p957 = scmp.eq.s32.totalorder %s956, 0
      %s959 = sadd.s32 %s958, 1
      %s960 = scalar_select %p957, %s958, %s959
      %p963 = pneg %p957
      %p964 = scmp.eq.s32.totalorder %s94, 1
      %p965 = por %p963, %p964
      %p966 = scmp.ne.s32.totalorder %s958, %s961
      %p967 = scmp.eq.s32.totalorder %s94, 0
      %p968 = por %p966, %p967
      %p969 = scmp.ne.s32.totalorder %s958, %s961
      %p970 = scmp.eq.s32.totalorder %s99, 1
      %p971 = por %p969, %p970
      %p972 = scmp.ne.s32.totalorder %s961, %s962
      %p973 = scmp.eq.s32.totalorder %s99, 0
      %p974 = por %p972, %p973
      %p975 = scmp.ne.s32.totalorder %s961, %s962
      %p976 = scmp.eq.s32.totalorder %s100, 1
      %p977 = por %p975, %p976
      %p979 = scmp.ne.s32.totalorder %s962, %s978
      %p980 = scmp.eq.s32.totalorder %s100, 0
      %p981 = por %p979, %p980
      %s982 = ssub.s32 %s94, %s101
      %p983 = scmp.eq.s32.totalorder %s982, 0
      %s985 = sadd.s32 %s984, 1
      %s986 = scalar_select %p983, %s984, %s985
      %p989 = pneg %p983
      %p990 = scmp.eq.s32.totalorder %s94, 1
      %p991 = por %p989, %p990
      %p992 = scmp.ne.s32.totalorder %s984, %s987
      %p993 = scmp.eq.s32.totalorder %s94, 0
      %p994 = por %p992, %p993
      %p995 = scmp.ne.s32.totalorder %s984, %s987
      %p996 = scmp.eq.s32.totalorder %s99, 1
      %p997 = por %p995, %p996
      %p998 = scmp.ne.s32.totalorder %s987, %s988
      %p999 = scmp.eq.s32.totalorder %s99, 0
      %p1000 = por %p998, %p999
      %p1001 = scmp.ne.s32.totalorder %s987, %s988
      %p1002 = scmp.eq.s32.totalorder %s100, 1
      %p1003 = por %p1001, %p1002
      %p1005 = scmp.ne.s32.totalorder %s988, %s1004
      %p1006 = scmp.eq.s32.totalorder %s100, 0
      %p1007 = por %p1005, %p1006
      %s1008 = ssub.s32 %s94, %s101
      %p1009 = scmp.eq.s32.totalorder %s1008, 0
      %s1011 = sadd.s32 %s1010, 1
      %s1012 = scalar_select %p1009, %s1010, %s1011
      %p1015 = pneg %p1009
      %p1016 = scmp.eq.s32.totalorder %s94, 1
      %p1017 = por %p1015, %p1016
      %p1018 = scmp.ne.s32.totalorder %s1010, %s1013
      %p1019 = scmp.eq.s32.totalorder %s94, 0
      %p1020 = por %p1018, %p1019
      %p1021 = scmp.ne.s32.totalorder %s1010, %s1013
      %p1022 = scmp.eq.s32.totalorder %s99, 1
      %p1023 = por %p1021, %p1022
      %p1024 = scmp.ne.s32.totalorder %s1013, %s1014
      %p1025 = scmp.eq.s32.totalorder %s99, 0
      %p1026 = por %p1024, %p1025
      %p1027 = scmp.ne.s32.totalorder %s1013, %s1014
      %p1028 = scmp.eq.s32.totalorder %s100, 1
      %p1029 = por %p1027, %p1028
      %p1031 = scmp.ne.s32.totalorder %s1014, %s1030
      %p1032 = scmp.eq.s32.totalorder %s100, 0
      %p1033 = por %p1031, %p1032
      %s1035 = sadd.s32 %s1034, 1
      %p1038 = scmp.eq.s32.totalorder %s94, 1
      %p1039 = scmp.ne.s32.totalorder %s1034, %s1036
      %p1040 = scmp.eq.s32.totalorder %s94, 0
      %p1041 = por %p1039, %p1040
      %p1042 = scmp.ne.s32.totalorder %s1034, %s1036
      %p1043 = scmp.eq.s32.totalorder %s99, 1
      %p1044 = por %p1042, %p1043
      %p1045 = scmp.ne.s32.totalorder %s1036, %s1037
      %p1046 = scmp.eq.s32.totalorder %s99, 0
      %p1047 = por %p1045, %p1046
      %p1048 = scmp.ne.s32.totalorder %s1036, %s1037
      %p1049 = scmp.eq.s32.totalorder %s100, 1
      %p1050 = por %p1048, %p1049
      %p1052 = scmp.ne.s32.totalorder %s1037, %s1051
      %p1053 = scmp.eq.s32.totalorder %s100, 0
      %p1054 = por %p1052, %p1053
      %p1055 = scmp.le.s32.totalorder 1, %s94
      %p1056 = scmp.lt.s32.totalorder %s94, 3
      %p1057 = pnand %p1055, %p1056
      %p1058 = pneg %p1057
      // Predicated region
      $region9: #{tpu_custom_call.1} parent=5 // pred_check
        _
      $region10: #{tpu_custom_call.1} parent=5 // pred_check_branch
        %1060 = sbr.rel (%p1057) target = $region12
      $region11: #{tpu_custom_call.1} parent=5 // pred_region
        %s1061 = ssub.s32 %s94, 1
        // Predicated region
        $region13: #{tpu_custom_call.1} parent=11 // pred_check
          %p1062 = pneg %p115
        $region14: #{tpu_custom_call.1} parent=11 // pred_check_branch
          %1064 = sbr.rel (%p1062) target = $region16
        $region15: #{tpu_custom_call.1} parent=11 // pred_region
          %1066 = vsyncadd [#allocation4], 0
          %s1067 = sshll.u32 %s1, 4
          %s1068 = int_to_ptr.hbm [resolvable:$true] %s1067
          %s1069 = sshll.u32 [#allocation3], 4
          %s1070 = int_to_ptr.vmem [resolvable:$true] %s1069
          %1075 = dma.hbm_to_vmem [thread:$0]  %s1068, 512, %s1070, [#allocation4], 128, 128, 8
        $region16: #{tpu_custom_call.1} parent=11 // pred_fallthru
          _
        // Predicated region
        $region17: #{tpu_custom_call.1} parent=11 // pred_check
          %p1076 = pneg %p136
        $region18: #{tpu_custom_call.1} parent=11 // pred_check_branch
          %1078 = sbr.rel (%p1076) target = $region20
        $region19: #{tpu_custom_call.1} parent=11 // pred_region
          %1080 = vsyncadd [#allocation7], 0
          %s1081 = sshll.u32 %s3, 4
          %s1082 = int_to_ptr.hbm [resolvable:$true] %s1081
          %s1083 = sshll.u32 [#allocation6], 4
          %s1084 = int_to_ptr.vmem [resolvable:$true] %s1083
          %1089 = dma.hbm_to_vmem [thread:$0]  %s1082, 512, %s1084, [#allocation7], 128, 128, 8
        $region20: #{tpu_custom_call.1} parent=11 // pred_fallthru
          _
        // Predicated region
        $region21: #{tpu_custom_call.1} parent=11 // pred_check
          %p1090 = pneg %p157
        $region22: #{tpu_custom_call.1} parent=11 // pred_check_branch
          %1092 = sbr.rel (%p1090) target = $region24
        $region23: #{tpu_custom_call.1} parent=11 // pred_region
          _
        $region24: #{tpu_custom_call.1} parent=11 // pred_fallthru
          _
        // Predicated region
        $region25: #{tpu_custom_call.1} parent=11 // pred_check
          %p1093 = pneg %p178
        $region26: #{tpu_custom_call.1} parent=11 // pred_check_branch
          %1095 = sbr.rel (%p1093) target = $region28
        $region27: #{tpu_custom_call.1} parent=11 // pred_region
          %1097 = vsyncadd [#allocation7], 0
          %s1098 = sshll.u32 %s7, 4
          %s1099 = int_to_ptr.hbm [resolvable:$true] %s1098
          %s1100 = sshll.u32 [#allocation8], 4
          %s1101 = int_to_ptr.vmem [resolvable:$true] %s1100
          %1106 = dma.hbm_to_vmem [thread:$0]  %s1099, 512, %s1101, [#allocation7], 128, 128, 8
        $region28: #{tpu_custom_call.1} parent=11 // pred_fallthru
          _
        // Predicated region
        $region29: #{tpu_custom_call.1} parent=11 // pred_check
          %p1107 = pneg %p199
        $region30: #{tpu_custom_call.1} parent=11 // pred_check_branch
          %1109 = sbr.rel (%p1107) target = $region32
        $region31: #{tpu_custom_call.1} parent=11 // pred_region
          %1111 = vsyncadd [#allocation10], 0
          %s1112 = sshll.u32 %s9, 4
          %s1113 = int_to_ptr.hbm [resolvable:$true] %s1112
          %s1114 = sshll.u32 [#allocation9], 4
          %s1115 = int_to_ptr.vmem [resolvable:$true] %s1114
          %1120 = dma.hbm_to_vmem [thread:$0]  %s1113, 1024, %s1115, [#allocation10], 128, 128, 8
        $region32: #{tpu_custom_call.1} parent=11 // pred_fallthru
          _
        // Predicated region
        $region33: #{tpu_custom_call.1} parent=11 // pred_check
          %p1121 = pneg %p220
        $region34: #{tpu_custom_call.1} parent=11 // pred_check_branch
          %1123 = sbr.rel (%p1121) target = $region36
        $region35: #{tpu_custom_call.1} parent=11 // pred_region
          %1125 = vsyncadd [#allocation10], 0
          %s1127 = sshll.u32 %s11, 4
          %s1128 = int_to_ptr.hbm [resolvable:$true] %s1127
          %s1129 = sshll.u32 [#allocation11], 4
          %s1130 = int_to_ptr.vmem [resolvable:$true] %s1129
          %1132 = dma.hbm_to_vmem [thread:$0]  %s1128, 16, %s1130, [#allocation10]
        $region36: #{tpu_custom_call.1} parent=11 // pred_fallthru
          _
      $region12: #{tpu_custom_call.1} parent=5 // pred_fallthru
        _
      %p1133 = scmp.lt.s32.totalorder %s94, 2
      // Predicated region
      $region37: #{tpu_custom_call.1} parent=5 // pred_check
        %p1134 = pneg %p1133
      $region38: #{tpu_custom_call.1} parent=5 // pred_check_branch
        %1136 = sbr.rel (%p1134) target = $region40
      $region39: #{tpu_custom_call.1} parent=5 // pred_region
        // Predicated region
        $region41: #{tpu_custom_call.1} parent=39 // pred_check
          %p1137 = pneg %p240
        $region42: #{tpu_custom_call.1} parent=39 // pred_check_branch
          %1139 = sbr.rel (%p1137) target = $region44
        $region43: #{tpu_custom_call.1} parent=39 // pred_region
          %p1140 = scmp.lt.s32.totalorder %s94, 1
          %s1141 = scalar_select %p1140, %s94, 1
          %s1142 = scalar_lea.vmem %s13, %s1141
        $region44: #{tpu_custom_call.1} parent=39 // pred_fallthru
          _
        // Predicated region
        $region45: #{tpu_custom_call.1} parent=39 // pred_check
          %p1143 = pneg %p266
        $region46: #{tpu_custom_call.1} parent=39 // pred_check_branch
          %1145 = sbr.rel (%p1143) target = $region48
        $region47: #{tpu_custom_call.1} parent=39 // pred_region
          %p1146 = scmp.lt.s32.totalorder %s94, 1
          %s1147 = scalar_select %p1146, %s94, 1
          %s1148 = scalar_lea.vmem %s15, %s1147
        $region48: #{tpu_custom_call.1} parent=39 // pred_fallthru
          _
        // Predicated region
        $region49: #{tpu_custom_call.1} parent=39 // pred_check
          %p1149 = pneg %p292
        $region50: #{tpu_custom_call.1} parent=39 // pred_check_branch
          %1151 = sbr.rel (%p1149) target = $region52
        $region51: #{tpu_custom_call.1} parent=39 // pred_region
          %p1152 = scmp.lt.s32.totalorder %s94, 1
          %s1153 = scalar_select %p1152, %s94, 1
          %s1154 = smul.addr %s1153, 8
          %s1155 = smul.addr %s1154, 8
          %s1156 = scalar_lea.vmem %s17, %s1155
        $region52: #{tpu_custom_call.1} parent=39 // pred_fallthru
          _
        // Predicated region
        $region53: #{tpu_custom_call.1} parent=39 // pred_check
          %p1157 = pneg %p318
        $region54: #{tpu_custom_call.1} parent=39 // pred_check_branch
          %1159 = sbr.rel (%p1157) target = $region56
        $region55: #{tpu_custom_call.1} parent=39 // pred_region
          %p1160 = scmp.lt.s32.totalorder %s94, 1
          %s1161 = scalar_select %p1160, %s94, 1
          %s1162 = scalar_lea.vmem %s19, %s1161
        $region56: #{tpu_custom_call.1} parent=39 // pred_fallthru
          _
        // Predicated region
        $region57: #{tpu_custom_call.1} parent=39 // pred_check
          %p1163 = pneg %p344
        $region58: #{tpu_custom_call.1} parent=39 // pred_check_branch
          %1165 = sbr.rel (%p1163) target = $region60
        $region59: #{tpu_custom_call.1} parent=39 // pred_region
          %p1166 = scmp.lt.s32.totalorder %s94, 1
          %s1167 = scalar_select %p1166, %s94, 1
          %s1168 = smul.addr %s1167, 16
          %s1169 = smul.addr %s1168, 8
          %s1170 = scalar_lea.vmem %s21, %s1169
        $region60: #{tpu_custom_call.1} parent=39 // pred_fallthru
          _
        // Predicated region
        $region61: #{tpu_custom_call.1} parent=39 // pred_check
          %p1171 = pneg %p370
        $region62: #{tpu_custom_call.1} parent=39 // pred_check_branch
          %1173 = sbr.rel (%p1171) target = $region64
        $region63: #{tpu_custom_call.1} parent=39 // pred_region
          %p1174 = scmp.lt.s32.totalorder %s94, 1
          %s1175 = scalar_select %p1174, %s94, 1
          %s1176 = scalar_lea.vmem %s23, %s1175
        $region64: #{tpu_custom_call.1} parent=39 // pred_fallthru
          _
        // Predicated region
        $region65: #{tpu_custom_call.1} parent=39 // pred_check
          %p1177 = pneg %p396
        $region66: #{tpu_custom_call.1} parent=39 // pred_check_branch
          %1179 = sbr.rel (%p1177) target = $region68
        $region67: #{tpu_custom_call.1} parent=39 // pred_region
          %p1180 = scmp.lt.s32.totalorder %s94, 1
          %s1181 = scalar_select %p1180, %s94, 1
          %s1182 = scalar_lea.vmem %s25, %s1181
        $region68: #{tpu_custom_call.1} parent=39 // pred_fallthru
          _
        // Predicated region
        $region69: #{tpu_custom_call.1} parent=39 // pred_check
          %p1183 = pneg %p422
        $region70: #{tpu_custom_call.1} parent=39 // pred_check_branch
          %1185 = sbr.rel (%p1183) target = $region72
        $region71: #{tpu_custom_call.1} parent=39 // pred_region
          %p1186 = scmp.lt.s32.totalorder %s94, 1
          %s1187 = scalar_select %p1186, %s94, 1
          %s1188 = scalar_lea.vmem %s27, %s1187
        $region72: #{tpu_custom_call.1} parent=39 // pred_fallthru
          _
        // Predicated region
        $region73: #{tpu_custom_call.1} parent=39 // pred_check
          %p1189 = pneg %p448
        $region74: #{tpu_custom_call.1} parent=39 // pred_check_branch
          %1191 = sbr.rel (%p1189) target = $region76
        $region75: #{tpu_custom_call.1} parent=39 // pred_region
          %p1192 = scmp.lt.s32.totalorder %s94, 1
          %s1193 = scalar_select %p1192, %s94, 1
          %s1194 = smul.addr %s1193, 16
          %s1195 = smul.addr %s1194, 8
          %s1196 = scalar_lea.vmem %s29, %s1195
        $region76: #{tpu_custom_call.1} parent=39 // pred_fallthru
          _
        // Predicated region
        $region77: #{tpu_custom_call.1} parent=39 // pred_check
          %p1197 = pneg %p474
        $region78: #{tpu_custom_call.1} parent=39 // pred_check_branch
          %1199 = sbr.rel (%p1197) target = $region80
        $region79: #{tpu_custom_call.1} parent=39 // pred_region
          %p1200 = scmp.lt.s32.totalorder %s94, 1
          %s1201 = scalar_select %p1200, %s94, 1
          %s1202 = smul.addr %s1201, 2
          %s1203 = scalar_lea.vmem %s31, %s1202
        $region80: #{tpu_custom_call.1} parent=39 // pred_fallthru
          _
        // Predicated region
        $region81: #{tpu_custom_call.1} parent=39 // pred_check
          %p1204 = pneg %p500
        $region82: #{tpu_custom_call.1} parent=39 // pred_check_branch
          %1206 = sbr.rel (%p1204) target = $region84
        $region83: #{tpu_custom_call.1} parent=39 // pred_region
          %p1207 = scmp.lt.s32.totalorder %s94, 1
          %s1208 = scalar_select %p1207, %s94, 1
          %s1209 = smul.addr %s1208, 8
          %s1210 = smul.addr %s1209, 8
          %s1211 = scalar_lea.vmem %s33, %s1210
        $region84: #{tpu_custom_call.1} parent=39 // pred_fallthru
          _
        // Predicated region
        $region85: #{tpu_custom_call.1} parent=39 // pred_check
          %p1212 = pneg %p526
        $region86: #{tpu_custom_call.1} parent=39 // pred_check_branch
          %1214 = sbr.rel (%p1212) target = $region88
        $region87: #{tpu_custom_call.1} parent=39 // pred_region
          %p1215 = scmp.lt.s32.totalorder %s94, 1
          %s1216 = scalar_select %p1215, %s94, 1
          %s1217 = scalar_lea.vmem %s35, %s1216
        $region88: #{tpu_custom_call.1} parent=39 // pred_fallthru
          _
        // Predicated region
        $region89: #{tpu_custom_call.1} parent=39 // pred_check
          %p1218 = pneg %p552
        $region90: #{tpu_custom_call.1} parent=39 // pred_check_branch
          %1220 = sbr.rel (%p1218) target = $region92
        $region91: #{tpu_custom_call.1} parent=39 // pred_region
          %p1221 = scmp.lt.s32.totalorder %s94, 1
          %s1222 = scalar_select %p1221, %s94, 1
          %s1223 = scalar_lea.vmem %s37, %s1222
        $region92: #{tpu_custom_call.1} parent=39 // pred_fallthru
          _
        // Predicated region
        $region93: #{tpu_custom_call.1} parent=39 // pred_check
          %p1224 = pneg %p578
        $region94: #{tpu_custom_call.1} parent=39 // pred_check_branch
          %1226 = sbr.rel (%p1224) target = $region96
        $region95: #{tpu_custom_call.1} parent=39 // pred_region
          %p1227 = scmp.lt.s32.totalorder %s94, 1
          %s1228 = scalar_select %p1227, %s94, 1
          %s1229 = smul.addr %s1228, 8
          %s1230 = smul.addr %s1229, 8
          %s1231 = scalar_lea.vmem %s39, %s1230
        $region96: #{tpu_custom_call.1} parent=39 // pred_fallthru
          _
        // Predicated region
        $region97: #{tpu_custom_call.1} parent=39 // pred_check
          %p1232 = pneg %p604
        $region98: #{tpu_custom_call.1} parent=39 // pred_check_branch
          %1234 = sbr.rel (%p1232) target = $region100
        $region99: #{tpu_custom_call.1} parent=39 // pred_region
          %p1235 = scmp.lt.s32.totalorder %s94, 1
          %s1236 = scalar_select %p1235, %s94, 1
          %s1237 = scalar_lea.vmem %s41, %s1236
        $region100: #{tpu_custom_call.1} parent=39 // pred_fallthru
          _
        // Predicated region
        $region101: #{tpu_custom_call.1} parent=39 // pred_check
          %p1238 = pneg %p630
        $region102: #{tpu_custom_call.1} parent=39 // pred_check_branch
          %1240 = sbr.rel (%p1238) target = $region104
        $region103: #{tpu_custom_call.1} parent=39 // pred_region
          %p1241 = scmp.lt.s32.totalorder %s94, 1
          %s1242 = scalar_select %p1241, %s94, 1
          %s1243 = scalar_lea.vmem %s43, %s1242
        $region104: #{tpu_custom_call.1} parent=39 // pred_fallthru
          _
        // Predicated region
        $region105: #{tpu_custom_call.1} parent=39 // pred_check
          %p1244 = pneg %p656
        $region106: #{tpu_custom_call.1} parent=39 // pred_check_branch
          %1246 = sbr.rel (%p1244) target = $region108
        $region107: #{tpu_custom_call.1} parent=39 // pred_region
          %p1247 = scmp.lt.s32.totalorder %s94, 1
          %s1248 = scalar_select %p1247, %s94, 1
          %s1249 = scalar_lea.vmem %s45, %s1248
        $region108: #{tpu_custom_call.1} parent=39 // pred_fallthru
          _
        // Predicated region
        $region109: #{tpu_custom_call.1} parent=39 // pred_check
          %p1250 = pneg %p682
        $region110: #{tpu_custom_call.1} parent=39 // pred_check_branch
          %1252 = sbr.rel (%p1250) target = $region112
        $region111: #{tpu_custom_call.1} parent=39 // pred_region
          %s1253 = sand.u32 %s94, 1
          %s1254 = scalar_lea.sflag [#allocation13], %s1253
          %s1255 = sand.u32 %s672, 1
          %s1256 = smul.addr %s1255, 64
          %s1257 = scalar_lea.vmem [#allocation12], %s1256
          %1259 = vsyncadd %s1254, 0
          %s1260 = smul.addr %s94, 8
          %s1261 = smul.addr %s1260, 8
          %s1262 = scalar_lea.hbm %s47, %s1261
          %s1263 = sshll.u32 %s1262, 4
          %s1264 = int_to_ptr.hbm [resolvable:$true] %s1263
          %s1265 = sshll.u32 %s1257, 4
          %s1266 = int_to_ptr.vmem [resolvable:$true] %s1265
          %1271 = dma.hbm_to_vmem [thread:$0]  %s1264, 1024, %s1266, %s1254, 128, 128, 8
        $region112: #{tpu_custom_call.1} parent=39 // pred_fallthru
          _
        // Predicated region
        $region113: #{tpu_custom_call.1} parent=39 // pred_check
          %p1272 = pneg %p708
        $region114: #{tpu_custom_call.1} parent=39 // pred_check_branch
          %1274 = sbr.rel (%p1272) target = $region116
        $region115: #{tpu_custom_call.1} parent=39 // pred_region
          %s1275 = sand.u32 %s94, 1
          %s1276 = scalar_lea.sflag [#allocation13], %s1275
          %s1277 = sand.u32 %s698, 1
          %s1278 = smul.addr %s1277, 64
          %s1279 = scalar_lea.vmem [#allocation14], %s1278
          %1281 = vsyncadd %s1276, 0
          %s1282 = smul.addr %s94, 8
          %s1283 = smul.addr %s1282, 8
          %s1284 = scalar_lea.hbm %s49, %s1283
          %s1285 = sshll.u32 %s1284, 4
          %s1286 = int_to_ptr.hbm [resolvable:$true] %s1285
          %s1287 = sshll.u32 %s1279, 4
          %s1288 = int_to_ptr.vmem [resolvable:$true] %s1287
          %1293 = dma.hbm_to_vmem [thread:$0]  %s1286, 1024, %s1288, %s1276, 128, 128, 8
        $region116: #{tpu_custom_call.1} parent=39 // pred_fallthru
          _
        // Predicated region
        $region117: #{tpu_custom_call.1} parent=39 // pred_check
          %p1294 = pneg %p734
        $region118: #{tpu_custom_call.1} parent=39 // pred_check_branch
          %1296 = sbr.rel (%p1294) target = $region120
        $region119: #{tpu_custom_call.1} parent=39 // pred_region
          %p1297 = scmp.lt.s32.totalorder %s94, 1
          %s1298 = scalar_select %p1297, %s94, 1
          %s1299 = smul.addr %s1298, 8
          %s1300 = scalar_lea.vmem %s51, %s1299
        $region120: #{tpu_custom_call.1} parent=39 // pred_fallthru
          _
        // Predicated region
        $region121: #{tpu_custom_call.1} parent=39 // pred_check
          %p1301 = pneg %p760
        $region122: #{tpu_custom_call.1} parent=39 // pred_check_branch
          %1303 = sbr.rel (%p1301) target = $region124
        $region123: #{tpu_custom_call.1} parent=39 // pred_region
          %p1304 = scmp.lt.s32.totalorder %s94, 1
          %s1305 = scalar_select %p1304, %s94, 1
          %s1306 = scalar_lea.vmem %s53, %s1305
        $region124: #{tpu_custom_call.1} parent=39 // pred_fallthru
          _
        // Predicated region
        $region125: #{tpu_custom_call.1} parent=39 // pred_check
          %p1307 = pneg %p786
        $region126: #{tpu_custom_call.1} parent=39 // pred_check_branch
          %1309 = sbr.rel (%p1307) target = $region128
        $region127: #{tpu_custom_call.1} parent=39 // pred_region
          %p1310 = scmp.lt.s32.totalorder %s94, 1
          %s1311 = scalar_select %p1310, %s94, 1
          %s1312 = scalar_lea.vmem %s55, %s1311
        $region128: #{tpu_custom_call.1} parent=39 // pred_fallthru
          _
        // Predicated region
        $region129: #{tpu_custom_call.1} parent=39 // pred_check
          %p1313 = pneg %p812
        $region130: #{tpu_custom_call.1} parent=39 // pred_check_branch
          %1315 = sbr.rel (%p1313) target = $region132
        $region131: #{tpu_custom_call.1} parent=39 // pred_region
          %s1316 = sand.u32 %s94, 1
          %s1317 = scalar_lea.sflag [#allocation16], %s1316
          %s1318 = sand.u32 %s802, 1
          %s1319 = smul.addr %s1318, 64
          %s1320 = scalar_lea.vmem [#allocation15], %s1319
          %1322 = vsyncadd %s1317, 0
          %s1323 = smul.addr %s94, 8
          %s1324 = smul.addr %s1323, 8
          %s1325 = scalar_lea.hbm %s57, %s1324
          %s1326 = sshll.u32 %s1325, 4
          %s1327 = int_to_ptr.hbm [resolvable:$true] %s1326
          %s1328 = sshll.u32 %s1320, 4
          %s1329 = int_to_ptr.vmem [resolvable:$true] %s1328
          %1334 = dma.hbm_to_vmem [thread:$0]  %s1327, 1024, %s1329, %s1317, 128, 128, 8
        $region132: #{tpu_custom_call.1} parent=39 // pred_fallthru
          _
        // Predicated region
        $region133: #{tpu_custom_call.1} parent=39 // pred_check
          %p1335 = pneg %p838
        $region134: #{tpu_custom_call.1} parent=39 // pred_check_branch
          %1337 = sbr.rel (%p1335) target = $region136
        $region135: #{tpu_custom_call.1} parent=39 // pred_region
          %p1338 = scmp.lt.s32.totalorder %s94, 1
          %s1339 = scalar_select %p1338, %s94, 1
          %s1340 = scalar_lea.vmem %s59, %s1339
        $region136: #{tpu_custom_call.1} parent=39 // pred_fallthru
          _
        // Predicated region
        $region137: #{tpu_custom_call.1} parent=39 // pred_check
          %p1341 = pneg %p864
        $region138: #{tpu_custom_call.1} parent=39 // pred_check_branch
          %1343 = sbr.rel (%p1341) target = $region140
        $region139: #{tpu_custom_call.1} parent=39 // pred_region
          %p1344 = scmp.lt.s32.totalorder %s94, 1
          %s1345 = scalar_select %p1344, %s94, 1
          %s1346 = scalar_lea.vmem %s61, %s1345
        $region140: #{tpu_custom_call.1} parent=39 // pred_fallthru
          _
        // Predicated region
        $region141: #{tpu_custom_call.1} parent=39 // pred_check
          %p1347 = pneg %p890
        $region142: #{tpu_custom_call.1} parent=39 // pred_check_branch
          %1349 = sbr.rel (%p1347) target = $region144
        $region143: #{tpu_custom_call.1} parent=39 // pred_region
          %s1350 = sand.u32 %s94, 1
          %s1351 = scalar_lea.sflag [#allocation16], %s1350
          %s1352 = sand.u32 %s880, 1
          %s1353 = smul.addr %s1352, 64
          %s1354 = scalar_lea.vmem [#allocation17], %s1353
          %1356 = vsyncadd %s1351, 0
          %s1357 = smul.addr %s94, 8
          %s1358 = smul.addr %s1357, 8
          %s1359 = scalar_lea.hbm %s63, %s1358
          %s1360 = sshll.u32 %s1359, 4
          %s1361 = int_to_ptr.hbm [resolvable:$true] %s1360
          %s1362 = sshll.u32 %s1354, 4
          %s1363 = int_to_ptr.vmem [resolvable:$true] %s1362
          %1368 = dma.hbm_to_vmem [thread:$0]  %s1361, 1024, %s1363, %s1351, 128, 128, 8
        $region144: #{tpu_custom_call.1} parent=39 // pred_fallthru
          _
        // Predicated region
        $region145: #{tpu_custom_call.1} parent=39 // pred_check
          %p1369 = pneg %p916
        $region146: #{tpu_custom_call.1} parent=39 // pred_check_branch
          %1371 = sbr.rel (%p1369) target = $region148
        $region147: #{tpu_custom_call.1} parent=39 // pred_region
          %p1372 = scmp.lt.s32.totalorder %s94, 1
          %s1373 = scalar_select %p1372, %s94, 1
          %s1374 = scalar_lea.vmem %s65, %s1373
        $region148: #{tpu_custom_call.1} parent=39 // pred_fallthru
          _
        // Predicated region
        $region149: #{tpu_custom_call.1} parent=39 // pred_check
          %p1375 = pneg %p942
        $region150: #{tpu_custom_call.1} parent=39 // pred_check_branch
          %1377 = sbr.rel (%p1375) target = $region152
        $region151: #{tpu_custom_call.1} parent=39 // pred_region
          %p1378 = scmp.lt.s32.totalorder %s94, 1
          %s1379 = scalar_select %p1378, %s94, 1
          %s1380 = smul.addr %s1379, 16
          %s1381 = smul.addr %s1380, 8
          %s1382 = scalar_lea.vmem %s67, %s1381
        $region152: #{tpu_custom_call.1} parent=39 // pred_fallthru
          _
        // Predicated region
        $region153: #{tpu_custom_call.1} parent=39 // pred_check
          %p1383 = pneg %p968
        $region154: #{tpu_custom_call.1} parent=39 // pred_check_branch
          %1385 = sbr.rel (%p1383) target = $region156
        $region155: #{tpu_custom_call.1} parent=39 // pred_region
          %p1386 = scmp.lt.s32.totalorder %s94, 1
          %s1387 = scalar_select %p1386, %s94, 1
          %s1388 = scalar_lea.vmem %s69, %s1387
        $region156: #{tpu_custom_call.1} parent=39 // pred_fallthru
          _
        // Predicated region
        $region157: #{tpu_custom_call.1} parent=39 // pred_check
          %p1389 = pneg %p994
        $region158: #{tpu_custom_call.1} parent=39 // pred_check_branch
          %1391 = sbr.rel (%p1389) target = $region160
        $region159: #{tpu_custom_call.1} parent=39 // pred_region
          %s1392 = sand.u32 %s984, 1
          %s1393 = scalar_lea.sflag [#allocation19], %s1392
          %s1394 = sand.u32 %s984, 1
          %s1395 = scalar_lea.vmem [#allocation18], %s1394
          %1397 = vsyncadd %s1393, 0
          %s1398 = scalar_lea.hbm %s71, %s94
          %s1400 = sshll.u32 %s1398, 4
          %s1401 = int_to_ptr.hbm [resolvable:$true] %s1400
          %s1402 = sshll.u32 %s1395, 4
          %s1403 = int_to_ptr.vmem [resolvable:$true] %s1402
          %1405 = dma.hbm_to_vmem [thread:$0]  %s1401, 16, %s1403, %s1393
        $region160: #{tpu_custom_call.1} parent=39 // pred_fallthru
          _
        // Predicated region
        $region161: #{tpu_custom_call.1} parent=39 // pred_check
          %p1406 = pneg %p1020
        $region162: #{tpu_custom_call.1} parent=39 // pred_check_branch
          %1408 = sbr.rel (%p1406) target = $region164
        $region163: #{tpu_custom_call.1} parent=39 // pred_region
          %p1409 = scmp.lt.s32.totalorder %s94, 1
          %s1410 = scalar_select %p1409, %s94, 1
          %s1411 = scalar_lea.vmem %s73, %s1410
        $region164: #{tpu_custom_call.1} parent=39 // pred_fallthru
          _
      $region40: #{tpu_custom_call.1} parent=5 // pred_fallthru
        _
      %p1412 = scmp.le.s32.totalorder 1, %s94
      %p1413 = scmp.lt.s32.totalorder %s94, 3
      %p1414 = pnand %p1412, %p1413
      %p1415 = pneg %p1414
      // Predicated region
      $region165: #{tpu_custom_call.1} parent=5 // pred_check
        _
      $region166: #{tpu_custom_call.1} parent=5 // pred_check_branch
        %1417 = sbr.rel (%p1414) target = $region168
      $region167: #{tpu_custom_call.1} parent=5 // pred_region
        %s1418 = ssub.s32 %s94, 1
        // Predicated region
        $region169: #{tpu_custom_call.1} parent=167 // pred_check
          %p1419 = pneg %p115
        $region170: #{tpu_custom_call.1} parent=167 // pred_check_branch
          %1421 = sbr.rel (%p1419) target = $region172
        $region171: #{tpu_custom_call.1} parent=167 // pred_region
          %1423 = dma.done [#allocation4], 512
        $region172: #{tpu_custom_call.1} parent=167 // pred_fallthru
          _
        // Predicated region
        $region173: #{tpu_custom_call.1} parent=167 // pred_check
          %p1424 = pneg %p136
        $region174: #{tpu_custom_call.1} parent=167 // pred_check_branch
          %1426 = sbr.rel (%p1424) target = $region176
        $region175: #{tpu_custom_call.1} parent=167 // pred_region
          %1428 = dma.done [#allocation7], 512
        $region176: #{tpu_custom_call.1} parent=167 // pred_fallthru
          _
        // Predicated region
        $region177: #{tpu_custom_call.1} parent=167 // pred_check
          %p1429 = pneg %p178
        $region178: #{tpu_custom_call.1} parent=167 // pred_check_branch
          %1431 = sbr.rel (%p1429) target = $region180
        $region179: #{tpu_custom_call.1} parent=167 // pred_region
          %1433 = dma.done [#allocation7], 512
        $region180: #{tpu_custom_call.1} parent=167 // pred_fallthru
          _
        // Predicated region
        $region181: #{tpu_custom_call.1} parent=167 // pred_check
          %p1434 = pneg %p199
        $region182: #{tpu_custom_call.1} parent=167 // pred_check_branch
          %1436 = sbr.rel (%p1434) target = $region184
        $region183: #{tpu_custom_call.1} parent=167 // pred_region
          %1438 = dma.done [#allocation10], 1024
        $region184: #{tpu_custom_call.1} parent=167 // pred_fallthru
          _
        // Predicated region
        $region185: #{tpu_custom_call.1} parent=167 // pred_check
          %p1439 = pneg %p220
        $region186: #{tpu_custom_call.1} parent=167 // pred_check_branch
          %1441 = sbr.rel (%p1439) target = $region188
        $region187: #{tpu_custom_call.1} parent=167 // pred_region
          %1443 = dma.done [#allocation10], 16
        $region188: #{tpu_custom_call.1} parent=167 // pred_fallthru
          _
        %s1444 = sand.u32 %s99, 1
        %s1445 = scalar_lea.sflag [#allocation13], %s1444
        %s1446 = sand.u32 %s675, 1
        %s1447 = smul.addr %s1446, 64
        %s1448 = scalar_lea.vmem [#allocation12], %s1447
        // Predicated region
        $region189: #{tpu_custom_call.1} parent=167 // pred_check
          %p1449 = pneg %p688
        $region190: #{tpu_custom_call.1} parent=167 // pred_check_branch
          %1451 = sbr.rel (%p1449) target = $region192
        $region191: #{tpu_custom_call.1} parent=167 // pred_region
          %1453 = dma.done %s1445, 1024
        $region192: #{tpu_custom_call.1} parent=167 // pred_fallthru
          _
        %s1454 = sand.u32 %s99, 1
        %s1455 = scalar_lea.sflag [#allocation13], %s1454
        %s1456 = sand.u32 %s701, 1
        %s1457 = smul.addr %s1456, 64
        %s1458 = scalar_lea.vmem [#allocation14], %s1457
        // Predicated region
        $region193: #{tpu_custom_call.1} parent=167 // pred_check
          %p1459 = pneg %p714
        $region194: #{tpu_custom_call.1} parent=167 // pred_check_branch
          %1461 = sbr.rel (%p1459) target = $region196
        $region195: #{tpu_custom_call.1} parent=167 // pred_region
          %1463 = dma.done %s1455, 1024
        $region196: #{tpu_custom_call.1} parent=167 // pred_fallthru
          _
        %s1464 = sand.u32 %s99, 1
        %s1465 = scalar_lea.sflag [#allocation16], %s1464
        %s1466 = sand.u32 %s805, 1
        %s1467 = smul.addr %s1466, 64
        %s1468 = scalar_lea.vmem [#allocation15], %s1467
        // Predicated region
        $region197: #{tpu_custom_call.1} parent=167 // pred_check
          %p1469 = pneg %p818
        $region198: #{tpu_custom_call.1} parent=167 // pred_check_branch
          %1471 = sbr.rel (%p1469) target = $region200
        $region199: #{tpu_custom_call.1} parent=167 // pred_region
          %1473 = dma.done %s1465, 1024
        $region200: #{tpu_custom_call.1} parent=167 // pred_fallthru
          _
        %s1474 = sand.u32 %s99, 1
        %s1475 = scalar_lea.sflag [#allocation16], %s1474
        %s1476 = sand.u32 %s883, 1
        %s1477 = smul.addr %s1476, 64
        %s1478 = scalar_lea.vmem [#allocation17], %s1477
        // Predicated region
        $region201: #{tpu_custom_call.1} parent=167 // pred_check
          %p1479 = pneg %p896
        $region202: #{tpu_custom_call.1} parent=167 // pred_check_branch
          %1481 = sbr.rel (%p1479) target = $region204
        $region203: #{tpu_custom_call.1} parent=167 // pred_region
          %1483 = dma.done %s1475, 1024
        $region204: #{tpu_custom_call.1} parent=167 // pred_fallthru
          _
        %s1484 = sand.u32 %s987, 1
        %s1485 = scalar_lea.sflag [#allocation19], %s1484
        %s1486 = sand.u32 %s987, 1
        %s1487 = scalar_lea.vmem [#allocation18], %s1486
        // Predicated region
        $region205: #{tpu_custom_call.1} parent=167 // pred_check
          %p1488 = pneg %p1000
        $region206: #{tpu_custom_call.1} parent=167 // pred_check_branch
          %1490 = sbr.rel (%p1488) target = $region208
        $region207: #{tpu_custom_call.1} parent=167 // pred_region
          %1492 = dma.done %s1485, 16
        $region208: #{tpu_custom_call.1} parent=167 // pred_fallthru
          _
        %p1493 = pneg %p115
        %p1494 = pneg %p112
        %p1495 = pneg %p136
        %p1496 = pneg %p133
        %p1497 = pneg %p157
        %p1498 = pneg %p154
        %p1499 = pneg %p178
        %p1500 = pneg %p175
        %p1501 = pneg %p199
        %p1502 = pneg %p196
        %p1503 = pneg %p220
        %p1504 = pneg %p217
        %p1505 = scmp.lt.s32.totalorder %s99, 1
        %s1506 = scalar_select %p1505, %s99, 1
        %s1507 = scalar_lea.vmem %s13, %s1506
        %p1508 = pneg %p246
        %p1509 = pneg %p243
        %p1510 = scmp.lt.s32.totalorder %s99, 1
        %s1511 = scalar_select %p1510, %s99, 1
        %s1512 = scalar_lea.vmem %s15, %s1511
        %p1513 = pneg %p272
        %p1514 = pneg %p269
        %p1515 = scmp.lt.s32.totalorder %s99, 1
        %s1516 = scalar_select %p1515, %s99, 1
        %s1517 = smul.addr %s1516, 8
        %s1518 = smul.addr %s1517, 8
        %s1519 = scalar_lea.vmem %s17, %s1518
        %p1520 = pneg %p298
        %p1521 = pneg %p295
        %p1522 = scmp.lt.s32.totalorder %s99, 1
        %s1523 = scalar_select %p1522, %s99, 1
        %s1524 = scalar_lea.vmem %s19, %s1523
        %p1525 = pneg %p324
        %p1526 = pneg %p321
        %p1527 = scmp.lt.s32.totalorder %s99, 1
        %s1528 = scalar_select %p1527, %s99, 1
        %s1529 = smul.addr %s1528, 16
        %s1530 = smul.addr %s1529, 8
        %s1531 = scalar_lea.vmem %s21, %s1530
        %p1532 = pneg %p350
        %p1533 = pneg %p347
        %p1534 = scmp.lt.s32.totalorder %s99, 1
        %s1535 = scalar_select %p1534, %s99, 1
        %s1536 = scalar_lea.vmem %s23, %s1535
        %p1537 = pneg %p376
        %p1538 = pneg %p373
        %p1539 = scmp.lt.s32.totalorder %s99, 1
        %s1540 = scalar_select %p1539, %s99, 1
        %s1541 = scalar_lea.vmem %s25, %s1540
        %p1542 = pneg %p402
        %p1543 = pneg %p399
        %p1544 = scmp.lt.s32.totalorder %s99, 1
        %s1545 = scalar_select %p1544, %s99, 1
        %s1546 = scalar_lea.vmem %s27, %s1545
        %p1547 = pneg %p428
        %p1548 = pneg %p425
        %p1549 = scmp.lt.s32.totalorder %s99, 1
        %s1550 = scalar_select %p1549, %s99, 1
        %s1551 = smul.addr %s1550, 16
        %s1552 = smul.addr %s1551, 8
        %s1553 = scalar_lea.vmem %s29, %s1552
        %p1554 = pneg %p454
        %p1555 = pneg %p451
        %p1556 = scmp.lt.s32.totalorder %s99, 1
        %s1557 = scalar_select %p1556, %s99, 1
        %s1558 = smul.addr %s1557, 2
        %s1559 = scalar_lea.vmem %s31, %s1558
        %p1560 = pneg %p480
        %p1561 = pneg %p477
        %p1562 = scmp.lt.s32.totalorder %s99, 1
        %s1563 = scalar_select %p1562, %s99, 1
        %s1564 = smul.addr %s1563, 8
        %s1565 = smul.addr %s1564, 8
        %s1566 = scalar_lea.vmem %s33, %s1565
        %p1567 = pneg %p506
        %p1568 = pneg %p503
        %p1569 = scmp.lt.s32.totalorder %s99, 1
        %s1570 = scalar_select %p1569, %s99, 1
        %s1571 = scalar_lea.vmem %s35, %s1570
        %p1572 = pneg %p532
        %p1573 = pneg %p529
        %p1574 = scmp.lt.s32.totalorder %s99, 1
        %s1575 = scalar_select %p1574, %s99, 1
        %s1576 = scalar_lea.vmem %s37, %s1575
        %p1577 = pneg %p558
        %p1578 = pneg %p555
        %p1579 = scmp.lt.s32.totalorder %s99, 1
        %s1580 = scalar_select %p1579, %s99, 1
        %s1581 = smul.addr %s1580, 8
        %s1582 = smul.addr %s1581, 8
        %s1583 = scalar_lea.vmem %s39, %s1582
        %p1584 = pneg %p584
        %p1585 = pneg %p581
        %p1586 = scmp.lt.s32.totalorder %s99, 1
        %s1587 = scalar_select %p1586, %s99, 1
        %s1588 = scalar_lea.vmem %s41, %s1587
        %p1589 = pneg %p610
        %p1590 = pneg %p607
        %p1591 = scmp.lt.s32.totalorder %s99, 1
        %s1592 = scalar_select %p1591, %s99, 1
        %s1593 = scalar_lea.vmem %s43, %s1592
        %p1594 = pneg %p636
        %p1595 = pneg %p633
        %p1596 = scmp.lt.s32.totalorder %s99, 1
        %s1597 = scalar_select %p1596, %s99, 1
        %s1598 = scalar_lea.vmem %s45, %s1597
        %p1599 = pneg %p662
        %p1600 = pneg %p659
        %s1601 = sand.u32 %s99, 1
        %s1602 = scalar_lea.sflag [#allocation13], %s1601
        %s1603 = sand.u32 %s675, 1
        %s1604 = smul.addr %s1603, 64
        %s1605 = scalar_lea.vmem [#allocation12], %s1604
        %p1606 = pneg %p688
        %p1607 = pneg %p685
        %s1608 = sand.u32 %s99, 1
        %s1609 = scalar_lea.sflag [#allocation13], %s1608
        %s1610 = sand.u32 %s701, 1
        %s1611 = smul.addr %s1610, 64
        %s1612 = scalar_lea.vmem [#allocation14], %s1611
        %p1613 = pneg %p714
        %p1614 = pneg %p711
        %p1615 = scmp.lt.s32.totalorder %s99, 1
        %s1616 = scalar_select %p1615, %s99, 1
        %s1617 = smul.addr %s1616, 8
        %s1618 = scalar_lea.vmem %s51, %s1617
        %p1619 = pneg %p740
        %p1620 = pneg %p737
        %p1621 = scmp.lt.s32.totalorder %s99, 1
        %s1622 = scalar_select %p1621, %s99, 1
        %s1623 = scalar_lea.vmem %s53, %s1622
        %p1624 = pneg %p766
        %p1625 = pneg %p763
        %p1626 = scmp.lt.s32.totalorder %s99, 1
        %s1627 = scalar_select %p1626, %s99, 1
        %s1628 = scalar_lea.vmem %s55, %s1627
        %p1629 = pneg %p792
        %p1630 = pneg %p789
        %s1631 = sand.u32 %s99, 1
        %s1632 = scalar_lea.sflag [#allocation16], %s1631
        %s1633 = sand.u32 %s805, 1
        %s1634 = smul.addr %s1633, 64
        %s1635 = scalar_lea.vmem [#allocation15], %s1634
        %p1636 = pneg %p818
        %p1637 = pneg %p815
        %p1638 = scmp.lt.s32.totalorder %s99, 1
        %s1639 = scalar_select %p1638, %s99, 1
        %s1640 = scalar_lea.vmem %s59, %s1639
        %p1641 = pneg %p844
        %p1642 = pneg %p841
        %p1643 = scmp.lt.s32.totalorder %s99, 1
        %s1644 = scalar_select %p1643, %s99, 1
        %s1645 = scalar_lea.vmem %s61, %s1644
        %p1646 = pneg %p870
        %p1647 = pneg %p867
        %s1648 = sand.u32 %s99, 1
        %s1649 = scalar_lea.sflag [#allocation16], %s1648
        %s1650 = sand.u32 %s883, 1
        %s1651 = smul.addr %s1650, 64
        %s1652 = scalar_lea.vmem [#allocation17], %s1651
        %p1653 = pneg %p896
        %p1654 = pneg %p893
        %p1655 = scmp.lt.s32.totalorder %s99, 1
        %s1656 = scalar_select %p1655, %s99, 1
        %s1657 = scalar_lea.vmem %s65, %s1656
        %p1658 = pneg %p922
        %p1659 = pneg %p919
        %p1660 = scmp.lt.s32.totalorder %s99, 1
        %s1661 = scalar_select %p1660, %s99, 1
        %s1662 = smul.addr %s1661, 16
        %s1663 = smul.addr %s1662, 8
        %s1664 = scalar_lea.vmem %s67, %s1663
        %p1665 = pneg %p948
        %p1666 = pneg %p945
        %p1667 = scmp.lt.s32.totalorder %s99, 1
        %s1668 = scalar_select %p1667, %s99, 1
        %s1669 = scalar_lea.vmem %s69, %s1668
        %p1670 = pneg %p974
        %p1671 = pneg %p971
        %s1672 = sand.u32 %s987, 1
        %s1673 = scalar_lea.sflag [#allocation19], %s1672
        %s1674 = sand.u32 %s987, 1
        %s1675 = scalar_lea.vmem [#allocation18], %s1674
        %p1676 = pneg %p1000
        %p1677 = pneg %p997
        %p1678 = scmp.lt.s32.totalorder %s99, 1
        %s1679 = scalar_select %p1678, %s99, 1
        %s1680 = scalar_lea.vmem %s73, %s1679
        %p1681 = pneg %p1026
        %p1682 = pneg %p1023
        %p1683 = pneg %p1047
        %p1684 = pneg %p1044
        %p1685 = scmp.lt.s32.totalorder %s99, 1
        %s1686 = scalar_select %p1685, %s99, 1
        %s1687 = scalar_lea.vmem %s13, %s1686
        %p1688 = scmp.lt.s32.totalorder %s99, 1
        %s1689 = scalar_select %p1688, %s99, 1
        %s1690 = scalar_lea.vmem %s15, %s1689
        %p1691 = scmp.lt.s32.totalorder %s99, 1
        %s1692 = scalar_select %p1691, %s99, 1
        %s1693 = smul.addr %s1692, 8
        %s1694 = smul.addr %s1693, 8
        %s1695 = scalar_lea.vmem %s17, %s1694
        %p1696 = scmp.lt.s32.totalorder %s99, 1
        %s1697 = scalar_select %p1696, %s99, 1
        %s1698 = scalar_lea.vmem %s19, %s1697
        %p1699 = scmp.lt.s32.totalorder %s99, 1
        %s1700 = scalar_select %p1699, %s99, 1
        %s1701 = smul.addr %s1700, 16
        %s1702 = smul.addr %s1701, 8
        %s1703 = scalar_lea.vmem %s21, %s1702
        %p1704 = scmp.lt.s32.totalorder %s99, 1
        %s1705 = scalar_select %p1704, %s99, 1
        %s1706 = scalar_lea.vmem %s23, %s1705
        %p1707 = scmp.lt.s32.totalorder %s99, 1
        %s1708 = scalar_select %p1707, %s99, 1
        %s1709 = scalar_lea.vmem %s25, %s1708
        %p1710 = scmp.lt.s32.totalorder %s99, 1
        %s1711 = scalar_select %p1710, %s99, 1
        %s1712 = scalar_lea.vmem %s27, %s1711
        %p1713 = scmp.lt.s32.totalorder %s99, 1
        %s1714 = scalar_select %p1713, %s99, 1
        %s1715 = smul.addr %s1714, 16
        %s1716 = smul.addr %s1715, 8
        %s1717 = scalar_lea.vmem %s29, %s1716
        %p1718 = scmp.lt.s32.totalorder %s99, 1
        %s1719 = scalar_select %p1718, %s99, 1
        %s1720 = smul.addr %s1719, 2
        %s1721 = scalar_lea.vmem %s31, %s1720
        %p1722 = scmp.lt.s32.totalorder %s99, 1
        %s1723 = scalar_select %p1722, %s99, 1
        %s1724 = smul.addr %s1723, 8
        %s1725 = smul.addr %s1724, 8
        %s1726 = scalar_lea.vmem %s33, %s1725
        %p1727 = scmp.lt.s32.totalorder %s99, 1
        %s1728 = scalar_select %p1727, %s99, 1
        %s1729 = scalar_lea.vmem %s35, %s1728
        %p1730 = scmp.lt.s32.totalorder %s99, 1
        %s1731 = scalar_select %p1730, %s99, 1
        %s1732 = scalar_lea.vmem %s37, %s1731
        %p1733 = scmp.lt.s32.totalorder %s99, 1
        %s1734 = scalar_select %p1733, %s99, 1
        %s1735 = smul.addr %s1734, 8
        %s1736 = smul.addr %s1735, 8
        %s1737 = scalar_lea.vmem %s39, %s1736
        %p1738 = scmp.lt.s32.totalorder %s99, 1
        %s1739 = scalar_select %p1738, %s99, 1
        %s1740 = scalar_lea.vmem %s41, %s1739
        %p1741 = scmp.lt.s32.totalorder %s99, 1
        %s1742 = scalar_select %p1741, %s99, 1
        %s1743 = scalar_lea.vmem %s43, %s1742
        %p1744 = scmp.lt.s32.totalorder %s99, 1
        %s1745 = scalar_select %p1744, %s99, 1
        %s1746 = scalar_lea.vmem %s45, %s1745
        %p1747 = scmp.lt.s32.totalorder %s99, 1
        %s1748 = scalar_select %p1747, %s99, 1
        %s1749 = smul.addr %s1748, 8
        %s1750 = scalar_lea.vmem %s51, %s1749
        %p1751 = scmp.lt.s32.totalorder %s99, 1
        %s1752 = scalar_select %p1751, %s99, 1
        %s1753 = scalar_lea.vmem %s53, %s1752
        %p1754 = scmp.lt.s32.totalorder %s99, 1
        %s1755 = scalar_select %p1754, %s99, 1
        %s1756 = scalar_lea.vmem %s55, %s1755
        %p1757 = scmp.lt.s32.totalorder %s99, 1
        %s1758 = scalar_select %p1757, %s99, 1
        %s1759 = scalar_lea.vmem %s59, %s1758
        %p1760 = scmp.lt.s32.totalorder %s99, 1
        %s1761 = scalar_select %p1760, %s99, 1
        %s1762 = scalar_lea.vmem %s61, %s1761
        %p1763 = scmp.lt.s32.totalorder %s99, 1
        %s1764 = scalar_select %p1763, %s99, 1
        %s1765 = scalar_lea.vmem %s65, %s1764
        %p1766 = scmp.lt.s32.totalorder %s99, 1
        %s1767 = scalar_select %p1766, %s99, 1
        %s1768 = smul.addr %s1767, 16
        %s1769 = smul.addr %s1768, 8
        %s1770 = scalar_lea.vmem %s67, %s1769
        %p1771 = scmp.lt.s32.totalorder %s99, 1
        %s1772 = scalar_select %p1771, %s99, 1
        %s1773 = scalar_lea.vmem %s69, %s1772
        %p1774 = scmp.lt.s32.totalorder %s99, 1
        %s1775 = scalar_select %p1774, %s99, 1
        %s1776 = scalar_lea.vmem %s73, %s1775
        %p1778 = scmp.eq.s32.totalorder %s99, 0
        // Predicated region
        $region209: #{tpu_custom_call.1} parent=167 // pred_check
          %p1779 = pneg %p1778
        $region210: #{tpu_custom_call.1} parent=167 // pred_check_branch
          %1781 = sbr.rel (%p1779) target = $region212
        $region211: #{tpu_custom_call.1} parent=167 // pred_region
          %v1782 = vld [vmem:[#allocation3] sm:$0xff]
          %v1783 = vld [vmem:[#allocation3 + $0x8] sm:$0xff]
          %v1784 = vld [vmem:[#allocation3 + $0x10] sm:$0xff]
          %v1785 = vld [vmem:[#allocation3 + $0x18] sm:$0xff]
          %v1786 = vld [vmem:[#allocation6] sm:$0xff]
          %v1787 = vld [vmem:[#allocation6 + $0x8] sm:$0xff]
          %v1788 = vld [vmem:[#allocation6 + $0x10] sm:$0xff]
          %v1789 = vld [vmem:[#allocation6 + $0x18] sm:$0xff]
          %v1790 = vmul.f32 %v1782, 8.0
          %v1791 = vmul.f32 %v1783, 8.0
          %v1792 = vmul.f32 %v1784, 8.0
          %v1793 = vmul.f32 %v1785, 8.0
          %v1794 = vld [vmem:[#allocation9] sm:$0xff]
          %v1795 = vld [vmem:[#allocation9 + $0x8] sm:$0xff]
          %v1796 = vld [vmem:[#allocation9 + $0x10] sm:$0xff]
          %v1797 = vld [vmem:[#allocation9 + $0x18] sm:$0xff]
          %v1798 = vld [vmem:[#allocation9 + $0x20] sm:$0xff]
          %v1799 = vld [vmem:[#allocation9 + $0x28] sm:$0xff]
          %v1800 = vld [vmem:[#allocation9 + $0x30] sm:$0xff]
          %v1801 = vld [vmem:[#allocation9 + $0x38] sm:$0xff]
          %v1802 = vpack.c.bf16 %v1791, %v1790
          %v1803 = vpack.c.bf16 %v1793, %v1792
          %v1804 = vpack.c.bf16 %v1795, %v1794
          %v1805 = vpack.c.bf16 %v1797, %v1796
          %v1806 = vpack.c.bf16 %v1799, %v1798
          %v1807 = vpack.c.bf16 %v1801, %v1800
          %v1808 = vld [vmem:[#allocation11] sm:$0x1]
          %v1810 = vperm.slane %v1808, 0
          %vm1812 = vcmask 523264
          %v1814 = vsel %vm1812, %v1802, 0
          %v1817 = vsel %vm1812, %v1803, 0
          %1819 = vmatpush.bf16.msra.mxu0 0
          %1820 = vmatpush.bf16.msra.mxu0 0
          %1821 = vmatpush.bf16.msra.mxu0 0
          %1822 = vmatpush.bf16.msra.mxu0 0
          %1823 = vmatpush.bf16.msra.mxu0 %v1807
          %1824 = vmatpush.bf16.msra.mxu0 %v1806
          %1825 = vmatpush.bf16.msra.mxu0 %v1805
          %1826 = vmatpush.bf16.msra.mxu0 %v1804
          %1827 = vmatmul.bf16.gmra.mxu0 %v1814
          %v1828 = vpop.f32.mrf.mxu0
          %v1829 = vadd.f32 %v1810, %v1828
          %v1830 = vpop.f32.mrf.mxu0
          %v1831 = vadd.f32 %v1810, %v1830
          %1832 = vmatmul.bf16.gmra.mxu0 %v1817
          %v1833 = vpop.f32.mrf.mxu0
          %v1834 = vadd.f32 %v1810, %v1833
          %v1835 = vpop.f32.mrf.mxu0
          %v1836 = vadd.f32 %v1810, %v1835
          %1837 = vdwg.mxu0
          %v1838 = vadd.f32 %v1829, %v1786
          %v1839 = vadd.f32 %v1831, %v1787
          %v1840 = vadd.f32 %v1834, %v1788
          %v1841 = vadd.f32 %v1836, %v1789
          %1842 = vst.msk [vmem:[#allocation2] sm:$0xff] %vm1812, %v1838
          %1843 = vst.msk [vmem:[#allocation2 + $0x8] sm:$0xff] %vm1812, %v1839
          %1844 = vst.msk [vmem:[#allocation2 + $0x10] sm:$0xff] %vm1812, %v1840
          %1845 = vst.msk [vmem:[#allocation2 + $0x18] sm:$0xff] %vm1812, %v1841
        $region212: #{tpu_custom_call.1} parent=167 // pred_fallthru
          _
        %v1846 = vld [vmem:[#allocation2] sm:$0xff]
        %v1847 = vld [vmem:[#allocation2 + $0x8] sm:$0xff]
        %v1848 = vld [vmem:[#allocation2 + $0x10] sm:$0xff]
        %v1849 = vld [vmem:[#allocation2 + $0x18] sm:$0xff]
        %v1850 = vld [vmem:[%s5] sm:$0x1]
        %v1851 = vld [vmem:[%s5 + $0x1] sm:$0x1]
        %v1852 = vld [vmem:[#allocation8] sm:$0xff]
        %v1853 = vld [vmem:[#allocation8 + $0x8] sm:$0xff]
        %v1854 = vld [vmem:[#allocation8 + $0x10] sm:$0xff]
        %v1855 = vld [vmem:[#allocation8 + $0x18] sm:$0x7f]
        %v1856 = vld [vmem:[%s1687] sm:$0x1]
        %v1857 = vld [vmem:[%s1690] sm:$0x1]
        %v1858 = vld [vmem:[%s1695] sm:$0xff]
        %v1859 = vld [vmem:[%s1695 + $0x8] sm:$0xff]
        %v1860 = vld [vmem:[%s1695 + $0x10] sm:$0xff]
        %v1861 = vld [vmem:[%s1695 + $0x18] sm:$0xff]
        %v1862 = vld [vmem:[%s1695 + $0x20] sm:$0xff]
        %v1863 = vld [vmem:[%s1695 + $0x28] sm:$0xff]
        %v1864 = vld [vmem:[%s1695 + $0x30] sm:$0xff]
        %v1865 = vld [vmem:[%s1695 + $0x38] sm:$0xff]
        %v1866 = vld [vmem:[%s1698] sm:$0x1]
        %v1867 = vld [vmem:[%s1703] sm:$0xff]
        %v1868 = vld [vmem:[%s1703 + $0x8] sm:$0xff]
        %v1869 = vld [vmem:[%s1703 + $0x10] sm:$0xff]
        %v1870 = vld [vmem:[%s1703 + $0x18] sm:$0xff]
        %v1871 = vld [vmem:[%s1703 + $0x20] sm:$0xff]
        %v1872 = vld [vmem:[%s1703 + $0x28] sm:$0xff]
        %v1873 = vld [vmem:[%s1703 + $0x30] sm:$0xff]
        %v1874 = vld [vmem:[%s1703 + $0x38] sm:$0xff]
        %v1875 = vld [vmem:[%s1703 + $0x40] sm:$0xff]
        %v1876 = vld [vmem:[%s1703 + $0x48] sm:$0xff]
        %v1877 = vld [vmem:[%s1703 + $0x50] sm:$0xff]
        %v1878 = vld [vmem:[%s1703 + $0x58] sm:$0xff]
        %v1879 = vld [vmem:[%s1703 + $0x60] sm:$0xff]
        %v1880 = vld [vmem:[%s1703 + $0x68] sm:$0xff]
        %v1881 = vld [vmem:[%s1703 + $0x70] sm:$0xff]
        %v1882 = vld [vmem:[%s1703 + $0x78] sm:$0xff]
        %v1883 = vld [vmem:[%s1706] sm:$0x1]
        %vm1884 = vcmask 523264
        %v1885 = vsel %vm1884, %v1846, 0.0
        %1886 = vadd.xlane.f32.xlu0 %v1885
        %v1887 = vpop.xlane.xlu0 %1886
        %v1888 = vsel %vm1884, %v1847, 0.0
        %1889 = vadd.xlane.f32.xlu0 %v1888
        %v1890 = vpop.xlane.xlu0 %1889
        %v1891 = vsel %vm1884, %v1848, 0.0
        %1892 = vadd.xlane.f32.xlu0 %v1891
        %v1893 = vpop.xlane.xlu0 %1892
        %v1894 = vsel %vm1884, %v1849, 0.0
        %1895 = vadd.xlane.f32.xlu0 %v1894
        %v1896 = vpop.xlane.xlu0 %1895
        %v1897 = vrcp.pop 64.0
        %v1898 = vmul.f32 64.0, %v1897
        %v1899 = vsub.f32 1.0, %v1898
        %v1900 = vmul.f32 %v1897, %v1899
        %v1901 = vadd.f32 %v1897, %v1900
        %vm1902 = vweird.f32 %v1897
        %v1903 = vsel %vm1902, %v1897, %v1901
        %v1904 = vmul.f32 %v1887, %v1903
        %v1905 = vmul.f32 %v1890, %v1903
        %v1906 = vmul.f32 %v1893, %v1903
        %v1907 = vmul.f32 %v1896, %v1903
        %v1908 = vsub.f32 %v1846, %v1904
        %v1909 = vsub.f32 %v1847, %v1905
        %v1910 = vsub.f32 %v1848, %v1906
        %v1911 = vsub.f32 %v1849, %v1907
        %v1912 = vmul.f32 %v1908, %v1908
        %v1913 = vmul.f32 %v1909, %v1909
        %v1914 = vmul.f32 %v1910, %v1910
        %v1915 = vmul.f32 %v1911, %v1911
        %v1916 = vsel %vm1884, %v1912, 0.0
        %1917 = vadd.xlane.f32.xlu0 %v1916
        %v1918 = vpop.xlane.xlu0 %1917
        %v1919 = vsel %vm1884, %v1913, 0.0
        %1920 = vadd.xlane.f32.xlu0 %v1919
        %v1921 = vpop.xlane.xlu0 %1920
        %v1922 = vsel %vm1884, %v1914, 0.0
        %1923 = vadd.xlane.f32.xlu0 %v1922
        %v1924 = vpop.xlane.xlu0 %1923
        %v1925 = vsel %vm1884, %v1915, 0.0
        %1926 = vadd.xlane.f32.xlu0 %v1925
        %v1927 = vpop.xlane.xlu0 %1926
        %v1928 = vmul.f32 %v1918, %v1903
        %v1929 = vmul.f32 %v1921, %v1903
        %v1930 = vmul.f32 %v1924, %v1903
        %v1931 = vmul.f32 %v1927, %v1903
        %v1932 = vadd.f32 %v1928, 1e-05
        %v1933 = vadd.f32 %v1929, 1e-05
        %v1934 = vadd.f32 %v1930, 1e-05
        %v1935 = vadd.f32 %v1931, 1e-05
        %v1936 = vrsqrt.pop %v1932
        %v1937 = vmul.f32 %v1936, %v1932
        %v1938 = vmul.f32 %v1937, %v1936
        %v1939 = vmul.f32 0.5, %v1938
        %v1940 = vsub.f32 1.5, %v1939
        %v1941 = vmul.f32 %v1936, %v1940
        %vm1942 = vweird.f32 %v1932
        %vm1943 = vweird.f32 %v1936
        %vm1944 = vmor %vm1942, %vm1943
        %v1945 = vsel %vm1944, %v1936, %v1941
        %v1946 = vrsqrt.pop %v1933
        %v1947 = vmul.f32 %v1946, %v1933
        %v1948 = vmul.f32 %v1947, %v1946
        %v1949 = vmul.f32 0.5, %v1948
        %v1950 = vsub.f32 1.5, %v1949
        %v1951 = vmul.f32 %v1946, %v1950
        %vm1952 = vweird.f32 %v1933
        %vm1953 = vweird.f32 %v1946
        %vm1954 = vmor %vm1952, %vm1953
        %v1955 = vsel %vm1954, %v1946, %v1951
        %v1956 = vrsqrt.pop %v1934
        %v1957 = vmul.f32 %v1956, %v1934
        %v1958 = vmul.f32 %v1957, %v1956
        %v1959 = vmul.f32 0.5, %v1958
        %v1960 = vsub.f32 1.5, %v1959
        %v1961 = vmul.f32 %v1956, %v1960
        %vm1962 = vweird.f32 %v1934
        %vm1963 = vweird.f32 %v1956
        %vm1964 = vmor %vm1962, %vm1963
        %v1965 = vsel %vm1964, %v1956, %v1961
        %v1966 = vrsqrt.pop %v1935
        %v1967 = vmul.f32 %v1966, %v1935
        %v1968 = vmul.f32 %v1967, %v1966
        %v1969 = vmul.f32 0.5, %v1968
        %v1970 = vsub.f32 1.5, %v1969
        %v1971 = vmul.f32 %v1966, %v1970
        %vm1972 = vweird.f32 %v1935
        %vm1973 = vweird.f32 %v1966
        %vm1974 = vmor %vm1972, %vm1973
        %v1975 = vsel %vm1974, %v1966, %v1971
        %v1976 = vmul.f32 %v1908, %v1945
        %v1977 = vmul.f32 %v1909, %v1955
        %v1978 = vmul.f32 %v1910, %v1965
        %v1979 = vmul.f32 %v1911, %v1975
        %v1981 = vperm.slane %v1856, 0
        %v1983 = vmul.f32 %v1976, %v1981
        %v1984 = vmul.f32 %v1977, %v1981
        %v1985 = vmul.f32 %v1978, %v1981
        %v1986 = vmul.f32 %v1979, %v1981
        %v1988 = vperm.slane %v1857, 0
        %v1990 = vadd.f32 %v1983, %v1988
        %v1991 = vadd.f32 %v1984, %v1988
        %v1992 = vadd.f32 %v1985, %v1988
        %v1993 = vadd.f32 %v1986, %v1988
        %v1994 = vpack.c.bf16 %v1991, %v1990
        %v1995 = vpack.c.bf16 %v1993, %v1992
        %v1996 = vpack.c.bf16 %v1859, %v1858
        %v1997 = vpack.c.bf16 %v1861, %v1860
        %v1998 = vpack.c.bf16 %v1863, %v1862
        %v1999 = vpack.c.bf16 %v1865, %v1864
        %v2001 = vperm.slane %v1866, 0
        %v2004 = vsel %vm1884, %v1994, 0
        %v2007 = vsel %vm1884, %v1995, 0
        %2009 = vmatpush.bf16.msra.mxu0 0
        %2010 = vmatpush.bf16.msra.mxu0 0
        %2011 = vmatpush.bf16.msra.mxu0 0
        %2012 = vmatpush.bf16.msra.mxu0 0
        %2013 = vmatpush.bf16.msra.mxu0 %v1999
        %2014 = vmatpush.bf16.msra.mxu0 %v1998
        %2015 = vmatpush.bf16.msra.mxu0 %v1997
        %2016 = vmatpush.bf16.msra.mxu0 %v1996
        %2017 = vmatmul.bf16.gmra.mxu0 %v2004
        %v2018 = vpop.f32.mrf.mxu0
        %v2019 = vadd.f32 %v2001, %v2018
        %v2020 = vpop.f32.mrf.mxu0
        %v2021 = vadd.f32 %v2001, %v2020
        %2022 = vmatmul.bf16.gmra.mxu0 %v2007
        %v2023 = vpop.f32.mrf.mxu0
        %v2024 = vadd.f32 %v2001, %v2023
        %v2025 = vpop.f32.mrf.mxu0
        %v2026 = vadd.f32 %v2001, %v2025
        %2027 = vdwg.mxu0
        %v2028 = vxor.u32 %v2019, 2147483648
        %v2029 = vxor.u32 %v2021, 2147483648
        %v2030 = vxor.u32 %v2024, 2147483648
        %v2031 = vxor.u32 %v2026, 2147483648
        %v2032 = vmul.f32 %v2028, 1.442695
        %v2033 = vpow.pop %v2032
        %v2034 = vmul.f32 %v2029, 1.442695
        %v2035 = vpow.pop %v2034
        %v2036 = vmul.f32 %v2030, 1.442695
        %v2037 = vpow.pop %v2036
        %v2038 = vmul.f32 %v2031, 1.442695
        %v2039 = vpow.pop %v2038
        %v2040 = vadd.f32 %v2033, 1.0
        %v2041 = vadd.f32 %v2035, 1.0
        %v2042 = vadd.f32 %v2037, 1.0
        %v2043 = vadd.f32 %v2039, 1.0
        %v2044 = vrcp.pop %v2040
        %v2045 = vmul.f32 %v2040, %v2044
        %v2046 = vsub.f32 1.0, %v2045
        %v2047 = vmul.f32 %v2044, %v2046
        %v2048 = vadd.f32 %v2044, %v2047
        %vm2049 = vweird.f32 %v2040
        %vm2050 = vweird.f32 %v2044
        %vm2051 = vmor %vm2049, %vm2050
        %v2052 = vsel %vm2051, %v2044, %v2048
        %v2053 = vand.u32 2147483647, %v2040
        %vm2054 = vcmp.eq.f32.partialorder %v2053, 8.507059e+37
        %v2055 = vand.u32 %v2040, 2147483648
        %v2056 = vor.u32 1.1754944e-38, %v2055
        %v2057 = vsel %vm2054, %v2056, %v2052
        %v2058 = vmul.f32 1.0, %v2057
        %v2059 = vrcp.pop %v2041
        %v2060 = vmul.f32 %v2041, %v2059
        %v2061 = vsub.f32 1.0, %v2060
        %v2062 = vmul.f32 %v2059, %v2061
        %v2063 = vadd.f32 %v2059, %v2062
        %vm2064 = vweird.f32 %v2041
        %vm2065 = vweird.f32 %v2059
        %vm2066 = vmor %vm2064, %vm2065
        %v2067 = vsel %vm2066, %v2059, %v2063
        %v2068 = vand.u32 2147483647, %v2041
        %vm2069 = vcmp.eq.f32.partialorder %v2068, 8.507059e+37
        %v2070 = vand.u32 %v2041, 2147483648
        %v2071 = vor.u32 1.1754944e-38, %v2070
        %v2072 = vsel %vm2069, %v2071, %v2067
        %v2073 = vmul.f32 1.0, %v2072
        %v2074 = vrcp.pop %v2042
        %v2075 = vmul.f32 %v2042, %v2074
        %v2076 = vsub.f32 1.0, %v2075
        %v2077 = vmul.f32 %v2074, %v2076
        %v2078 = vadd.f32 %v2074, %v2077
        %vm2079 = vweird.f32 %v2042
        %vm2080 = vweird.f32 %v2074
        %vm2081 = vmor %vm2079, %vm2080
        %v2082 = vsel %vm2081, %v2074, %v2078
        %v2083 = vand.u32 2147483647, %v2042
        %vm2084 = vcmp.eq.f32.partialorder %v2083, 8.507059e+37
        %v2085 = vand.u32 %v2042, 2147483648
        %v2086 = vor.u32 1.1754944e-38, %v2085
        %v2087 = vsel %vm2084, %v2086, %v2082
        %v2088 = vmul.f32 1.0, %v2087
        %v2089 = vrcp.pop %v2043
        %v2090 = vmul.f32 %v2043, %v2089
        %v2091 = vsub.f32 1.0, %v2090
        %v2092 = vmul.f32 %v2089, %v2091
        %v2093 = vadd.f32 %v2089, %v2092
        %vm2094 = vweird.f32 %v2043
        %vm2095 = vweird.f32 %v2089
        %vm2096 = vmor %vm2094, %vm2095
        %v2097 = vsel %vm2096, %v2089, %v2093
        %v2098 = vand.u32 2147483647, %v2043
        %vm2099 = vcmp.eq.f32.partialorder %v2098, 8.507059e+37
        %v2100 = vand.u32 %v2043, 2147483648
        %v2101 = vor.u32 1.1754944e-38, %v2100
        %v2102 = vsel %vm2099, %v2101, %v2097
        %v2103 = vmul.f32 1.0, %v2102
        %v2104 = vmul.f32 %v2019, %v2058
        %v2105 = vmul.f32 %v2021, %v2073
        %v2106 = vmul.f32 %v2024, %v2088
        %v2107 = vmul.f32 %v2026, %v2103
        %v2108 = vpack.c.bf16 %v2105, %v2104
        %v2109 = vpack.c.bf16 %v2107, %v2106
        %v2110 = vpack.c.bf16 %v1868, %v1867
        %v2111 = vpack.c.bf16 %v1870, %v1869
        %v2112 = vpack.c.bf16 %v1872, %v1871
        %v2113 = vpack.c.bf16 %v1874, %v1873
        %v2114 = vpack.c.bf16 %v1876, %v1875
        %v2115 = vpack.c.bf16 %v1878, %v1877
        %v2116 = vpack.c.bf16 %v1880, %v1879
        %v2117 = vpack.c.bf16 %v1882, %v1881
        %v2119 = vperm.slane %v1883, 0
        %2121 = vmatpush.bf16.msra.mxu0 %v2117
        %2122 = vmatpush.bf16.msra.mxu0 %v2116
        %2123 = vmatpush.bf16.msra.mxu0 %v2115
        %2124 = vmatpush.bf16.msra.mxu0 %v2114
        %2125 = vmatpush.bf16.msra.mxu0 %v2113
        %2126 = vmatpush.bf16.msra.mxu0 %v2112
        %2127 = vmatpush.bf16.msra.mxu0 %v2111
        %2128 = vmatpush.bf16.msra.mxu0 %v2110
        %2129 = vmatmul.bf16.gmra.mxu0 %v2108
        %v2130 = vpop.f32.mrf.mxu0
        %v2131 = vadd.f32 %v2119, %v2130
        %v2132 = vpop.f32.mrf.mxu0
        %v2133 = vadd.f32 %v2119, %v2132
        %2134 = vmatmul.bf16.gmra.mxu0 %v2109
        %v2135 = vpop.f32.mrf.mxu0
        %v2136 = vadd.f32 %v2119, %v2135
        %v2137 = vpop.f32.mrf.mxu0
        %v2138 = vadd.f32 %v2119, %v2137
        %2139 = vdwg.mxu0
        %v2140 = vmul.f32 %v2131, 0.5
        %v2141 = vmul.f32 %v2133, 0.5
        %v2142 = vmul.f32 %v2136, 0.5
        %v2143 = vmul.f32 %v2138, 0.5
        %v2144 = vadd.f32 %v1846, %v2140
        %v2145 = vadd.f32 %v1847, %v2141
        %v2146 = vadd.f32 %v1848, %v2142
        %v2147 = vadd.f32 %v1849, %v2143
        %v2148 = vld [vmem:[%s1709] sm:$0x1]
        %v2149 = vld [vmem:[%s1712] sm:$0x1]
        %v2150 = vld [vmem:[%s1717] sm:$0xff]
        %v2151 = vld [vmem:[%s1717 + $0x8] sm:$0xff]
        %v2152 = vld [vmem:[%s1717 + $0x10] sm:$0xff]
        %v2153 = vld [vmem:[%s1717 + $0x18] sm:$0xff]
        %v2154 = vld [vmem:[%s1717 + $0x20] sm:$0xff]
        %v2155 = vld [vmem:[%s1717 + $0x28] sm:$0xff]
        %v2156 = vld [vmem:[%s1717 + $0x30] sm:$0xff]
        %v2157 = vld [vmem:[%s1717 + $0x38] sm:$0xff]
        %v2158 = vld [vmem:[%s1717 + $0x40] sm:$0xff]
        %v2159 = vld [vmem:[%s1717 + $0x48] sm:$0xff]
        %v2160 = vld [vmem:[%s1717 + $0x50] sm:$0xff]
        %v2161 = vld [vmem:[%s1717 + $0x58] sm:$0xff]
        %v2162 = vld [vmem:[%s1717 + $0x60] sm:$0xff]
        %v2163 = vld [vmem:[%s1717 + $0x68] sm:$0xff]
        %v2164 = vld [vmem:[%s1717 + $0x70] sm:$0xff]
        %v2165 = vld [vmem:[%s1717 + $0x78] sm:$0xff]
        %v2166 = vld [vmem:[%s1721] sm:$0x3]
        %v2167 = vld [vmem:[%s1726] sm:$0xff]
        %v2168 = vld [vmem:[%s1726 + $0x8] sm:$0xff]
        %v2169 = vld [vmem:[%s1726 + $0x10] sm:$0xff]
        %v2170 = vld [vmem:[%s1726 + $0x18] sm:$0xff]
        %v2171 = vld [vmem:[%s1726 + $0x20] sm:$0xff]
        %v2172 = vld [vmem:[%s1726 + $0x28] sm:$0xff]
        %v2173 = vld [vmem:[%s1726 + $0x30] sm:$0xff]
        %v2174 = vld [vmem:[%s1726 + $0x38] sm:$0xff]
        %v2175 = vld [vmem:[%s1729] sm:$0x1]
        %v2176 = vld [vmem:[%s1732] sm:$0x1]
        %v2177 = vld [vmem:[%s1737] sm:$0xff]
        %v2178 = vld [vmem:[%s1737 + $0x8] sm:$0xff]
        %v2179 = vld [vmem:[%s1737 + $0x10] sm:$0xff]
        %v2180 = vld [vmem:[%s1737 + $0x18] sm:$0xff]
        %v2181 = vld [vmem:[%s1737 + $0x20] sm:$0xff]
        %v2182 = vld [vmem:[%s1737 + $0x28] sm:$0xff]
        %v2183 = vld [vmem:[%s1737 + $0x30] sm:$0xff]
        %v2184 = vld [vmem:[%s1737 + $0x38] sm:$0xff]
        %v2185 = vld [vmem:[%s1740] sm:$0x1]
        %v2186 = vsel %vm1884, %v2144, 0.0
        %2187 = vadd.xlane.f32.xlu0 %v2186
        %v2188 = vpop.xlane.xlu0 %2187
        %v2189 = vsel %vm1884, %v2145, 0.0
        %2190 = vadd.xlane.f32.xlu0 %v2189
        %v2191 = vpop.xlane.xlu0 %2190
        %v2192 = vsel %vm1884, %v2146, 0.0
        %2193 = vadd.xlane.f32.xlu0 %v2192
        %v2194 = vpop.xlane.xlu0 %2193
        %v2195 = vsel %vm1884, %v2147, 0.0
        %2196 = vadd.xlane.f32.xlu0 %v2195
        %v2197 = vpop.xlane.xlu0 %2196
        %v2198 = vmul.f32 %v2188, %v1903
        %v2199 = vmul.f32 %v2191, %v1903
        %v2200 = vmul.f32 %v2194, %v1903
        %v2201 = vmul.f32 %v2197, %v1903
        %v2202 = vsub.f32 %v2144, %v2198
        %v2203 = vsub.f32 %v2145, %v2199
        %v2204 = vsub.f32 %v2146, %v2200
        %v2205 = vsub.f32 %v2147, %v2201
        %v2206 = vmul.f32 %v2202, %v2202
        %v2207 = vmul.f32 %v2203, %v2203
        %v2208 = vmul.f32 %v2204, %v2204
        %v2209 = vmul.f32 %v2205, %v2205
        %v2210 = vsel %vm1884, %v2206, 0.0
        %2211 = vadd.xlane.f32.xlu0 %v2210
        %v2212 = vpop.xlane.xlu0 %2211
        %v2213 = vsel %vm1884, %v2207, 0.0
        %2214 = vadd.xlane.f32.xlu0 %v2213
        %v2215 = vpop.xlane.xlu0 %2214
        %v2216 = vsel %vm1884, %v2208, 0.0
        %2217 = vadd.xlane.f32.xlu0 %v2216
        %v2218 = vpop.xlane.xlu0 %2217
        %v2219 = vsel %vm1884, %v2209, 0.0
        %2220 = vadd.xlane.f32.xlu0 %v2219
        %v2221 = vpop.xlane.xlu0 %2220
        %v2222 = vmul.f32 %v2212, %v1903
        %v2223 = vmul.f32 %v2215, %v1903
        %v2224 = vmul.f32 %v2218, %v1903
        %v2225 = vmul.f32 %v2221, %v1903
        %v2226 = vadd.f32 %v2222, 1e-05
        %v2227 = vadd.f32 %v2223, 1e-05
        %v2228 = vadd.f32 %v2224, 1e-05
        %v2229 = vadd.f32 %v2225, 1e-05
        %v2230 = vrsqrt.pop %v2226
        %v2231 = vmul.f32 %v2230, %v2226
        %v2232 = vmul.f32 %v2231, %v2230
        %v2233 = vmul.f32 0.5, %v2232
        %v2234 = vsub.f32 1.5, %v2233
        %v2235 = vmul.f32 %v2230, %v2234
        %vm2236 = vweird.f32 %v2226
        %vm2237 = vweird.f32 %v2230
        %vm2238 = vmor %vm2236, %vm2237
        %v2239 = vsel %vm2238, %v2230, %v2235
        %v2240 = vrsqrt.pop %v2227
        %v2241 = vmul.f32 %v2240, %v2227
        %v2242 = vmul.f32 %v2241, %v2240
        %v2243 = vmul.f32 0.5, %v2242
        %v2244 = vsub.f32 1.5, %v2243
        %v2245 = vmul.f32 %v2240, %v2244
        %vm2246 = vweird.f32 %v2227
        %vm2247 = vweird.f32 %v2240
        %vm2248 = vmor %vm2246, %vm2247
        %v2249 = vsel %vm2248, %v2240, %v2245
        %v2250 = vrsqrt.pop %v2228
        %v2251 = vmul.f32 %v2250, %v2228
        %v2252 = vmul.f32 %v2251, %v2250
        %v2253 = vmul.f32 0.5, %v2252
        %v2254 = vsub.f32 1.5, %v2253
        %v2255 = vmul.f32 %v2250, %v2254
        %vm2256 = vweird.f32 %v2228
        %vm2257 = vweird.f32 %v2250
        %vm2258 = vmor %vm2256, %vm2257
        %v2259 = vsel %vm2258, %v2250, %v2255
        %v2260 = vrsqrt.pop %v2229
        %v2261 = vmul.f32 %v2260, %v2229
        %v2262 = vmul.f32 %v2261, %v2260
        %v2263 = vmul.f32 0.5, %v2262
        %v2264 = vsub.f32 1.5, %v2263
        %v2265 = vmul.f32 %v2260, %v2264
        %vm2266 = vweird.f32 %v2229
        %vm2267 = vweird.f32 %v2260
        %vm2268 = vmor %vm2266, %vm2267
        %v2269 = vsel %vm2268, %v2260, %v2265
        %v2270 = vmul.f32 %v2202, %v2239
        %v2271 = vmul.f32 %v2203, %v2249
        %v2272 = vmul.f32 %v2204, %v2259
        %v2273 = vmul.f32 %v2205, %v2269
        %v2275 = vperm.slane %v2148, 0
        %v2277 = vmul.f32 %v2270, %v2275
        %v2278 = vmul.f32 %v2271, %v2275
        %v2279 = vmul.f32 %v2272, %v2275
        %v2280 = vmul.f32 %v2273, %v2275
        %v2282 = vperm.slane %v2149, 0
        %v2284 = vadd.f32 %v2277, %v2282
        %v2285 = vadd.f32 %v2278, %v2282
        %v2286 = vadd.f32 %v2279, %v2282
        %v2287 = vadd.f32 %v2280, %v2282
        %v2288 = vpack.c.bf16 %v2285, %v2284
        %v2289 = vpack.c.bf16 %v2287, %v2286
        %v2290 = vpack.c.bf16 %v2152, %v2150
        %v2291 = vpack.c.bf16 %v2153, %v2151
        %v2292 = vpack.c.bf16 %v2156, %v2154
        %v2293 = vpack.c.bf16 %v2157, %v2155
        %v2294 = vpack.c.bf16 %v2160, %v2158
        %v2295 = vpack.c.bf16 %v2161, %v2159
        %v2296 = vpack.c.bf16 %v2164, %v2162
        %v2297 = vpack.c.bf16 %v2165, %v2163
        %v2299 = vperm.slane %v2166, 0
        %v2300 = vperm.slane %v2166, 1
        %v2304 = vsel %vm1884, %v2288, 0
        %v2307 = vsel %vm1884, %v2289, 0
        %2309 = vmatpush.bf16.msra.mxu0 0
        %2310 = vmatpush.bf16.msra.mxu0 0
        %2311 = vmatpush.bf16.msra.mxu0 0
        %2312 = vmatpush.bf16.msra.mxu0 0
        %2313 = vmatpush.bf16.msra.mxu0 %v2296
        %2314 = vmatpush.bf16.msra.mxu0 %v2294
        %2315 = vmatpush.bf16.msra.mxu0 %v2292
        %2316 = vmatpush.bf16.msra.mxu0 %v2290
        %2317 = vmatmul.bf16.gmra.mxu0 %v2304
        %v2318 = vpop.f32.mrf.mxu0
        %v2319 = vadd.f32 %v2299, %v2318
        %v2320 = vpop.f32.mrf.mxu0
        %v2321 = vadd.f32 %v2299, %v2320
        %2322 = vmatmul.bf16.gmra.mxu0 %v2307
        %v2323 = vpop.f32.mrf.mxu0
        %v2324 = vadd.f32 %v2299, %v2323
        %v2325 = vpop.f32.mrf.mxu0
        %v2326 = vadd.f32 %v2299, %v2325
        %2327 = vdwg.mxu0
        %2328 = vmatpush.bf16.msra.mxu0 0
        %2329 = vmatpush.bf16.msra.mxu0 0
        %2330 = vmatpush.bf16.msra.mxu0 0
        %2331 = vmatpush.bf16.msra.mxu0 0
        %2332 = vmatpush.bf16.msra.mxu0 %v2297
        %2333 = vmatpush.bf16.msra.mxu0 %v2295
        %2334 = vmatpush.bf16.msra.mxu0 %v2293
        %2335 = vmatpush.bf16.msra.mxu0 %v2291
        %2336 = vmatmul.bf16.gmra.mxu0 %v2304
        %v2337 = vpop.f32.mrf.mxu0
        %v2338 = vadd.f32 %v2300, %v2337
        %v2339 = vpop.f32.mrf.mxu0
        %v2340 = vadd.f32 %v2300, %v2339
        %2341 = vmatmul.bf16.gmra.mxu0 %v2307
        %v2342 = vpop.f32.mrf.mxu0
        %v2343 = vadd.f32 %v2300, %v2342
        %v2344 = vpop.f32.mrf.mxu0
        %v2345 = vadd.f32 %v2300, %v2344
        %2346 = vdwg.mxu0
        %v2347 = vpack.c.bf16 %v1853, %v1852
        %v2348 = vpack.c.bf16 %v1855, %v1854
        %v2349 = vpack.c.bf16 %v2168, %v2167
        %v2350 = vpack.c.bf16 %v2170, %v2169
        %v2351 = vpack.c.bf16 %v2172, %v2171
        %v2352 = vpack.c.bf16 %v2174, %v2173
        %v2354 = vsel %vm1884, %v2347, 0
        %v2357 = vsel %vm1884, %v2348, 0
        %2359 = vmatpush.bf16.msra.mxu0 0
        %2360 = vmatpush.bf16.msra.mxu0 0
        %2361 = vmatpush.bf16.msra.mxu0 0
        %2362 = vmatpush.bf16.msra.mxu0 0
        %2363 = vmatpush.bf16.msra.mxu0 %v2352
        %2364 = vmatpush.bf16.msra.mxu0 %v2351
        %2365 = vmatpush.bf16.msra.mxu0 %v2350
        %2366 = vmatpush.bf16.msra.mxu0 %v2349
        %2367 = vmatmul.bf16.gmra.mxu0 %v2354
        %v2368 = vpop.f32.mrf.mxu0
        %v2369 = vadd.f32 0.0, %v2368
        %v2370 = vpop.f32.mrf.mxu0
        %v2371 = vadd.f32 0.0, %v2370
        %2372 = vmatmul.bf16.gmra.mxu0 %v2357
        %v2373 = vpop.f32.mrf.mxu0
        %v2374 = vadd.f32 0.0, %v2373
        %v2375 = vpop.f32.mrf.mxu0
        %v2376 = vadd.f32 0.0, %v2375
        %2377 = vdwg.mxu0
        %v2379 = vperm.slane %v2175, 0
        %v2381 = vadd.f32 %v2319, %v2379
        %v2382 = vadd.f32 %v2321, %v2379
        %v2383 = vadd.f32 %v2324, %v2379
        %v2384 = vadd.f32 %v2326, %v2379
        %v2386 = vperm.slane %v2176, 0
        %v2388 = vadd.f32 %v2319, %v2386
        %v2389 = vadd.f32 %v2321, %v2386
        %v2390 = vadd.f32 %v2324, %v2386
        %v2391 = vadd.f32 %v2326, %v2386
        %vm2392 = vcmp.gt.f32.partialorder %v1850, 0.5
        %vm2393 = vcmp.gt.f32.partialorder %v1851, 0.5
        %v2394 = vpack.c.bf16 %v2381, %v2381
        %v2395 = vpack.c.bf16 %v2382, %v2382
        %v2396 = vpack.c.bf16 %v2383, %v2383
        %v2397 = vpack.c.bf16 %v2384, %v2384
        %v2398 = vpack.c.bf16 %v2319, %v2319
        %v2399 = vpack.c.bf16 %v2321, %v2321
        %v2400 = vpack.c.bf16 %v2324, %v2324
        %v2401 = vpack.c.bf16 %v2326, %v2326
        %v2402 = vpack.c.bf16 %v2389, %v2388
        %v2403 = vpack.c.bf16 %v2391, %v2390
        %v2404 = vpack.c.bf16 %v2371, %v2369
        %v2405 = vpack.c.bf16 %v2376, %v2374
        %vm2406 = vcmask 130048
        %v2408 = vsel %vm2406, %v2402, 0
        %v2411 = vsel %vm2406, %v2403, 0
        %v2414 = vsel %vm2406, %v2404, 0
        %v2417 = vsel %vm2406, %v2405, 0
        %2419 = vmatpush.bf16.xpose.msra.mxu0 0
        %2420 = vmatpush.bf16.xpose.msra.mxu0 0
        %2421 = vmatpush.bf16.xpose.msra.mxu0 0
        %2422 = vmatpush.bf16.xpose.msra.mxu0 0
        %2423 = vmatpush.bf16.xpose.msra.mxu0 0
        %2424 = vmatpush.bf16.xpose.msra.mxu0 0
        %2425 = vmatpush.bf16.xpose.msra.mxu0 %v2417
        %2426 = vmatpush.bf16.xpose.msra.mxu0 %v2414
        %2427 = vmatmul.bf16.gmra.mxu0 %v2408
        %v2428 = vpop.f32.mrf.mxu0
        %v2429 = vadd.f32 0.0, %v2428
        %v2430 = vpop.f32.mrf.mxu0
        %v2431 = vadd.f32 0.0, %v2430
        %2432 = vmatmul.bf16.gmra.mxu0 %v2411
        %v2433 = vpop.f32.mrf.mxu0
        %v2434 = vadd.f32 0.0, %v2433
        %v2435 = vpop.f32.mrf.mxu0
        %v2436 = vadd.f32 0.0, %v2435
        %2437 = vdwg.mxu0
        %2440 = vrot.lane.b32.xlu0 %v2429, 1
        %v2441 = vpop.permute.xlu0 %2440
        %2442 = vrot.lane.b32.xlu0 %v2434, 1
        %v2443 = vpop.permute.xlu0 %2442
        %2446 = vrot.lane.b32.xlu0 %v2429, 2
        %v2447 = vpop.permute.xlu0 %2446
        %2448 = vrot.lane.b32.xlu0 %v2434, 2
        %v2449 = vpop.permute.xlu0 %2448
        %2452 = vrot.lane.b32.xlu0 %v2429, 3
        %v2453 = vpop.permute.xlu0 %2452
        %2454 = vrot.lane.b32.xlu0 %v2434, 3
        %v2455 = vpop.permute.xlu0 %2454
        %2458 = vrot.lane.b32.xlu0 %v2429, 4
        %v2459 = vpop.permute.xlu0 %2458
        %2460 = vrot.lane.b32.xlu0 %v2434, 4
        %v2461 = vpop.permute.xlu0 %2460
        %2464 = vrot.lane.b32.xlu0 %v2429, 5
        %v2465 = vpop.permute.xlu0 %2464
        %2466 = vrot.lane.b32.xlu0 %v2434, 5
        %v2467 = vpop.permute.xlu0 %2466
        %2470 = vrot.lane.b32.xlu0 %v2429, 6
        %v2471 = vpop.permute.xlu0 %2470
        %2472 = vrot.lane.b32.xlu0 %v2434, 6
        %v2473 = vpop.permute.xlu0 %2472
        %2476 = vrot.lane.b32.xlu0 %v2429, 7
        %v2477 = vpop.permute.xlu0 %2476
        %2478 = vrot.lane.b32.xlu0 %v2434, 7
        %v2479 = vpop.permute.xlu0 %2478
        %2484 = vrot.lane.b32.xlu0 %v2431, 8
        %v2485 = vpop.permute.xlu0 %2484
        %2486 = vrot.lane.b32.xlu0 %v2436, 8
        %v2487 = vpop.permute.xlu0 %2486
        %2490 = vrot.lane.b32.xlu0 %v2431, 9
        %v2491 = vpop.permute.xlu0 %2490
        %2492 = vrot.lane.b32.xlu0 %v2436, 9
        %v2493 = vpop.permute.xlu0 %2492
        %2496 = vrot.lane.b32.xlu0 %v2431, 10
        %v2497 = vpop.permute.xlu0 %2496
        %2498 = vrot.lane.b32.xlu0 %v2436, 10
        %v2499 = vpop.permute.xlu0 %2498
        %2502 = vrot.lane.b32.xlu0 %v2431, 11
        %v2503 = vpop.permute.xlu0 %2502
        %2504 = vrot.lane.b32.xlu0 %v2436, 11
        %v2505 = vpop.permute.xlu0 %2504
        %2508 = vrot.lane.b32.xlu0 %v2431, 12
        %v2509 = vpop.permute.xlu0 %2508
        %2510 = vrot.lane.b32.xlu0 %v2436, 12
        %v2511 = vpop.permute.xlu0 %2510
        %2514 = vrot.lane.b32.xlu0 %v2431, 13
        %v2515 = vpop.permute.xlu0 %2514
        %2516 = vrot.lane.b32.xlu0 %v2436, 13
        %v2517 = vpop.permute.xlu0 %2516
        %2520 = vrot.lane.b32.xlu0 %v2431, 14
        %v2521 = vpop.permute.xlu0 %2520
        %2522 = vrot.lane.b32.xlu0 %v2436, 14
        %v2523 = vpop.permute.xlu0 %2522
        %2526 = vrot.lane.b32.xlu0 %v2431, 15
        %v2527 = vpop.permute.xlu0 %2526
        %2528 = vrot.lane.b32.xlu0 %v2436, 15
        %v2529 = vpop.permute.xlu0 %2528
        %vm2532 = vcmask 1040384
        %v2533 = vsel %vm2532, %v2429, %v2441
        %v2534 = vsel %vm2532, %v2434, %v2443
        %vm2535 = vcmask 1041408
        %v2536 = vsel %vm2535, %v2533, %v2447
        %v2537 = vsel %vm2535, %v2534, %v2449
        %vm2538 = vcmask 1042432
        %v2539 = vsel %vm2538, %v2536, %v2453
        %v2540 = vsel %vm2538, %v2537, %v2455
        %vm2541 = vcmask 1043456
        %v2542 = vsel %vm2541, %v2539, %v2459
        %v2543 = vsel %vm2541, %v2540, %v2461
        %vm2544 = vcmask 1044480
        %v2545 = vsel %vm2544, %v2542, %v2465
        %v2546 = vsel %vm2544, %v2543, %v2467
        %vm2547 = vcmask 1045504
        %v2548 = vsel %vm2547, %v2545, %v2471
        %v2549 = vsel %vm2547, %v2546, %v2473
        %vm2550 = vcmask 1046528
        %v2551 = vsel %vm2550, %v2548, %v2477
        %v2552 = vsel %vm2550, %v2549, %v2479
        %v2553 = vsel %vm2532, %v2485, %v2491
        %v2554 = vsel %vm2532, %v2487, %v2493
        %v2555 = vsel %vm2535, %v2553, %v2497
        %v2556 = vsel %vm2535, %v2554, %v2499
        %v2557 = vsel %vm2538, %v2555, %v2503
        %v2558 = vsel %vm2538, %v2556, %v2505
        %v2559 = vsel %vm2541, %v2557, %v2509
        %v2560 = vsel %vm2541, %v2558, %v2511
        %v2561 = vsel %vm2544, %v2559, %v2515
        %v2562 = vsel %vm2544, %v2560, %v2517
        %v2563 = vsel %vm2547, %v2561, %v2521
        %v2564 = vsel %vm2547, %v2562, %v2523
        %v2565 = vsel %vm2550, %v2563, %v2527
        %v2566 = vsel %vm2550, %v2564, %v2529
        %v2569 = vunpack.c.l.b16 %v2394
        %v2570 = vunpack.c.l.b16 %v2395
        %v2571 = vpack.c.b16 %v2570, %v2569
        %v2574 = vunpack.c.l.b16 %v2398
        %v2575 = vunpack.c.l.b16 %v2399
        %v2576 = vpack.c.b16 %v2575, %v2574
        %2577 = vrot.lane.b32.xlu0 %v2576, 64
        %v2578 = vpop.permute.xlu0 %2577
        %2581 = vrot.lane.b32.xlu0 %v2551, 113
        %v2582 = vpop.permute.xlu0 %2581
        %2583 = vrot.lane.b32.xlu0 %v2565, 113
        %v2584 = vpop.permute.xlu0 %2583
        %v2588 = vsel %vm2406, %v2571, 0
        %v2591 = vsel %vm2406, %v2578, 0
        %2593 = vmatpush.bf16.xpose.msra.mxu0 0
        %2594 = vmatpush.bf16.xpose.msra.mxu0 0
        %2595 = vmatpush.bf16.xpose.msra.mxu0 0
        %2596 = vmatpush.bf16.xpose.msra.mxu0 0
        %2597 = vmatpush.bf16.xpose.msra.mxu0 0
        %2598 = vmatpush.bf16.xpose.msra.mxu0 0
        %2599 = vmatpush.bf16.xpose.msra.mxu0 0
        %2600 = vmatpush.bf16.xpose.msra.mxu0 %v2591
        %2601 = vmatmul.bf16.gmra.mxu0 %v2588
        %v2602 = vpop.f32.mrf.mxu0
        %v2603 = vadd.f32 %v2582, %v2602
        %v2604 = vpop.f32.mrf.mxu0
        %v2605 = vadd.f32 %v2584, %v2604
        %2606 = vdwg.mxu0
        %v2609 = vunpack.c.l.b16 %v2396
        %v2610 = vunpack.c.l.b16 %v2397
        %v2611 = vpack.c.b16 %v2610, %v2609
        %v2614 = vunpack.c.l.b16 %v2400
        %v2615 = vunpack.c.l.b16 %v2401
        %v2616 = vpack.c.b16 %v2615, %v2614
        %2617 = vrot.lane.b32.xlu0 %v2616, 64
        %v2618 = vpop.permute.xlu0 %2617
        %2621 = vrot.lane.b32.xlu0 %v2552, 113
        %v2622 = vpop.permute.xlu0 %2621
        %2623 = vrot.lane.b32.xlu0 %v2566, 113
        %v2624 = vpop.permute.xlu0 %2623
        %v2628 = vsel %vm2406, %v2611, 0
        %v2631 = vsel %vm2406, %v2618, 0
        %2633 = vmatpush.bf16.xpose.msra.mxu0 0
        %2634 = vmatpush.bf16.xpose.msra.mxu0 0
        %2635 = vmatpush.bf16.xpose.msra.mxu0 0
        %2636 = vmatpush.bf16.xpose.msra.mxu0 0
        %2637 = vmatpush.bf16.xpose.msra.mxu0 0
        %2638 = vmatpush.bf16.xpose.msra.mxu0 0
        %2639 = vmatpush.bf16.xpose.msra.mxu0 0
        %2640 = vmatpush.bf16.xpose.msra.mxu0 %v2631
        %2641 = vmatmul.bf16.gmra.mxu0 %v2628
        %v2642 = vpop.f32.mrf.mxu0
        %v2643 = vadd.f32 %v2622, %v2642
        %v2644 = vpop.f32.mrf.mxu0
        %v2645 = vadd.f32 %v2624, %v2644
        %2646 = vdwg.mxu0
        %v2647 = vmul.f32 %v2603, 0.25
        %v2648 = vmul.f32 %v2605, 0.25
        %v2649 = vmul.f32 %v2643, 0.25
        %v2650 = vmul.f32 %v2645, 0.25
        %v2651 = vsel %vm2392, 1, 0
        %v2652 = vsel %vm2393, 1, 0
        %v2653 = vperm.slane %v2651, 0
        %v2654 = vperm.slane %v2652, 0
        %vm2655 = vcmp.eq.s32.totalorder %v2653, 1
        %vm2656 = vcmp.eq.s32.totalorder %v2654, 1
        %v2657 = vsel %vm2655, -1e+30, %v2647
        %v2658 = vsel %vm2655, -1e+30, %v2648
        %v2659 = vsel %vm2656, -1e+30, %v2649
        %v2660 = vsel %vm2656, -1e+30, %v2650
        %v2661 = vsel %vm2406, %v2657, -inf
        %2662 = vmax.xlane.f32.xlu0 %v2661
        %v2663 = vpop.xlane.xlu0 %2662
        %v2664 = vsel %vm2406, %v2658, -inf
        %2665 = vmax.xlane.f32.xlu0 %v2664
        %v2666 = vpop.xlane.xlu0 %2665
        %v2667 = vsel %vm2406, %v2659, -inf
        %2668 = vmax.xlane.f32.xlu0 %v2667
        %v2669 = vpop.xlane.xlu0 %2668
        %v2670 = vsel %vm2406, %v2660, -inf
        %2671 = vmax.xlane.f32.xlu0 %v2670
        %v2672 = vpop.xlane.xlu0 %2671
        %v2673 = vsub.f32 %v2657, %v2663
        %v2674 = vsub.f32 %v2658, %v2666
        %v2675 = vsub.f32 %v2659, %v2669
        %v2676 = vsub.f32 %v2660, %v2672
        %v2677 = vmul.f32 %v2673, 1.442695
        %v2678 = vpow.pop %v2677
        %v2679 = vmul.f32 %v2674, 1.442695
        %v2680 = vpow.pop %v2679
        %v2681 = vmul.f32 %v2675, 1.442695
        %v2682 = vpow.pop %v2681
        %v2683 = vmul.f32 %v2676, 1.442695
        %v2684 = vpow.pop %v2683
        %v2685 = vsel %vm2406, %v2678, 0.0
        %2686 = vadd.xlane.f32.xlu0 %v2685
        %v2687 = vpop.xlane.xlu0 %2686
        %v2688 = vsel %vm2406, %v2680, 0.0
        %2689 = vadd.xlane.f32.xlu0 %v2688
        %v2690 = vpop.xlane.xlu0 %2689
        %v2691 = vsel %vm2406, %v2682, 0.0
        %2692 = vadd.xlane.f32.xlu0 %v2691
        %v2693 = vpop.xlane.xlu0 %2692
        %v2694 = vsel %vm2406, %v2684, 0.0
        %2695 = vadd.xlane.f32.xlu0 %v2694
        %v2696 = vpop.xlane.xlu0 %2695
        %v2697 = vrcp.pop %v2687
        %v2698 = vrcp.pop %v2690
        %v2699 = vrcp.pop %v2693
        %v2700 = vrcp.pop %v2696
        %v2701 = vmul.f32 %v2678, %v2697
        %v2702 = vmul.f32 %v2680, %v2698
        %v2703 = vmul.f32 %v2682, %v2699
        %v2704 = vmul.f32 %v2684, %v2700
        %v2705 = vsel %vm2655, 0.0, %v2701
        %v2706 = vsel %vm2655, 0.0, %v2702
        %v2707 = vsel %vm2656, 0.0, %v2703
        %v2708 = vsel %vm2656, 0.0, %v2704
        %v2709 = vpack.c.bf16 %v2705, %v2705
        %v2710 = vpack.c.bf16 %v2706, %v2706
        %v2711 = vpack.c.bf16 %v2707, %v2707
        %v2712 = vpack.c.bf16 %v2708, %v2708
        %v2713 = vpack.c.bf16 %v2338, %v2338
        %v2714 = vpack.c.bf16 %v2340, %v2340
        %v2715 = vpack.c.bf16 %v2343, %v2343
        %v2716 = vpack.c.bf16 %v2345, %v2345
        %v2719 = vunpack.c.l.b16 %v2709
        %v2720 = vunpack.c.l.b16 %v2710
        %v2721 = vpack.c.b16 %v2720, %v2719
        %v2724 = vunpack.c.l.b16 %v2713
        %v2725 = vunpack.c.l.b16 %v2714
        %v2726 = vpack.c.b16 %v2725, %v2724
        %v2729 = vsel %vm2406, %v2721, 0
        %2731 = vmatpush.bf16.msra.mxu0 0
        %2732 = vmatpush.bf16.msra.mxu0 0
        %2733 = vmatpush.bf16.msra.mxu0 0
        %2734 = vmatpush.bf16.msra.mxu0 0
        %2735 = vmatpush.bf16.msra.mxu0 0
        %2736 = vmatpush.bf16.msra.mxu0 0
        %2737 = vmatpush.bf16.msra.mxu0 0
        %2738 = vmatpush.bf16.msra.mxu0 %v2726
        %2739 = vmatmul.bf16.gmra.mxu0 %v2729
        %v2740 = vpop.f32.mrf.mxu0
        %v2741 = vadd.f32 0.0, %v2740
        %v2742 = vpop.f32.mrf.mxu0
        %v2743 = vadd.f32 0.0, %v2742
        %2744 = vdwg.mxu0
        %v2747 = vunpack.c.l.b16 %v2711
        %v2748 = vunpack.c.l.b16 %v2712
        %v2749 = vpack.c.b16 %v2748, %v2747
        %v2752 = vunpack.c.l.b16 %v2715
        %v2753 = vunpack.c.l.b16 %v2716
        %v2754 = vpack.c.b16 %v2753, %v2752
        %v2757 = vsel %vm2406, %v2749, 0
        %2759 = vmatpush.bf16.msra.mxu0 0
        %2760 = vmatpush.bf16.msra.mxu0 0
        %2761 = vmatpush.bf16.msra.mxu0 0
        %2762 = vmatpush.bf16.msra.mxu0 0
        %2763 = vmatpush.bf16.msra.mxu0 0
        %2764 = vmatpush.bf16.msra.mxu0 0
        %2765 = vmatpush.bf16.msra.mxu0 0
        %2766 = vmatpush.bf16.msra.mxu0 %v2754
        %2767 = vmatmul.bf16.gmra.mxu0 %v2757
        %v2768 = vpop.f32.mrf.mxu0
        %v2769 = vadd.f32 0.0, %v2768
        %v2770 = vpop.f32.mrf.mxu0
        %v2771 = vadd.f32 0.0, %v2770
        %2772 = vdwg.mxu0
        %v2773 = vpack.c.bf16 %v2743, %v2741
        %v2774 = vpack.c.bf16 %v2771, %v2769
        %v2775 = vpack.c.bf16 %v2178, %v2177
        %2778 = vrot.lane.b32.xlu0 %v2402, 112
        %v2779 = vpop.permute.xlu0 %2778
        %2780 = vrot.lane.b32.xlu0 %v2403, 112
        %v2781 = vpop.permute.xlu0 %2780
        %2784 = vrot.lane.b32.xlu0 %v2404, 112
        %v2785 = vpop.permute.xlu0 %2784
        %2786 = vrot.lane.b32.xlu0 %v2405, 112
        %v2787 = vpop.permute.xlu0 %2786
        %v2789 = vsel %vm2406, %v2779, 0
        %v2792 = vsel %vm2406, %v2781, 0
        %v2795 = vsel %vm2406, %v2785, 0
        %v2798 = vsel %vm2406, %v2787, 0
        %2800 = vmatpush.bf16.xpose.msra.mxu0 0
        %2801 = vmatpush.bf16.xpose.msra.mxu0 0
        %2802 = vmatpush.bf16.xpose.msra.mxu0 0
        %2803 = vmatpush.bf16.xpose.msra.mxu0 0
        %2804 = vmatpush.bf16.xpose.msra.mxu0 0
        %2805 = vmatpush.bf16.xpose.msra.mxu0 0
        %2806 = vmatpush.bf16.xpose.msra.mxu0 %v2798
        %2807 = vmatpush.bf16.xpose.msra.mxu0 %v2795
        %2808 = vmatmul.bf16.gmra.mxu0 %v2789
        %v2809 = vpop.f32.mrf.mxu0
        %v2810 = vadd.f32 0.0, %v2809
        %v2811 = vpop.f32.mrf.mxu0
        %v2812 = vadd.f32 0.0, %v2811
        %2813 = vmatmul.bf16.gmra.mxu0 %v2792
        %v2814 = vpop.f32.mrf.mxu0
        %v2815 = vadd.f32 0.0, %v2814
        %v2816 = vpop.f32.mrf.mxu0
        %v2817 = vadd.f32 0.0, %v2816
        %2818 = vdwg.mxu0
        %2821 = vrot.lane.b32.xlu0 %v2810, 1
        %v2822 = vpop.permute.xlu0 %2821
        %2823 = vrot.lane.b32.xlu0 %v2815, 1
        %v2824 = vpop.permute.xlu0 %2823
        %2827 = vrot.lane.b32.xlu0 %v2810, 2
        %v2828 = vpop.permute.xlu0 %2827
        %2829 = vrot.lane.b32.xlu0 %v2815, 2
        %v2830 = vpop.permute.xlu0 %2829
        %2833 = vrot.lane.b32.xlu0 %v2810, 3
        %v2834 = vpop.permute.xlu0 %2833
        %2835 = vrot.lane.b32.xlu0 %v2815, 3
        %v2836 = vpop.permute.xlu0 %2835
        %2839 = vrot.lane.b32.xlu0 %v2810, 4
        %v2840 = vpop.permute.xlu0 %2839
        %2841 = vrot.lane.b32.xlu0 %v2815, 4
        %v2842 = vpop.permute.xlu0 %2841
        %2845 = vrot.lane.b32.xlu0 %v2810, 5
        %v2846 = vpop.permute.xlu0 %2845
        %2847 = vrot.lane.b32.xlu0 %v2815, 5
        %v2848 = vpop.permute.xlu0 %2847
        %2851 = vrot.lane.b32.xlu0 %v2810, 6
        %v2852 = vpop.permute.xlu0 %2851
        %2853 = vrot.lane.b32.xlu0 %v2815, 6
        %v2854 = vpop.permute.xlu0 %2853
        %2857 = vrot.lane.b32.xlu0 %v2810, 7
        %v2858 = vpop.permute.xlu0 %2857
        %2859 = vrot.lane.b32.xlu0 %v2815, 7
        %v2860 = vpop.permute.xlu0 %2859
        %2865 = vrot.lane.b32.xlu0 %v2812, 8
        %v2866 = vpop.permute.xlu0 %2865
        %2867 = vrot.lane.b32.xlu0 %v2817, 8
        %v2868 = vpop.permute.xlu0 %2867
        %2871 = vrot.lane.b32.xlu0 %v2812, 9
        %v2872 = vpop.permute.xlu0 %2871
        %2873 = vrot.lane.b32.xlu0 %v2817, 9
        %v2874 = vpop.permute.xlu0 %2873
        %2877 = vrot.lane.b32.xlu0 %v2812, 10
        %v2878 = vpop.permute.xlu0 %2877
        %2879 = vrot.lane.b32.xlu0 %v2817, 10
        %v2880 = vpop.permute.xlu0 %2879
        %2883 = vrot.lane.b32.xlu0 %v2812, 11
        %v2884 = vpop.permute.xlu0 %2883
        %2885 = vrot.lane.b32.xlu0 %v2817, 11
        %v2886 = vpop.permute.xlu0 %2885
        %2889 = vrot.lane.b32.xlu0 %v2812, 12
        %v2890 = vpop.permute.xlu0 %2889
        %2891 = vrot.lane.b32.xlu0 %v2817, 12
        %v2892 = vpop.permute.xlu0 %2891
        %2895 = vrot.lane.b32.xlu0 %v2812, 13
        %v2896 = vpop.permute.xlu0 %2895
        %2897 = vrot.lane.b32.xlu0 %v2817, 13
        %v2898 = vpop.permute.xlu0 %2897
        %2901 = vrot.lane.b32.xlu0 %v2812, 14
        %v2902 = vpop.permute.xlu0 %2901
        %2903 = vrot.lane.b32.xlu0 %v2817, 14
        %v2904 = vpop.permute.xlu0 %2903
        %2907 = vrot.lane.b32.xlu0 %v2812, 15
        %v2908 = vpop.permute.xlu0 %2907
        %2909 = vrot.lane.b32.xlu0 %v2817, 15
        %v2910 = vpop.permute.xlu0 %2909
        %v2913 = vsel %vm2532, %v2810, %v2822
        %v2914 = vsel %vm2532, %v2815, %v2824
        %v2915 = vsel %vm2535, %v2913, %v2828
        %v2916 = vsel %vm2535, %v2914, %v2830
        %v2917 = vsel %vm2538, %v2915, %v2834
        %v2918 = vsel %vm2538, %v2916, %v2836
        %v2919 = vsel %vm2541, %v2917, %v2840
        %v2920 = vsel %vm2541, %v2918, %v2842
        %v2921 = vsel %vm2544, %v2919, %v2846
        %v2922 = vsel %vm2544, %v2920, %v2848
        %v2923 = vsel %vm2547, %v2921, %v2852
        %v2924 = vsel %vm2547, %v2922, %v2854
        %v2925 = vsel %vm2550, %v2923, %v2858
        %v2926 = vsel %vm2550, %v2924, %v2860
        %v2927 = vsel %vm2532, %v2866, %v2872
        %v2928 = vsel %vm2532, %v2868, %v2874
        %v2929 = vsel %vm2535, %v2927, %v2878
        %v2930 = vsel %vm2535, %v2928, %v2880
        %v2931 = vsel %vm2538, %v2929, %v2884
        %v2932 = vsel %vm2538, %v2930, %v2886
        %v2933 = vsel %vm2541, %v2931, %v2890
        %v2934 = vsel %vm2541, %v2932, %v2892
        %v2935 = vsel %vm2544, %v2933, %v2896
        %v2936 = vsel %vm2544, %v2934, %v2898
        %v2937 = vsel %vm2547, %v2935, %v2902
        %v2938 = vsel %vm2547, %v2936, %v2904
        %v2939 = vsel %vm2550, %v2937, %v2908
        %v2940 = vsel %vm2550, %v2938, %v2910
        %2941 = vrot.lane.b32.xlu0 %v2571, 112
        %v2942 = vpop.permute.xlu0 %2941
        %2943 = vrot.lane.b32.xlu0 %v2576, 48
        %v2944 = vpop.permute.xlu0 %2943
        %2947 = vrot.lane.b32.xlu0 %v2925, 113
        %v2948 = vpop.permute.xlu0 %2947
        %2949 = vrot.lane.b32.xlu0 %v2939, 113
        %v2950 = vpop.permute.xlu0 %2949
        %v2954 = vsel %vm2406, %v2942, 0
        %v2957 = vsel %vm2406, %v2944, 0
        %2959 = vmatpush.bf16.xpose.msra.mxu0 0
        %2960 = vmatpush.bf16.xpose.msra.mxu0 0
        %2961 = vmatpush.bf16.xpose.msra.mxu0 0
        %2962 = vmatpush.bf16.xpose.msra.mxu0 0
        %2963 = vmatpush.bf16.xpose.msra.mxu0 0
        %2964 = vmatpush.bf16.xpose.msra.mxu0 0
        %2965 = vmatpush.bf16.xpose.msra.mxu0 0
        %2966 = vmatpush.bf16.xpose.msra.mxu0 %v2957
        %2967 = vmatmul.bf16.gmra.mxu0 %v2954
        %v2968 = vpop.f32.mrf.mxu0
        %v2969 = vadd.f32 %v2948, %v2968
        %v2970 = vpop.f32.mrf.mxu0
        %v2971 = vadd.f32 %v2950, %v2970
        %2972 = vdwg.mxu0
        %2973 = vrot.lane.b32.xlu0 %v2611, 112
        %v2974 = vpop.permute.xlu0 %2973
        %2975 = vrot.lane.b32.xlu0 %v2616, 48
        %v2976 = vpop.permute.xlu0 %2975
        %2979 = vrot.lane.b32.xlu0 %v2926, 113
        %v2980 = vpop.permute.xlu0 %2979
        %2981 = vrot.lane.b32.xlu0 %v2940, 113
        %v2982 = vpop.permute.xlu0 %2981
        %v2986 = vsel %vm2406, %v2974, 0
        %v2989 = vsel %vm2406, %v2976, 0
        %2991 = vmatpush.bf16.xpose.msra.mxu0 0
        %2992 = vmatpush.bf16.xpose.msra.mxu0 0
        %2993 = vmatpush.bf16.xpose.msra.mxu0 0
        %2994 = vmatpush.bf16.xpose.msra.mxu0 0
        %2995 = vmatpush.bf16.xpose.msra.mxu0 0
        %2996 = vmatpush.bf16.xpose.msra.mxu0 0
        %2997 = vmatpush.bf16.xpose.msra.mxu0 0
        %2998 = vmatpush.bf16.xpose.msra.mxu0 %v2989
        %2999 = vmatmul.bf16.gmra.mxu0 %v2986
        %v3000 = vpop.f32.mrf.mxu0
        %v3001 = vadd.f32 %v2980, %v3000
        %v3002 = vpop.f32.mrf.mxu0
        %v3003 = vadd.f32 %v2982, %v3002
        %3004 = vdwg.mxu0
        %v3005 = vmul.f32 %v2969, 0.25
        %v3006 = vmul.f32 %v2971, 0.25
        %v3007 = vmul.f32 %v3001, 0.25
        %v3008 = vmul.f32 %v3003, 0.25
        %v3009 = vsel %vm2655, -1e+30, %v3005
        %v3010 = vsel %vm2655, -1e+30, %v3006
        %v3011 = vsel %vm2656, -1e+30, %v3007
        %v3012 = vsel %vm2656, -1e+30, %v3008
        %v3013 = vsel %vm2406, %v3009, -inf
        %3014 = vmax.xlane.f32.xlu0 %v3013
        %v3015 = vpop.xlane.xlu0 %3014
        %v3016 = vsel %vm2406, %v3010, -inf
        %3017 = vmax.xlane.f32.xlu0 %v3016
        %v3018 = vpop.xlane.xlu0 %3017
        %v3019 = vsel %vm2406, %v3011, -inf
        %3020 = vmax.xlane.f32.xlu0 %v3019
        %v3021 = vpop.xlane.xlu0 %3020
        %v3022 = vsel %vm2406, %v3012, -inf
        %3023 = vmax.xlane.f32.xlu0 %v3022
        %v3024 = vpop.xlane.xlu0 %3023
        %v3025 = vsub.f32 %v3009, %v3015
        %v3026 = vsub.f32 %v3010, %v3018
        %v3027 = vsub.f32 %v3011, %v3021
        %v3028 = vsub.f32 %v3012, %v3024
        %v3029 = vmul.f32 %v3025, 1.442695
        %v3030 = vpow.pop %v3029
        %v3031 = vmul.f32 %v3026, 1.442695
        %v3032 = vpow.pop %v3031
        %v3033 = vmul.f32 %v3027, 1.442695
        %v3034 = vpow.pop %v3033
        %v3035 = vmul.f32 %v3028, 1.442695
        %v3036 = vpow.pop %v3035
        %v3037 = vsel %vm2406, %v3030, 0.0
        %3038 = vadd.xlane.f32.xlu0 %v3037
        %v3039 = vpop.xlane.xlu0 %3038
        %v3040 = vsel %vm2406, %v3032, 0.0
        %3041 = vadd.xlane.f32.xlu0 %v3040
        %v3042 = vpop.xlane.xlu0 %3041
        %v3043 = vsel %vm2406, %v3034, 0.0
        %3044 = vadd.xlane.f32.xlu0 %v3043
        %v3045 = vpop.xlane.xlu0 %3044
        %v3046 = vsel %vm2406, %v3036, 0.0
        %3047 = vadd.xlane.f32.xlu0 %v3046
        %v3048 = vpop.xlane.xlu0 %3047
        %v3049 = vrcp.pop %v3039
        %v3050 = vrcp.pop %v3042
        %v3051 = vrcp.pop %v3045
        %v3052 = vrcp.pop %v3048
        %v3053 = vmul.f32 %v3030, %v3049
        %v3054 = vmul.f32 %v3032, %v3050
        %v3055 = vmul.f32 %v3034, %v3051
        %v3056 = vmul.f32 %v3036, %v3052
        %v3057 = vsel %vm2655, 0.0, %v3053
        %v3058 = vsel %vm2655, 0.0, %v3054
        %v3059 = vsel %vm2656, 0.0, %v3055
        %v3060 = vsel %vm2656, 0.0, %v3056
        %v3061 = vpack.c.bf16 %v3057, %v3057
        %v3062 = vpack.c.bf16 %v3058, %v3058
        %v3063 = vpack.c.bf16 %v3059, %v3059
        %v3064 = vpack.c.bf16 %v3060, %v3060
        %v3067 = vunpack.c.l.b16 %v3061
        %v3068 = vunpack.c.l.b16 %v3062
        %v3069 = vpack.c.b16 %v3068, %v3067
        %3070 = vrot.lane.b32.xlu0 %v2726, 112
        %v3071 = vpop.permute.xlu0 %3070
        %v3074 = vsel %vm2406, %v3069, 0
        %3076 = vmatpush.bf16.msra.mxu0 0
        %3077 = vmatpush.bf16.msra.mxu0 0
        %3078 = vmatpush.bf16.msra.mxu0 0
        %3079 = vmatpush.bf16.msra.mxu0 0
        %3080 = vmatpush.bf16.msra.mxu0 0
        %3081 = vmatpush.bf16.msra.mxu0 0
        %3082 = vmatpush.bf16.msra.mxu0 0
        %3083 = vmatpush.bf16.msra.mxu0 %v3071
        %3084 = vmatmul.bf16.gmra.mxu0 %v3074
        %v3085 = vpop.f32.mrf.mxu0
        %v3086 = vadd.f32 0.0, %v3085
        %v3087 = vpop.f32.mrf.mxu0
        %v3088 = vadd.f32 0.0, %v3087
        %3089 = vdwg.mxu0
        %v3092 = vunpack.c.l.b16 %v3063
        %v3093 = vunpack.c.l.b16 %v3064
        %v3094 = vpack.c.b16 %v3093, %v3092
        %3095 = vrot.lane.b32.xlu0 %v2754, 112
        %v3096 = vpop.permute.xlu0 %3095
        %v3099 = vsel %vm2406, %v3094, 0
        %3101 = vmatpush.bf16.msra.mxu0 0
        %3102 = vmatpush.bf16.msra.mxu0 0
        %3103 = vmatpush.bf16.msra.mxu0 0
        %3104 = vmatpush.bf16.msra.mxu0 0
        %3105 = vmatpush.bf16.msra.mxu0 0
        %3106 = vmatpush.bf16.msra.mxu0 0
        %3107 = vmatpush.bf16.msra.mxu0 0
        %3108 = vmatpush.bf16.msra.mxu0 %v3096
        %3109 = vmatmul.bf16.gmra.mxu0 %v3099
        %v3110 = vpop.f32.mrf.mxu0
        %v3111 = vadd.f32 0.0, %v3110
        %v3112 = vpop.f32.mrf.mxu0
        %v3113 = vadd.f32 0.0, %v3112
        %3114 = vdwg.mxu0
        %v3115 = vpack.c.bf16 %v3088, %v3086
        %v3116 = vpack.c.bf16 %v3113, %v3111
        %v3117 = vpack.c.bf16 %v2180, %v2179
        %v3119 = vsel %vm2406, %v3115, 0
        %v3122 = vsel %vm2406, %v3116, 0
        %3124 = vmatpush.bf16.msra.mxu0 0
        %3125 = vmatpush.bf16.msra.mxu0 0
        %3126 = vmatpush.bf16.msra.mxu0 0
        %3127 = vmatpush.bf16.msra.mxu0 0
        %3128 = vmatpush.bf16.msra.mxu0 0
        %3129 = vmatpush.bf16.msra.mxu0 0
        %3130 = vmatpush.bf16.msra.mxu0 0
        %3131 = vmatpush.bf16.msra.mxu0 %v3117
        %3132 = vmatmul.bf16.gmra.mxu0 %v3119
        %v3133 = vpop.f32.mrf.mxu0
        %v3134 = vadd.f32 0.0, %v3133
        %v3135 = vpop.f32.mrf.mxu0
        %v3136 = vadd.f32 0.0, %v3135
        %3137 = vmatmul.bf16.gmra.mxu0 %v3122
        %v3138 = vpop.f32.mrf.mxu0
        %v3139 = vadd.f32 0.0, %v3138
        %v3140 = vpop.f32.mrf.mxu0
        %v3141 = vadd.f32 0.0, %v3140
        %3142 = vdwg.mxu0
        %v3144 = vsel %vm2406, %v2773, 0
        %v3147 = vsel %vm2406, %v2774, 0
        %3149 = vmatpush.bf16.msra.mxu0 0
        %3150 = vmatpush.bf16.msra.mxu0 0
        %3151 = vmatpush.bf16.msra.mxu0 0
        %3152 = vmatpush.bf16.msra.mxu0 0
        %3153 = vmatpush.bf16.msra.mxu0 0
        %3154 = vmatpush.bf16.msra.mxu0 0
        %3155 = vmatpush.bf16.msra.mxu0 0
        %3156 = vmatpush.bf16.msra.mxu0 %v2775
        %3157 = vmatmul.bf16.gmra.mxu0 %v3144
        %v3158 = vpop.f32.mrf.mxu0
        %v3159 = vadd.f32 %v3134, %v3158
        %v3160 = vpop.f32.mrf.mxu0
        %v3161 = vadd.f32 %v3136, %v3160
        %3162 = vmatmul.bf16.gmra.mxu0 %v3147
        %v3163 = vpop.f32.mrf.mxu0
        %v3164 = vadd.f32 %v3139, %v3163
        %v3165 = vpop.f32.mrf.mxu0
        %v3166 = vadd.f32 %v3141, %v3165
        %3167 = vdwg.mxu0
        %3168 = vrot.lane.b32.xlu0 %v2402, 96
        %v3169 = vpop.permute.xlu0 %3168
        %3170 = vrot.lane.b32.xlu0 %v2403, 96
        %v3171 = vpop.permute.xlu0 %3170
        %3172 = vrot.lane.b32.xlu0 %v2404, 96
        %v3173 = vpop.permute.xlu0 %3172
        %3174 = vrot.lane.b32.xlu0 %v2405, 96
        %v3175 = vpop.permute.xlu0 %3174
        %v3177 = vsel %vm2406, %v3169, 0
        %v3180 = vsel %vm2406, %v3171, 0
        %v3183 = vsel %vm2406, %v3173, 0
        %v3186 = vsel %vm2406, %v3175, 0
        %3188 = vmatpush.bf16.xpose.msra.mxu0 0
        %3189 = vmatpush.bf16.xpose.msra.mxu0 0
        %3190 = vmatpush.bf16.xpose.msra.mxu0 0
        %3191 = vmatpush.bf16.xpose.msra.mxu0 0
        %3192 = vmatpush.bf16.xpose.msra.mxu0 0
        %3193 = vmatpush.bf16.xpose.msra.mxu0 0
        %3194 = vmatpush.bf16.xpose.msra.mxu0 %v3186
        %3195 = vmatpush.bf16.xpose.msra.mxu0 %v3183
        %3196 = vmatmul.bf16.gmra.mxu0 %v3177
        %v3197 = vpop.f32.mrf.mxu0
        %v3198 = vadd.f32 0.0, %v3197
        %v3199 = vpop.f32.mrf.mxu0
        %v3200 = vadd.f32 0.0, %v3199
        %3201 = vmatmul.bf16.gmra.mxu0 %v3180
        %v3202 = vpop.f32.mrf.mxu0
        %v3203 = vadd.f32 0.0, %v3202
        %v3204 = vpop.f32.mrf.mxu0
        %v3205 = vadd.f32 0.0, %v3204
        %3206 = vdwg.mxu0
        %3209 = vrot.lane.b32.xlu0 %v3198, 1
        %v3210 = vpop.permute.xlu0 %3209
        %3211 = vrot.lane.b32.xlu0 %v3203, 1
        %v3212 = vpop.permute.xlu0 %3211
        %3215 = vrot.lane.b32.xlu0 %v3198, 2
        %v3216 = vpop.permute.xlu0 %3215
        %3217 = vrot.lane.b32.xlu0 %v3203, 2
        %v3218 = vpop.permute.xlu0 %3217
        %3221 = vrot.lane.b32.xlu0 %v3198, 3
        %v3222 = vpop.permute.xlu0 %3221
        %3223 = vrot.lane.b32.xlu0 %v3203, 3
        %v3224 = vpop.permute.xlu0 %3223
        %3227 = vrot.lane.b32.xlu0 %v3198, 4
        %v3228 = vpop.permute.xlu0 %3227
        %3229 = vrot.lane.b32.xlu0 %v3203, 4
        %v3230 = vpop.permute.xlu0 %3229
        %3233 = vrot.lane.b32.xlu0 %v3198, 5
        %v3234 = vpop.permute.xlu0 %3233
        %3235 = vrot.lane.b32.xlu0 %v3203, 5
        %v3236 = vpop.permute.xlu0 %3235
        %3239 = vrot.lane.b32.xlu0 %v3198, 6
        %v3240 = vpop.permute.xlu0 %3239
        %3241 = vrot.lane.b32.xlu0 %v3203, 6
        %v3242 = vpop.permute.xlu0 %3241
        %3245 = vrot.lane.b32.xlu0 %v3198, 7
        %v3246 = vpop.permute.xlu0 %3245
        %3247 = vrot.lane.b32.xlu0 %v3203, 7
        %v3248 = vpop.permute.xlu0 %3247
        %3253 = vrot.lane.b32.xlu0 %v3200, 8
        %v3254 = vpop.permute.xlu0 %3253
        %3255 = vrot.lane.b32.xlu0 %v3205, 8
        %v3256 = vpop.permute.xlu0 %3255
        %3259 = vrot.lane.b32.xlu0 %v3200, 9
        %v3260 = vpop.permute.xlu0 %3259
        %3261 = vrot.lane.b32.xlu0 %v3205, 9
        %v3262 = vpop.permute.xlu0 %3261
        %3265 = vrot.lane.b32.xlu0 %v3200, 10
        %v3266 = vpop.permute.xlu0 %3265
        %3267 = vrot.lane.b32.xlu0 %v3205, 10
        %v3268 = vpop.permute.xlu0 %3267
        %3271 = vrot.lane.b32.xlu0 %v3200, 11
        %v3272 = vpop.permute.xlu0 %3271
        %3273 = vrot.lane.b32.xlu0 %v3205, 11
        %v3274 = vpop.permute.xlu0 %3273
        %3277 = vrot.lane.b32.xlu0 %v3200, 12
        %v3278 = vpop.permute.xlu0 %3277
        %3279 = vrot.lane.b32.xlu0 %v3205, 12
        %v3280 = vpop.permute.xlu0 %3279
        %3283 = vrot.lane.b32.xlu0 %v3200, 13
        %v3284 = vpop.permute.xlu0 %3283
        %3285 = vrot.lane.b32.xlu0 %v3205, 13
        %v3286 = vpop.permute.xlu0 %3285
        %3289 = vrot.lane.b32.xlu0 %v3200, 14
        %v3290 = vpop.permute.xlu0 %3289
        %3291 = vrot.lane.b32.xlu0 %v3205, 14
        %v3292 = vpop.permute.xlu0 %3291
        %3295 = vrot.lane.b32.xlu0 %v3200, 15
        %v3296 = vpop.permute.xlu0 %3295
        %3297 = vrot.lane.b32.xlu0 %v3205, 15
        %v3298 = vpop.permute.xlu0 %3297
        %v3301 = vsel %vm2532, %v3198, %v3210
        %v3302 = vsel %vm2532, %v3203, %v3212
        %v3303 = vsel %vm2535, %v3301, %v3216
        %v3304 = vsel %vm2535, %v3302, %v3218
        %v3305 = vsel %vm2538, %v3303, %v3222
        %v3306 = vsel %vm2538, %v3304, %v3224
        %v3307 = vsel %vm2541, %v3305, %v3228
        %v3308 = vsel %vm2541, %v3306, %v3230
        %v3309 = vsel %vm2544, %v3307, %v3234
        %v3310 = vsel %vm2544, %v3308, %v3236
        %v3311 = vsel %vm2547, %v3309, %v3240
        %v3312 = vsel %vm2547, %v3310, %v3242
        %v3313 = vsel %vm2550, %v3311, %v3246
        %v3314 = vsel %vm2550, %v3312, %v3248
        %v3315 = vsel %vm2532, %v3254, %v3260
        %v3316 = vsel %vm2532, %v3256, %v3262
        %v3317 = vsel %vm2535, %v3315, %v3266
        %v3318 = vsel %vm2535, %v3316, %v3268
        %v3319 = vsel %vm2538, %v3317, %v3272
        %v3320 = vsel %vm2538, %v3318, %v3274
        %v3321 = vsel %vm2541, %v3319, %v3278
        %v3322 = vsel %vm2541, %v3320, %v3280
        %v3323 = vsel %vm2544, %v3321, %v3284
        %v3324 = vsel %vm2544, %v3322, %v3286
        %v3325 = vsel %vm2547, %v3323, %v3290
        %v3326 = vsel %vm2547, %v3324, %v3292
        %v3327 = vsel %vm2550, %v3325, %v3296
        %v3328 = vsel %vm2550, %v3326, %v3298
        %3329 = vrot.lane.b32.xlu0 %v2571, 96
        %v3330 = vpop.permute.xlu0 %3329
        %3331 = vrot.lane.b32.xlu0 %v2576, 32
        %v3332 = vpop.permute.xlu0 %3331
        %3335 = vrot.lane.b32.xlu0 %v3313, 113
        %v3336 = vpop.permute.xlu0 %3335
        %3337 = vrot.lane.b32.xlu0 %v3327, 113
        %v3338 = vpop.permute.xlu0 %3337
        %v3342 = vsel %vm2406, %v3330, 0
        %v3345 = vsel %vm2406, %v3332, 0
        %3347 = vmatpush.bf16.xpose.msra.mxu0 0
        %3348 = vmatpush.bf16.xpose.msra.mxu0 0
        %3349 = vmatpush.bf16.xpose.msra.mxu0 0
        %3350 = vmatpush.bf16.xpose.msra.mxu0 0
        %3351 = vmatpush.bf16.xpose.msra.mxu0 0
        %3352 = vmatpush.bf16.xpose.msra.mxu0 0
        %3353 = vmatpush.bf16.xpose.msra.mxu0 0
        %3354 = vmatpush.bf16.xpose.msra.mxu0 %v3345
        %3355 = vmatmul.bf16.gmra.mxu0 %v3342
        %v3356 = vpop.f32.mrf.mxu0
        %v3357 = vadd.f32 %v3336, %v3356
        %v3358 = vpop.f32.mrf.mxu0
        %v3359 = vadd.f32 %v3338, %v3358
        %3360 = vdwg.mxu0
        %3361 = vrot.lane.b32.xlu0 %v2611, 96
        %v3362 = vpop.permute.xlu0 %3361
        %3363 = vrot.lane.b32.xlu0 %v2616, 32
        %v3364 = vpop.permute.xlu0 %3363
        %3367 = vrot.lane.b32.xlu0 %v3314, 113
        %v3368 = vpop.permute.xlu0 %3367
        %3369 = vrot.lane.b32.xlu0 %v3328, 113
        %v3370 = vpop.permute.xlu0 %3369
        %v3374 = vsel %vm2406, %v3362, 0
        %v3377 = vsel %vm2406, %v3364, 0
        %3379 = vmatpush.bf16.xpose.msra.mxu0 0
        %3380 = vmatpush.bf16.xpose.msra.mxu0 0
        %3381 = vmatpush.bf16.xpose.msra.mxu0 0
        %3382 = vmatpush.bf16.xpose.msra.mxu0 0
        %3383 = vmatpush.bf16.xpose.msra.mxu0 0
        %3384 = vmatpush.bf16.xpose.msra.mxu0 0
        %3385 = vmatpush.bf16.xpose.msra.mxu0 0
        %3386 = vmatpush.bf16.xpose.msra.mxu0 %v3377
        %3387 = vmatmul.bf16.gmra.mxu0 %v3374
        %v3388 = vpop.f32.mrf.mxu0
        %v3389 = vadd.f32 %v3368, %v3388
        %v3390 = vpop.f32.mrf.mxu0
        %v3391 = vadd.f32 %v3370, %v3390
        %3392 = vdwg.mxu0
        %v3393 = vmul.f32 %v3357, 0.25
        %v3394 = vmul.f32 %v3359, 0.25
        %v3395 = vmul.f32 %v3389, 0.25
        %v3396 = vmul.f32 %v3391, 0.25
        %v3397 = vsel %vm2655, -1e+30, %v3393
        %v3398 = vsel %vm2655, -1e+30, %v3394
        %v3399 = vsel %vm2656, -1e+30, %v3395
        %v3400 = vsel %vm2656, -1e+30, %v3396
        %v3401 = vsel %vm2406, %v3397, -inf
        %3402 = vmax.xlane.f32.xlu0 %v3401
        %v3403 = vpop.xlane.xlu0 %3402
        %v3404 = vsel %vm2406, %v3398, -inf
        %3405 = vmax.xlane.f32.xlu0 %v3404
        %v3406 = vpop.xlane.xlu0 %3405
        %v3407 = vsel %vm2406, %v3399, -inf
        %3408 = vmax.xlane.f32.xlu0 %v3407
        %v3409 = vpop.xlane.xlu0 %3408
        %v3410 = vsel %vm2406, %v3400, -inf
        %3411 = vmax.xlane.f32.xlu0 %v3410
        %v3412 = vpop.xlane.xlu0 %3411
        %v3413 = vsub.f32 %v3397, %v3403
        %v3414 = vsub.f32 %v3398, %v3406
        %v3415 = vsub.f32 %v3399, %v3409
        %v3416 = vsub.f32 %v3400, %v3412
        %v3417 = vmul.f32 %v3413, 1.442695
        %v3418 = vpow.pop %v3417
        %v3419 = vmul.f32 %v3414, 1.442695
        %v3420 = vpow.pop %v3419
        %v3421 = vmul.f32 %v3415, 1.442695
        %v3422 = vpow.pop %v3421
        %v3423 = vmul.f32 %v3416, 1.442695
        %v3424 = vpow.pop %v3423
        %v3425 = vsel %vm2406, %v3418, 0.0
        %3426 = vadd.xlane.f32.xlu0 %v3425
        %v3427 = vpop.xlane.xlu0 %3426
        %v3428 = vsel %vm2406, %v3420, 0.0
        %3429 = vadd.xlane.f32.xlu0 %v3428
        %v3430 = vpop.xlane.xlu0 %3429
        %v3431 = vsel %vm2406, %v3422, 0.0
        %3432 = vadd.xlane.f32.xlu0 %v3431
        %v3433 = vpop.xlane.xlu0 %3432
        %v3434 = vsel %vm2406, %v3424, 0.0
        %3435 = vadd.xlane.f32.xlu0 %v3434
        %v3436 = vpop.xlane.xlu0 %3435
        %v3437 = vrcp.pop %v3427
        %v3438 = vrcp.pop %v3430
        %v3439 = vrcp.pop %v3433
        %v3440 = vrcp.pop %v3436
        %v3441 = vmul.f32 %v3418, %v3437
        %v3442 = vmul.f32 %v3420, %v3438
        %v3443 = vmul.f32 %v3422, %v3439
        %v3444 = vmul.f32 %v3424, %v3440
        %v3445 = vsel %vm2655, 0.0, %v3441
        %v3446 = vsel %vm2655, 0.0, %v3442
        %v3447 = vsel %vm2656, 0.0, %v3443
        %v3448 = vsel %vm2656, 0.0, %v3444
        %v3449 = vpack.c.bf16 %v3445, %v3445
        %v3450 = vpack.c.bf16 %v3446, %v3446
        %v3451 = vpack.c.bf16 %v3447, %v3447
        %v3452 = vpack.c.bf16 %v3448, %v3448
        %v3455 = vunpack.c.l.b16 %v3449
        %v3456 = vunpack.c.l.b16 %v3450
        %v3457 = vpack.c.b16 %v3456, %v3455
        %3458 = vrot.lane.b32.xlu0 %v2726, 96
        %v3459 = vpop.permute.xlu0 %3458
        %v3462 = vsel %vm2406, %v3457, 0
        %3464 = vmatpush.bf16.msra.mxu0 0
        %3465 = vmatpush.bf16.msra.mxu0 0
        %3466 = vmatpush.bf16.msra.mxu0 0
        %3467 = vmatpush.bf16.msra.mxu0 0
        %3468 = vmatpush.bf16.msra.mxu0 0
        %3469 = vmatpush.bf16.msra.mxu0 0
        %3470 = vmatpush.bf16.msra.mxu0 0
        %3471 = vmatpush.bf16.msra.mxu0 %v3459
        %3472 = vmatmul.bf16.gmra.mxu0 %v3462
        %v3473 = vpop.f32.mrf.mxu0
        %v3474 = vadd.f32 0.0, %v3473
        %v3475 = vpop.f32.mrf.mxu0
        %v3476 = vadd.f32 0.0, %v3475
        %3477 = vdwg.mxu0
        %v3480 = vunpack.c.l.b16 %v3451
        %v3481 = vunpack.c.l.b16 %v3452
        %v3482 = vpack.c.b16 %v3481, %v3480
        %3483 = vrot.lane.b32.xlu0 %v2754, 96
        %v3484 = vpop.permute.xlu0 %3483
        %v3487 = vsel %vm2406, %v3482, 0
        %3489 = vmatpush.bf16.msra.mxu0 0
        %3490 = vmatpush.bf16.msra.mxu0 0
        %3491 = vmatpush.bf16.msra.mxu0 0
        %3492 = vmatpush.bf16.msra.mxu0 0
        %3493 = vmatpush.bf16.msra.mxu0 0
        %3494 = vmatpush.bf16.msra.mxu0 0
        %3495 = vmatpush.bf16.msra.mxu0 0
        %3496 = vmatpush.bf16.msra.mxu0 %v3484
        %3497 = vmatmul.bf16.gmra.mxu0 %v3487
        %v3498 = vpop.f32.mrf.mxu0
        %v3499 = vadd.f32 0.0, %v3498
        %v3500 = vpop.f32.mrf.mxu0
        %v3501 = vadd.f32 0.0, %v3500
        %3502 = vdwg.mxu0
        %v3503 = vpack.c.bf16 %v3476, %v3474
        %v3504 = vpack.c.bf16 %v3501, %v3499
        %v3505 = vpack.c.bf16 %v2182, %v2181
        %v3507 = vsel %vm2406, %v3503, 0
        %v3510 = vsel %vm2406, %v3504, 0
        %3512 = vmatpush.bf16.msra.mxu0 0
        %3513 = vmatpush.bf16.msra.mxu0 0
        %3514 = vmatpush.bf16.msra.mxu0 0
        %3515 = vmatpush.bf16.msra.mxu0 0
        %3516 = vmatpush.bf16.msra.mxu0 0
        %3517 = vmatpush.bf16.msra.mxu0 0
        %3518 = vmatpush.bf16.msra.mxu0 0
        %3519 = vmatpush.bf16.msra.mxu0 %v3505
        %3520 = vmatmul.bf16.gmra.mxu0 %v3507
        %v3521 = vpop.f32.mrf.mxu0
        %v3522 = vadd.f32 0.0, %v3521
        %v3523 = vpop.f32.mrf.mxu0
        %v3524 = vadd.f32 0.0, %v3523
        %3525 = vmatmul.bf16.gmra.mxu0 %v3510
        %v3526 = vpop.f32.mrf.mxu0
        %v3527 = vadd.f32 0.0, %v3526
        %v3528 = vpop.f32.mrf.mxu0
        %v3529 = vadd.f32 0.0, %v3528
        %3530 = vdwg.mxu0
        %v3531 = vadd.f32 %v3159, %v3522
        %v3532 = vadd.f32 %v3161, %v3524
        %v3533 = vadd.f32 %v3164, %v3527
        %v3534 = vadd.f32 %v3166, %v3529
        %3535 = vrot.lane.b32.xlu0 %v2402, 80
        %v3536 = vpop.permute.xlu0 %3535
        %3537 = vrot.lane.b32.xlu0 %v2403, 80
        %v3538 = vpop.permute.xlu0 %3537
        %3539 = vrot.lane.b32.xlu0 %v2404, 80
        %v3540 = vpop.permute.xlu0 %3539
        %3541 = vrot.lane.b32.xlu0 %v2405, 80
        %v3542 = vpop.permute.xlu0 %3541
        %v3544 = vsel %vm2406, %v3536, 0
        %v3547 = vsel %vm2406, %v3538, 0
        %v3550 = vsel %vm2406, %v3540, 0
        %v3553 = vsel %vm2406, %v3542, 0
        %3555 = vmatpush.bf16.xpose.msra.mxu0 0
        %3556 = vmatpush.bf16.xpose.msra.mxu0 0
        %3557 = vmatpush.bf16.xpose.msra.mxu0 0
        %3558 = vmatpush.bf16.xpose.msra.mxu0 0
        %3559 = vmatpush.bf16.xpose.msra.mxu0 0
        %3560 = vmatpush.bf16.xpose.msra.mxu0 0
        %3561 = vmatpush.bf16.xpose.msra.mxu0 %v3553
        %3562 = vmatpush.bf16.xpose.msra.mxu0 %v3550
        %3563 = vmatmul.bf16.gmra.mxu0 %v3544
        %v3564 = vpop.f32.mrf.mxu0
        %v3565 = vadd.f32 0.0, %v3564
        %v3566 = vpop.f32.mrf.mxu0
        %v3567 = vadd.f32 0.0, %v3566
        %3568 = vmatmul.bf16.gmra.mxu0 %v3547
        %v3569 = vpop.f32.mrf.mxu0
        %v3570 = vadd.f32 0.0, %v3569
        %v3571 = vpop.f32.mrf.mxu0
        %v3572 = vadd.f32 0.0, %v3571
        %3573 = vdwg.mxu0
        %3576 = vrot.lane.b32.xlu0 %v3565, 1
        %v3577 = vpop.permute.xlu0 %3576
        %3578 = vrot.lane.b32.xlu0 %v3570, 1
        %v3579 = vpop.permute.xlu0 %3578
        %3582 = vrot.lane.b32.xlu0 %v3565, 2
        %v3583 = vpop.permute.xlu0 %3582
        %3584 = vrot.lane.b32.xlu0 %v3570, 2
        %v3585 = vpop.permute.xlu0 %3584
        %3588 = vrot.lane.b32.xlu0 %v3565, 3
        %v3589 = vpop.permute.xlu0 %3588
        %3590 = vrot.lane.b32.xlu0 %v3570, 3
        %v3591 = vpop.permute.xlu0 %3590
        %3594 = vrot.lane.b32.xlu0 %v3565, 4
        %v3595 = vpop.permute.xlu0 %3594
        %3596 = vrot.lane.b32.xlu0 %v3570, 4
        %v3597 = vpop.permute.xlu0 %3596
        %3600 = vrot.lane.b32.xlu0 %v3565, 5
        %v3601 = vpop.permute.xlu0 %3600
        %3602 = vrot.lane.b32.xlu0 %v3570, 5
        %v3603 = vpop.permute.xlu0 %3602
        %3606 = vrot.lane.b32.xlu0 %v3565, 6
        %v3607 = vpop.permute.xlu0 %3606
        %3608 = vrot.lane.b32.xlu0 %v3570, 6
        %v3609 = vpop.permute.xlu0 %3608
        %3612 = vrot.lane.b32.xlu0 %v3565, 7
        %v3613 = vpop.permute.xlu0 %3612
        %3614 = vrot.lane.b32.xlu0 %v3570, 7
        %v3615 = vpop.permute.xlu0 %3614
        %3620 = vrot.lane.b32.xlu0 %v3567, 8
        %v3621 = vpop.permute.xlu0 %3620
        %3622 = vrot.lane.b32.xlu0 %v3572, 8
        %v3623 = vpop.permute.xlu0 %3622
        %3626 = vrot.lane.b32.xlu0 %v3567, 9
        %v3627 = vpop.permute.xlu0 %3626
        %3628 = vrot.lane.b32.xlu0 %v3572, 9
        %v3629 = vpop.permute.xlu0 %3628
        %3632 = vrot.lane.b32.xlu0 %v3567, 10
        %v3633 = vpop.permute.xlu0 %3632
        %3634 = vrot.lane.b32.xlu0 %v3572, 10
        %v3635 = vpop.permute.xlu0 %3634
        %3638 = vrot.lane.b32.xlu0 %v3567, 11
        %v3639 = vpop.permute.xlu0 %3638
        %3640 = vrot.lane.b32.xlu0 %v3572, 11
        %v3641 = vpop.permute.xlu0 %3640
        %3644 = vrot.lane.b32.xlu0 %v3567, 12
        %v3645 = vpop.permute.xlu0 %3644
        %3646 = vrot.lane.b32.xlu0 %v3572, 12
        %v3647 = vpop.permute.xlu0 %3646
        %3650 = vrot.lane.b32.xlu0 %v3567, 13
        %v3651 = vpop.permute.xlu0 %3650
        %3652 = vrot.lane.b32.xlu0 %v3572, 13
        %v3653 = vpop.permute.xlu0 %3652
        %3656 = vrot.lane.b32.xlu0 %v3567, 14
        %v3657 = vpop.permute.xlu0 %3656
        %3658 = vrot.lane.b32.xlu0 %v3572, 14
        %v3659 = vpop.permute.xlu0 %3658
        %3662 = vrot.lane.b32.xlu0 %v3567, 15
        %v3663 = vpop.permute.xlu0 %3662
        %3664 = vrot.lane.b32.xlu0 %v3572, 15
        %v3665 = vpop.permute.xlu0 %3664
        %v3668 = vsel %vm2532, %v3565, %v3577
        %v3669 = vsel %vm2532, %v3570, %v3579
        %v3670 = vsel %vm2535, %v3668, %v3583
        %v3671 = vsel %vm2535, %v3669, %v3585
        %v3672 = vsel %vm2538, %v3670, %v3589
        %v3673 = vsel %vm2538, %v3671, %v3591
        %v3674 = vsel %vm2541, %v3672, %v3595
        %v3675 = vsel %vm2541, %v3673, %v3597
        %v3676 = vsel %vm2544, %v3674, %v3601
        %v3677 = vsel %vm2544, %v3675, %v3603
        %v3678 = vsel %vm2547, %v3676, %v3607
        %v3679 = vsel %vm2547, %v3677, %v3609
        %v3680 = vsel %vm2550, %v3678, %v3613
        %v3681 = vsel %vm2550, %v3679, %v3615
        %v3682 = vsel %vm2532, %v3621, %v3627
        %v3683 = vsel %vm2532, %v3623, %v3629
        %v3684 = vsel %vm2535, %v3682, %v3633
        %v3685 = vsel %vm2535, %v3683, %v3635
        %v3686 = vsel %vm2538, %v3684, %v3639
        %v3687 = vsel %vm2538, %v3685, %v3641
        %v3688 = vsel %vm2541, %v3686, %v3645
        %v3689 = vsel %vm2541, %v3687, %v3647
        %v3690 = vsel %vm2544, %v3688, %v3651
        %v3691 = vsel %vm2544, %v3689, %v3653
        %v3692 = vsel %vm2547, %v3690, %v3657
        %v3693 = vsel %vm2547, %v3691, %v3659
        %v3694 = vsel %vm2550, %v3692, %v3663
        %v3695 = vsel %vm2550, %v3693, %v3665
        %3696 = vrot.lane.b32.xlu0 %v2571, 80
        %v3697 = vpop.permute.xlu0 %3696
        %3698 = vrot.lane.b32.xlu0 %v2576, 16
        %v3699 = vpop.permute.xlu0 %3698
        %3702 = vrot.lane.b32.xlu0 %v3680, 113
        %v3703 = vpop.permute.xlu0 %3702
        %3704 = vrot.lane.b32.xlu0 %v3694, 113
        %v3705 = vpop.permute.xlu0 %3704
        %v3709 = vsel %vm2406, %v3697, 0
        %v3712 = vsel %vm2406, %v3699, 0
        %3714 = vmatpush.bf16.xpose.msra.mxu0 0
        %3715 = vmatpush.bf16.xpose.msra.mxu0 0
        %3716 = vmatpush.bf16.xpose.msra.mxu0 0
        %3717 = vmatpush.bf16.xpose.msra.mxu0 0
        %3718 = vmatpush.bf16.xpose.msra.mxu0 0
        %3719 = vmatpush.bf16.xpose.msra.mxu0 0
        %3720 = vmatpush.bf16.xpose.msra.mxu0 0
        %3721 = vmatpush.bf16.xpose.msra.mxu0 %v3712
        %3722 = vmatmul.bf16.gmra.mxu0 %v3709
        %v3723 = vpop.f32.mrf.mxu0
        %v3724 = vadd.f32 %v3703, %v3723
        %v3725 = vpop.f32.mrf.mxu0
        %v3726 = vadd.f32 %v3705, %v3725
        %3727 = vdwg.mxu0
        %3728 = vrot.lane.b32.xlu0 %v2611, 80
        %v3729 = vpop.permute.xlu0 %3728
        %3730 = vrot.lane.b32.xlu0 %v2616, 16
        %v3731 = vpop.permute.xlu0 %3730
        %3734 = vrot.lane.b32.xlu0 %v3681, 113
        %v3735 = vpop.permute.xlu0 %3734
        %3736 = vrot.lane.b32.xlu0 %v3695, 113
        %v3737 = vpop.permute.xlu0 %3736
        %v3741 = vsel %vm2406, %v3729, 0
        %v3744 = vsel %vm2406, %v3731, 0
        %3746 = vmatpush.bf16.xpose.msra.mxu0 0
        %3747 = vmatpush.bf16.xpose.msra.mxu0 0
        %3748 = vmatpush.bf16.xpose.msra.mxu0 0
        %3749 = vmatpush.bf16.xpose.msra.mxu0 0
        %3750 = vmatpush.bf16.xpose.msra.mxu0 0
        %3751 = vmatpush.bf16.xpose.msra.mxu0 0
        %3752 = vmatpush.bf16.xpose.msra.mxu0 0
        %3753 = vmatpush.bf16.xpose.msra.mxu0 %v3744
        %3754 = vmatmul.bf16.gmra.mxu0 %v3741
        %v3755 = vpop.f32.mrf.mxu0
        %v3756 = vadd.f32 %v3735, %v3755
        %v3757 = vpop.f32.mrf.mxu0
        %v3758 = vadd.f32 %v3737, %v3757
        %3759 = vdwg.mxu0
        %v3760 = vmul.f32 %v3724, 0.25
        %v3761 = vmul.f32 %v3726, 0.25
        %v3762 = vmul.f32 %v3756, 0.25
        %v3763 = vmul.f32 %v3758, 0.25
        %v3764 = vsel %vm2655, -1e+30, %v3760
        %v3765 = vsel %vm2655, -1e+30, %v3761
        %v3766 = vsel %vm2656, -1e+30, %v3762
        %v3767 = vsel %vm2656, -1e+30, %v3763
        %v3768 = vsel %vm2406, %v3764, -inf
        %3769 = vmax.xlane.f32.xlu0 %v3768
        %v3770 = vpop.xlane.xlu0 %3769
        %v3771 = vsel %vm2406, %v3765, -inf
        %3772 = vmax.xlane.f32.xlu0 %v3771
        %v3773 = vpop.xlane.xlu0 %3772
        %v3774 = vsel %vm2406, %v3766, -inf
        %3775 = vmax.xlane.f32.xlu0 %v3774
        %v3776 = vpop.xlane.xlu0 %3775
        %v3777 = vsel %vm2406, %v3767, -inf
        %3778 = vmax.xlane.f32.xlu0 %v3777
        %v3779 = vpop.xlane.xlu0 %3778
        %v3780 = vsub.f32 %v3764, %v3770
        %v3781 = vsub.f32 %v3765, %v3773
        %v3782 = vsub.f32 %v3766, %v3776
        %v3783 = vsub.f32 %v3767, %v3779
        %v3784 = vmul.f32 %v3780, 1.442695
        %v3785 = vpow.pop %v3784
        %v3786 = vmul.f32 %v3781, 1.442695
        %v3787 = vpow.pop %v3786
        %v3788 = vmul.f32 %v3782, 1.442695
        %v3789 = vpow.pop %v3788
        %v3790 = vmul.f32 %v3783, 1.442695
        %v3791 = vpow.pop %v3790
        %v3792 = vsel %vm2406, %v3785, 0.0
        %3793 = vadd.xlane.f32.xlu0 %v3792
        %v3794 = vpop.xlane.xlu0 %3793
        %v3795 = vsel %vm2406, %v3787, 0.0
        %3796 = vadd.xlane.f32.xlu0 %v3795
        %v3797 = vpop.xlane.xlu0 %3796
        %v3798 = vsel %vm2406, %v3789, 0.0
        %3799 = vadd.xlane.f32.xlu0 %v3798
        %v3800 = vpop.xlane.xlu0 %3799
        %v3801 = vsel %vm2406, %v3791, 0.0
        %3802 = vadd.xlane.f32.xlu0 %v3801
        %v3803 = vpop.xlane.xlu0 %3802
        %v3804 = vrcp.pop %v3794
        %v3805 = vrcp.pop %v3797
        %v3806 = vrcp.pop %v3800
        %v3807 = vrcp.pop %v3803
        %v3808 = vmul.f32 %v3785, %v3804
        %v3809 = vmul.f32 %v3787, %v3805
        %v3810 = vmul.f32 %v3789, %v3806
        %v3811 = vmul.f32 %v3791, %v3807
        %v3812 = vsel %vm2655, 0.0, %v3808
        %v3813 = vsel %vm2655, 0.0, %v3809
        %v3814 = vsel %vm2656, 0.0, %v3810
        %v3815 = vsel %vm2656, 0.0, %v3811
        %v3816 = vpack.c.bf16 %v3812, %v3812
        %v3817 = vpack.c.bf16 %v3813, %v3813
        %v3818 = vpack.c.bf16 %v3814, %v3814
        %v3819 = vpack.c.bf16 %v3815, %v3815
        %v3822 = vunpack.c.l.b16 %v3816
        %v3823 = vunpack.c.l.b16 %v3817
        %v3824 = vpack.c.b16 %v3823, %v3822
        %3825 = vrot.lane.b32.xlu0 %v2726, 80
        %v3826 = vpop.permute.xlu0 %3825
        %v3829 = vsel %vm2406, %v3824, 0
        %3831 = vmatpush.bf16.msra.mxu0 0
        %3832 = vmatpush.bf16.msra.mxu0 0
        %3833 = vmatpush.bf16.msra.mxu0 0
        %3834 = vmatpush.bf16.msra.mxu0 0
        %3835 = vmatpush.bf16.msra.mxu0 0
        %3836 = vmatpush.bf16.msra.mxu0 0
        %3837 = vmatpush.bf16.msra.mxu0 0
        %3838 = vmatpush.bf16.msra.mxu0 %v3826
        %3839 = vmatmul.bf16.gmra.mxu0 %v3829
        %v3840 = vpop.f32.mrf.mxu0
        %v3841 = vadd.f32 0.0, %v3840
        %v3842 = vpop.f32.mrf.mxu0
        %v3843 = vadd.f32 0.0, %v3842
        %3844 = vdwg.mxu0
        %v3847 = vunpack.c.l.b16 %v3818
        %v3848 = vunpack.c.l.b16 %v3819
        %v3849 = vpack.c.b16 %v3848, %v3847
        %3850 = vrot.lane.b32.xlu0 %v2754, 80
        %v3851 = vpop.permute.xlu0 %3850
        %v3854 = vsel %vm2406, %v3849, 0
        %3856 = vmatpush.bf16.msra.mxu0 0
        %3857 = vmatpush.bf16.msra.mxu0 0
        %3858 = vmatpush.bf16.msra.mxu0 0
        %3859 = vmatpush.bf16.msra.mxu0 0
        %3860 = vmatpush.bf16.msra.mxu0 0
        %3861 = vmatpush.bf16.msra.mxu0 0
        %3862 = vmatpush.bf16.msra.mxu0 0
        %3863 = vmatpush.bf16.msra.mxu0 %v3851
        %3864 = vmatmul.bf16.gmra.mxu0 %v3854
        %v3865 = vpop.f32.mrf.mxu0
        %v3866 = vadd.f32 0.0, %v3865
        %v3867 = vpop.f32.mrf.mxu0
        %v3868 = vadd.f32 0.0, %v3867
        %3869 = vdwg.mxu0
        %v3870 = vpack.c.bf16 %v3843, %v3841
        %v3871 = vpack.c.bf16 %v3868, %v3866
        %v3872 = vpack.c.bf16 %v2184, %v2183
        %v3874 = vsel %vm2406, %v3870, 0
        %v3877 = vsel %vm2406, %v3871, 0
        %3879 = vmatpush.bf16.msra.mxu0 0
        %3880 = vmatpush.bf16.msra.mxu0 0
        %3881 = vmatpush.bf16.msra.mxu0 0
        %3882 = vmatpush.bf16.msra.mxu0 0
        %3883 = vmatpush.bf16.msra.mxu0 0
        %3884 = vmatpush.bf16.msra.mxu0 0
        %3885 = vmatpush.bf16.msra.mxu0 0
        %3886 = vmatpush.bf16.msra.mxu0 %v3872
        %3887 = vmatmul.bf16.gmra.mxu0 %v3874
        %v3888 = vpop.f32.mrf.mxu0
        %v3889 = vadd.f32 0.0, %v3888
        %v3890 = vpop.f32.mrf.mxu0
        %v3891 = vadd.f32 0.0, %v3890
        %3892 = vmatmul.bf16.gmra.mxu0 %v3877
        %v3893 = vpop.f32.mrf.mxu0
        %v3894 = vadd.f32 0.0, %v3893
        %v3895 = vpop.f32.mrf.mxu0
        %v3896 = vadd.f32 0.0, %v3895
        %3897 = vdwg.mxu0
        %v3898 = vadd.f32 %v3531, %v3889
        %v3899 = vadd.f32 %v3532, %v3891
        %v3900 = vadd.f32 %v3533, %v3894
        %v3901 = vadd.f32 %v3534, %v3896
        %v3902 = vadd.f32 %v2144, %v3898
        %v3903 = vadd.f32 %v2145, %v3899
        %v3904 = vadd.f32 %v2146, %v3900
        %v3905 = vadd.f32 %v2147, %v3901
        %v3907 = vperm.slane %v2185, 0
        %v3909 = vadd.f32 %v3902, %v3907
        %v3910 = vadd.f32 %v3903, %v3907
        %v3911 = vadd.f32 %v3904, %v3907
        %v3912 = vadd.f32 %v3905, %v3907
        %v3913 = vld [vmem:[%s1743] sm:$0x1]
        %v3914 = vld [vmem:[%s1746] sm:$0x1]
        %v3915 = vld [vmem:[%s1448] sm:$0xff]
        %v3916 = vld [vmem:[%s1448 + $0x8] sm:$0xff]
        %v3917 = vld [vmem:[%s1448 + $0x10] sm:$0xff]
        %v3918 = vld [vmem:[%s1448 + $0x18] sm:$0xff]
        %v3919 = vld [vmem:[%s1448 + $0x20] sm:$0xff]
        %v3920 = vld [vmem:[%s1448 + $0x28] sm:$0xff]
        %v3921 = vld [vmem:[%s1448 + $0x30] sm:$0xff]
        %v3922 = vld [vmem:[%s1448 + $0x38] sm:$0xff]
        %v3923 = vld [vmem:[%s1458] sm:$0xff]
        %v3924 = vld [vmem:[%s1458 + $0x8] sm:$0xff]
        %v3925 = vld [vmem:[%s1458 + $0x10] sm:$0xff]
        %v3926 = vld [vmem:[%s1458 + $0x18] sm:$0xff]
        %v3927 = vld [vmem:[%s1458 + $0x20] sm:$0xff]
        %v3928 = vld [vmem:[%s1458 + $0x28] sm:$0xff]
        %v3929 = vld [vmem:[%s1458 + $0x30] sm:$0xff]
        %v3930 = vld [vmem:[%s1458 + $0x38] sm:$0xff]
        %v3931 = vld [vmem:[%s1750] sm:$0x7f]
        %v3932 = vld [vmem:[%s1753] sm:$0x1]
        %v3933 = vld [vmem:[%s1756] sm:$0x1]
        %v3934 = vld [vmem:[%s1468] sm:$0xff]
        %v3935 = vld [vmem:[%s1468 + $0x8] sm:$0xff]
        %v3936 = vld [vmem:[%s1468 + $0x10] sm:$0xff]
        %v3937 = vld [vmem:[%s1468 + $0x18] sm:$0xff]
        %v3938 = vld [vmem:[%s1468 + $0x20] sm:$0xff]
        %v3939 = vld [vmem:[%s1468 + $0x28] sm:$0xff]
        %v3940 = vld [vmem:[%s1468 + $0x30] sm:$0xff]
        %v3941 = vld [vmem:[%s1468 + $0x38] sm:$0xff]
        %v3942 = vsel %vm1884, %v3909, 0.0
        %3943 = vadd.xlane.f32.xlu0 %v3942
        %v3944 = vpop.xlane.xlu0 %3943
        %v3945 = vsel %vm1884, %v3910, 0.0
        %3946 = vadd.xlane.f32.xlu0 %v3945
        %v3947 = vpop.xlane.xlu0 %3946
        %v3948 = vsel %vm1884, %v3911, 0.0
        %3949 = vadd.xlane.f32.xlu0 %v3948
        %v3950 = vpop.xlane.xlu0 %3949
        %v3951 = vsel %vm1884, %v3912, 0.0
        %3952 = vadd.xlane.f32.xlu0 %v3951
        %v3953 = vpop.xlane.xlu0 %3952
        %v3954 = vmul.f32 %v3944, %v1903
        %v3955 = vmul.f32 %v3947, %v1903
        %v3956 = vmul.f32 %v3950, %v1903
        %v3957 = vmul.f32 %v3953, %v1903
        %v3958 = vsub.f32 %v3909, %v3954
        %v3959 = vsub.f32 %v3910, %v3955
        %v3960 = vsub.f32 %v3911, %v3956
        %v3961 = vsub.f32 %v3912, %v3957
        %v3962 = vmul.f32 %v3958, %v3958
        %v3963 = vmul.f32 %v3959, %v3959
        %v3964 = vmul.f32 %v3960, %v3960
        %v3965 = vmul.f32 %v3961, %v3961
        %v3966 = vsel %vm1884, %v3962, 0.0
        %3967 = vadd.xlane.f32.xlu0 %v3966
        %v3968 = vpop.xlane.xlu0 %3967
        %v3969 = vsel %vm1884, %v3963, 0.0
        %3970 = vadd.xlane.f32.xlu0 %v3969
        %v3971 = vpop.xlane.xlu0 %3970
        %v3972 = vsel %vm1884, %v3964, 0.0
        %3973 = vadd.xlane.f32.xlu0 %v3972
        %v3974 = vpop.xlane.xlu0 %3973
        %v3975 = vsel %vm1884, %v3965, 0.0
        %3976 = vadd.xlane.f32.xlu0 %v3975
        %v3977 = vpop.xlane.xlu0 %3976
        %v3978 = vmul.f32 %v3968, %v1903
        %v3979 = vmul.f32 %v3971, %v1903
        %v3980 = vmul.f32 %v3974, %v1903
        %v3981 = vmul.f32 %v3977, %v1903
        %v3982 = vadd.f32 %v3978, 1e-05
        %v3983 = vadd.f32 %v3979, 1e-05
        %v3984 = vadd.f32 %v3980, 1e-05
        %v3985 = vadd.f32 %v3981, 1e-05
        %v3986 = vrsqrt.pop %v3982
        %v3987 = vmul.f32 %v3986, %v3982
        %v3988 = vmul.f32 %v3987, %v3986
        %v3989 = vmul.f32 0.5, %v3988
        %v3990 = vsub.f32 1.5, %v3989
        %v3991 = vmul.f32 %v3986, %v3990
        %vm3992 = vweird.f32 %v3982
        %vm3993 = vweird.f32 %v3986
        %vm3994 = vmor %vm3992, %vm3993
        %v3995 = vsel %vm3994, %v3986, %v3991
        %v3996 = vrsqrt.pop %v3983
        %v3997 = vmul.f32 %v3996, %v3983
        %v3998 = vmul.f32 %v3997, %v3996
        %v3999 = vmul.f32 0.5, %v3998
        %v4000 = vsub.f32 1.5, %v3999
        %v4001 = vmul.f32 %v3996, %v4000
        %vm4002 = vweird.f32 %v3983
        %vm4003 = vweird.f32 %v3996
        %vm4004 = vmor %vm4002, %vm4003
        %v4005 = vsel %vm4004, %v3996, %v4001
        %v4006 = vrsqrt.pop %v3984
        %v4007 = vmul.f32 %v4006, %v3984
        %v4008 = vmul.f32 %v4007, %v4006
        %v4009 = vmul.f32 0.5, %v4008
        %v4010 = vsub.f32 1.5, %v4009
        %v4011 = vmul.f32 %v4006, %v4010
        %vm4012 = vweird.f32 %v3984
        %vm4013 = vweird.f32 %v4006
        %vm4014 = vmor %vm4012, %vm4013
        %v4015 = vsel %vm4014, %v4006, %v4011
        %v4016 = vrsqrt.pop %v3985
        %v4017 = vmul.f32 %v4016, %v3985
        %v4018 = vmul.f32 %v4017, %v4016
        %v4019 = vmul.f32 0.5, %v4018
        %v4020 = vsub.f32 1.5, %v4019
        %v4021 = vmul.f32 %v4016, %v4020
        %vm4022 = vweird.f32 %v3985
        %vm4023 = vweird.f32 %v4016
        %vm4024 = vmor %vm4022, %vm4023
        %v4025 = vsel %vm4024, %v4016, %v4021
        %v4026 = vmul.f32 %v3958, %v3995
        %v4027 = vmul.f32 %v3959, %v4005
        %v4028 = vmul.f32 %v3960, %v4015
        %v4029 = vmul.f32 %v3961, %v4025
        %v4031 = vperm.slane %v3913, 0
        %v4033 = vmul.f32 %v4026, %v4031
        %v4034 = vmul.f32 %v4027, %v4031
        %v4035 = vmul.f32 %v4028, %v4031
        %v4036 = vmul.f32 %v4029, %v4031
        %v4038 = vperm.slane %v3914, 0
        %v4040 = vadd.f32 %v4033, %v4038
        %v4041 = vadd.f32 %v4034, %v4038
        %v4042 = vadd.f32 %v4035, %v4038
        %v4043 = vadd.f32 %v4036, %v4038
        %v4044 = vpack.c.bf16 %v4041, %v4040
        %v4045 = vpack.c.bf16 %v4043, %v4042
        %v4046 = vpack.c.bf16 %v3916, %v3915
        %v4047 = vpack.c.bf16 %v3918, %v3917
        %v4048 = vpack.c.bf16 %v3920, %v3919
        %v4049 = vpack.c.bf16 %v3922, %v3921
        %v4051 = vsel %vm1884, %v4044, 0
        %v4054 = vsel %vm1884, %v4045, 0
        %4056 = vmatpush.bf16.msra.mxu0 0
        %4057 = vmatpush.bf16.msra.mxu0 0
        %4058 = vmatpush.bf16.msra.mxu0 0
        %4059 = vmatpush.bf16.msra.mxu0 0
        %4060 = vmatpush.bf16.msra.mxu0 %v4049
        %4061 = vmatpush.bf16.msra.mxu0 %v4048
        %4062 = vmatpush.bf16.msra.mxu0 %v4047
        %4063 = vmatpush.bf16.msra.mxu0 %v4046
        %4064 = vmatmul.bf16.gmra.mxu0 %v4051
        %v4065 = vpop.f32.mrf.mxu0
        %v4066 = vadd.f32 0.0, %v4065
        %v4067 = vpop.f32.mrf.mxu0
        %v4068 = vadd.f32 0.0, %v4067
        %4069 = vmatmul.bf16.gmra.mxu0 %v4054
        %v4070 = vpop.f32.mrf.mxu0
        %v4071 = vadd.f32 0.0, %v4070
        %v4072 = vpop.f32.mrf.mxu0
        %v4073 = vadd.f32 0.0, %v4072
        %4074 = vdwg.mxu0
        %v4075 = vpack.c.bf16 %v3924, %v3923
        %v4076 = vpack.c.bf16 %v3926, %v3925
        %v4077 = vpack.c.bf16 %v3928, %v3927
        %v4078 = vpack.c.bf16 %v3930, %v3929
        %4079 = vmatpush.bf16.msra.mxu0 0
        %4080 = vmatpush.bf16.msra.mxu0 0
        %4081 = vmatpush.bf16.msra.mxu0 0
        %4082 = vmatpush.bf16.msra.mxu0 0
        %4083 = vmatpush.bf16.msra.mxu0 %v4078
        %4084 = vmatpush.bf16.msra.mxu0 %v4077
        %4085 = vmatpush.bf16.msra.mxu0 %v4076
        %4086 = vmatpush.bf16.msra.mxu0 %v4075
        %4087 = vmatmul.bf16.gmra.mxu0 %v4051
        %v4088 = vpop.f32.mrf.mxu0
        %v4089 = vadd.f32 0.0, %v4088
        %v4090 = vpop.f32.mrf.mxu0
        %v4091 = vadd.f32 0.0, %v4090
        %4092 = vmatmul.bf16.gmra.mxu0 %v4054
        %v4093 = vpop.f32.mrf.mxu0
        %v4094 = vadd.f32 0.0, %v4093
        %v4095 = vpop.f32.mrf.mxu0
        %v4096 = vadd.f32 0.0, %v4095
        %4097 = vdwg.mxu0
        %v4098 = vxor.u32 %v4089, 2147483648
        %v4099 = vxor.u32 %v4091, 2147483648
        %v4100 = vxor.u32 %v4094, 2147483648
        %v4101 = vxor.u32 %v4096, 2147483648
        %v4102 = vmul.f32 %v4098, 1.442695
        %v4103 = vpow.pop %v4102
        %v4104 = vmul.f32 %v4099, 1.442695
        %v4105 = vpow.pop %v4104
        %v4106 = vmul.f32 %v4100, 1.442695
        %v4107 = vpow.pop %v4106
        %v4108 = vmul.f32 %v4101, 1.442695
        %v4109 = vpow.pop %v4108
        %v4110 = vadd.f32 %v4103, 1.0
        %v4111 = vadd.f32 %v4105, 1.0
        %v4112 = vadd.f32 %v4107, 1.0
        %v4113 = vadd.f32 %v4109, 1.0
        %v4114 = vrcp.pop %v4110
        %v4115 = vmul.f32 %v4110, %v4114
        %v4116 = vsub.f32 1.0, %v4115
        %v4117 = vmul.f32 %v4114, %v4116
        %v4118 = vadd.f32 %v4114, %v4117
        %vm4119 = vweird.f32 %v4110
        %vm4120 = vweird.f32 %v4114
        %vm4121 = vmor %vm4119, %vm4120
        %v4122 = vsel %vm4121, %v4114, %v4118
        %v4123 = vand.u32 2147483647, %v4110
        %vm4124 = vcmp.eq.f32.partialorder %v4123, 8.507059e+37
        %v4125 = vand.u32 %v4110, 2147483648
        %v4126 = vor.u32 1.1754944e-38, %v4125
        %v4127 = vsel %vm4124, %v4126, %v4122
        %v4128 = vmul.f32 1.0, %v4127
        %v4129 = vrcp.pop %v4111
        %v4130 = vmul.f32 %v4111, %v4129
        %v4131 = vsub.f32 1.0, %v4130
        %v4132 = vmul.f32 %v4129, %v4131
        %v4133 = vadd.f32 %v4129, %v4132
        %vm4134 = vweird.f32 %v4111
        %vm4135 = vweird.f32 %v4129
        %vm4136 = vmor %vm4134, %vm4135
        %v4137 = vsel %vm4136, %v4129, %v4133
        %v4138 = vand.u32 2147483647, %v4111
        %vm4139 = vcmp.eq.f32.partialorder %v4138, 8.507059e+37
        %v4140 = vand.u32 %v4111, 2147483648
        %v4141 = vor.u32 1.1754944e-38, %v4140
        %v4142 = vsel %vm4139, %v4141, %v4137
        %v4143 = vmul.f32 1.0, %v4142
        %v4144 = vrcp.pop %v4112
        %v4145 = vmul.f32 %v4112, %v4144
        %v4146 = vsub.f32 1.0, %v4145
        %v4147 = vmul.f32 %v4144, %v4146
        %v4148 = vadd.f32 %v4144, %v4147
        %vm4149 = vweird.f32 %v4112
        %vm4150 = vweird.f32 %v4144
        %vm4151 = vmor %vm4149, %vm4150
        %v4152 = vsel %vm4151, %v4144, %v4148
        %v4153 = vand.u32 2147483647, %v4112
        %vm4154 = vcmp.eq.f32.partialorder %v4153, 8.507059e+37
        %v4155 = vand.u32 %v4112, 2147483648
        %v4156 = vor.u32 1.1754944e-38, %v4155
        %v4157 = vsel %vm4154, %v4156, %v4152
        %v4158 = vmul.f32 1.0, %v4157
        %v4159 = vrcp.pop %v4113
        %v4160 = vmul.f32 %v4113, %v4159
        %v4161 = vsub.f32 1.0, %v4160
        %v4162 = vmul.f32 %v4159, %v4161
        %v4163 = vadd.f32 %v4159, %v4162
        %vm4164 = vweird.f32 %v4113
        %vm4165 = vweird.f32 %v4159
        %vm4166 = vmor %vm4164, %vm4165
        %v4167 = vsel %vm4166, %v4159, %v4163
        %v4168 = vand.u32 2147483647, %v4113
        %vm4169 = vcmp.eq.f32.partialorder %v4168, 8.507059e+37
        %v4170 = vand.u32 %v4113, 2147483648
        %v4171 = vor.u32 1.1754944e-38, %v4170
        %v4172 = vsel %vm4169, %v4171, %v4167
        %v4173 = vmul.f32 1.0, %v4172
        %v4174 = vmul.f32 %v4066, %v4128
        %v4175 = vmul.f32 %v4068, %v4143
        %v4176 = vmul.f32 %v4071, %v4158
        %v4177 = vmul.f32 %v4073, %v4173
        %v4178 = vlaneseq
        %v4179 = vshrl.u32 %v4178, 7
        %v4180 = vadd.s32 %v4179, 8
        %v4181 = vrot.slane %v4174, 5
        %v4182 = vrot.slane %v4175, 5
        %v4183 = vrot.slane %v4176, 5
        %v4184 = vrot.slane %v4177, 5
        %vm4185 = vcmp.lt.s32.totalorder %v4179, 3
        %v4186 = vsel %vm4185, %v4183, %v4184
        %v4187 = vsel %vm4185, %v4182, %v4183
        %v4188 = vsel %vm4185, %v4181, %v4182
        %v4189 = vsel %vm4185, %v4184, %v4181
        %v4190 = vadd.s32 %v4179, 4294967293
        %v4191 = vadd.s32 %v4180, 4294967293
        %vm4192 = vcmp.ge.s32.totalorder %v4190, 0
        %vm4193 = vcmp.ge.s32.totalorder %v4191, 0
        %vm4194 = vcmp.le.s32.totalorder %v4190, 15
        %vm4195 = vcmp.le.s32.totalorder %v4191, 15
        %vm4196 = vmand %vm4192, %vm4194
        %vm4197 = vmand %vm4193, %vm4195
        %v4198 = vsel %vm4196, 1, 0
        %v4199 = vsel %vm4197, 1, 0
        %vm4200 = vcmp.eq.s32.totalorder %v4198, 1
        %vm4201 = vcmp.eq.s32.totalorder %v4199, 1
        %v4202 = vsel %vm4200, %v4189, 0.0
        %v4203 = vsel %vm4201, %v4188, 0.0
        %v4204 = vsel %vm4200, %v4187, 0.0
        %v4205 = vsel %vm4201, %v4186, 0.0
        %v4206 = vperm.slane %v3931, 0
        %v4207 = vmul.f32 %v4202, %v4206
        %v4208 = vmul.f32 %v4203, %v4206
        %v4209 = vmul.f32 %v4204, %v4206
        %v4210 = vmul.f32 %v4205, %v4206
        %v4211 = vadd.f32 %v4207, 0.0
        %v4212 = vadd.f32 %v4208, 0.0
        %v4213 = vadd.f32 %v4209, 0.0
        %v4214 = vadd.f32 %v4210, 0.0
        %v4215 = vrot.slane %v4174, 6
        %v4216 = vrot.slane %v4175, 6
        %v4217 = vrot.slane %v4176, 6
        %v4218 = vrot.slane %v4177, 6
        %vm4219 = vcmp.lt.s32.totalorder %v4179, 2
        %v4220 = vsel %vm4219, %v4217, %v4218
        %v4221 = vsel %vm4219, %v4216, %v4217
        %v4222 = vsel %vm4219, %v4215, %v4216
        %v4223 = vsel %vm4219, %v4218, %v4215
        %v4224 = vadd.s32 %v4179, 4294967294
        %v4225 = vadd.s32 %v4180, 4294967294
        %vm4226 = vcmp.ge.s32.totalorder %v4224, 0
        %vm4227 = vcmp.ge.s32.totalorder %v4225, 0
        %vm4228 = vcmp.le.s32.totalorder %v4224, 15
        %vm4229 = vcmp.le.s32.totalorder %v4225, 15
        %vm4230 = vmand %vm4226, %vm4228
        %vm4231 = vmand %vm4227, %vm4229
        %v4232 = vsel %vm4230, 1, 0
        %v4233 = vsel %vm4231, 1, 0
        %vm4234 = vcmp.eq.s32.totalorder %v4232, 1
        %vm4235 = vcmp.eq.s32.totalorder %v4233, 1
        %v4236 = vsel %vm4234, %v4223, 0.0
        %v4237 = vsel %vm4235, %v4222, 0.0
        %v4238 = vsel %vm4234, %v4221, 0.0
        %v4239 = vsel %vm4235, %v4220, 0.0
        %v4240 = vperm.slane %v3931, 1
        %v4241 = vmul.f32 %v4236, %v4240
        %v4242 = vmul.f32 %v4237, %v4240
        %v4243 = vmul.f32 %v4238, %v4240
        %v4244 = vmul.f32 %v4239, %v4240
        %v4245 = vadd.f32 %v4211, %v4241
        %v4246 = vadd.f32 %v4212, %v4242
        %v4247 = vadd.f32 %v4213, %v4243
        %v4248 = vadd.f32 %v4214, %v4244
        %v4249 = vrot.slane %v4174, 7
        %v4250 = vrot.slane %v4175, 7
        %v4251 = vrot.slane %v4176, 7
        %v4252 = vrot.slane %v4177, 7
        %vm4253 = vcmp.lt.s32.totalorder %v4179, 1
        %v4254 = vsel %vm4253, %v4251, %v4252
        %v4255 = vsel %vm4253, %v4250, %v4251
        %v4256 = vsel %vm4253, %v4249, %v4250
        %v4257 = vsel %vm4253, %v4252, %v4249
        %v4258 = vadd.s32 %v4179, 4294967295
        %v4259 = vadd.s32 %v4180, 4294967295
        %vm4260 = vcmp.ge.s32.totalorder %v4258, 0
        %vm4261 = vcmp.ge.s32.totalorder %v4259, 0
        %vm4262 = vcmp.le.s32.totalorder %v4258, 15
        %vm4263 = vcmp.le.s32.totalorder %v4259, 15
        %vm4264 = vmand %vm4260, %vm4262
        %vm4265 = vmand %vm4261, %vm4263
        %v4266 = vsel %vm4264, 1, 0
        %v4267 = vsel %vm4265, 1, 0
        %vm4268 = vcmp.eq.s32.totalorder %v4266, 1
        %vm4269 = vcmp.eq.s32.totalorder %v4267, 1
        %v4270 = vsel %vm4268, %v4257, 0.0
        %v4271 = vsel %vm4269, %v4256, 0.0
        %v4272 = vsel %vm4268, %v4255, 0.0
        %v4273 = vsel %vm4269, %v4254, 0.0
        %v4274 = vperm.slane %v3931, 2
        %v4275 = vmul.f32 %v4270, %v4274
        %v4276 = vmul.f32 %v4271, %v4274
        %v4277 = vmul.f32 %v4272, %v4274
        %v4278 = vmul.f32 %v4273, %v4274
        %v4279 = vadd.f32 %v4245, %v4275
        %v4280 = vadd.f32 %v4246, %v4276
        %v4281 = vadd.f32 %v4247, %v4277
        %v4282 = vadd.f32 %v4248, %v4278
        %v4283 = vperm.slane %v3931, 3
        %v4284 = vmul.f32 %v4174, %v4283
        %v4285 = vmul.f32 %v4175, %v4283
        %v4286 = vmul.f32 %v4176, %v4283
        %v4287 = vmul.f32 %v4177, %v4283
        %v4288 = vadd.f32 %v4279, %v4284
        %v4289 = vadd.f32 %v4280, %v4285
        %v4290 = vadd.f32 %v4281, %v4286
        %v4291 = vadd.f32 %v4282, %v4287
        %v4292 = vrot.slane %v4174, 1
        %v4293 = vrot.slane %v4175, 1
        %v4294 = vrot.slane %v4176, 1
        %v4295 = vrot.slane %v4177, 1
        %vm4296 = vcmp.lt.s32.totalorder %v4179, 7
        %v4297 = vsel %vm4296, %v4294, %v4295
        %v4298 = vsel %vm4296, %v4293, %v4294
        %v4299 = vsel %vm4296, %v4292, %v4293
        %v4300 = vsel %vm4296, %v4295, %v4292
        %v4301 = vadd.s32 %v4179, 1
        %v4302 = vadd.s32 %v4180, 1
        %vm4303 = vcmp.ge.s32.totalorder %v4301, 0
        %vm4304 = vcmp.ge.s32.totalorder %v4302, 0
        %vm4305 = vcmp.le.s32.totalorder %v4301, 15
        %vm4306 = vcmp.le.s32.totalorder %v4302, 15
        %vm4307 = vmand %vm4303, %vm4305
        %vm4308 = vmand %vm4304, %vm4306
        %v4309 = vsel %vm4307, 1, 0
        %v4310 = vsel %vm4308, 1, 0
        %vm4311 = vcmp.eq.s32.totalorder %v4309, 1
        %vm4312 = vcmp.eq.s32.totalorder %v4310, 1
        %v4313 = vsel %vm4311, %v4299, 0.0
        %v4314 = vsel %vm4312, %v4298, 0.0
        %v4315 = vsel %vm4311, %v4297, 0.0
        %v4316 = vsel %vm4312, %v4300, 0.0
        %v4317 = vperm.slane %v3931, 4
        %v4318 = vmul.f32 %v4313, %v4317
        %v4319 = vmul.f32 %v4314, %v4317
        %v4320 = vmul.f32 %v4315, %v4317
        %v4321 = vmul.f32 %v4316, %v4317
        %v4322 = vadd.f32 %v4288, %v4318
        %v4323 = vadd.f32 %v4289, %v4319
        %v4324 = vadd.f32 %v4290, %v4320
        %v4325 = vadd.f32 %v4291, %v4321
        %v4326 = vrot.slane %v4174, 2
        %v4327 = vrot.slane %v4175, 2
        %v4328 = vrot.slane %v4176, 2
        %v4329 = vrot.slane %v4177, 2
        %vm4330 = vcmp.lt.s32.totalorder %v4179, 6
        %v4331 = vsel %vm4330, %v4328, %v4329
        %v4332 = vsel %vm4330, %v4327, %v4328
        %v4333 = vsel %vm4330, %v4326, %v4327
        %v4334 = vsel %vm4330, %v4329, %v4326
        %v4335 = vadd.s32 %v4179, 2
        %v4336 = vadd.s32 %v4180, 2
        %vm4337 = vcmp.ge.s32.totalorder %v4335, 0
        %vm4338 = vcmp.ge.s32.totalorder %v4336, 0
        %vm4339 = vcmp.le.s32.totalorder %v4335, 15
        %vm4340 = vcmp.le.s32.totalorder %v4336, 15
        %vm4341 = vmand %vm4337, %vm4339
        %vm4342 = vmand %vm4338, %vm4340
        %v4343 = vsel %vm4341, 1, 0
        %v4344 = vsel %vm4342, 1, 0
        %vm4345 = vcmp.eq.s32.totalorder %v4343, 1
        %vm4346 = vcmp.eq.s32.totalorder %v4344, 1
        %v4347 = vsel %vm4345, %v4333, 0.0
        %v4348 = vsel %vm4346, %v4332, 0.0
        %v4349 = vsel %vm4345, %v4331, 0.0
        %v4350 = vsel %vm4346, %v4334, 0.0
        %v4351 = vperm.slane %v3931, 5
        %v4352 = vmul.f32 %v4347, %v4351
        %v4353 = vmul.f32 %v4348, %v4351
        %v4354 = vmul.f32 %v4349, %v4351
        %v4355 = vmul.f32 %v4350, %v4351
        %v4356 = vadd.f32 %v4322, %v4352
        %v4357 = vadd.f32 %v4323, %v4353
        %v4358 = vadd.f32 %v4324, %v4354
        %v4359 = vadd.f32 %v4325, %v4355
        %v4360 = vrot.slane %v4174, 3
        %v4361 = vrot.slane %v4175, 3
        %v4362 = vrot.slane %v4176, 3
        %v4363 = vrot.slane %v4177, 3
        %vm4364 = vcmp.lt.s32.totalorder %v4179, 5
        %v4365 = vsel %vm4364, %v4362, %v4363
        %v4366 = vsel %vm4364, %v4361, %v4362
        %v4367 = vsel %vm4364, %v4360, %v4361
        %v4368 = vsel %vm4364, %v4363, %v4360
        %v4369 = vadd.s32 %v4179, 3
        %v4370 = vadd.s32 %v4180, 3
        %vm4371 = vcmp.ge.s32.totalorder %v4369, 0
        %vm4372 = vcmp.ge.s32.totalorder %v4370, 0
        %vm4373 = vcmp.le.s32.totalorder %v4369, 15
        %vm4374 = vcmp.le.s32.totalorder %v4370, 15
        %vm4375 = vmand %vm4371, %vm4373
        %vm4376 = vmand %vm4372, %vm4374
        %v4377 = vsel %vm4375, 1, 0
        %v4378 = vsel %vm4376, 1, 0
        %vm4379 = vcmp.eq.s32.totalorder %v4377, 1
        %vm4380 = vcmp.eq.s32.totalorder %v4378, 1
        %v4381 = vsel %vm4379, %v4367, 0.0
        %v4382 = vsel %vm4380, %v4366, 0.0
        %v4383 = vsel %vm4379, %v4365, 0.0
        %v4384 = vsel %vm4380, %v4368, 0.0
        %v4385 = vperm.slane %v3931, 6
        %v4386 = vmul.f32 %v4381, %v4385
        %v4387 = vmul.f32 %v4382, %v4385
        %v4388 = vmul.f32 %v4383, %v4385
        %v4389 = vmul.f32 %v4384, %v4385
        %v4390 = vadd.f32 %v4356, %v4386
        %v4391 = vadd.f32 %v4357, %v4387
        %v4392 = vadd.f32 %v4358, %v4388
        %v4393 = vadd.f32 %v4359, %v4389
        %v4395 = vperm.slane %v3932, 0
        %v4397 = vmul.f32 %v4390, %v4395
        %v4398 = vmul.f32 %v4391, %v4395
        %v4399 = vmul.f32 %v4392, %v4395
        %v4400 = vmul.f32 %v4393, %v4395
        %v4402 = vperm.slane %v3933, 0
        %v4404 = vadd.f32 %v4397, %v4402
        %v4405 = vadd.f32 %v4398, %v4402
        %v4406 = vadd.f32 %v4399, %v4402
        %v4407 = vadd.f32 %v4400, %v4402
        %v4408 = vxor.u32 %v4404, 2147483648
        %v4409 = vxor.u32 %v4405, 2147483648
        %v4410 = vxor.u32 %v4406, 2147483648
        %v4411 = vxor.u32 %v4407, 2147483648
        %v4412 = vmul.f32 %v4408, 1.442695
        %v4413 = vpow.pop %v4412
        %v4414 = vmul.f32 %v4409, 1.442695
        %v4415 = vpow.pop %v4414
        %v4416 = vmul.f32 %v4410, 1.442695
        %v4417 = vpow.pop %v4416
        %v4418 = vmul.f32 %v4411, 1.442695
        %v4419 = vpow.pop %v4418
        %v4420 = vadd.f32 %v4413, 1.0
        %v4421 = vadd.f32 %v4415, 1.0
        %v4422 = vadd.f32 %v4417, 1.0
        %v4423 = vadd.f32 %v4419, 1.0
        %v4424 = vrcp.pop %v4420
        %v4425 = vmul.f32 %v4420, %v4424
        %v4426 = vsub.f32 1.0, %v4425
        %v4427 = vmul.f32 %v4424, %v4426
        %v4428 = vadd.f32 %v4424, %v4427
        %vm4429 = vweird.f32 %v4420
        %vm4430 = vweird.f32 %v4424
        %vm4431 = vmor %vm4429, %vm4430
        %v4432 = vsel %vm4431, %v4424, %v4428
        %v4433 = vand.u32 2147483647, %v4420
        %vm4434 = vcmp.eq.f32.partialorder %v4433, 8.507059e+37
        %v4435 = vand.u32 %v4420, 2147483648
        %v4436 = vor.u32 1.1754944e-38, %v4435
        %v4437 = vsel %vm4434, %v4436, %v4432
        %v4438 = vmul.f32 1.0, %v4437
        %v4439 = vrcp.pop %v4421
        %v4440 = vmul.f32 %v4421, %v4439
        %v4441 = vsub.f32 1.0, %v4440
        %v4442 = vmul.f32 %v4439, %v4441
        %v4443 = vadd.f32 %v4439, %v4442
        %vm4444 = vweird.f32 %v4421
        %vm4445 = vweird.f32 %v4439
        %vm4446 = vmor %vm4444, %vm4445
        %v4447 = vsel %vm4446, %v4439, %v4443
        %v4448 = vand.u32 2147483647, %v4421
        %vm4449 = vcmp.eq.f32.partialorder %v4448, 8.507059e+37
        %v4450 = vand.u32 %v4421, 2147483648
        %v4451 = vor.u32 1.1754944e-38, %v4450
        %v4452 = vsel %vm4449, %v4451, %v4447
        %v4453 = vmul.f32 1.0, %v4452
        %v4454 = vrcp.pop %v4422
        %v4455 = vmul.f32 %v4422, %v4454
        %v4456 = vsub.f32 1.0, %v4455
        %v4457 = vmul.f32 %v4454, %v4456
        %v4458 = vadd.f32 %v4454, %v4457
        %vm4459 = vweird.f32 %v4422
        %vm4460 = vweird.f32 %v4454
        %vm4461 = vmor %vm4459, %vm4460
        %v4462 = vsel %vm4461, %v4454, %v4458
        %v4463 = vand.u32 2147483647, %v4422
        %vm4464 = vcmp.eq.f32.partialorder %v4463, 8.507059e+37
        %v4465 = vand.u32 %v4422, 2147483648
        %v4466 = vor.u32 1.1754944e-38, %v4465
        %v4467 = vsel %vm4464, %v4466, %v4462
        %v4468 = vmul.f32 1.0, %v4467
        %v4469 = vrcp.pop %v4423
        %v4470 = vmul.f32 %v4423, %v4469
        %v4471 = vsub.f32 1.0, %v4470
        %v4472 = vmul.f32 %v4469, %v4471
        %v4473 = vadd.f32 %v4469, %v4472
        %vm4474 = vweird.f32 %v4423
        %vm4475 = vweird.f32 %v4469
        %vm4476 = vmor %vm4474, %vm4475
        %v4477 = vsel %vm4476, %v4469, %v4473
        %v4478 = vand.u32 2147483647, %v4423
        %vm4479 = vcmp.eq.f32.partialorder %v4478, 8.507059e+37
        %v4480 = vand.u32 %v4423, 2147483648
        %v4481 = vor.u32 1.1754944e-38, %v4480
        %v4482 = vsel %vm4479, %v4481, %v4477
        %v4483 = vmul.f32 1.0, %v4482
        %v4484 = vmul.f32 %v4404, %v4438
        %v4485 = vmul.f32 %v4405, %v4453
        %v4486 = vmul.f32 %v4406, %v4468
        %v4487 = vmul.f32 %v4407, %v4483
        %v4488 = vpack.c.bf16 %v4485, %v4484
        %v4489 = vpack.c.bf16 %v4487, %v4486
        %v4490 = vpack.c.bf16 %v3935, %v3934
        %v4491 = vpack.c.bf16 %v3937, %v3936
        %v4492 = vpack.c.bf16 %v3939, %v3938
        %v4493 = vpack.c.bf16 %v3941, %v3940
        %v4495 = vsel %vm1884, %v4488, 0
        %v4498 = vsel %vm1884, %v4489, 0
        %4500 = vmatpush.bf16.msra.mxu0 0
        %4501 = vmatpush.bf16.msra.mxu0 0
        %4502 = vmatpush.bf16.msra.mxu0 0
        %4503 = vmatpush.bf16.msra.mxu0 0
        %4504 = vmatpush.bf16.msra.mxu0 %v4493
        %4505 = vmatpush.bf16.msra.mxu0 %v4492
        %4506 = vmatpush.bf16.msra.mxu0 %v4491
        %4507 = vmatpush.bf16.msra.mxu0 %v4490
        %4508 = vmatmul.bf16.gmra.mxu0 %v4495
        %v4509 = vpop.f32.mrf.mxu0
        %v4510 = vadd.f32 0.0, %v4509
        %v4511 = vpop.f32.mrf.mxu0
        %v4512 = vadd.f32 0.0, %v4511
        %4513 = vmatmul.bf16.gmra.mxu0 %v4498
        %v4514 = vpop.f32.mrf.mxu0
        %v4515 = vadd.f32 0.0, %v4514
        %v4516 = vpop.f32.mrf.mxu0
        %v4517 = vadd.f32 0.0, %v4516
        %4518 = vdwg.mxu0
        %v4519 = vadd.f32 %v3909, %v4510
        %v4520 = vadd.f32 %v3910, %v4512
        %v4521 = vadd.f32 %v3911, %v4515
        %v4522 = vadd.f32 %v3912, %v4517
        %v4523 = vld [vmem:[%s1759] sm:$0x1]
        %v4524 = vld [vmem:[%s1762] sm:$0x1]
        %v4525 = vld [vmem:[%s1478] sm:$0xff]
        %v4526 = vld [vmem:[%s1478 + $0x8] sm:$0xff]
        %v4527 = vld [vmem:[%s1478 + $0x10] sm:$0xff]
        %v4528 = vld [vmem:[%s1478 + $0x18] sm:$0xff]
        %v4529 = vld [vmem:[%s1478 + $0x20] sm:$0xff]
        %v4530 = vld [vmem:[%s1478 + $0x28] sm:$0xff]
        %v4531 = vld [vmem:[%s1478 + $0x30] sm:$0xff]
        %v4532 = vld [vmem:[%s1478 + $0x38] sm:$0xff]
        %v4533 = vld [vmem:[%s1765] sm:$0x1]
        %v4534 = vld [vmem:[%s1770] sm:$0xff]
        %v4535 = vld [vmem:[%s1770 + $0x8] sm:$0xff]
        %v4536 = vld [vmem:[%s1770 + $0x10] sm:$0xff]
        %v4537 = vld [vmem:[%s1770 + $0x18] sm:$0xff]
        %v4538 = vld [vmem:[%s1770 + $0x20] sm:$0xff]
        %v4539 = vld [vmem:[%s1770 + $0x28] sm:$0xff]
        %v4540 = vld [vmem:[%s1770 + $0x30] sm:$0xff]
        %v4541 = vld [vmem:[%s1770 + $0x38] sm:$0xff]
        %v4542 = vld [vmem:[%s1770 + $0x40] sm:$0xff]
        %v4543 = vld [vmem:[%s1770 + $0x48] sm:$0xff]
        %v4544 = vld [vmem:[%s1770 + $0x50] sm:$0xff]
        %v4545 = vld [vmem:[%s1770 + $0x58] sm:$0xff]
        %v4546 = vld [vmem:[%s1770 + $0x60] sm:$0xff]
        %v4547 = vld [vmem:[%s1770 + $0x68] sm:$0xff]
        %v4548 = vld [vmem:[%s1770 + $0x70] sm:$0xff]
        %v4549 = vld [vmem:[%s1770 + $0x78] sm:$0xff]
        %v4550 = vld [vmem:[%s1773] sm:$0x1]
        %v4551 = vsel %vm1884, %v4519, 0.0
        %4552 = vadd.xlane.f32.xlu0 %v4551
        %v4553 = vpop.xlane.xlu0 %4552
        %v4554 = vsel %vm1884, %v4520, 0.0
        %4555 = vadd.xlane.f32.xlu0 %v4554
        %v4556 = vpop.xlane.xlu0 %4555
        %v4557 = vsel %vm1884, %v4521, 0.0
        %4558 = vadd.xlane.f32.xlu0 %v4557
        %v4559 = vpop.xlane.xlu0 %4558
        %v4560 = vsel %vm1884, %v4522, 0.0
        %4561 = vadd.xlane.f32.xlu0 %v4560
        %v4562 = vpop.xlane.xlu0 %4561
        %v4563 = vmul.f32 %v4553, %v1903
        %v4564 = vmul.f32 %v4556, %v1903
        %v4565 = vmul.f32 %v4559, %v1903
        %v4566 = vmul.f32 %v4562, %v1903
        %v4567 = vsub.f32 %v4519, %v4563
        %v4568 = vsub.f32 %v4520, %v4564
        %v4569 = vsub.f32 %v4521, %v4565
        %v4570 = vsub.f32 %v4522, %v4566
        %v4571 = vmul.f32 %v4567, %v4567
        %v4572 = vmul.f32 %v4568, %v4568
        %v4573 = vmul.f32 %v4569, %v4569
        %v4574 = vmul.f32 %v4570, %v4570
        %v4575 = vsel %vm1884, %v4571, 0.0
        %4576 = vadd.xlane.f32.xlu0 %v4575
        %v4577 = vpop.xlane.xlu0 %4576
        %v4578 = vsel %vm1884, %v4572, 0.0
        %4579 = vadd.xlane.f32.xlu0 %v4578
        %v4580 = vpop.xlane.xlu0 %4579
        %v4581 = vsel %vm1884, %v4573, 0.0
        %4582 = vadd.xlane.f32.xlu0 %v4581
        %v4583 = vpop.xlane.xlu0 %4582
        %v4584 = vsel %vm1884, %v4574, 0.0
        %4585 = vadd.xlane.f32.xlu0 %v4584
        %v4586 = vpop.xlane.xlu0 %4585
        %v4587 = vmul.f32 %v4577, %v1903
        %v4588 = vmul.f32 %v4580, %v1903
        %v4589 = vmul.f32 %v4583, %v1903
        %v4590 = vmul.f32 %v4586, %v1903
        %v4591 = vadd.f32 %v4587, 1e-05
        %v4592 = vadd.f32 %v4588, 1e-05
        %v4593 = vadd.f32 %v4589, 1e-05
        %v4594 = vadd.f32 %v4590, 1e-05
        %v4595 = vrsqrt.pop %v4591
        %v4596 = vmul.f32 %v4595, %v4591
        %v4597 = vmul.f32 %v4596, %v4595
        %v4598 = vmul.f32 0.5, %v4597
        %v4599 = vsub.f32 1.5, %v4598
        %v4600 = vmul.f32 %v4595, %v4599
        %vm4601 = vweird.f32 %v4591
        %vm4602 = vweird.f32 %v4595
        %vm4603 = vmor %vm4601, %vm4602
        %v4604 = vsel %vm4603, %v4595, %v4600
        %v4605 = vrsqrt.pop %v4592
        %v4606 = vmul.f32 %v4605, %v4592
        %v4607 = vmul.f32 %v4606, %v4605
        %v4608 = vmul.f32 0.5, %v4607
        %v4609 = vsub.f32 1.5, %v4608
        %v4610 = vmul.f32 %v4605, %v4609
        %vm4611 = vweird.f32 %v4592
        %vm4612 = vweird.f32 %v4605
        %vm4613 = vmor %vm4611, %vm4612
        %v4614 = vsel %vm4613, %v4605, %v4610
        %v4615 = vrsqrt.pop %v4593
        %v4616 = vmul.f32 %v4615, %v4593
        %v4617 = vmul.f32 %v4616, %v4615
        %v4618 = vmul.f32 0.5, %v4617
        %v4619 = vsub.f32 1.5, %v4618
        %v4620 = vmul.f32 %v4615, %v4619
        %vm4621 = vweird.f32 %v4593
        %vm4622 = vweird.f32 %v4615
        %vm4623 = vmor %vm4621, %vm4622
        %v4624 = vsel %vm4623, %v4615, %v4620
        %v4625 = vrsqrt.pop %v4594
        %v4626 = vmul.f32 %v4625, %v4594
        %v4627 = vmul.f32 %v4626, %v4625
        %v4628 = vmul.f32 0.5, %v4627
        %v4629 = vsub.f32 1.5, %v4628
        %v4630 = vmul.f32 %v4625, %v4629
        %vm4631 = vweird.f32 %v4594
        %vm4632 = vweird.f32 %v4625
        %vm4633 = vmor %vm4631, %vm4632
        %v4634 = vsel %vm4633, %v4625, %v4630
        %v4635 = vmul.f32 %v4567, %v4604
        %v4636 = vmul.f32 %v4568, %v4614
        %v4637 = vmul.f32 %v4569, %v4624
        %v4638 = vmul.f32 %v4570, %v4634
        %v4640 = vperm.slane %v4523, 0
        %v4642 = vmul.f32 %v4635, %v4640
        %v4643 = vmul.f32 %v4636, %v4640
        %v4644 = vmul.f32 %v4637, %v4640
        %v4645 = vmul.f32 %v4638, %v4640
        %v4647 = vperm.slane %v4524, 0
        %v4649 = vadd.f32 %v4642, %v4647
        %v4650 = vadd.f32 %v4643, %v4647
        %v4651 = vadd.f32 %v4644, %v4647
        %v4652 = vadd.f32 %v4645, %v4647
        %v4653 = vpack.c.bf16 %v4650, %v4649
        %v4654 = vpack.c.bf16 %v4652, %v4651
        %v4655 = vpack.c.bf16 %v4526, %v4525
        %v4656 = vpack.c.bf16 %v4528, %v4527
        %v4657 = vpack.c.bf16 %v4530, %v4529
        %v4658 = vpack.c.bf16 %v4532, %v4531
        %v4660 = vperm.slane %v4533, 0
        %v4663 = vsel %vm1884, %v4653, 0
        %v4666 = vsel %vm1884, %v4654, 0
        %4668 = vmatpush.bf16.msra.mxu0 0
        %4669 = vmatpush.bf16.msra.mxu0 0
        %4670 = vmatpush.bf16.msra.mxu0 0
        %4671 = vmatpush.bf16.msra.mxu0 0
        %4672 = vmatpush.bf16.msra.mxu0 %v4658
        %4673 = vmatpush.bf16.msra.mxu0 %v4657
        %4674 = vmatpush.bf16.msra.mxu0 %v4656
        %4675 = vmatpush.bf16.msra.mxu0 %v4655
        %4676 = vmatmul.bf16.gmra.mxu0 %v4663
        %v4677 = vpop.f32.mrf.mxu0
        %v4678 = vadd.f32 %v4660, %v4677
        %v4679 = vpop.f32.mrf.mxu0
        %v4680 = vadd.f32 %v4660, %v4679
        %4681 = vmatmul.bf16.gmra.mxu0 %v4666
        %v4682 = vpop.f32.mrf.mxu0
        %v4683 = vadd.f32 %v4660, %v4682
        %v4684 = vpop.f32.mrf.mxu0
        %v4685 = vadd.f32 %v4660, %v4684
        %4686 = vdwg.mxu0
        %v4687 = vxor.u32 %v4678, 2147483648
        %v4688 = vxor.u32 %v4680, 2147483648
        %v4689 = vxor.u32 %v4683, 2147483648
        %v4690 = vxor.u32 %v4685, 2147483648
        %v4691 = vmul.f32 %v4687, 1.442695
        %v4692 = vpow.pop %v4691
        %v4693 = vmul.f32 %v4688, 1.442695
        %v4694 = vpow.pop %v4693
        %v4695 = vmul.f32 %v4689, 1.442695
        %v4696 = vpow.pop %v4695
        %v4697 = vmul.f32 %v4690, 1.442695
        %v4698 = vpow.pop %v4697
        %v4699 = vadd.f32 %v4692, 1.0
        %v4700 = vadd.f32 %v4694, 1.0
        %v4701 = vadd.f32 %v4696, 1.0
        %v4702 = vadd.f32 %v4698, 1.0
        %v4703 = vrcp.pop %v4699
        %v4704 = vmul.f32 %v4699, %v4703
        %v4705 = vsub.f32 1.0, %v4704
        %v4706 = vmul.f32 %v4703, %v4705
        %v4707 = vadd.f32 %v4703, %v4706
        %vm4708 = vweird.f32 %v4699
        %vm4709 = vweird.f32 %v4703
        %vm4710 = vmor %vm4708, %vm4709
        %v4711 = vsel %vm4710, %v4703, %v4707
        %v4712 = vand.u32 2147483647, %v4699
        %vm4713 = vcmp.eq.f32.partialorder %v4712, 8.507059e+37
        %v4714 = vand.u32 %v4699, 2147483648
        %v4715 = vor.u32 1.1754944e-38, %v4714
        %v4716 = vsel %vm4713, %v4715, %v4711
        %v4717 = vmul.f32 1.0, %v4716
        %v4718 = vrcp.pop %v4700
        %v4719 = vmul.f32 %v4700, %v4718
        %v4720 = vsub.f32 1.0, %v4719
        %v4721 = vmul.f32 %v4718, %v4720
        %v4722 = vadd.f32 %v4718, %v4721
        %vm4723 = vweird.f32 %v4700
        %vm4724 = vweird.f32 %v4718
        %vm4725 = vmor %vm4723, %vm4724
        %v4726 = vsel %vm4725, %v4718, %v4722
        %v4727 = vand.u32 2147483647, %v4700
        %vm4728 = vcmp.eq.f32.partialorder %v4727, 8.507059e+37
        %v4729 = vand.u32 %v4700, 2147483648
        %v4730 = vor.u32 1.1754944e-38, %v4729
        %v4731 = vsel %vm4728, %v4730, %v4726
        %v4732 = vmul.f32 1.0, %v4731
        %v4733 = vrcp.pop %v4701
        %v4734 = vmul.f32 %v4701, %v4733
        %v4735 = vsub.f32 1.0, %v4734
        %v4736 = vmul.f32 %v4733, %v4735
        %v4737 = vadd.f32 %v4733, %v4736
        %vm4738 = vweird.f32 %v4701
        %vm4739 = vweird.f32 %v4733
        %vm4740 = vmor %vm4738, %vm4739
        %v4741 = vsel %vm4740, %v4733, %v4737
        %v4742 = vand.u32 2147483647, %v4701
        %vm4743 = vcmp.eq.f32.partialorder %v4742, 8.507059e+37
        %v4744 = vand.u32 %v4701, 2147483648
        %v4745 = vor.u32 1.1754944e-38, %v4744
        %v4746 = vsel %vm4743, %v4745, %v4741
        %v4747 = vmul.f32 1.0, %v4746
        %v4748 = vrcp.pop %v4702
        %v4749 = vmul.f32 %v4702, %v4748
        %v4750 = vsub.f32 1.0, %v4749
        %v4751 = vmul.f32 %v4748, %v4750
        %v4752 = vadd.f32 %v4748, %v4751
        %vm4753 = vweird.f32 %v4702
        %vm4754 = vweird.f32 %v4748
        %vm4755 = vmor %vm4753, %vm4754
        %v4756 = vsel %vm4755, %v4748, %v4752
        %v4757 = vand.u32 2147483647, %v4702
        %vm4758 = vcmp.eq.f32.partialorder %v4757, 8.507059e+37
        %v4759 = vand.u32 %v4702, 2147483648
        %v4760 = vor.u32 1.1754944e-38, %v4759
        %v4761 = vsel %vm4758, %v4760, %v4756
        %v4762 = vmul.f32 1.0, %v4761
        %v4763 = vmul.f32 %v4678, %v4717
        %v4764 = vmul.f32 %v4680, %v4732
        %v4765 = vmul.f32 %v4683, %v4747
        %v4766 = vmul.f32 %v4685, %v4762
        %v4767 = vpack.c.bf16 %v4764, %v4763
        %v4768 = vpack.c.bf16 %v4766, %v4765
        %v4769 = vpack.c.bf16 %v4535, %v4534
        %v4770 = vpack.c.bf16 %v4537, %v4536
        %v4771 = vpack.c.bf16 %v4539, %v4538
        %v4772 = vpack.c.bf16 %v4541, %v4540
        %v4773 = vpack.c.bf16 %v4543, %v4542
        %v4774 = vpack.c.bf16 %v4545, %v4544
        %v4775 = vpack.c.bf16 %v4547, %v4546
        %v4776 = vpack.c.bf16 %v4549, %v4548
        %v4778 = vperm.slane %v4550, 0
        %4780 = vmatpush.bf16.msra.mxu0 %v4776
        %4781 = vmatpush.bf16.msra.mxu0 %v4775
        %4782 = vmatpush.bf16.msra.mxu0 %v4774
        %4783 = vmatpush.bf16.msra.mxu0 %v4773
        %4784 = vmatpush.bf16.msra.mxu0 %v4772
        %4785 = vmatpush.bf16.msra.mxu0 %v4771
        %4786 = vmatpush.bf16.msra.mxu0 %v4770
        %4787 = vmatpush.bf16.msra.mxu0 %v4769
        %4788 = vmatmul.bf16.gmra.mxu0 %v4767
        %v4789 = vpop.f32.mrf.mxu0
        %v4790 = vadd.f32 %v4778, %v4789
        %v4791 = vpop.f32.mrf.mxu0
        %v4792 = vadd.f32 %v4778, %v4791
        %4793 = vmatmul.bf16.gmra.mxu0 %v4768
        %v4794 = vpop.f32.mrf.mxu0
        %v4795 = vadd.f32 %v4778, %v4794
        %v4796 = vpop.f32.mrf.mxu0
        %v4797 = vadd.f32 %v4778, %v4796
        %4798 = vdwg.mxu0
        %v4799 = vmul.f32 %v4790, 0.5
        %v4800 = vmul.f32 %v4792, 0.5
        %v4801 = vmul.f32 %v4795, 0.5
        %v4802 = vmul.f32 %v4797, 0.5
        %v4803 = vadd.f32 %v4519, %v4799
        %v4804 = vadd.f32 %v4520, %v4800
        %v4805 = vadd.f32 %v4521, %v4801
        %v4806 = vadd.f32 %v4522, %v4802
        %v4807 = vld [vmem:[%s1487] sm:$0x1]
        %v4808 = vld [vmem:[%s1776] sm:$0x1]
        %v4809 = vsel %vm1884, %v4803, 0.0
        %4810 = vadd.xlane.f32.xlu0 %v4809
        %v4811 = vpop.xlane.xlu0 %4810
        %v4812 = vsel %vm1884, %v4804, 0.0
        %4813 = vadd.xlane.f32.xlu0 %v4812
        %v4814 = vpop.xlane.xlu0 %4813
        %v4815 = vsel %vm1884, %v4805, 0.0
        %4816 = vadd.xlane.f32.xlu0 %v4815
        %v4817 = vpop.xlane.xlu0 %4816
        %v4818 = vsel %vm1884, %v4806, 0.0
        %4819 = vadd.xlane.f32.xlu0 %v4818
        %v4820 = vpop.xlane.xlu0 %4819
        %v4821 = vmul.f32 %v4811, %v1903
        %v4822 = vmul.f32 %v4814, %v1903
        %v4823 = vmul.f32 %v4817, %v1903
        %v4824 = vmul.f32 %v4820, %v1903
        %v4825 = vsub.f32 %v4803, %v4821
        %v4826 = vsub.f32 %v4804, %v4822
        %v4827 = vsub.f32 %v4805, %v4823
        %v4828 = vsub.f32 %v4806, %v4824
        %v4829 = vmul.f32 %v4825, %v4825
        %v4830 = vmul.f32 %v4826, %v4826
        %v4831 = vmul.f32 %v4827, %v4827
        %v4832 = vmul.f32 %v4828, %v4828
        %v4833 = vsel %vm1884, %v4829, 0.0
        %4834 = vadd.xlane.f32.xlu0 %v4833
        %v4835 = vpop.xlane.xlu0 %4834
        %v4836 = vsel %vm1884, %v4830, 0.0
        %4837 = vadd.xlane.f32.xlu0 %v4836
        %v4838 = vpop.xlane.xlu0 %4837
        %v4839 = vsel %vm1884, %v4831, 0.0
        %4840 = vadd.xlane.f32.xlu0 %v4839
        %v4841 = vpop.xlane.xlu0 %4840
        %v4842 = vsel %vm1884, %v4832, 0.0
        %4843 = vadd.xlane.f32.xlu0 %v4842
        %v4844 = vpop.xlane.xlu0 %4843
        %v4845 = vmul.f32 %v4835, %v1903
        %v4846 = vmul.f32 %v4838, %v1903
        %v4847 = vmul.f32 %v4841, %v1903
        %v4848 = vmul.f32 %v4844, %v1903
        %v4849 = vadd.f32 %v4845, 1e-05
        %v4850 = vadd.f32 %v4846, 1e-05
        %v4851 = vadd.f32 %v4847, 1e-05
        %v4852 = vadd.f32 %v4848, 1e-05
        %v4853 = vrsqrt.pop %v4849
        %v4854 = vmul.f32 %v4853, %v4849
        %v4855 = vmul.f32 %v4854, %v4853
        %v4856 = vmul.f32 0.5, %v4855
        %v4857 = vsub.f32 1.5, %v4856
        %v4858 = vmul.f32 %v4853, %v4857
        %vm4859 = vweird.f32 %v4849
        %vm4860 = vweird.f32 %v4853
        %vm4861 = vmor %vm4859, %vm4860
        %v4862 = vsel %vm4861, %v4853, %v4858
        %v4863 = vrsqrt.pop %v4850
        %v4864 = vmul.f32 %v4863, %v4850
        %v4865 = vmul.f32 %v4864, %v4863
        %v4866 = vmul.f32 0.5, %v4865
        %v4867 = vsub.f32 1.5, %v4866
        %v4868 = vmul.f32 %v4863, %v4867
        %vm4869 = vweird.f32 %v4850
        %vm4870 = vweird.f32 %v4863
        %vm4871 = vmor %vm4869, %vm4870
        %v4872 = vsel %vm4871, %v4863, %v4868
        %v4873 = vrsqrt.pop %v4851
        %v4874 = vmul.f32 %v4873, %v4851
        %v4875 = vmul.f32 %v4874, %v4873
        %v4876 = vmul.f32 0.5, %v4875
        %v4877 = vsub.f32 1.5, %v4876
        %v4878 = vmul.f32 %v4873, %v4877
        %vm4879 = vweird.f32 %v4851
        %vm4880 = vweird.f32 %v4873
        %vm4881 = vmor %vm4879, %vm4880
        %v4882 = vsel %vm4881, %v4873, %v4878
        %v4883 = vrsqrt.pop %v4852
        %v4884 = vmul.f32 %v4883, %v4852
        %v4885 = vmul.f32 %v4884, %v4883
        %v4886 = vmul.f32 0.5, %v4885
        %v4887 = vsub.f32 1.5, %v4886
        %v4888 = vmul.f32 %v4883, %v4887
        %vm4889 = vweird.f32 %v4852
        %vm4890 = vweird.f32 %v4883
        %vm4891 = vmor %vm4889, %vm4890
        %v4892 = vsel %vm4891, %v4883, %v4888
        %v4893 = vmul.f32 %v4825, %v4862
        %v4894 = vmul.f32 %v4826, %v4872
        %v4895 = vmul.f32 %v4827, %v4882
        %v4896 = vmul.f32 %v4828, %v4892
        %v4898 = vperm.slane %v4807, 0
        %v4900 = vmul.f32 %v4893, %v4898
        %v4901 = vmul.f32 %v4894, %v4898
        %v4902 = vmul.f32 %v4895, %v4898
        %v4903 = vmul.f32 %v4896, %v4898
        %v4905 = vperm.slane %v4808, 0
        %v4907 = vadd.f32 %v4900, %v4905
        %v4908 = vadd.f32 %v4901, %v4905
        %v4909 = vadd.f32 %v4902, %v4905
        %v4910 = vadd.f32 %v4903, %v4905
        %4911 = vst.msk [vmem:[#allocation2] sm:$0xff] %vm1884, %v4907
        %4912 = vst.msk [vmem:[#allocation2 + $0x8] sm:$0xff] %vm1884, %v4908
        %4913 = vst.msk [vmem:[#allocation2 + $0x10] sm:$0xff] %vm1884, %v4909
        %4914 = vst.msk [vmem:[#allocation2 + $0x18] sm:$0xff] %vm1884, %v4910
        %p4915 = scmp.eq.s32.totalorder %s99, 1
        // Predicated region
        $region213: #{tpu_custom_call.1} parent=167 // pred_check
          %p4916 = pneg %p4915
        $region214: #{tpu_custom_call.1} parent=167 // pred_check_branch
          %4918 = sbr.rel (%p4916) target = $region216
        $region215: #{tpu_custom_call.1} parent=167 // pred_region
          %4919 = vst.msk [vmem:[#allocation20] sm:$0xff] %vm1884, %v4907
          %4920 = vst.msk [vmem:[#allocation20 + $0x8] sm:$0xff] %vm1884, %v4908
          %4923 = vrot.lane.b32.xlu0 %v4909, 64
          %v4924 = vpop.permute.xlu0 %4923
          %4925 = vrot.lane.b32.xlu0 %v4910, 64
          %v4926 = vpop.permute.xlu0 %4925
          %vm4929 = vcmask 1048064
          %4930 = vst.msk [vmem:[#allocation20] sm:$0xff] %vm4929, %v4924
          %4931 = vst.msk [vmem:[#allocation20 + $0x8] sm:$0xff] %vm4929, %v4926
        $region216: #{tpu_custom_call.1} parent=167 // pred_fallthru
          _
        // Predicated region
        $region217: #{tpu_custom_call.1} parent=167 // pred_check
          %p4932 = pneg %p1044
        $region218: #{tpu_custom_call.1} parent=167 // pred_check_branch
          %4934 = sbr.rel (%p4932) target = $region220
        $region219: #{tpu_custom_call.1} parent=167 // pred_region
          %4936 = vsyncadd [#allocation5], 0
          %s4937 = sshll.u32 [#allocation20], 4
          %s4938 = int_to_ptr.vmem [resolvable:$true] %s4937
          %s4939 = sshll.u32 %s75, 4
          %s4940 = int_to_ptr.hbm [resolvable:$true] %s4939
          %4945 = dma.vmem_to_hbm [thread:$0]  %s4938, 256, %s4940, [#allocation5], 128, 128, 8
        $region220: #{tpu_custom_call.1} parent=167 // pred_fallthru
          _
        // Predicated region
        $region221: #{tpu_custom_call.1} parent=167 // pred_check
          %p4946 = pneg %p1044
        $region222: #{tpu_custom_call.1} parent=167 // pred_check_branch
          %4948 = sbr.rel (%p4946) target = $region224
        $region223: #{tpu_custom_call.1} parent=167 // pred_region
          %4950 = dma.done [#allocation5], 256
        $region224: #{tpu_custom_call.1} parent=167 // pred_fallthru
          _
      $region168: #{tpu_custom_call.1} parent=5 // pred_fallthru
        _
      %p4951 = scmp.le.s32.totalorder 2, %s94
      // Predicated region
      $region225: #{tpu_custom_call.1} parent=5 // pred_check
        %p4952 = pneg %p4951
      $region226: #{tpu_custom_call.1} parent=5 // pred_check_branch
        %4954 = sbr.rel (%p4952) target = $region228
      $region227: #{tpu_custom_call.1} parent=5 // pred_region
        %s4955 = ssub.s32 %s94, 2
      $region228: #{tpu_custom_call.1} parent=5 // pred_fallthru
        _
    $region6: #{tpu_custom_call.1} parent=1 // loop_footer
      %s98 = sadd.s32 1, %s94
    $region7: #{tpu_custom_call.1} parent=1 // loop_footer_branch
      %93 = sbr.rel target = $region3
    $region8: #{tpu_custom_call.1} parent=1 // loop_exit
      _
    %4956 = vsyncpa [#allocation4], 1
    %s4957 = scalar_lea.sflag [#allocation4], 1
    %4958 = vsyncpa %s4957, 1
    %4959 = vsyncpa [#allocation7], 1
    %4960 = vsyncpa [#allocation10], 1
    %4961 = vsyncpa [#allocation13], 1
    %s4962 = scalar_lea.sflag [#allocation13], 1
    %4963 = vsyncpa %s4962, 1
    %4964 = vsyncpa [#allocation16], 1
    %s4965 = scalar_lea.sflag [#allocation16], 1
    %4966 = vsyncpa %s4965, 1
    %4967 = vsyncpa [#allocation19], 1
    %s4968 = scalar_lea.sflag [#allocation19], 1
    %4969 = vsyncpa %s4968, 1
    %4970 = vsyncpa [#allocation5], 1
    %s4971 = scalar_lea.sflag [#allocation5], 1
    %4972 = vsyncpa %s4971, 1

</llo_original>
